<compile_context>
chip_gen: v5e
topology: v5e:2x2
jax: 0.10.0
libtpu: 0.0.40
codegen_flags: <defaults>
</compile_context>

<pallas_src>
import functools

import jax
import jax.numpy as jnp
from jax.experimental import pallas as pl
from jax.experimental.pallas import tpu as pltpu


def _ferb_kernel(x_ref, w_ref, b_ref, o_ref, pad_ref, *, k, compute_dtype):
    """Fused FERB forward for one batch image (NHWC).

    x_ref   : (1, H, W, C)             input block (f32)
    w_ref   : (8, C, k*C)              8 conv weights, taps packed on the MXU
                                       output axis: w_ref[i][cin, t*C + cout]
    b_ref   : (8, 1, C)                8 conv biases (f32)
    o_ref   : (1, H, W, C)             output block (also parks residual_0)
    pad_ref : (H+2*pad, W+2*off, k*C)  shared zero-halo scratch for the per-tap
                                       matmul results (z-space, f32)
    """
    _, H, W, C = o_ref.shape
    HW = H * W
    KC = k * C
    pad = k // 2
    # Body offset along W rounded to a sublane multiple -> unmasked body store.
    off = ((pad + 7) // 8) * 8
    f32 = jnp.float32

    # Zero the scratch once per grid step (halos must be 0 == zero-padded
    # input contribution; the body is overwritten by every conv).  Re-zeroing
    # every step keeps per-core scratch valid under megacore grid sharding.
    pad_ref[...] = jnp.zeros_like(pad_ref)

    def conv(a, idx, axis, relu):
        # One fused MXU matmul over all k taps (N = k*C), then shift-and-add
        # the per-tap 64-lane result chunks along `axis`.
        z = jnp.dot(a.reshape(HW, C).astype(compute_dtype), w_ref[idx],
                    preferred_element_type=f32)                 # (HW, k*C)
        pad_ref[pad:pad + H, off:off + W, :] = z.reshape(H, W, KC)
        acc = None
        for t in range(k):                                      # static unroll
            if axis == 2:
                # (1, k) conv: taps shift along W (sublane axis).
                chunk = pad_ref[pad:pad + H,
                                off - pad + t:off - pad + t + W,
                                t * C:(t + 1) * C]
            else:
                # (k, 1) conv: taps shift along H (outer axis) -- free offsets.
                chunk = pad_ref[t:t + H, off:off + W, t * C:(t + 1) * C]
            acc = chunk if acc is None else acc + chunk
        acc = acc + b_ref[idx]                                  # (1,C) bcast
        if relu:
            acc = jnp.maximum(acc, 0.0)
        return acc                                              # (H, W, C) f32

    # ---- block 0: Conv(1,k) -> Conv(k,1) -> ReLU -> Conv(1,k) -> Conv(k,1) -> ReLU
    a = conv(x_ref[0], 0, axis=2, relu=False)
    a = conv(a,        1, axis=1, relu=True)
    a = conv(a,        2, axis=2, relu=False)
    a = conv(a,        3, axis=1, relu=True)
    o_ref[0] = a + x_ref[0]                    # residual_0, parked in out block

    # ---- block 1 ----
    a = conv(o_ref[0], 4, axis=2, relu=False)
    a = conv(a,        5, axis=1, relu=True)
    a = conv(a,        6, axis=2, relu=False)
    a = conv(a,        7, axis=1, relu=True)
    o_ref[0] = a + o_ref[0] + x_ref[0]         # residual_1 = blk1 + residual_0 + x


def ferb_forward(x_nchw, weights, biases, *, k_size,
                 compute_dtype=jnp.float32):
    """x_nchw: (N, 64, H, W) f32; weights: (8, k, Cin, Cout) tap-major
    (W[i, t, cin, cout] == torch_conv_i.weight[cout, cin, <tap t along its
    non-unit axis>]); biases: (8, 64).  Returns (N, 64, H, W) f32."""
    N, C, H, W = x_nchw.shape
    assert C == 64, "FERB residual adds require in_channels == 64"
    k = k_size
    assert k % 2 == 1, "'same' padding in the reference module needs odd k"
    pad = k // 2
    off = ((pad + 7) // 8) * 8

    x = jnp.transpose(x_nchw, (0, 2, 3, 1))            # NCHW -> NHWC (once)
    # Pack taps along the MXU output axis: (8, k, Cin, Cout) -> (8, Cin, k*Cout)
    w = jnp.transpose(weights, (0, 2, 1, 3)).reshape(8, C, k * C)
    w = w.astype(compute_dtype)                        # bf16 on v6e/v7x if desired
    b = biases.reshape(8, 1, C).astype(jnp.float32)

    kernel = functools.partial(_ferb_kernel, k=k, compute_dtype=compute_dtype)
    out = pl.pallas_call(
        kernel,
        out_shape=jax.ShapeDtypeStruct((N, H, W, C), jnp.float32),
        grid=(N,),
        in_specs=[
            pl.BlockSpec((1, H, W, C), lambda n: (n, 0, 0, 0)),
            pl.BlockSpec((8, C, k * C), lambda n: (0, 0, 0)),   # constant -> one DMA
            pl.BlockSpec((8, 1, C), lambda n: (0, 0, 0)),
        ],
        out_specs=pl.BlockSpec((1, H, W, C), lambda n: (n, 0, 0, 0)),
        scratch_shapes=[
            pltpu.VMEM((H + 2 * pad, W + 2 * off, k * C), jnp.float32),
        ],
        compiler_params=pltpu.CompilerParams(
            dimension_semantics=("parallel",),
            vmem_limit_bytes=32 * 1024 * 1024,
        ),
    )(x, w, b)
    return jnp.transpose(out, (0, 3, 1, 2))            # NHWC -> NCHW (once)


# -----------------------------------------------------------------------------
# Pure-JAX reference (same weight convention) for correctness checking.
# -----------------------------------------------------------------------------
def _conv1d_ref(x, w, b, axis):
    k = w.shape[0]
    pad = k // 2
    pads = [(0, 0)] * 4
    pads[axis] = (pad, pad)
    xp = jnp.pad(x, pads)
    L = x.shape[axis]
    out = None
    for t in range(k):
        sl = [slice(None)] * 4
        sl[axis] = slice(t, t + L)
        d = jnp.einsum("nhwc,cd->nhwd", xp[tuple(sl)], w[t])
        out = d if out is None else out + d
    return out + b.reshape(1, 1, 1, -1)


def ferb_reference(x_nchw, weights, biases, *, k_size):
    x = jnp.transpose(x_nchw, (0, 2, 3, 1))

    def block(a, i0):
        a = _conv1d_ref(a, weights[i0 + 0], biases[i0 + 0], axis=2)
        a = jax.nn.relu(_conv1d_ref(a, weights[i0 + 1], biases[i0 + 1], axis=1))
        a = _conv1d_ref(a, weights[i0 + 2], biases[i0 + 2], axis=2)
        a = jax.nn.relu(_conv1d_ref(a, weights[i0 + 3], biases[i0 + 3], axis=1))
        return a

    r0 = block(x, 0) + x
    r1 = block(r0, 4) + r0 + x
    return jnp.transpose(r1, (0, 3, 1, 2))


if __name__ == "__main__":
    # The PyTorch residual adds require in_channels == 64.
    N, C, H, W = 2, 64, 16, 16
    K_SIZE = 3

    key = jax.random.PRNGKey(0)
    kx, kw, kb = jax.random.split(key, 3)
    x = jax.random.normal(kx, (N, C, H, W), jnp.float32)
    weights = jax.random.normal(kw, (8, K_SIZE, C, C), jnp.float32) * 0.05
    biases = jax.random.normal(kb, (8, C), jnp.float32) * 0.01

    fwd = jax.jit(functools.partial(ferb_forward, k_size=K_SIZE))
    out = jax.block_until_ready(fwd(x, weights, biases))
    assert out.shape == (N, C, H, W) and out.dtype == jnp.float32

    ref = jax.block_until_ready(
        jax.jit(functools.partial(ferb_reference, k_size=K_SIZE))(
            x, weights, biases))
    max_err = float(jnp.max(jnp.abs(out - ref)))
    assert jnp.allclose(out, ref, atol=1e-3, rtol=1e-3), max_err

    print("KERNEL_OK")
</pallas_src>

<mosaic_0001>
module attributes {stable_mosaic.version = 11 : i64} {
  func.func @_ferb_kernel(%arg0: i32, %arg1: memref<1x16x16x64xf32, #tpu.memory_space<vmem>>, %arg2: memref<8x64x192xf32, #tpu.memory_space<vmem>>, %arg3: memref<8x1x64xf32, #tpu.memory_space<vmem>>, %arg4: memref<1x16x16x64xf32, #tpu.memory_space<vmem>>, %arg5: memref<18x32x192xf32, #tpu.memory_space<vmem>>) attributes {dimension_semantics = [#tpu.dimension_semantics<parallel>], iteration_bounds = array<i64: 2>, scalar_prefetch = 0 : i64, scratch_operands = 1 : i64, tpu.core_type = #tpu.core_type<tc>, window_params = [{transform_indices = @transform_0, window_bounds = array<i64: 1, 16, 16, 64>}, {pipeline_mode = #tpu.pipeline_mode<synchronous>, transform_indices = @transform_1, window_bounds = array<i64: 8, 64, 192>}, {pipeline_mode = #tpu.pipeline_mode<synchronous>, transform_indices = @transform_2, window_bounds = array<i64: 8, 1, 64>}, {transform_indices = @transform_3, window_bounds = array<i64: 1, 16, 16, 64>}]} {
    %cst = arith.constant 0.000000e+00 : f32
    %0 = vector.broadcast %cst : f32 to vector<18x32x192xf32>
    %c0 = arith.constant 0 : index
    %c0_0 = arith.constant 0 : index
    %c0_1 = arith.constant 0 : index
    %1 = vector.load %arg5[%c0, %c0_0, %c0_1] : memref<18x32x192xf32, #tpu.memory_space<vmem>>, vector<18x32x192xf32>
    tpu.vector_store %arg5[%c0, %c0_0, %c0_1], %0 {strides = array<i32>} : memref<18x32x192xf32, #tpu.memory_space<vmem>>, vector<18x32x192xf32>,
    %c0_2 = arith.constant 0 : index
    %c0_3 = arith.constant 0 : index
    %c0_4 = arith.constant 0 : index
    %c0_5 = arith.constant 0 : index
    %2 = vector.load %arg1[%c0_2, %c0_3, %c0_4, %c0_5] : memref<1x16x16x64xf32, #tpu.memory_space<vmem>>, vector<1x16x16x64xf32>
    %3 = vector.shape_cast %2 : vector<1x16x16x64xf32> to vector<16x16x64xf32>
    %4 = vector.shape_cast %3 : vector<16x16x64xf32> to vector<256x64xf32>
    %c0_6 = arith.constant 0 : index
    %c0_7 = arith.constant 0 : index
    %c0_8 = arith.constant 0 : index
    %5 = vector.load %arg2[%c0_6, %c0_7, %c0_8] : memref<8x64x192xf32, #tpu.memory_space<vmem>>, vector<1x64x192xf32>
    %6 = vector.shape_cast %5 : vector<1x64x192xf32> to vector<64x192xf32>
    %cst_9 = arith.constant dense<0.000000e+00> : vector<256x192xf32>
    %7 = tpu.matmul %4, %6, %cst_9 {dimension_numbers = #tpu.dot_dimension_numbers<[1], [0], [0], [1], [0, 0, 1, 1], [], []>} : vector<256x64xf32>, vector<64x192xf32>, vector<256x192xf32> -> vector<256x192xf32>
    %8 = vector.shape_cast %7 : vector<256x192xf32> to vector<16x16x192xf32>
    %c1 = arith.constant 1 : index
    %c8 = arith.constant 8 : index
    %c0_10 = arith.constant 0 : index
    %9 = vector.load %arg5[%c1, %c8, %c0_10] : memref<18x32x192xf32, #tpu.memory_space<vmem>>, vector<16x16x192xf32>
    tpu.vector_store %arg5[%c1, %c8, %c0_10], %8 {strides = array<i32>} : memref<18x32x192xf32, #tpu.memory_space<vmem>>, vector<16x16x192xf32>,
    %c1_11 = arith.constant 1 : index
    %c7 = arith.constant 7 : index
    %c0_12 = arith.constant 0 : index
    %10 = vector.load %arg5[%c1_11, %c7, %c0_12] : memref<18x32x192xf32, #tpu.memory_space<vmem>>, vector<16x16x64xf32>
    %c1_13 = arith.constant 1 : index
    %c8_14 = arith.constant 8 : index
    %c64 = arith.constant 64 : index
    %11 = vector.load %arg5[%c1_13, %c8_14, %c64] : memref<18x32x192xf32, #tpu.memory_space<vmem>>, vector<16x16x64xf32>
    %12 = arith.addf %10, %11 : vector<16x16x64xf32>
    %c1_15 = arith.constant 1 : index
    %c9 = arith.constant 9 : index
    %c128 = arith.constant 128 : index
    %13 = vector.load %arg5[%c1_15, %c9, %c128] : memref<18x32x192xf32, #tpu.memory_space<vmem>>, vector<16x16x64xf32>
    %14 = arith.addf %12, %13 : vector<16x16x64xf32>
    %c0_16 = arith.constant 0 : index
    %c0_17 = arith.constant 0 : index
    %c0_18 = arith.constant 0 : index
    %15 = vector.load %arg3[%c0_16, %c0_17, %c0_18] : memref<8x1x64xf32, #tpu.memory_space<vmem>>, vector<1x1x64xf32>
    %16 = vector.shape_cast %15 : vector<1x1x64xf32> to vector<1x64xf32>
    %17 = vector.shape_cast %16 : vector<1x64xf32> to vector<1x1x64xf32>
    %18 = vector.broadcast %17 : vector<1x1x64xf32> to vector<16x16x64xf32>
    %19 = arith.addf %14, %18 : vector<16x16x64xf32>
    %20 = vector.shape_cast %19 : vector<16x16x64xf32> to vector<256x64xf32>
    %c1_19 = arith.constant 1 : index
    %c0_20 = arith.constant 0 : index
    %c0_21 = arith.constant 0 : index
    %21 = vector.load %arg2[%c1_19, %c0_20, %c0_21] : memref<8x64x192xf32, #tpu.memory_space<vmem>>, vector<1x64x192xf32>
    %22 = vector.shape_cast %21 : vector<1x64x192xf32> to vector<64x192xf32>
    %cst_22 = arith.constant dense<0.000000e+00> : vector<256x192xf32>
    %23 = tpu.matmul %20, %22, %cst_22 {dimension_numbers = #tpu.dot_dimension_numbers<[1], [0], [0], [1], [0, 0, 1, 1], [], []>} : vector<256x64xf32>, vector<64x192xf32>, vector<256x192xf32> -> vector<256x192xf32>
    %24 = vector.shape_cast %23 : vector<256x192xf32> to vector<16x16x192xf32>
    %c1_23 = arith.constant 1 : index
    %c8_24 = arith.constant 8 : index
    %c0_25 = arith.constant 0 : index
    %25 = vector.load %arg5[%c1_23, %c8_24, %c0_25] : memref<18x32x192xf32, #tpu.memory_space<vmem>>, vector<16x16x192xf32>
    tpu.vector_store %arg5[%c1_23, %c8_24, %c0_25], %24 {strides = array<i32>} : memref<18x32x192xf32, #tpu.memory_space<vmem>>, vector<16x16x192xf32>,
    %c0_26 = arith.constant 0 : index
    %c8_27 = arith.constant 8 : index
    %c0_28 = arith.constant 0 : index
    %26 = vector.load %arg5[%c0_26, %c8_27, %c0_28] : memref<18x32x192xf32, #tpu.memory_space<vmem>>, vector<16x16x64xf32>
    %c1_29 = arith.constant 1 : index
    %c8_30 = arith.constant 8 : index
    %c64_31 = arith.constant 64 : index
    %27 = vector.load %arg5[%c1_29, %c8_30, %c64_31] : memref<18x32x192xf32, #tpu.memory_space<vmem>>, vector<16x16x64xf32>
    %28 = arith.addf %26, %27 : vector<16x16x64xf32>
    %c2 = arith.constant 2 : index
    %c8_32 = arith.constant 8 : index
    %c128_33 = arith.constant 128 : index
    %29 = vector.load %arg5[%c2, %c8_32, %c128_33] : memref<18x32x192xf32, #tpu.memory_space<vmem>>, vector<16x16x64xf32>
    %30 = arith.addf %28, %29 : vector<16x16x64xf32>
    %c1_34 = arith.constant 1 : index
    %c0_35 = arith.constant 0 : index
    %c0_36 = arith.constant 0 : index
    %31 = vector.load %arg3[%c1_34, %c0_35, %c0_36] : memref<8x1x64xf32, #tpu.memory_space<vmem>>, vector<1x1x64xf32>
    %32 = vector.shape_cast %31 : vector<1x1x64xf32> to vector<1x64xf32>
    %33 = vector.shape_cast %32 : vector<1x64xf32> to vector<1x1x64xf32>
    %34 = vector.broadcast %33 : vector<1x1x64xf32> to vector<16x16x64xf32>
    %35 = arith.addf %30, %34 : vector<16x16x64xf32>
    %cst_37 = arith.constant 0.000000e+00 : f32
    %36 = vector.broadcast %cst_37 : f32 to vector<16x16x64xf32>
    %37 = arith.maximumf %35, %36 : vector<16x16x64xf32>
    %38 = vector.shape_cast %37 : vector<16x16x64xf32> to vector<256x64xf32>
    %c2_38 = arith.constant 2 : index
    %c0_39 = arith.constant 0 : index
    %c0_40 = arith.constant 0 : index
    %39 = vector.load %arg2[%c2_38, %c0_39, %c0_40] : memref<8x64x192xf32, #tpu.memory_space<vmem>>, vector<1x64x192xf32>
    %40 = vector.shape_cast %39 : vector<1x64x192xf32> to vector<64x192xf32>
    %cst_41 = arith.constant dense<0.000000e+00> : vector<256x192xf32>
    %41 = tpu.matmul %38, %40, %cst_41 {dimension_numbers = #tpu.dot_dimension_numbers<[1], [0], [0], [1], [0, 0, 1, 1], [], []>} : vector<256x64xf32>, vector<64x192xf32>, vector<256x192xf32> -> vector<256x192xf32>
    %42 = vector.shape_cast %41 : vector<256x192xf32> to vector<16x16x192xf32>
    %c1_42 = arith.constant 1 : index
    %c8_43 = arith.constant 8 : index
    %c0_44 = arith.constant 0 : index
    %43 = vector.load %arg5[%c1_42, %c8_43, %c0_44] : memref<18x32x192xf32, #tpu.memory_space<vmem>>, vector<16x16x192xf32>
    tpu.vector_store %arg5[%c1_42, %c8_43, %c0_44], %42 {strides = array<i32>} : memref<18x32x192xf32, #tpu.memory_space<vmem>>, vector<16x16x192xf32>,
    %c1_45 = arith.constant 1 : index
    %c7_46 = arith.constant 7 : index
    %c0_47 = arith.constant 0 : index
    %44 = vector.load %arg5[%c1_45, %c7_46, %c0_47] : memref<18x32x192xf32, #tpu.memory_space<vmem>>, vector<16x16x64xf32>
    %c1_48 = arith.constant 1 : index
    %c8_49 = arith.constant 8 : index
    %c64_50 = arith.constant 64 : index
    %45 = vector.load %arg5[%c1_48, %c8_49, %c64_50] : memref<18x32x192xf32, #tpu.memory_space<vmem>>, vector<16x16x64xf32>
    %46 = arith.addf %44, %45 : vector<16x16x64xf32>
    %c1_51 = arith.constant 1 : index
    %c9_52 = arith.constant 9 : index
    %c128_53 = arith.constant 128 : index
    %47 = vector.load %arg5[%c1_51, %c9_52, %c128_53] : memref<18x32x192xf32, #tpu.memory_space<vmem>>, vector<16x16x64xf32>
    %48 = arith.addf %46, %47 : vector<16x16x64xf32>
    %c2_54 = arith.constant 2 : index
    %c0_55 = arith.constant 0 : index
    %c0_56 = arith.constant 0 : index
    %49 = vector.load %arg3[%c2_54, %c0_55, %c0_56] : memref<8x1x64xf32, #tpu.memory_space<vmem>>, vector<1x1x64xf32>
    %50 = vector.shape_cast %49 : vector<1x1x64xf32> to vector<1x64xf32>
    %51 = vector.shape_cast %50 : vector<1x64xf32> to vector<1x1x64xf32>
    %52 = vector.broadcast %51 : vector<1x1x64xf32> to vector<16x16x64xf32>
    %53 = arith.addf %48, %52 : vector<16x16x64xf32>
    %54 = vector.shape_cast %53 : vector<16x16x64xf32> to vector<256x64xf32>
    %c3 = arith.constant 3 : index
    %c0_57 = arith.constant 0 : index
    %c0_58 = arith.constant 0 : index
    %55 = vector.load %arg2[%c3, %c0_57, %c0_58] : memref<8x64x192xf32, #tpu.memory_space<vmem>>, vector<1x64x192xf32>
    %56 = vector.shape_cast %55 : vector<1x64x192xf32> to vector<64x192xf32>
    %cst_59 = arith.constant dense<0.000000e+00> : vector<256x192xf32>
    %57 = tpu.matmul %54, %56, %cst_59 {dimension_numbers = #tpu.dot_dimension_numbers<[1], [0], [0], [1], [0, 0, 1, 1], [], []>} : vector<256x64xf32>, vector<64x192xf32>, vector<256x192xf32> -> vector<256x192xf32>
    %58 = vector.shape_cast %57 : vector<256x192xf32> to vector<16x16x192xf32>
    %c1_60 = arith.constant 1 : index
    %c8_61 = arith.constant 8 : index
    %c0_62 = arith.constant 0 : index
    %59 = vector.load %arg5[%c1_60, %c8_61, %c0_62] : memref<18x32x192xf32, #tpu.memory_space<vmem>>, vector<16x16x192xf32>
    tpu.vector_store %arg5[%c1_60, %c8_61, %c0_62], %58 {strides = array<i32>} : memref<18x32x192xf32, #tpu.memory_space<vmem>>, vector<16x16x192xf32>,
    %c0_63 = arith.constant 0 : index
    %c8_64 = arith.constant 8 : index
    %c0_65 = arith.constant 0 : index
    %60 = vector.load %arg5[%c0_63, %c8_64, %c0_65] : memref<18x32x192xf32, #tpu.memory_space<vmem>>, vector<16x16x64xf32>
    %c1_66 = arith.constant 1 : index
    %c8_67 = arith.constant 8 : index
    %c64_68 = arith.constant 64 : index
    %61 = vector.load %arg5[%c1_66, %c8_67, %c64_68] : memref<18x32x192xf32, #tpu.memory_space<vmem>>, vector<16x16x64xf32>
    %62 = arith.addf %60, %61 : vector<16x16x64xf32>
    %c2_69 = arith.constant 2 : index
    %c8_70 = arith.constant 8 : index
    %c128_71 = arith.constant 128 : index
    %63 = vector.load %arg5[%c2_69, %c8_70, %c128_71] : memref<18x32x192xf32, #tpu.memory_space<vmem>>, vector<16x16x64xf32>
    %64 = arith.addf %62, %63 : vector<16x16x64xf32>
    %c3_72 = arith.constant 3 : index
    %c0_73 = arith.constant 0 : index
    %c0_74 = arith.constant 0 : index
    %65 = vector.load %arg3[%c3_72, %c0_73, %c0_74] : memref<8x1x64xf32, #tpu.memory_space<vmem>>, vector<1x1x64xf32>
    %66 = vector.shape_cast %65 : vector<1x1x64xf32> to vector<1x64xf32>
    %67 = vector.shape_cast %66 : vector<1x64xf32> to vector<1x1x64xf32>
    %68 = vector.broadcast %67 : vector<1x1x64xf32> to vector<16x16x64xf32>
    %69 = arith.addf %64, %68 : vector<16x16x64xf32>
    %cst_75 = arith.constant 0.000000e+00 : f32
    %70 = vector.broadcast %cst_75 : f32 to vector<16x16x64xf32>
    %71 = arith.maximumf %69, %70 : vector<16x16x64xf32>
    %c0_76 = arith.constant 0 : index
    %c0_77 = arith.constant 0 : index
    %c0_78 = arith.constant 0 : index
    %c0_79 = arith.constant 0 : index
    %72 = vector.load %arg1[%c0_76, %c0_77, %c0_78, %c0_79] : memref<1x16x16x64xf32, #tpu.memory_space<vmem>>, vector<1x16x16x64xf32>
    %73 = vector.shape_cast %72 : vector<1x16x16x64xf32> to vector<16x16x64xf32>
    %74 = arith.addf %71, %73 : vector<16x16x64xf32>
    %c0_80 = arith.constant 0 : index
    %c0_81 = arith.constant 0 : index
    %c0_82 = arith.constant 0 : index
    %c0_83 = arith.constant 0 : index
    %75 = vector.load %arg4[%c0_80, %c0_81, %c0_82, %c0_83] : memref<1x16x16x64xf32, #tpu.memory_space<vmem>>, vector<1x16x16x64xf32>
    %76 = vector.shape_cast %75 : vector<1x16x16x64xf32> to vector<16x16x64xf32>
    %77 = vector.shape_cast %74 : vector<16x16x64xf32> to vector<1x16x16x64xf32>
    tpu.vector_store %arg4[%c0_80, %c0_81, %c0_82, %c0_83], %77 {strides = array<i32>} : memref<1x16x16x64xf32, #tpu.memory_space<vmem>>, vector<1x16x16x64xf32>,
    %c0_84 = arith.constant 0 : index
    %c0_85 = arith.constant 0 : index
    %c0_86 = arith.constant 0 : index
    %c0_87 = arith.constant 0 : index
    %78 = vector.load %arg4[%c0_84, %c0_85, %c0_86, %c0_87] : memref<1x16x16x64xf32, #tpu.memory_space<vmem>>, vector<1x16x16x64xf32>
    %79 = vector.shape_cast %78 : vector<1x16x16x64xf32> to vector<16x16x64xf32>
    %80 = vector.shape_cast %79 : vector<16x16x64xf32> to vector<256x64xf32>
    %c4 = arith.constant 4 : index
    %c0_88 = arith.constant 0 : index
    %c0_89 = arith.constant 0 : index
    %81 = vector.load %arg2[%c4, %c0_88, %c0_89] : memref<8x64x192xf32, #tpu.memory_space<vmem>>, vector<1x64x192xf32>
    %82 = vector.shape_cast %81 : vector<1x64x192xf32> to vector<64x192xf32>
    %cst_90 = arith.constant dense<0.000000e+00> : vector<256x192xf32>
    %83 = tpu.matmul %80, %82, %cst_90 {dimension_numbers = #tpu.dot_dimension_numbers<[1], [0], [0], [1], [0, 0, 1, 1], [], []>} : vector<256x64xf32>, vector<64x192xf32>, vector<256x192xf32> -> vector<256x192xf32>
    %84 = vector.shape_cast %83 : vector<256x192xf32> to vector<16x16x192xf32>
    %c1_91 = arith.constant 1 : index
    %c8_92 = arith.constant 8 : index
    %c0_93 = arith.constant 0 : index
    %85 = vector.load %arg5[%c1_91, %c8_92, %c0_93] : memref<18x32x192xf32, #tpu.memory_space<vmem>>, vector<16x16x192xf32>
    tpu.vector_store %arg5[%c1_91, %c8_92, %c0_93], %84 {strides = array<i32>} : memref<18x32x192xf32, #tpu.memory_space<vmem>>, vector<16x16x192xf32>,
    %c1_94 = arith.constant 1 : index
    %c7_95 = arith.constant 7 : index
    %c0_96 = arith.constant 0 : index
    %86 = vector.load %arg5[%c1_94, %c7_95, %c0_96] : memref<18x32x192xf32, #tpu.memory_space<vmem>>, vector<16x16x64xf32>
    %c1_97 = arith.constant 1 : index
    %c8_98 = arith.constant 8 : index
    %c64_99 = arith.constant 64 : index
    %87 = vector.load %arg5[%c1_97, %c8_98, %c64_99] : memref<18x32x192xf32, #tpu.memory_space<vmem>>, vector<16x16x64xf32>
    %88 = arith.addf %86, %87 : vector<16x16x64xf32>
    %c1_100 = arith.constant 1 : index
    %c9_101 = arith.constant 9 : index
    %c128_102 = arith.constant 128 : index
    %89 = vector.load %arg5[%c1_100, %c9_101, %c128_102] : memref<18x32x192xf32, #tpu.memory_space<vmem>>, vector<16x16x64xf32>
    %90 = arith.addf %88, %89 : vector<16x16x64xf32>
    %c4_103 = arith.constant 4 : index
    %c0_104 = arith.constant 0 : index
    %c0_105 = arith.constant 0 : index
    %91 = vector.load %arg3[%c4_103, %c0_104, %c0_105] : memref<8x1x64xf32, #tpu.memory_space<vmem>>, vector<1x1x64xf32>
    %92 = vector.shape_cast %91 : vector<1x1x64xf32> to vector<1x64xf32>
    %93 = vector.shape_cast %92 : vector<1x64xf32> to vector<1x1x64xf32>
    %94 = vector.broadcast %93 : vector<1x1x64xf32> to vector<16x16x64xf32>
    %95 = arith.addf %90, %94 : vector<16x16x64xf32>
    %96 = vector.shape_cast %95 : vector<16x16x64xf32> to vector<256x64xf32>
    %c5 = arith.constant 5 : index
    %c0_106 = arith.constant 0 : index
    %c0_107 = arith.constant 0 : index
    %97 = vector.load %arg2[%c5, %c0_106, %c0_107] : memref<8x64x192xf32, #tpu.memory_space<vmem>>, vector<1x64x192xf32>
    %98 = vector.shape_cast %97 : vector<1x64x192xf32> to vector<64x192xf32>
    %cst_108 = arith.constant dense<0.000000e+00> : vector<256x192xf32>
    %99 = tpu.matmul %96, %98, %cst_108 {dimension_numbers = #tpu.dot_dimension_numbers<[1], [0], [0], [1], [0, 0, 1, 1], [], []>} : vector<256x64xf32>, vector<64x192xf32>, vector<256x192xf32> -> vector<256x192xf32>
    %100 = vector.shape_cast %99 : vector<256x192xf32> to vector<16x16x192xf32>
    %c1_109 = arith.constant 1 : index
    %c8_110 = arith.constant 8 : index
    %c0_111 = arith.constant 0 : index
    %101 = vector.load %arg5[%c1_109, %c8_110, %c0_111] : memref<18x32x192xf32, #tpu.memory_space<vmem>>, vector<16x16x192xf32>
    tpu.vector_store %arg5[%c1_109, %c8_110, %c0_111], %100 {strides = array<i32>} : memref<18x32x192xf32, #tpu.memory_space<vmem>>, vector<16x16x192xf32>,
    %c0_112 = arith.constant 0 : index
    %c8_113 = arith.constant 8 : index
    %c0_114 = arith.constant 0 : index
    %102 = vector.load %arg5[%c0_112, %c8_113, %c0_114] : memref<18x32x192xf32, #tpu.memory_space<vmem>>, vector<16x16x64xf32>
    %c1_115 = arith.constant 1 : index
    %c8_116 = arith.constant 8 : index
    %c64_117 = arith.constant 64 : index
    %103 = vector.load %arg5[%c1_115, %c8_116, %c64_117] : memref<18x32x192xf32, #tpu.memory_space<vmem>>, vector<16x16x64xf32>
    %104 = arith.addf %102, %103 : vector<16x16x64xf32>
    %c2_118 = arith.constant 2 : index
    %c8_119 = arith.constant 8 : index
    %c128_120 = arith.constant 128 : index
    %105 = vector.load %arg5[%c2_118, %c8_119, %c128_120] : memref<18x32x192xf32, #tpu.memory_space<vmem>>, vector<16x16x64xf32>
    %106 = arith.addf %104, %105 : vector<16x16x64xf32>
    %c5_121 = arith.constant 5 : index
    %c0_122 = arith.constant 0 : index
    %c0_123 = arith.constant 0 : index
    %107 = vector.load %arg3[%c5_121, %c0_122, %c0_123] : memref<8x1x64xf32, #tpu.memory_space<vmem>>, vector<1x1x64xf32>
    %108 = vector.shape_cast %107 : vector<1x1x64xf32> to vector<1x64xf32>
    %109 = vector.shape_cast %108 : vector<1x64xf32> to vector<1x1x64xf32>
    %110 = vector.broadcast %109 : vector<1x1x64xf32> to vector<16x16x64xf32>
    %111 = arith.addf %106, %110 : vector<16x16x64xf32>
    %cst_124 = arith.constant 0.000000e+00 : f32
    %112 = vector.broadcast %cst_124 : f32 to vector<16x16x64xf32>
    %113 = arith.maximumf %111, %112 : vector<16x16x64xf32>
    %114 = vector.shape_cast %113 : vector<16x16x64xf32> to vector<256x64xf32>
    %c6 = arith.constant 6 : index
    %c0_125 = arith.constant 0 : index
    %c0_126 = arith.constant 0 : index
    %115 = vector.load %arg2[%c6, %c0_125, %c0_126] : memref<8x64x192xf32, #tpu.memory_space<vmem>>, vector<1x64x192xf32>
    %116 = vector.shape_cast %115 : vector<1x64x192xf32> to vector<64x192xf32>
    %cst_127 = arith.constant dense<0.000000e+00> : vector<256x192xf32>
    %117 = tpu.matmul %114, %116, %cst_127 {dimension_numbers = #tpu.dot_dimension_numbers<[1], [0], [0], [1], [0, 0, 1, 1], [], []>} : vector<256x64xf32>, vector<64x192xf32>, vector<256x192xf32> -> vector<256x192xf32>
    %118 = vector.shape_cast %117 : vector<256x192xf32> to vector<16x16x192xf32>
    %c1_128 = arith.constant 1 : index
    %c8_129 = arith.constant 8 : index
    %c0_130 = arith.constant 0 : index
    %119 = vector.load %arg5[%c1_128, %c8_129, %c0_130] : memref<18x32x192xf32, #tpu.memory_space<vmem>>, vector<16x16x192xf32>
    tpu.vector_store %arg5[%c1_128, %c8_129, %c0_130], %118 {strides = array<i32>} : memref<18x32x192xf32, #tpu.memory_space<vmem>>, vector<16x16x192xf32>,
    %c1_131 = arith.constant 1 : index
    %c7_132 = arith.constant 7 : index
    %c0_133 = arith.constant 0 : index
    %120 = vector.load %arg5[%c1_131, %c7_132, %c0_133] : memref<18x32x192xf32, #tpu.memory_space<vmem>>, vector<16x16x64xf32>
    %c1_134 = arith.constant 1 : index
    %c8_135 = arith.constant 8 : index
    %c64_136 = arith.constant 64 : index
    %121 = vector.load %arg5[%c1_134, %c8_135, %c64_136] : memref<18x32x192xf32, #tpu.memory_space<vmem>>, vector<16x16x64xf32>
    %122 = arith.addf %120, %121 : vector<16x16x64xf32>
    %c1_137 = arith.constant 1 : index
    %c9_138 = arith.constant 9 : index
    %c128_139 = arith.constant 128 : index
    %123 = vector.load %arg5[%c1_137, %c9_138, %c128_139] : memref<18x32x192xf32, #tpu.memory_space<vmem>>, vector<16x16x64xf32>
    %124 = arith.addf %122, %123 : vector<16x16x64xf32>
    %c6_140 = arith.constant 6 : index
    %c0_141 = arith.constant 0 : index
    %c0_142 = arith.constant 0 : index
    %125 = vector.load %arg3[%c6_140, %c0_141, %c0_142] : memref<8x1x64xf32, #tpu.memory_space<vmem>>, vector<1x1x64xf32>
    %126 = vector.shape_cast %125 : vector<1x1x64xf32> to vector<1x64xf32>
    %127 = vector.shape_cast %126 : vector<1x64xf32> to vector<1x1x64xf32>
    %128 = vector.broadcast %127 : vector<1x1x64xf32> to vector<16x16x64xf32>
    %129 = arith.addf %124, %128 : vector<16x16x64xf32>
    %130 = vector.shape_cast %129 : vector<16x16x64xf32> to vector<256x64xf32>
    %c7_143 = arith.constant 7 : index
    %c0_144 = arith.constant 0 : index
    %c0_145 = arith.constant 0 : index
    %131 = vector.load %arg2[%c7_143, %c0_144, %c0_145] : memref<8x64x192xf32, #tpu.memory_space<vmem>>, vector<1x64x192xf32>
    %132 = vector.shape_cast %131 : vector<1x64x192xf32> to vector<64x192xf32>
    %cst_146 = arith.constant dense<0.000000e+00> : vector<256x192xf32>
    %133 = tpu.matmul %130, %132, %cst_146 {dimension_numbers = #tpu.dot_dimension_numbers<[1], [0], [0], [1], [0, 0, 1, 1], [], []>} : vector<256x64xf32>, vector<64x192xf32>, vector<256x192xf32> -> vector<256x192xf32>
    %134 = vector.shape_cast %133 : vector<256x192xf32> to vector<16x16x192xf32>
    %c1_147 = arith.constant 1 : index
    %c8_148 = arith.constant 8 : index
    %c0_149 = arith.constant 0 : index
    %135 = vector.load %arg5[%c1_147, %c8_148, %c0_149] : memref<18x32x192xf32, #tpu.memory_space<vmem>>, vector<16x16x192xf32>
    tpu.vector_store %arg5[%c1_147, %c8_148, %c0_149], %134 {strides = array<i32>} : memref<18x32x192xf32, #tpu.memory_space<vmem>>, vector<16x16x192xf32>,
    %c0_150 = arith.constant 0 : index
    %c8_151 = arith.constant 8 : index
    %c0_152 = arith.constant 0 : index
    %136 = vector.load %arg5[%c0_150, %c8_151, %c0_152] : memref<18x32x192xf32, #tpu.memory_space<vmem>>, vector<16x16x64xf32>
    %c1_153 = arith.constant 1 : index
    %c8_154 = arith.constant 8 : index
    %c64_155 = arith.constant 64 : index
    %137 = vector.load %arg5[%c1_153, %c8_154, %c64_155] : memref<18x32x192xf32, #tpu.memory_space<vmem>>, vector<16x16x64xf32>
    %138 = arith.addf %136, %137 : vector<16x16x64xf32>
    %c2_156 = arith.constant 2 : index
    %c8_157 = arith.constant 8 : index
    %c128_158 = arith.constant 128 : index
    %139 = vector.load %arg5[%c2_156, %c8_157, %c128_158] : memref<18x32x192xf32, #tpu.memory_space<vmem>>, vector<16x16x64xf32>
    %140 = arith.addf %138, %139 : vector<16x16x64xf32>
    %c7_159 = arith.constant 7 : index
    %c0_160 = arith.constant 0 : index
    %c0_161 = arith.constant 0 : index
    %141 = vector.load %arg3[%c7_159, %c0_160, %c0_161] : memref<8x1x64xf32, #tpu.memory_space<vmem>>, vector<1x1x64xf32>
    %142 = vector.shape_cast %141 : vector<1x1x64xf32> to vector<1x64xf32>
    %143 = vector.shape_cast %142 : vector<1x64xf32> to vector<1x1x64xf32>
    %144 = vector.broadcast %143 : vector<1x1x64xf32> to vector<16x16x64xf32>
    %145 = arith.addf %140, %144 : vector<16x16x64xf32>
    %cst_162 = arith.constant 0.000000e+00 : f32
    %146 = vector.broadcast %cst_162 : f32 to vector<16x16x64xf32>
    %147 = arith.maximumf %145, %146 : vector<16x16x64xf32>
    %c0_163 = arith.constant 0 : index
    %c0_164 = arith.constant 0 : index
    %c0_165 = arith.constant 0 : index
    %c0_166 = arith.constant 0 : index
    %148 = vector.load %arg4[%c0_163, %c0_164, %c0_165, %c0_166] : memref<1x16x16x64xf32, #tpu.memory_space<vmem>>, vector<1x16x16x64xf32>
    %149 = vector.shape_cast %148 : vector<1x16x16x64xf32> to vector<16x16x64xf32>
    %150 = arith.addf %147, %149 : vector<16x16x64xf32>
    %c0_167 = arith.constant 0 : index
    %c0_168 = arith.constant 0 : index
    %c0_169 = arith.constant 0 : index
    %c0_170 = arith.constant 0 : index
    %151 = vector.load %arg1[%c0_167, %c0_168, %c0_169, %c0_170] : memref<1x16x16x64xf32, #tpu.memory_space<vmem>>, vector<1x16x16x64xf32>
    %152 = vector.shape_cast %151 : vector<1x16x16x64xf32> to vector<16x16x64xf32>
    %153 = arith.addf %150, %152 : vector<16x16x64xf32>
    %c0_171 = arith.constant 0 : index
    %c0_172 = arith.constant 0 : index
    %c0_173 = arith.constant 0 : index
    %c0_174 = arith.constant 0 : index
    %154 = vector.load %arg4[%c0_171, %c0_172, %c0_173, %c0_174] : memref<1x16x16x64xf32, #tpu.memory_space<vmem>>, vector<1x16x16x64xf32>
    %155 = vector.shape_cast %154 : vector<1x16x16x64xf32> to vector<16x16x64xf32>
    %156 = vector.shape_cast %153 : vector<16x16x64xf32> to vector<1x16x16x64xf32>
    tpu.vector_store %arg4[%c0_171, %c0_172, %c0_173, %c0_174], %156 {strides = array<i32>} : memref<1x16x16x64xf32, #tpu.memory_space<vmem>>, vector<1x16x16x64xf32>,
    return
  }
  func.func @transform_0(%arg0: i32) -> (i32, i32, i32, i32) {
    %c0_i32 = arith.constant 0 : i32
    %c0_i32_0 = arith.constant 0 : i32
    %c0_i32_1 = arith.constant 0 : i32
    %c0_i32_2 = arith.constant 0 : i32
    return %arg0, %c0_i32, %c0_i32_0, %c0_i32_1 : i32, i32, i32, i32
  }
  func.func @transform_1(%arg0: i32) -> (i32, i32, i32) {
    %c0_i32 = arith.constant 0 : i32
    %c0_i32_0 = arith.constant 0 : i32
    %c0_i32_1 = arith.constant 0 : i32
    %c0_i32_2 = arith.constant 0 : i32
    return %c0_i32, %c0_i32_0, %c0_i32_1 : i32, i32, i32
  }
  func.func @transform_2(%arg0: i32) -> (i32, i32, i32) {
    %c0_i32 = arith.constant 0 : i32
    %c0_i32_0 = arith.constant 0 : i32
    %c0_i32_1 = arith.constant 0 : i32
    %c0_i32_2 = arith.constant 0 : i32
    return %c0_i32, %c0_i32_0, %c0_i32_1 : i32, i32, i32
  }
  func.func @transform_3(%arg0: i32) -> (i32, i32, i32, i32) {
    %c0_i32 = arith.constant 0 : i32
    %c0_i32_0 = arith.constant 0 : i32
    %c0_i32_1 = arith.constant 0 : i32
    %c0_i32_2 = arith.constant 0 : i32
    return %arg0, %c0_i32, %c0_i32_0, %c0_i32_1 : i32, i32, i32, i32
  }
}

</mosaic_0001>

<llo_original>
// kernel: ferb_forward.1
$region0: #{ferb_forward.1}
  #allocation0 [shape = 'u32[]', space=smem, size = 0x4, offset = 0x4, fixed_abs, tag = 'smem constant byte address 0x4 - core index']
  #allocation1 [shape = 'u32[72,128]{1,0:T(1,128)}', space=vmem, size = 0x9000, scoped, tag = 'internal scratch']
  #allocation2 [shape = 'f32[18,32,192]{2,1,0:T(8,128)}', space=vmem, size = 0x90000, scoped, tag = 'scratch operand']
  %s0 = inlined_call_operand.vmem [shape: f32[2,16,16,64], index: 0, kind: input, shape index: {}]
  %s1 = inlined_call_operand.vmem [shape: f32[8,64,192], index: 1, kind: input, shape index: {}]
  %s2 = inlined_call_operand.vmem [shape: f32[8,1,64], index: 2, kind: input, shape index: {}]
  %s3 = inlined_call_operand.hbm [shape: f32[2,16,16,64], index: 3, kind: output, shape index: {}]
  %s4 = sld [smem:[#allocation0]]
  $region45: #{ferb_forward.1} parent=0
    _
  %s6 = ssub.s32 1, %s4
  %s7 = scalar_select 0, %s6, %s4
  $region1: #{ferb_forward.1} parent=0
    #allocation3 [shape = 'u8[262144]{0}', space=vmem, size = 0x40000, scoped, tag = 'output window, operand 0']
    #allocation4 [shape = 's32[2]{0}', space=sflag, size = 0x8, scoped, tag = 'scoped memory for ferb_forward.1']
    %8 = vsyncpa [#allocation4], 0
    %s9 = scalar_lea.sflag [#allocation4], 1
    %10 = vsyncpa %s9, 0
    loop: start=0, step=1, limit=4
    $region2: #{ferb_forward.1} parent=1 // loop_pre_header
      _
    $region3: #{ferb_forward.1} parent=1 // loop_header
      %s12 = sphi 0, %s16
      %p13 = scmp.ge.s32.totalorder %s12, 4
      %s22 = sphi 0, %s24
      %s25 = sphi 0, %s22
      %s26 = sphi 0, %s25
      %s42 = sphi 0, %s26
      %s46 = sphi 0, %s46
      %s48 = sphi 0, %s46
      %s49 = sphi 0, %s48
      %s63 = sphi 0, %s49
      %s67 = sphi 0, %s67
      %s69 = sphi 0, %s67
      %s70 = sphi 0, %s69
      %s84 = sphi 0, %s70
      %s90 = sphi 0, %s92
      %s93 = sphi 0, %s90
      %s94 = sphi 0, %s93
      %s110 = sphi 0, %s94
    $region4: #{ferb_forward.1} parent=1 // loop_header_branch
      %15 = sbr.rel (%p13) target = $region8
    $region5: #{ferb_forward.1} parent=1 // loop_body
      %s17 = ssub.s32 %s12, 1
      %s18 = ssub.s32 %s12, 2
      %s19 = sadd.s32 %s12, 1
      %s20 = ssub.s32 %s12, %s19
      %p21 = scmp.eq.s32.totalorder %s20, 0
      %s23 = sadd.s32 %s22, 1
      %s24 = scalar_select %p21, %s22, %s23
      %p27 = pneg %p21
      %p28 = scmp.eq.s32.totalorder %s12, 1
      %p29 = por %p27, %p28
      %p30 = scmp.ne.s32.totalorder %s22, %s25
      %p31 = scmp.eq.s32.totalorder %s12, 0
      %p32 = por %p30, %p31
      %p33 = scmp.ne.s32.totalorder %s22, %s25
      %p34 = scmp.eq.s32.totalorder %s17, 1
      %p35 = por %p33, %p34
      %p36 = scmp.ne.s32.totalorder %s25, %s26
      %p37 = scmp.eq.s32.totalorder %s17, 0
      %p38 = por %p36, %p37
      %p39 = scmp.ne.s32.totalorder %s25, %s26
      %p40 = scmp.eq.s32.totalorder %s18, 1
      %p41 = por %p39, %p40
      %p43 = scmp.ne.s32.totalorder %s26, %s42
      %p44 = scmp.eq.s32.totalorder %s18, 0
      %p45 = por %p43, %p44
      %s47 = sadd.s32 %s46, 1
      %p50 = scmp.eq.s32.totalorder %s12, 1
      %p51 = scmp.ne.s32.totalorder %s46, %s48
      %p52 = scmp.eq.s32.totalorder %s12, 0
      %p53 = por %p51, %p52
      %p54 = scmp.ne.s32.totalorder %s46, %s48
      %p55 = scmp.eq.s32.totalorder %s17, 1
      %p56 = por %p54, %p55
      %p57 = scmp.ne.s32.totalorder %s48, %s49
      %p58 = scmp.eq.s32.totalorder %s17, 0
      %p59 = por %p57, %p58
      %p60 = scmp.ne.s32.totalorder %s48, %s49
      %p61 = scmp.eq.s32.totalorder %s18, 1
      %p62 = por %p60, %p61
      %p64 = scmp.ne.s32.totalorder %s49, %s63
      %p65 = scmp.eq.s32.totalorder %s18, 0
      %p66 = por %p64, %p65
      %s68 = sadd.s32 %s67, 1
      %p71 = scmp.eq.s32.totalorder %s12, 1
      %p72 = scmp.ne.s32.totalorder %s67, %s69
      %p73 = scmp.eq.s32.totalorder %s12, 0
      %p74 = por %p72, %p73
      %p75 = scmp.ne.s32.totalorder %s67, %s69
      %p76 = scmp.eq.s32.totalorder %s17, 1
      %p77 = por %p75, %p76
      %p78 = scmp.ne.s32.totalorder %s69, %s70
      %p79 = scmp.eq.s32.totalorder %s17, 0
      %p80 = por %p78, %p79
      %p81 = scmp.ne.s32.totalorder %s69, %s70
      %p82 = scmp.eq.s32.totalorder %s18, 1
      %p83 = por %p81, %p82
      %p85 = scmp.ne.s32.totalorder %s70, %s84
      %p86 = scmp.eq.s32.totalorder %s18, 0
      %p87 = por %p85, %p86
      %s88 = ssub.s32 %s12, %s19
      %p89 = scmp.eq.s32.totalorder %s88, 0
      %s91 = sadd.s32 %s90, 1
      %s92 = scalar_select %p89, %s90, %s91
      %p95 = pneg %p89
      %p96 = scmp.eq.s32.totalorder %s12, 1
      %p97 = por %p95, %p96
      %p98 = scmp.ne.s32.totalorder %s90, %s93
      %p99 = scmp.eq.s32.totalorder %s12, 0
      %p100 = por %p98, %p99
      %p101 = scmp.ne.s32.totalorder %s90, %s93
      %p102 = scmp.eq.s32.totalorder %s17, 1
      %p103 = por %p101, %p102
      %p104 = scmp.ne.s32.totalorder %s93, %s94
      %p105 = scmp.eq.s32.totalorder %s17, 0
      %p106 = por %p104, %p105
      %p107 = scmp.ne.s32.totalorder %s93, %s94
      %p108 = scmp.eq.s32.totalorder %s18, 1
      %p109 = por %p107, %p108
      %p111 = scmp.ne.s32.totalorder %s94, %s110
      %p112 = scmp.eq.s32.totalorder %s18, 0
      %p113 = por %p111, %p112
      %p114 = scmp.le.s32.totalorder 1, %s12
      %p115 = scmp.lt.s32.totalorder %s12, 3
      %p116 = pnand %p114, %p115
      %p117 = pneg %p116
      // Predicated region
      $region9: #{ferb_forward.1} parent=5 // pred_check
        _
      $region10: #{ferb_forward.1} parent=5 // pred_check_branch
        %119 = sbr.rel (%p116) target = $region12
      $region11: #{ferb_forward.1} parent=5 // pred_region
        %s120 = ssub.s32 %s12, 1
        // Predicated region
        $region13: #{ferb_forward.1} parent=11 // pred_check
          %p121 = pneg %p59
        $region14: #{ferb_forward.1} parent=11 // pred_check_branch
          %123 = sbr.rel (%p121) target = $region16
        $region15: #{ferb_forward.1} parent=11 // pred_region
          _
        $region16: #{ferb_forward.1} parent=11 // pred_fallthru
          _
        // Predicated region
        $region17: #{ferb_forward.1} parent=11 // pred_check
          %p124 = pneg %p80
        $region18: #{ferb_forward.1} parent=11 // pred_check_branch
          %126 = sbr.rel (%p124) target = $region20
        $region19: #{ferb_forward.1} parent=11 // pred_region
          _
        $region20: #{ferb_forward.1} parent=11 // pred_fallthru
          _
      $region12: #{ferb_forward.1} parent=5 // pred_fallthru
        _
      %p127 = scmp.lt.s32.totalorder %s12, 2
      // Predicated region
      $region21: #{ferb_forward.1} parent=5 // pred_check
        %p128 = pneg %p127
      $region22: #{ferb_forward.1} parent=5 // pred_check_branch
        %130 = sbr.rel (%p128) target = $region24
      $region23: #{ferb_forward.1} parent=5 // pred_region
        // Predicated region
        $region25: #{ferb_forward.1} parent=23 // pred_check
          %p131 = pneg %p32
        $region26: #{ferb_forward.1} parent=23 // pred_check_branch
          %133 = sbr.rel (%p131) target = $region28
        $region27: #{ferb_forward.1} parent=23 // pred_region
          %p134 = scmp.lt.s32.totalorder %s12, 1
          %s135 = scalar_select %p134, %s12, 1
          %s136 = smul.addr %s135, 32
          %s137 = smul.addr %s136, 8
          %s138 = scalar_lea.vmem %s0, %s137
        $region28: #{ferb_forward.1} parent=23 // pred_fallthru
          _
      $region24: #{ferb_forward.1} parent=5 // pred_fallthru
        _
      %p139 = scmp.le.s32.totalorder 1, %s12
      %p140 = scmp.lt.s32.totalorder %s12, 3
      %p141 = pnand %p139, %p140
      %p142 = pneg %p141
      // Predicated region
      $region29: #{ferb_forward.1} parent=5 // pred_check
        _
      $region30: #{ferb_forward.1} parent=5 // pred_check_branch
        %144 = sbr.rel (%p141) target = $region32
      $region31: #{ferb_forward.1} parent=5 // pred_region
        %s145 = ssub.s32 %s12, 1
        %p146 = scmp.lt.s32.totalorder %s17, 1
        %s147 = scalar_select %p146, %s17, 1
        %s148 = smul.addr %s147, 32
        %s149 = smul.addr %s148, 8
        %s150 = scalar_lea.vmem %s0, %s149
        %p151 = pneg %p38
        %p152 = pneg %p35
        %p153 = pneg %p59
        %p154 = pneg %p56
        %p155 = pneg %p80
        %p156 = pneg %p77
        %p157 = pneg %p106
        %p158 = pneg %p103
        %s159 = sand.u32 %s93, 1
        %s160 = scalar_lea.sflag [#allocation4], %s159
        %s161 = sand.u32 %s93, 1
        %s162 = smul.addr %s161, 256
        %s163 = scalar_lea.vmem [#allocation3], %s162
        %p164 = scmp.lt.s32.totalorder %s17, 1
        %s165 = scalar_select %p164, %s17, 1
        %s166 = smul.addr %s165, 32
        %s167 = smul.addr %s166, 8
        %s168 = scalar_lea.vmem %s0, %s167
        %169 = vst [vmem:[#allocation2] sm:$0xff] 0.0
        %vm170 = vcmask 523264
        %171 = vst.msk [vmem:[#allocation2 + $0x8] sm:$0xff] %vm170, 0.0
        %172 = vst [vmem:[#allocation2 + $0x10] sm:$0xff] 0.0
        %173 = vst.msk [vmem:[#allocation2 + $0x18] sm:$0xff] %vm170, 0.0
        %174 = vst [vmem:[#allocation2 + $0x20] sm:$0xff] 0.0
        %175 = vst.msk [vmem:[#allocation2 + $0x28] sm:$0xff] %vm170, 0.0
        %176 = vst [vmem:[#allocation2 + $0x30] sm:$0xff] 0.0
        %177 = vst.msk [vmem:[#allocation2 + $0x38] sm:$0xff] %vm170, 0.0
        %178 = vst [vmem:[#allocation2 + $0x40] sm:$0xff] 0.0
        %179 = vst.msk [vmem:[#allocation2 + $0x48] sm:$0xff] %vm170, 0.0
        %180 = vst [vmem:[#allocation2 + $0x50] sm:$0xff] 0.0
        %181 = vst.msk [vmem:[#allocation2 + $0x58] sm:$0xff] %vm170, 0.0
        %182 = vst [vmem:[#allocation2 + $0x60] sm:$0xff] 0.0
        %183 = vst.msk [vmem:[#allocation2 + $0x68] sm:$0xff] %vm170, 0.0
        %184 = vst [vmem:[#allocation2 + $0x70] sm:$0xff] 0.0
        %185 = vst.msk [vmem:[#allocation2 + $0x78] sm:$0xff] %vm170, 0.0
        %186 = vst [vmem:[#allocation2 + $0x80] sm:$0xff] 0.0
        %187 = vst.msk [vmem:[#allocation2 + $0x88] sm:$0xff] %vm170, 0.0
        %188 = vst [vmem:[#allocation2 + $0x90] sm:$0xff] 0.0
        %189 = vst.msk [vmem:[#allocation2 + $0x98] sm:$0xff] %vm170, 0.0
        %190 = vst [vmem:[#allocation2 + $0xa0] sm:$0xff] 0.0
        %191 = vst.msk [vmem:[#allocation2 + $0xa8] sm:$0xff] %vm170, 0.0
        %192 = vst [vmem:[#allocation2 + $0xb0] sm:$0xff] 0.0
        %193 = vst.msk [vmem:[#allocation2 + $0xb8] sm:$0xff] %vm170, 0.0
        %194 = vst [vmem:[#allocation2 + $0xc0] sm:$0xff] 0.0
        %195 = vst.msk [vmem:[#allocation2 + $0xc8] sm:$0xff] %vm170, 0.0
        %196 = vst [vmem:[#allocation2 + $0xd0] sm:$0xff] 0.0
        %197 = vst.msk [vmem:[#allocation2 + $0xd8] sm:$0xff] %vm170, 0.0
        %198 = vst [vmem:[#allocation2 + $0xe0] sm:$0xff] 0.0
        %199 = vst.msk [vmem:[#allocation2 + $0xe8] sm:$0xff] %vm170, 0.0
        %200 = vst [vmem:[#allocation2 + $0xf0] sm:$0xff] 0.0
        %201 = vst.msk [vmem:[#allocation2 + $0xf8] sm:$0xff] %vm170, 0.0
        %202 = vst [vmem:[#allocation2 + $0x100] sm:$0xff] 0.0
        %203 = vst.msk [vmem:[#allocation2 + $0x108] sm:$0xff] %vm170, 0.0
        %204 = vst [vmem:[#allocation2 + $0x110] sm:$0xff] 0.0
        %205 = vst.msk [vmem:[#allocation2 + $0x118] sm:$0xff] %vm170, 0.0
        %206 = vst [vmem:[#allocation2 + $0x120] sm:$0xff] 0.0
        %207 = vst.msk [vmem:[#allocation2 + $0x128] sm:$0xff] %vm170, 0.0
        %208 = vst [vmem:[#allocation2 + $0x130] sm:$0xff] 0.0
        %209 = vst.msk [vmem:[#allocation2 + $0x138] sm:$0xff] %vm170, 0.0
        %210 = vst [vmem:[#allocation2 + $0x140] sm:$0xff] 0.0
        %211 = vst.msk [vmem:[#allocation2 + $0x148] sm:$0xff] %vm170, 0.0
        %212 = vst [vmem:[#allocation2 + $0x150] sm:$0xff] 0.0
        %213 = vst.msk [vmem:[#allocation2 + $0x158] sm:$0xff] %vm170, 0.0
        %214 = vst [vmem:[#allocation2 + $0x160] sm:$0xff] 0.0
        %215 = vst.msk [vmem:[#allocation2 + $0x168] sm:$0xff] %vm170, 0.0
        %216 = vst [vmem:[#allocation2 + $0x170] sm:$0xff] 0.0
        %217 = vst.msk [vmem:[#allocation2 + $0x178] sm:$0xff] %vm170, 0.0
        %218 = vst [vmem:[#allocation2 + $0x180] sm:$0xff] 0.0
        %219 = vst.msk [vmem:[#allocation2 + $0x188] sm:$0xff] %vm170, 0.0
        %220 = vst [vmem:[#allocation2 + $0x190] sm:$0xff] 0.0
        %221 = vst.msk [vmem:[#allocation2 + $0x198] sm:$0xff] %vm170, 0.0
        %222 = vst [vmem:[#allocation2 + $0x1a0] sm:$0xff] 0.0
        %223 = vst.msk [vmem:[#allocation2 + $0x1a8] sm:$0xff] %vm170, 0.0
        %224 = vst [vmem:[#allocation2 + $0x1b0] sm:$0xff] 0.0
        %225 = vst.msk [vmem:[#allocation2 + $0x1b8] sm:$0xff] %vm170, 0.0
        %226 = vst [vmem:[#allocation2 + $0x1c0] sm:$0xff] 0.0
        %227 = vst.msk [vmem:[#allocation2 + $0x1c8] sm:$0xff] %vm170, 0.0
        %228 = vst [vmem:[#allocation2 + $0x1d0] sm:$0xff] 0.0
        %229 = vst.msk [vmem:[#allocation2 + $0x1d8] sm:$0xff] %vm170, 0.0
        %230 = vst [vmem:[#allocation2 + $0x1e0] sm:$0xff] 0.0
        %231 = vst.msk [vmem:[#allocation2 + $0x1e8] sm:$0xff] %vm170, 0.0
        %232 = vst [vmem:[#allocation2 + $0x1f0] sm:$0xff] 0.0
        %233 = vst.msk [vmem:[#allocation2 + $0x1f8] sm:$0xff] %vm170, 0.0
        %234 = vst [vmem:[#allocation2 + $0x200] sm:$0xff] 0.0
        %235 = vst.msk [vmem:[#allocation2 + $0x208] sm:$0xff] %vm170, 0.0
        %236 = vst [vmem:[#allocation2 + $0x210] sm:$0xff] 0.0
        %237 = vst.msk [vmem:[#allocation2 + $0x218] sm:$0xff] %vm170, 0.0
        %238 = vst [vmem:[#allocation2 + $0x220] sm:$0xff] 0.0
        %239 = vst.msk [vmem:[#allocation2 + $0x228] sm:$0xff] %vm170, 0.0
        %240 = vst [vmem:[#allocation2 + $0x230] sm:$0xff] 0.0
        %241 = vst.msk [vmem:[#allocation2 + $0x238] sm:$0xff] %vm170, 0.0
        %242 = vst [vmem:[#allocation2 + $0x240] sm:$0xff] 0.0
        %243 = vst.msk [vmem:[#allocation2 + $0x248] sm:$0xff] %vm170, 0.0
        %244 = vst [vmem:[#allocation2 + $0x250] sm:$0xff] 0.0
        %245 = vst.msk [vmem:[#allocation2 + $0x258] sm:$0xff] %vm170, 0.0
        %246 = vst [vmem:[#allocation2 + $0x260] sm:$0xff] 0.0
        %247 = vst.msk [vmem:[#allocation2 + $0x268] sm:$0xff] %vm170, 0.0
        %248 = vst [vmem:[#allocation2 + $0x270] sm:$0xff] 0.0
        %249 = vst.msk [vmem:[#allocation2 + $0x278] sm:$0xff] %vm170, 0.0
        %250 = vst [vmem:[#allocation2 + $0x280] sm:$0xff] 0.0
        %251 = vst.msk [vmem:[#allocation2 + $0x288] sm:$0xff] %vm170, 0.0
        %252 = vst [vmem:[#allocation2 + $0x290] sm:$0xff] 0.0
        %253 = vst.msk [vmem:[#allocation2 + $0x298] sm:$0xff] %vm170, 0.0
        %254 = vst [vmem:[#allocation2 + $0x2a0] sm:$0xff] 0.0
        %255 = vst.msk [vmem:[#allocation2 + $0x2a8] sm:$0xff] %vm170, 0.0
        %256 = vst [vmem:[#allocation2 + $0x2b0] sm:$0xff] 0.0
        %257 = vst.msk [vmem:[#allocation2 + $0x2b8] sm:$0xff] %vm170, 0.0
        %258 = vst [vmem:[#allocation2 + $0x2c0] sm:$0xff] 0.0
        %259 = vst.msk [vmem:[#allocation2 + $0x2c8] sm:$0xff] %vm170, 0.0
        %260 = vst [vmem:[#allocation2 + $0x2d0] sm:$0xff] 0.0
        %261 = vst.msk [vmem:[#allocation2 + $0x2d8] sm:$0xff] %vm170, 0.0
        %262 = vst [vmem:[#allocation2 + $0x2e0] sm:$0xff] 0.0
        %263 = vst.msk [vmem:[#allocation2 + $0x2e8] sm:$0xff] %vm170, 0.0
        %264 = vst [vmem:[#allocation2 + $0x2f0] sm:$0xff] 0.0
        %265 = vst.msk [vmem:[#allocation2 + $0x2f8] sm:$0xff] %vm170, 0.0
        %266 = vst [vmem:[#allocation2 + $0x300] sm:$0xff] 0.0
        %267 = vst.msk [vmem:[#allocation2 + $0x308] sm:$0xff] %vm170, 0.0
        %268 = vst [vmem:[#allocation2 + $0x310] sm:$0xff] 0.0
        %269 = vst.msk [vmem:[#allocation2 + $0x318] sm:$0xff] %vm170, 0.0
        %270 = vst [vmem:[#allocation2 + $0x320] sm:$0xff] 0.0
        %271 = vst.msk [vmem:[#allocation2 + $0x328] sm:$0xff] %vm170, 0.0
        %272 = vst [vmem:[#allocation2 + $0x330] sm:$0xff] 0.0
        %273 = vst.msk [vmem:[#allocation2 + $0x338] sm:$0xff] %vm170, 0.0
        %274 = vst [vmem:[#allocation2 + $0x340] sm:$0xff] 0.0
        %275 = vst.msk [vmem:[#allocation2 + $0x348] sm:$0xff] %vm170, 0.0
        %276 = vst [vmem:[#allocation2 + $0x350] sm:$0xff] 0.0
        %277 = vst.msk [vmem:[#allocation2 + $0x358] sm:$0xff] %vm170, 0.0
        %278 = vst [vmem:[#allocation2 + $0x360] sm:$0xff] 0.0
        %279 = vst.msk [vmem:[#allocation2 + $0x368] sm:$0xff] %vm170, 0.0
        %280 = vst [vmem:[#allocation2 + $0x370] sm:$0xff] 0.0
        %281 = vst.msk [vmem:[#allocation2 + $0x378] sm:$0xff] %vm170, 0.0
        %282 = vst [vmem:[#allocation2 + $0x380] sm:$0xff] 0.0
        %283 = vst.msk [vmem:[#allocation2 + $0x388] sm:$0xff] %vm170, 0.0
        %284 = vst [vmem:[#allocation2 + $0x390] sm:$0xff] 0.0
        %285 = vst.msk [vmem:[#allocation2 + $0x398] sm:$0xff] %vm170, 0.0
        %286 = vst [vmem:[#allocation2 + $0x3a0] sm:$0xff] 0.0
        %287 = vst.msk [vmem:[#allocation2 + $0x3a8] sm:$0xff] %vm170, 0.0
        %288 = vst [vmem:[#allocation2 + $0x3b0] sm:$0xff] 0.0
        %289 = vst.msk [vmem:[#allocation2 + $0x3b8] sm:$0xff] %vm170, 0.0
        %290 = vst [vmem:[#allocation2 + $0x3c0] sm:$0xff] 0.0
        %291 = vst.msk [vmem:[#allocation2 + $0x3c8] sm:$0xff] %vm170, 0.0
        %292 = vst [vmem:[#allocation2 + $0x3d0] sm:$0xff] 0.0
        %293 = vst.msk [vmem:[#allocation2 + $0x3d8] sm:$0xff] %vm170, 0.0
        %294 = vst [vmem:[#allocation2 + $0x3e0] sm:$0xff] 0.0
        %295 = vst.msk [vmem:[#allocation2 + $0x3e8] sm:$0xff] %vm170, 0.0
        %296 = vst [vmem:[#allocation2 + $0x3f0] sm:$0xff] 0.0
        %297 = vst.msk [vmem:[#allocation2 + $0x3f8] sm:$0xff] %vm170, 0.0
        %298 = vst [vmem:[#allocation2 + $0x400] sm:$0xff] 0.0
        %299 = vst.msk [vmem:[#allocation2 + $0x408] sm:$0xff] %vm170, 0.0
        %300 = vst [vmem:[#allocation2 + $0x410] sm:$0xff] 0.0
        %301 = vst.msk [vmem:[#allocation2 + $0x418] sm:$0xff] %vm170, 0.0
        %302 = vst [vmem:[#allocation2 + $0x420] sm:$0xff] 0.0
        %303 = vst.msk [vmem:[#allocation2 + $0x428] sm:$0xff] %vm170, 0.0
        %304 = vst [vmem:[#allocation2 + $0x430] sm:$0xff] 0.0
        %305 = vst.msk [vmem:[#allocation2 + $0x438] sm:$0xff] %vm170, 0.0
        %306 = vst [vmem:[#allocation2 + $0x440] sm:$0xff] 0.0
        %307 = vst.msk [vmem:[#allocation2 + $0x448] sm:$0xff] %vm170, 0.0
        %308 = vst [vmem:[#allocation2 + $0x450] sm:$0xff] 0.0
        %309 = vst.msk [vmem:[#allocation2 + $0x458] sm:$0xff] %vm170, 0.0
        %310 = vst [vmem:[#allocation2 + $0x460] sm:$0xff] 0.0
        %311 = vst.msk [vmem:[#allocation2 + $0x468] sm:$0xff] %vm170, 0.0
        %312 = vst [vmem:[#allocation2 + $0x470] sm:$0xff] 0.0
        %313 = vst.msk [vmem:[#allocation2 + $0x478] sm:$0xff] %vm170, 0.0
        %v314 = vld [vmem:[%s168] sm:$0xff]
        %v315 = vld [vmem:[%s168 + $0x8] sm:$0xff]
        %v316 = vld [vmem:[%s168 + $0x10] sm:$0xff]
        %v317 = vld [vmem:[%s168 + $0x18] sm:$0xff]
        %v318 = vld [vmem:[%s168 + $0x20] sm:$0xff]
        %v319 = vld [vmem:[%s168 + $0x28] sm:$0xff]
        %v320 = vld [vmem:[%s168 + $0x30] sm:$0xff]
        %v321 = vld [vmem:[%s168 + $0x38] sm:$0xff]
        %v322 = vld [vmem:[%s168 + $0x40] sm:$0xff]
        %v323 = vld [vmem:[%s168 + $0x48] sm:$0xff]
        %v324 = vld [vmem:[%s168 + $0x50] sm:$0xff]
        %v325 = vld [vmem:[%s168 + $0x58] sm:$0xff]
        %v326 = vld [vmem:[%s168 + $0x60] sm:$0xff]
        %v327 = vld [vmem:[%s168 + $0x68] sm:$0xff]
        %v328 = vld [vmem:[%s168 + $0x70] sm:$0xff]
        %v329 = vld [vmem:[%s168 + $0x78] sm:$0xff]
        %v330 = vld [vmem:[%s168 + $0x80] sm:$0xff]
        %v331 = vld [vmem:[%s168 + $0x88] sm:$0xff]
        %v332 = vld [vmem:[%s168 + $0x90] sm:$0xff]
        %v333 = vld [vmem:[%s168 + $0x98] sm:$0xff]
        %v334 = vld [vmem:[%s168 + $0xa0] sm:$0xff]
        %v335 = vld [vmem:[%s168 + $0xa8] sm:$0xff]
        %v336 = vld [vmem:[%s168 + $0xb0] sm:$0xff]
        %v337 = vld [vmem:[%s168 + $0xb8] sm:$0xff]
        %v338 = vld [vmem:[%s168 + $0xc0] sm:$0xff]
        %v339 = vld [vmem:[%s168 + $0xc8] sm:$0xff]
        %v340 = vld [vmem:[%s168 + $0xd0] sm:$0xff]
        %v341 = vld [vmem:[%s168 + $0xd8] sm:$0xff]
        %v342 = vld [vmem:[%s168 + $0xe0] sm:$0xff]
        %v343 = vld [vmem:[%s168 + $0xe8] sm:$0xff]
        %v344 = vld [vmem:[%s168 + $0xf0] sm:$0xff]
        %v345 = vld [vmem:[%s168 + $0xf8] sm:$0xff]
        %v346 = vld [vmem:[%s1] sm:$0xff]
        %v347 = vld [vmem:[%s1 + $0x8] sm:$0xff]
        %v348 = vld [vmem:[%s1 + $0x10] sm:$0xff]
        %v349 = vld [vmem:[%s1 + $0x18] sm:$0xff]
        %v350 = vld [vmem:[%s1 + $0x20] sm:$0xff]
        %v351 = vld [vmem:[%s1 + $0x28] sm:$0xff]
        %v352 = vld [vmem:[%s1 + $0x30] sm:$0xff]
        %v353 = vld [vmem:[%s1 + $0x38] sm:$0xff]
        %v354 = vld [vmem:[%s1 + $0x40] sm:$0xff]
        %v355 = vld [vmem:[%s1 + $0x48] sm:$0xff]
        %v356 = vld [vmem:[%s1 + $0x50] sm:$0xff]
        %v357 = vld [vmem:[%s1 + $0x58] sm:$0xff]
        %v358 = vld [vmem:[%s1 + $0x60] sm:$0xff]
        %v359 = vld [vmem:[%s1 + $0x68] sm:$0xff]
        %v360 = vld [vmem:[%s1 + $0x70] sm:$0xff]
        %v361 = vld [vmem:[%s1 + $0x78] sm:$0xff]
        %v363 = vsel %vm170, %v314, 0
        %v366 = vsel %vm170, %v315, 0
        %v369 = vsel %vm170, %v316, 0
        %v372 = vsel %vm170, %v317, 0
        %v375 = vsel %vm170, %v318, 0
        %v378 = vsel %vm170, %v319, 0
        %v381 = vsel %vm170, %v320, 0
        %v384 = vsel %vm170, %v321, 0
        %v387 = vsel %vm170, %v322, 0
        %v390 = vsel %vm170, %v323, 0
        %v393 = vsel %vm170, %v324, 0
        %v396 = vsel %vm170, %v325, 0
        %v399 = vsel %vm170, %v326, 0
        %v402 = vsel %vm170, %v327, 0
        %v405 = vsel %vm170, %v328, 0
        %v408 = vsel %vm170, %v329, 0
        %v411 = vsel %vm170, %v330, 0
        %v414 = vsel %vm170, %v331, 0
        %v417 = vsel %vm170, %v332, 0
        %v420 = vsel %vm170, %v333, 0
        %v423 = vsel %vm170, %v334, 0
        %v426 = vsel %vm170, %v335, 0
        %v429 = vsel %vm170, %v336, 0
        %v432 = vsel %vm170, %v337, 0
        %v435 = vsel %vm170, %v338, 0
        %v438 = vsel %vm170, %v339, 0
        %v441 = vsel %vm170, %v340, 0
        %v444 = vsel %vm170, %v341, 0
        %v447 = vsel %vm170, %v342, 0
        %v450 = vsel %vm170, %v343, 0
        %v453 = vsel %vm170, %v344, 0
        %v456 = vsel %vm170, %v345, 0
        %458 = vmatpush.msra.mxu0 0.0
        %459 = vmatpush.msra.mxu0 0.0
        %460 = vmatpush.msra.mxu0 0.0
        %461 = vmatpush.msra.mxu0 0.0
        %462 = vmatpush.msra.mxu0 0.0
        %463 = vmatpush.msra.mxu0 0.0
        %464 = vmatpush.msra.mxu0 0.0
        %465 = vmatpush.msra.mxu0 0.0
        %466 = vmatpush.msra.mxu0 %v360
        %467 = vmatpush.msra.mxu0 %v358
        %468 = vmatpush.msra.mxu0 %v356
        %469 = vmatpush.msra.mxu0 %v354
        %470 = vmatpush.msra.mxu0 %v352
        %471 = vmatpush.msra.mxu0 %v350
        %472 = vmatpush.msra.mxu0 %v348
        %473 = vmatpush.msra.mxu0 %v346
        %474 = vmatmul.f32.gmra.mxu0 %v363
        %v475 = vpop.f32.mrf.mxu0
        %v476 = vadd.f32 0.0, %v475
        %477 = vmatmul.f32.gmra.mxu0 %v366
        %v478 = vpop.f32.mrf.mxu0
        %v479 = vadd.f32 0.0, %v478
        %480 = vmatmul.f32.gmra.mxu0 %v369
        %v481 = vpop.f32.mrf.mxu0
        %v482 = vadd.f32 0.0, %v481
        %483 = vmatmul.f32.gmra.mxu0 %v372
        %v484 = vpop.f32.mrf.mxu0
        %v485 = vadd.f32 0.0, %v484
        %486 = vmatmul.f32.gmra.mxu0 %v375
        %v487 = vpop.f32.mrf.mxu0
        %v488 = vadd.f32 0.0, %v487
        %489 = vmatmul.f32.gmra.mxu0 %v378
        %v490 = vpop.f32.mrf.mxu0
        %v491 = vadd.f32 0.0, %v490
        %492 = vmatmul.f32.gmra.mxu0 %v381
        %v493 = vpop.f32.mrf.mxu0
        %v494 = vadd.f32 0.0, %v493
        %495 = vmatmul.f32.gmra.mxu0 %v384
        %v496 = vpop.f32.mrf.mxu0
        %v497 = vadd.f32 0.0, %v496
        %498 = vmatmul.f32.gmra.mxu0 %v387
        %v499 = vpop.f32.mrf.mxu0
        %v500 = vadd.f32 0.0, %v499
        %501 = vmatmul.f32.gmra.mxu0 %v390
        %v502 = vpop.f32.mrf.mxu0
        %v503 = vadd.f32 0.0, %v502
        %504 = vmatmul.f32.gmra.mxu0 %v393
        %v505 = vpop.f32.mrf.mxu0
        %v506 = vadd.f32 0.0, %v505
        %507 = vmatmul.f32.gmra.mxu0 %v396
        %v508 = vpop.f32.mrf.mxu0
        %v509 = vadd.f32 0.0, %v508
        %510 = vmatmul.f32.gmra.mxu0 %v399
        %v511 = vpop.f32.mrf.mxu0
        %v512 = vadd.f32 0.0, %v511
        %513 = vmatmul.f32.gmra.mxu0 %v402
        %v514 = vpop.f32.mrf.mxu0
        %v515 = vadd.f32 0.0, %v514
        %516 = vmatmul.f32.gmra.mxu0 %v405
        %v517 = vpop.f32.mrf.mxu0
        %v518 = vadd.f32 0.0, %v517
        %519 = vmatmul.f32.gmra.mxu0 %v408
        %v520 = vpop.f32.mrf.mxu0
        %v521 = vadd.f32 0.0, %v520
        %522 = vmatmul.f32.gmra.mxu0 %v411
        %v523 = vpop.f32.mrf.mxu0
        %v524 = vadd.f32 0.0, %v523
        %525 = vmatmul.f32.gmra.mxu0 %v414
        %v526 = vpop.f32.mrf.mxu0
        %v527 = vadd.f32 0.0, %v526
        %528 = vmatmul.f32.gmra.mxu0 %v417
        %v529 = vpop.f32.mrf.mxu0
        %v530 = vadd.f32 0.0, %v529
        %531 = vmatmul.f32.gmra.mxu0 %v420
        %v532 = vpop.f32.mrf.mxu0
        %v533 = vadd.f32 0.0, %v532
        %534 = vmatmul.f32.gmra.mxu0 %v423
        %v535 = vpop.f32.mrf.mxu0
        %v536 = vadd.f32 0.0, %v535
        %537 = vmatmul.f32.gmra.mxu0 %v426
        %v538 = vpop.f32.mrf.mxu0
        %v539 = vadd.f32 0.0, %v538
        %540 = vmatmul.f32.gmra.mxu0 %v429
        %v541 = vpop.f32.mrf.mxu0
        %v542 = vadd.f32 0.0, %v541
        %543 = vmatmul.f32.gmra.mxu0 %v432
        %v544 = vpop.f32.mrf.mxu0
        %v545 = vadd.f32 0.0, %v544
        %546 = vmatmul.f32.gmra.mxu0 %v435
        %v547 = vpop.f32.mrf.mxu0
        %v548 = vadd.f32 0.0, %v547
        %549 = vmatmul.f32.gmra.mxu0 %v438
        %v550 = vpop.f32.mrf.mxu0
        %v551 = vadd.f32 0.0, %v550
        %552 = vmatmul.f32.gmra.mxu0 %v441
        %v553 = vpop.f32.mrf.mxu0
        %v554 = vadd.f32 0.0, %v553
        %555 = vmatmul.f32.gmra.mxu0 %v444
        %v556 = vpop.f32.mrf.mxu0
        %v557 = vadd.f32 0.0, %v556
        %558 = vmatmul.f32.gmra.mxu0 %v447
        %v559 = vpop.f32.mrf.mxu0
        %v560 = vadd.f32 0.0, %v559
        %561 = vmatmul.f32.gmra.mxu0 %v450
        %v562 = vpop.f32.mrf.mxu0
        %v563 = vadd.f32 0.0, %v562
        %564 = vmatmul.f32.gmra.mxu0 %v453
        %v565 = vpop.f32.mrf.mxu0
        %v566 = vadd.f32 0.0, %v565
        %567 = vmatmul.f32.gmra.mxu0 %v456
        %v568 = vpop.f32.mrf.mxu0
        %v569 = vadd.f32 0.0, %v568
        %570 = vdwg.mxu0
        %571 = vmatpush.msra.mxu0 0.0
        %572 = vmatpush.msra.mxu0 0.0
        %573 = vmatpush.msra.mxu0 0.0
        %574 = vmatpush.msra.mxu0 0.0
        %575 = vmatpush.msra.mxu0 0.0
        %576 = vmatpush.msra.mxu0 0.0
        %577 = vmatpush.msra.mxu0 0.0
        %578 = vmatpush.msra.mxu0 0.0
        %579 = vmatpush.msra.mxu0 %v361
        %580 = vmatpush.msra.mxu0 %v359
        %581 = vmatpush.msra.mxu0 %v357
        %582 = vmatpush.msra.mxu0 %v355
        %583 = vmatpush.msra.mxu0 %v353
        %584 = vmatpush.msra.mxu0 %v351
        %585 = vmatpush.msra.mxu0 %v349
        %586 = vmatpush.msra.mxu0 %v347
        %587 = vmatmul.f32.gmra.mxu0 %v363
        %v588 = vpop.f32.mrf.mxu0
        %v589 = vadd.f32 0.0, %v588
        %590 = vmatmul.f32.gmra.mxu0 %v366
        %v591 = vpop.f32.mrf.mxu0
        %v592 = vadd.f32 0.0, %v591
        %593 = vmatmul.f32.gmra.mxu0 %v369
        %v594 = vpop.f32.mrf.mxu0
        %v595 = vadd.f32 0.0, %v594
        %596 = vmatmul.f32.gmra.mxu0 %v372
        %v597 = vpop.f32.mrf.mxu0
        %v598 = vadd.f32 0.0, %v597
        %599 = vmatmul.f32.gmra.mxu0 %v375
        %v600 = vpop.f32.mrf.mxu0
        %v601 = vadd.f32 0.0, %v600
        %602 = vmatmul.f32.gmra.mxu0 %v378
        %v603 = vpop.f32.mrf.mxu0
        %v604 = vadd.f32 0.0, %v603
        %605 = vmatmul.f32.gmra.mxu0 %v381
        %v606 = vpop.f32.mrf.mxu0
        %v607 = vadd.f32 0.0, %v606
        %608 = vmatmul.f32.gmra.mxu0 %v384
        %v609 = vpop.f32.mrf.mxu0
        %v610 = vadd.f32 0.0, %v609
        %611 = vmatmul.f32.gmra.mxu0 %v387
        %v612 = vpop.f32.mrf.mxu0
        %v613 = vadd.f32 0.0, %v612
        %614 = vmatmul.f32.gmra.mxu0 %v390
        %v615 = vpop.f32.mrf.mxu0
        %v616 = vadd.f32 0.0, %v615
        %617 = vmatmul.f32.gmra.mxu0 %v393
        %v618 = vpop.f32.mrf.mxu0
        %v619 = vadd.f32 0.0, %v618
        %620 = vmatmul.f32.gmra.mxu0 %v396
        %v621 = vpop.f32.mrf.mxu0
        %v622 = vadd.f32 0.0, %v621
        %623 = vmatmul.f32.gmra.mxu0 %v399
        %v624 = vpop.f32.mrf.mxu0
        %v625 = vadd.f32 0.0, %v624
        %626 = vmatmul.f32.gmra.mxu0 %v402
        %v627 = vpop.f32.mrf.mxu0
        %v628 = vadd.f32 0.0, %v627
        %629 = vmatmul.f32.gmra.mxu0 %v405
        %v630 = vpop.f32.mrf.mxu0
        %v631 = vadd.f32 0.0, %v630
        %632 = vmatmul.f32.gmra.mxu0 %v408
        %v633 = vpop.f32.mrf.mxu0
        %v634 = vadd.f32 0.0, %v633
        %635 = vmatmul.f32.gmra.mxu0 %v411
        %v636 = vpop.f32.mrf.mxu0
        %v637 = vadd.f32 0.0, %v636
        %638 = vmatmul.f32.gmra.mxu0 %v414
        %v639 = vpop.f32.mrf.mxu0
        %v640 = vadd.f32 0.0, %v639
        %641 = vmatmul.f32.gmra.mxu0 %v417
        %v642 = vpop.f32.mrf.mxu0
        %v643 = vadd.f32 0.0, %v642
        %644 = vmatmul.f32.gmra.mxu0 %v420
        %v645 = vpop.f32.mrf.mxu0
        %v646 = vadd.f32 0.0, %v645
        %647 = vmatmul.f32.gmra.mxu0 %v423
        %v648 = vpop.f32.mrf.mxu0
        %v649 = vadd.f32 0.0, %v648
        %650 = vmatmul.f32.gmra.mxu0 %v426
        %v651 = vpop.f32.mrf.mxu0
        %v652 = vadd.f32 0.0, %v651
        %653 = vmatmul.f32.gmra.mxu0 %v429
        %v654 = vpop.f32.mrf.mxu0
        %v655 = vadd.f32 0.0, %v654
        %656 = vmatmul.f32.gmra.mxu0 %v432
        %v657 = vpop.f32.mrf.mxu0
        %v658 = vadd.f32 0.0, %v657
        %659 = vmatmul.f32.gmra.mxu0 %v435
        %v660 = vpop.f32.mrf.mxu0
        %v661 = vadd.f32 0.0, %v660
        %662 = vmatmul.f32.gmra.mxu0 %v438
        %v663 = vpop.f32.mrf.mxu0
        %v664 = vadd.f32 0.0, %v663
        %665 = vmatmul.f32.gmra.mxu0 %v441
        %v666 = vpop.f32.mrf.mxu0
        %v667 = vadd.f32 0.0, %v666
        %668 = vmatmul.f32.gmra.mxu0 %v444
        %v669 = vpop.f32.mrf.mxu0
        %v670 = vadd.f32 0.0, %v669
        %671 = vmatmul.f32.gmra.mxu0 %v447
        %v672 = vpop.f32.mrf.mxu0
        %v673 = vadd.f32 0.0, %v672
        %674 = vmatmul.f32.gmra.mxu0 %v450
        %v675 = vpop.f32.mrf.mxu0
        %v676 = vadd.f32 0.0, %v675
        %677 = vmatmul.f32.gmra.mxu0 %v453
        %v678 = vpop.f32.mrf.mxu0
        %v679 = vadd.f32 0.0, %v678
        %680 = vmatmul.f32.gmra.mxu0 %v456
        %v681 = vpop.f32.mrf.mxu0
        %v682 = vadd.f32 0.0, %v681
        %683 = vdwg.mxu0
        %s684 = scalar_lea.vmem [#allocation2], 64
        %685 = vst [vmem:[%s684 + $0x10] sm:$0xff] %v476
        %686 = vst.msk [vmem:[%s684 + $0x18] sm:$0xff] %vm170, %v589
        %687 = vst [vmem:[%s684 + $0x20] sm:$0xff] %v479
        %688 = vst.msk [vmem:[%s684 + $0x28] sm:$0xff] %vm170, %v592
        %689 = vst [vmem:[%s684 + $0x50] sm:$0xff] %v482
        %690 = vst.msk [vmem:[%s684 + $0x58] sm:$0xff] %vm170, %v595
        %691 = vst [vmem:[%s684 + $0x60] sm:$0xff] %v485
        %692 = vst.msk [vmem:[%s684 + $0x68] sm:$0xff] %vm170, %v598
        %693 = vst [vmem:[%s684 + $0x90] sm:$0xff] %v488
        %694 = vst.msk [vmem:[%s684 + $0x98] sm:$0xff] %vm170, %v601
        %695 = vst [vmem:[%s684 + $0xa0] sm:$0xff] %v491
        %696 = vst.msk [vmem:[%s684 + $0xa8] sm:$0xff] %vm170, %v604
        %697 = vst [vmem:[%s684 + $0xd0] sm:$0xff] %v494
        %698 = vst.msk [vmem:[%s684 + $0xd8] sm:$0xff] %vm170, %v607
        %699 = vst [vmem:[%s684 + $0xe0] sm:$0xff] %v497
        %700 = vst.msk [vmem:[%s684 + $0xe8] sm:$0xff] %vm170, %v610
        %701 = vst [vmem:[%s684 + $0x110] sm:$0xff] %v500
        %702 = vst.msk [vmem:[%s684 + $0x118] sm:$0xff] %vm170, %v613
        %703 = vst [vmem:[%s684 + $0x120] sm:$0xff] %v503
        %704 = vst.msk [vmem:[%s684 + $0x128] sm:$0xff] %vm170, %v616
        %705 = vst [vmem:[%s684 + $0x150] sm:$0xff] %v506
        %706 = vst.msk [vmem:[%s684 + $0x158] sm:$0xff] %vm170, %v619
        %707 = vst [vmem:[%s684 + $0x160] sm:$0xff] %v509
        %708 = vst.msk [vmem:[%s684 + $0x168] sm:$0xff] %vm170, %v622
        %709 = vst [vmem:[%s684 + $0x190] sm:$0xff] %v512
        %710 = vst.msk [vmem:[%s684 + $0x198] sm:$0xff] %vm170, %v625
        %711 = vst [vmem:[%s684 + $0x1a0] sm:$0xff] %v515
        %712 = vst.msk [vmem:[%s684 + $0x1a8] sm:$0xff] %vm170, %v628
        %713 = vst [vmem:[%s684 + $0x1d0] sm:$0xff] %v518
        %714 = vst.msk [vmem:[%s684 + $0x1d8] sm:$0xff] %vm170, %v631
        %715 = vst [vmem:[%s684 + $0x1e0] sm:$0xff] %v521
        %716 = vst.msk [vmem:[%s684 + $0x1e8] sm:$0xff] %vm170, %v634
        %717 = vst [vmem:[%s684 + $0x210] sm:$0xff] %v524
        %718 = vst.msk [vmem:[%s684 + $0x218] sm:$0xff] %vm170, %v637
        %719 = vst [vmem:[%s684 + $0x220] sm:$0xff] %v527
        %720 = vst.msk [vmem:[%s684 + $0x228] sm:$0xff] %vm170, %v640
        %721 = vst [vmem:[%s684 + $0x250] sm:$0xff] %v530
        %722 = vst.msk [vmem:[%s684 + $0x258] sm:$0xff] %vm170, %v643
        %723 = vst [vmem:[%s684 + $0x260] sm:$0xff] %v533
        %724 = vst.msk [vmem:[%s684 + $0x268] sm:$0xff] %vm170, %v646
        %725 = vst [vmem:[%s684 + $0x290] sm:$0xff] %v536
        %726 = vst.msk [vmem:[%s684 + $0x298] sm:$0xff] %vm170, %v649
        %727 = vst [vmem:[%s684 + $0x2a0] sm:$0xff] %v539
        %728 = vst.msk [vmem:[%s684 + $0x2a8] sm:$0xff] %vm170, %v652
        %729 = vst [vmem:[%s684 + $0x2d0] sm:$0xff] %v542
        %730 = vst.msk [vmem:[%s684 + $0x2d8] sm:$0xff] %vm170, %v655
        %731 = vst [vmem:[%s684 + $0x2e0] sm:$0xff] %v545
        %732 = vst.msk [vmem:[%s684 + $0x2e8] sm:$0xff] %vm170, %v658
        %733 = vst [vmem:[%s684 + $0x310] sm:$0xff] %v548
        %734 = vst.msk [vmem:[%s684 + $0x318] sm:$0xff] %vm170, %v661
        %735 = vst [vmem:[%s684 + $0x320] sm:$0xff] %v551
        %736 = vst.msk [vmem:[%s684 + $0x328] sm:$0xff] %vm170, %v664
        %737 = vst [vmem:[%s684 + $0x350] sm:$0xff] %v554
        %738 = vst.msk [vmem:[%s684 + $0x358] sm:$0xff] %vm170, %v667
        %739 = vst [vmem:[%s684 + $0x360] sm:$0xff] %v557
        %740 = vst.msk [vmem:[%s684 + $0x368] sm:$0xff] %vm170, %v670
        %741 = vst [vmem:[%s684 + $0x390] sm:$0xff] %v560
        %742 = vst.msk [vmem:[%s684 + $0x398] sm:$0xff] %vm170, %v673
        %743 = vst [vmem:[%s684 + $0x3a0] sm:$0xff] %v563
        %744 = vst.msk [vmem:[%s684 + $0x3a8] sm:$0xff] %vm170, %v676
        %745 = vst [vmem:[%s684 + $0x3d0] sm:$0xff] %v566
        %746 = vst.msk [vmem:[%s684 + $0x3d8] sm:$0xff] %vm170, %v679
        %747 = vst [vmem:[%s684 + $0x3e0] sm:$0xff] %v569
        %748 = vst.msk [vmem:[%s684 + $0x3e8] sm:$0xff] %vm170, %v682
        %v749 = vld [vmem:[%s684] sm:$0x80]
        %v750 = vld [vmem:[%s684 + $0x10] sm:$0xff]
        %v751 = vld [vmem:[%s684 + $0x20] sm:$0x7f]
        %v752 = vld [vmem:[%s684 + $0x40] sm:$0x80]
        %v753 = vld [vmem:[%s684 + $0x50] sm:$0xff]
        %v754 = vld [vmem:[%s684 + $0x60] sm:$0x7f]
        %v755 = vld [vmem:[%s684 + $0x80] sm:$0x80]
        %v756 = vld [vmem:[%s684 + $0x90] sm:$0xff]
        %v757 = vld [vmem:[%s684 + $0xa0] sm:$0x7f]
        %v758 = vld [vmem:[%s684 + $0xc0] sm:$0x80]
        %v759 = vld [vmem:[%s684 + $0xd0] sm:$0xff]
        %v760 = vld [vmem:[%s684 + $0xe0] sm:$0x7f]
        %v761 = vld [vmem:[%s684 + $0x100] sm:$0x80]
        %v762 = vld [vmem:[%s684 + $0x110] sm:$0xff]
        %v763 = vld [vmem:[%s684 + $0x120] sm:$0x7f]
        %v764 = vld [vmem:[%s684 + $0x140] sm:$0x80]
        %v765 = vld [vmem:[%s684 + $0x150] sm:$0xff]
        %v766 = vld [vmem:[%s684 + $0x160] sm:$0x7f]
        %v767 = vld [vmem:[%s684 + $0x180] sm:$0x80]
        %v768 = vld [vmem:[%s684 + $0x190] sm:$0xff]
        %v769 = vld [vmem:[%s684 + $0x1a0] sm:$0x7f]
        %v770 = vld [vmem:[%s684 + $0x1c0] sm:$0x80]
        %v771 = vld [vmem:[%s684 + $0x1d0] sm:$0xff]
        %v772 = vld [vmem:[%s684 + $0x1e0] sm:$0x7f]
        %v773 = vld [vmem:[%s684 + $0x200] sm:$0x80]
        %v774 = vld [vmem:[%s684 + $0x210] sm:$0xff]
        %v775 = vld [vmem:[%s684 + $0x220] sm:$0x7f]
        %v776 = vld [vmem:[%s684 + $0x240] sm:$0x80]
        %v777 = vld [vmem:[%s684 + $0x250] sm:$0xff]
        %v778 = vld [vmem:[%s684 + $0x260] sm:$0x7f]
        %v779 = vld [vmem:[%s684 + $0x280] sm:$0x80]
        %v780 = vld [vmem:[%s684 + $0x290] sm:$0xff]
        %v781 = vld [vmem:[%s684 + $0x2a0] sm:$0x7f]
        %v782 = vld [vmem:[%s684 + $0x2c0] sm:$0x80]
        %v783 = vld [vmem:[%s684 + $0x2d0] sm:$0xff]
        %v784 = vld [vmem:[%s684 + $0x2e0] sm:$0x7f]
        %v785 = vld [vmem:[%s684 + $0x300] sm:$0x80]
        %v786 = vld [vmem:[%s684 + $0x310] sm:$0xff]
        %v787 = vld [vmem:[%s684 + $0x320] sm:$0x7f]
        %v788 = vld [vmem:[%s684 + $0x340] sm:$0x80]
        %v789 = vld [vmem:[%s684 + $0x350] sm:$0xff]
        %v790 = vld [vmem:[%s684 + $0x360] sm:$0x7f]
        %v791 = vld [vmem:[%s684 + $0x380] sm:$0x80]
        %v792 = vld [vmem:[%s684 + $0x390] sm:$0xff]
        %v793 = vld [vmem:[%s684 + $0x3a0] sm:$0x7f]
        %v794 = vld [vmem:[%s684 + $0x3c0] sm:$0x80]
        %v795 = vld [vmem:[%s684 + $0x3d0] sm:$0xff]
        %v796 = vld [vmem:[%s684 + $0x3e0] sm:$0x7f]
        %v797 = vld [vmem:[%s684 + $0x20] sm:$0xff]
        %v798 = vld [vmem:[%s684 + $0x60] sm:$0xff]
        %v799 = vld [vmem:[%s684 + $0xa0] sm:$0xff]
        %v800 = vld [vmem:[%s684 + $0xe0] sm:$0xff]
        %v801 = vld [vmem:[%s684 + $0x120] sm:$0xff]
        %v802 = vld [vmem:[%s684 + $0x160] sm:$0xff]
        %v803 = vld [vmem:[%s684 + $0x1a0] sm:$0xff]
        %v804 = vld [vmem:[%s684 + $0x1e0] sm:$0xff]
        %v805 = vld [vmem:[%s684 + $0x220] sm:$0xff]
        %v806 = vld [vmem:[%s684 + $0x260] sm:$0xff]
        %v807 = vld [vmem:[%s684 + $0x2a0] sm:$0xff]
        %v808 = vld [vmem:[%s684 + $0x2e0] sm:$0xff]
        %v809 = vld [vmem:[%s684 + $0x320] sm:$0xff]
        %v810 = vld [vmem:[%s684 + $0x360] sm:$0xff]
        %v811 = vld [vmem:[%s684 + $0x3a0] sm:$0xff]
        %v812 = vld [vmem:[%s684 + $0x3e0] sm:$0xff]
        %vm845 = vcmask 1046528
        %v846 = vrot.slane %v750, 1
        %v847 = vrot.slane %v797, 1
        %v848 = vsel %vm845, %v846, %v847
        %v849 = vrot.slane %v753, 1
        %v850 = vrot.slane %v798, 1
        %v851 = vsel %vm845, %v849, %v850
        %v852 = vrot.slane %v756, 1
        %v853 = vrot.slane %v799, 1
        %v854 = vsel %vm845, %v852, %v853
        %v855 = vrot.slane %v759, 1
        %v856 = vrot.slane %v800, 1
        %v857 = vsel %vm845, %v855, %v856
        %v858 = vrot.slane %v762, 1
        %v859 = vrot.slane %v801, 1
        %v860 = vsel %vm845, %v858, %v859
        %v861 = vrot.slane %v765, 1
        %v862 = vrot.slane %v802, 1
        %v863 = vsel %vm845, %v861, %v862
        %v864 = vrot.slane %v768, 1
        %v865 = vrot.slane %v803, 1
        %v866 = vsel %vm845, %v864, %v865
        %v867 = vrot.slane %v771, 1
        %v868 = vrot.slane %v804, 1
        %v869 = vsel %vm845, %v867, %v868
        %v870 = vrot.slane %v774, 1
        %v871 = vrot.slane %v805, 1
        %v872 = vsel %vm845, %v870, %v871
        %v873 = vrot.slane %v777, 1
        %v874 = vrot.slane %v806, 1
        %v875 = vsel %vm845, %v873, %v874
        %v876 = vrot.slane %v780, 1
        %v877 = vrot.slane %v807, 1
        %v878 = vsel %vm845, %v876, %v877
        %v879 = vrot.slane %v783, 1
        %v880 = vrot.slane %v808, 1
        %v881 = vsel %vm845, %v879, %v880
        %v882 = vrot.slane %v786, 1
        %v883 = vrot.slane %v809, 1
        %v884 = vsel %vm845, %v882, %v883
        %v885 = vrot.slane %v789, 1
        %v886 = vrot.slane %v810, 1
        %v887 = vsel %vm845, %v885, %v886
        %v888 = vrot.slane %v792, 1
        %v889 = vrot.slane %v811, 1
        %v890 = vsel %vm845, %v888, %v889
        %v891 = vrot.slane %v795, 1
        %v892 = vrot.slane %v812, 1
        %v893 = vsel %vm845, %v891, %v892
        %894 = vrot.lane.b32.xlu0 %v846, 64
        %v895 = vpop.permute.xlu0 %894
        %896 = vrot.lane.b32.xlu0 %v848, 64
        %v897 = vpop.permute.xlu0 %896
        %898 = vrot.lane.b32.xlu0 %v847, 64
        %v899 = vpop.permute.xlu0 %898
        %900 = vrot.lane.b32.xlu0 %v849, 64
        %v901 = vpop.permute.xlu0 %900
        %902 = vrot.lane.b32.xlu0 %v851, 64
        %v903 = vpop.permute.xlu0 %902
        %904 = vrot.lane.b32.xlu0 %v850, 64
        %v905 = vpop.permute.xlu0 %904
        %906 = vrot.lane.b32.xlu0 %v852, 64
        %v907 = vpop.permute.xlu0 %906
        %908 = vrot.lane.b32.xlu0 %v854, 64
        %v909 = vpop.permute.xlu0 %908
        %910 = vrot.lane.b32.xlu0 %v853, 64
        %v911 = vpop.permute.xlu0 %910
        %912 = vrot.lane.b32.xlu0 %v855, 64
        %v913 = vpop.permute.xlu0 %912
        %914 = vrot.lane.b32.xlu0 %v857, 64
        %v915 = vpop.permute.xlu0 %914
        %916 = vrot.lane.b32.xlu0 %v856, 64
        %v917 = vpop.permute.xlu0 %916
        %918 = vrot.lane.b32.xlu0 %v858, 64
        %v919 = vpop.permute.xlu0 %918
        %920 = vrot.lane.b32.xlu0 %v860, 64
        %v921 = vpop.permute.xlu0 %920
        %922 = vrot.lane.b32.xlu0 %v859, 64
        %v923 = vpop.permute.xlu0 %922
        %924 = vrot.lane.b32.xlu0 %v861, 64
        %v925 = vpop.permute.xlu0 %924
        %926 = vrot.lane.b32.xlu0 %v863, 64
        %v927 = vpop.permute.xlu0 %926
        %928 = vrot.lane.b32.xlu0 %v862, 64
        %v929 = vpop.permute.xlu0 %928
        %930 = vrot.lane.b32.xlu0 %v864, 64
        %v931 = vpop.permute.xlu0 %930
        %932 = vrot.lane.b32.xlu0 %v866, 64
        %v933 = vpop.permute.xlu0 %932
        %934 = vrot.lane.b32.xlu0 %v865, 64
        %v935 = vpop.permute.xlu0 %934
        %936 = vrot.lane.b32.xlu0 %v867, 64
        %v937 = vpop.permute.xlu0 %936
        %938 = vrot.lane.b32.xlu0 %v869, 64
        %v939 = vpop.permute.xlu0 %938
        %940 = vrot.lane.b32.xlu0 %v868, 64
        %v941 = vpop.permute.xlu0 %940
        %942 = vrot.lane.b32.xlu0 %v870, 64
        %v943 = vpop.permute.xlu0 %942
        %944 = vrot.lane.b32.xlu0 %v872, 64
        %v945 = vpop.permute.xlu0 %944
        %946 = vrot.lane.b32.xlu0 %v871, 64
        %v947 = vpop.permute.xlu0 %946
        %948 = vrot.lane.b32.xlu0 %v873, 64
        %v949 = vpop.permute.xlu0 %948
        %950 = vrot.lane.b32.xlu0 %v875, 64
        %v951 = vpop.permute.xlu0 %950
        %952 = vrot.lane.b32.xlu0 %v874, 64
        %v953 = vpop.permute.xlu0 %952
        %954 = vrot.lane.b32.xlu0 %v876, 64
        %v955 = vpop.permute.xlu0 %954
        %956 = vrot.lane.b32.xlu0 %v878, 64
        %v957 = vpop.permute.xlu0 %956
        %958 = vrot.lane.b32.xlu0 %v877, 64
        %v959 = vpop.permute.xlu0 %958
        %960 = vrot.lane.b32.xlu0 %v879, 64
        %v961 = vpop.permute.xlu0 %960
        %962 = vrot.lane.b32.xlu0 %v881, 64
        %v963 = vpop.permute.xlu0 %962
        %964 = vrot.lane.b32.xlu0 %v880, 64
        %v965 = vpop.permute.xlu0 %964
        %966 = vrot.lane.b32.xlu0 %v882, 64
        %v967 = vpop.permute.xlu0 %966
        %968 = vrot.lane.b32.xlu0 %v884, 64
        %v969 = vpop.permute.xlu0 %968
        %970 = vrot.lane.b32.xlu0 %v883, 64
        %v971 = vpop.permute.xlu0 %970
        %972 = vrot.lane.b32.xlu0 %v885, 64
        %v973 = vpop.permute.xlu0 %972
        %974 = vrot.lane.b32.xlu0 %v887, 64
        %v975 = vpop.permute.xlu0 %974
        %976 = vrot.lane.b32.xlu0 %v886, 64
        %v977 = vpop.permute.xlu0 %976
        %978 = vrot.lane.b32.xlu0 %v888, 64
        %v979 = vpop.permute.xlu0 %978
        %980 = vrot.lane.b32.xlu0 %v890, 64
        %v981 = vpop.permute.xlu0 %980
        %982 = vrot.lane.b32.xlu0 %v889, 64
        %v983 = vpop.permute.xlu0 %982
        %984 = vrot.lane.b32.xlu0 %v891, 64
        %v985 = vpop.permute.xlu0 %984
        %986 = vrot.lane.b32.xlu0 %v893, 64
        %v987 = vpop.permute.xlu0 %986
        %988 = vrot.lane.b32.xlu0 %v892, 64
        %v989 = vpop.permute.xlu0 %988
        %v1038 = vadd.f32 %v749, %v895
        %v1039 = vadd.f32 %v750, %v897
        %v1040 = vadd.f32 %v751, %v899
        %v1041 = vadd.f32 %v752, %v901
        %v1042 = vadd.f32 %v753, %v903
        %v1043 = vadd.f32 %v754, %v905
        %v1044 = vadd.f32 %v755, %v907
        %v1045 = vadd.f32 %v756, %v909
        %v1046 = vadd.f32 %v757, %v911
        %v1047 = vadd.f32 %v758, %v913
        %v1048 = vadd.f32 %v759, %v915
        %v1049 = vadd.f32 %v760, %v917
        %v1050 = vadd.f32 %v761, %v919
        %v1051 = vadd.f32 %v762, %v921
        %v1052 = vadd.f32 %v763, %v923
        %v1053 = vadd.f32 %v764, %v925
        %v1054 = vadd.f32 %v765, %v927
        %v1055 = vadd.f32 %v766, %v929
        %v1056 = vadd.f32 %v767, %v931
        %v1057 = vadd.f32 %v768, %v933
        %v1058 = vadd.f32 %v769, %v935
        %v1059 = vadd.f32 %v770, %v937
        %v1060 = vadd.f32 %v771, %v939
        %v1061 = vadd.f32 %v772, %v941
        %v1062 = vadd.f32 %v773, %v943
        %v1063 = vadd.f32 %v774, %v945
        %v1064 = vadd.f32 %v775, %v947
        %v1065 = vadd.f32 %v776, %v949
        %v1066 = vadd.f32 %v777, %v951
        %v1067 = vadd.f32 %v778, %v953
        %v1068 = vadd.f32 %v779, %v955
        %v1069 = vadd.f32 %v780, %v957
        %v1070 = vadd.f32 %v781, %v959
        %v1071 = vadd.f32 %v782, %v961
        %v1072 = vadd.f32 %v783, %v963
        %v1073 = vadd.f32 %v784, %v965
        %v1074 = vadd.f32 %v785, %v967
        %v1075 = vadd.f32 %v786, %v969
        %v1076 = vadd.f32 %v787, %v971
        %v1077 = vadd.f32 %v788, %v973
        %v1078 = vadd.f32 %v789, %v975
        %v1079 = vadd.f32 %v790, %v977
        %v1080 = vadd.f32 %v791, %v979
        %v1081 = vadd.f32 %v792, %v981
        %v1082 = vadd.f32 %v793, %v983
        %v1083 = vadd.f32 %v794, %v985
        %v1084 = vadd.f32 %v795, %v987
        %v1085 = vadd.f32 %v796, %v989
        %v1086 = vld [vmem:[%s684 + $0x18] sm:$0xfe]
        %v1087 = vld [vmem:[%s684 + $0x28] sm:$0xff]
        %v1088 = vld [vmem:[%s684 + $0x38] sm:$0x1]
        %v1089 = vld [vmem:[%s684 + $0x58] sm:$0xfe]
        %v1090 = vld [vmem:[%s684 + $0x68] sm:$0xff]
        %v1091 = vld [vmem:[%s684 + $0x78] sm:$0x1]
        %v1092 = vld [vmem:[%s684 + $0x98] sm:$0xfe]
        %v1093 = vld [vmem:[%s684 + $0xa8] sm:$0xff]
        %v1094 = vld [vmem:[%s684 + $0xb8] sm:$0x1]
        %v1095 = vld [vmem:[%s684 + $0xd8] sm:$0xfe]
        %v1096 = vld [vmem:[%s684 + $0xe8] sm:$0xff]
        %v1097 = vld [vmem:[%s684 + $0xf8] sm:$0x1]
        %v1098 = vld [vmem:[%s684 + $0x118] sm:$0xfe]
        %v1099 = vld [vmem:[%s684 + $0x128] sm:$0xff]
        %v1100 = vld [vmem:[%s684 + $0x138] sm:$0x1]
        %v1101 = vld [vmem:[%s684 + $0x158] sm:$0xfe]
        %v1102 = vld [vmem:[%s684 + $0x168] sm:$0xff]
        %v1103 = vld [vmem:[%s684 + $0x178] sm:$0x1]
        %v1104 = vld [vmem:[%s684 + $0x198] sm:$0xfe]
        %v1105 = vld [vmem:[%s684 + $0x1a8] sm:$0xff]
        %v1106 = vld [vmem:[%s684 + $0x1b8] sm:$0x1]
        %v1107 = vld [vmem:[%s684 + $0x1d8] sm:$0xfe]
        %v1108 = vld [vmem:[%s684 + $0x1e8] sm:$0xff]
        %v1109 = vld [vmem:[%s684 + $0x1f8] sm:$0x1]
        %v1110 = vld [vmem:[%s684 + $0x218] sm:$0xfe]
        %v1111 = vld [vmem:[%s684 + $0x228] sm:$0xff]
        %v1112 = vld [vmem:[%s684 + $0x238] sm:$0x1]
        %v1113 = vld [vmem:[%s684 + $0x258] sm:$0xfe]
        %v1114 = vld [vmem:[%s684 + $0x268] sm:$0xff]
        %v1115 = vld [vmem:[%s684 + $0x278] sm:$0x1]
        %v1116 = vld [vmem:[%s684 + $0x298] sm:$0xfe]
        %v1117 = vld [vmem:[%s684 + $0x2a8] sm:$0xff]
        %v1118 = vld [vmem:[%s684 + $0x2b8] sm:$0x1]
        %v1119 = vld [vmem:[%s684 + $0x2d8] sm:$0xfe]
        %v1120 = vld [vmem:[%s684 + $0x2e8] sm:$0xff]
        %v1121 = vld [vmem:[%s684 + $0x2f8] sm:$0x1]
        %v1122 = vld [vmem:[%s684 + $0x318] sm:$0xfe]
        %v1123 = vld [vmem:[%s684 + $0x328] sm:$0xff]
        %v1124 = vld [vmem:[%s684 + $0x338] sm:$0x1]
        %v1125 = vld [vmem:[%s684 + $0x358] sm:$0xfe]
        %v1126 = vld [vmem:[%s684 + $0x368] sm:$0xff]
        %v1127 = vld [vmem:[%s684 + $0x378] sm:$0x1]
        %v1128 = vld [vmem:[%s684 + $0x398] sm:$0xfe]
        %v1129 = vld [vmem:[%s684 + $0x3a8] sm:$0xff]
        %v1130 = vld [vmem:[%s684 + $0x3b8] sm:$0x1]
        %v1131 = vld [vmem:[%s684 + $0x3d8] sm:$0xfe]
        %v1132 = vld [vmem:[%s684 + $0x3e8] sm:$0xff]
        %v1133 = vld [vmem:[%s684 + $0x3f8] sm:$0x1]
        %vm1182 = vcmask 1045504
        %v1183 = vrot.slane %v1086, 2
        %v1184 = vrot.slane %v1087, 2
        %v1185 = vsel %vm1182, %v1183, %v1184
        %v1186 = vrot.slane %v1088, 2
        %v1187 = vsel %vm1182, %v1184, %v1186
        %v1188 = vrot.slane %v1089, 2
        %v1189 = vrot.slane %v1090, 2
        %v1190 = vsel %vm1182, %v1188, %v1189
        %v1191 = vrot.slane %v1091, 2
        %v1192 = vsel %vm1182, %v1189, %v1191
        %v1193 = vrot.slane %v1092, 2
        %v1194 = vrot.slane %v1093, 2
        %v1195 = vsel %vm1182, %v1193, %v1194
        %v1196 = vrot.slane %v1094, 2
        %v1197 = vsel %vm1182, %v1194, %v1196
        %v1198 = vrot.slane %v1095, 2
        %v1199 = vrot.slane %v1096, 2
        %v1200 = vsel %vm1182, %v1198, %v1199
        %v1201 = vrot.slane %v1097, 2
        %v1202 = vsel %vm1182, %v1199, %v1201
        %v1203 = vrot.slane %v1098, 2
        %v1204 = vrot.slane %v1099, 2
        %v1205 = vsel %vm1182, %v1203, %v1204
        %v1206 = vrot.slane %v1100, 2
        %v1207 = vsel %vm1182, %v1204, %v1206
        %v1208 = vrot.slane %v1101, 2
        %v1209 = vrot.slane %v1102, 2
        %v1210 = vsel %vm1182, %v1208, %v1209
        %v1211 = vrot.slane %v1103, 2
        %v1212 = vsel %vm1182, %v1209, %v1211
        %v1213 = vrot.slane %v1104, 2
        %v1214 = vrot.slane %v1105, 2
        %v1215 = vsel %vm1182, %v1213, %v1214
        %v1216 = vrot.slane %v1106, 2
        %v1217 = vsel %vm1182, %v1214, %v1216
        %v1218 = vrot.slane %v1107, 2
        %v1219 = vrot.slane %v1108, 2
        %v1220 = vsel %vm1182, %v1218, %v1219
        %v1221 = vrot.slane %v1109, 2
        %v1222 = vsel %vm1182, %v1219, %v1221
        %v1223 = vrot.slane %v1110, 2
        %v1224 = vrot.slane %v1111, 2
        %v1225 = vsel %vm1182, %v1223, %v1224
        %v1226 = vrot.slane %v1112, 2
        %v1227 = vsel %vm1182, %v1224, %v1226
        %v1228 = vrot.slane %v1113, 2
        %v1229 = vrot.slane %v1114, 2
        %v1230 = vsel %vm1182, %v1228, %v1229
        %v1231 = vrot.slane %v1115, 2
        %v1232 = vsel %vm1182, %v1229, %v1231
        %v1233 = vrot.slane %v1116, 2
        %v1234 = vrot.slane %v1117, 2
        %v1235 = vsel %vm1182, %v1233, %v1234
        %v1236 = vrot.slane %v1118, 2
        %v1237 = vsel %vm1182, %v1234, %v1236
        %v1238 = vrot.slane %v1119, 2
        %v1239 = vrot.slane %v1120, 2
        %v1240 = vsel %vm1182, %v1238, %v1239
        %v1241 = vrot.slane %v1121, 2
        %v1242 = vsel %vm1182, %v1239, %v1241
        %v1243 = vrot.slane %v1122, 2
        %v1244 = vrot.slane %v1123, 2
        %v1245 = vsel %vm1182, %v1243, %v1244
        %v1246 = vrot.slane %v1124, 2
        %v1247 = vsel %vm1182, %v1244, %v1246
        %v1248 = vrot.slane %v1125, 2
        %v1249 = vrot.slane %v1126, 2
        %v1250 = vsel %vm1182, %v1248, %v1249
        %v1251 = vrot.slane %v1127, 2
        %v1252 = vsel %vm1182, %v1249, %v1251
        %v1253 = vrot.slane %v1128, 2
        %v1254 = vrot.slane %v1129, 2
        %v1255 = vsel %vm1182, %v1253, %v1254
        %v1256 = vrot.slane %v1130, 2
        %v1257 = vsel %vm1182, %v1254, %v1256
        %v1258 = vrot.slane %v1131, 2
        %v1259 = vrot.slane %v1132, 2
        %v1260 = vsel %vm1182, %v1258, %v1259
        %v1261 = vrot.slane %v1133, 2
        %v1262 = vsel %vm1182, %v1259, %v1261
        %v1311 = vadd.f32 %v1038, %v1183
        %v1312 = vadd.f32 %v1039, %v1185
        %v1313 = vadd.f32 %v1040, %v1187
        %v1314 = vadd.f32 %v1041, %v1188
        %v1315 = vadd.f32 %v1042, %v1190
        %v1316 = vadd.f32 %v1043, %v1192
        %v1317 = vadd.f32 %v1044, %v1193
        %v1318 = vadd.f32 %v1045, %v1195
        %v1319 = vadd.f32 %v1046, %v1197
        %v1320 = vadd.f32 %v1047, %v1198
        %v1321 = vadd.f32 %v1048, %v1200
        %v1322 = vadd.f32 %v1049, %v1202
        %v1323 = vadd.f32 %v1050, %v1203
        %v1324 = vadd.f32 %v1051, %v1205
        %v1325 = vadd.f32 %v1052, %v1207
        %v1326 = vadd.f32 %v1053, %v1208
        %v1327 = vadd.f32 %v1054, %v1210
        %v1328 = vadd.f32 %v1055, %v1212
        %v1329 = vadd.f32 %v1056, %v1213
        %v1330 = vadd.f32 %v1057, %v1215
        %v1331 = vadd.f32 %v1058, %v1217
        %v1332 = vadd.f32 %v1059, %v1218
        %v1333 = vadd.f32 %v1060, %v1220
        %v1334 = vadd.f32 %v1061, %v1222
        %v1335 = vadd.f32 %v1062, %v1223
        %v1336 = vadd.f32 %v1063, %v1225
        %v1337 = vadd.f32 %v1064, %v1227
        %v1338 = vadd.f32 %v1065, %v1228
        %v1339 = vadd.f32 %v1066, %v1230
        %v1340 = vadd.f32 %v1067, %v1232
        %v1341 = vadd.f32 %v1068, %v1233
        %v1342 = vadd.f32 %v1069, %v1235
        %v1343 = vadd.f32 %v1070, %v1237
        %v1344 = vadd.f32 %v1071, %v1238
        %v1345 = vadd.f32 %v1072, %v1240
        %v1346 = vadd.f32 %v1073, %v1242
        %v1347 = vadd.f32 %v1074, %v1243
        %v1348 = vadd.f32 %v1075, %v1245
        %v1349 = vadd.f32 %v1076, %v1247
        %v1350 = vadd.f32 %v1077, %v1248
        %v1351 = vadd.f32 %v1078, %v1250
        %v1352 = vadd.f32 %v1079, %v1252
        %v1353 = vadd.f32 %v1080, %v1253
        %v1354 = vadd.f32 %v1081, %v1255
        %v1355 = vadd.f32 %v1082, %v1257
        %v1356 = vadd.f32 %v1083, %v1258
        %v1357 = vadd.f32 %v1084, %v1260
        %v1358 = vadd.f32 %v1085, %v1262
        %v1359 = vld [vmem:[%s2] sm:$0x1]
        %v1361 = vperm.slane %v1359, 0
        %v1363 = vadd.f32 %v1311, %v1361
        %v1364 = vadd.f32 %v1312, %v1361
        %v1365 = vadd.f32 %v1313, %v1361
        %v1366 = vadd.f32 %v1314, %v1361
        %v1367 = vadd.f32 %v1315, %v1361
        %v1368 = vadd.f32 %v1316, %v1361
        %v1369 = vadd.f32 %v1317, %v1361
        %v1370 = vadd.f32 %v1318, %v1361
        %v1371 = vadd.f32 %v1319, %v1361
        %v1372 = vadd.f32 %v1320, %v1361
        %v1373 = vadd.f32 %v1321, %v1361
        %v1374 = vadd.f32 %v1322, %v1361
        %v1375 = vadd.f32 %v1323, %v1361
        %v1376 = vadd.f32 %v1324, %v1361
        %v1377 = vadd.f32 %v1325, %v1361
        %v1378 = vadd.f32 %v1326, %v1361
        %v1379 = vadd.f32 %v1327, %v1361
        %v1380 = vadd.f32 %v1328, %v1361
        %v1381 = vadd.f32 %v1329, %v1361
        %v1382 = vadd.f32 %v1330, %v1361
        %v1383 = vadd.f32 %v1331, %v1361
        %v1384 = vadd.f32 %v1332, %v1361
        %v1385 = vadd.f32 %v1333, %v1361
        %v1386 = vadd.f32 %v1334, %v1361
        %v1387 = vadd.f32 %v1335, %v1361
        %v1388 = vadd.f32 %v1336, %v1361
        %v1389 = vadd.f32 %v1337, %v1361
        %v1390 = vadd.f32 %v1338, %v1361
        %v1391 = vadd.f32 %v1339, %v1361
        %v1392 = vadd.f32 %v1340, %v1361
        %v1393 = vadd.f32 %v1341, %v1361
        %v1394 = vadd.f32 %v1342, %v1361
        %v1395 = vadd.f32 %v1343, %v1361
        %v1396 = vadd.f32 %v1344, %v1361
        %v1397 = vadd.f32 %v1345, %v1361
        %v1398 = vadd.f32 %v1346, %v1361
        %v1399 = vadd.f32 %v1347, %v1361
        %v1400 = vadd.f32 %v1348, %v1361
        %v1401 = vadd.f32 %v1349, %v1361
        %v1402 = vadd.f32 %v1350, %v1361
        %v1403 = vadd.f32 %v1351, %v1361
        %v1404 = vadd.f32 %v1352, %v1361
        %v1405 = vadd.f32 %v1353, %v1361
        %v1406 = vadd.f32 %v1354, %v1361
        %v1407 = vadd.f32 %v1355, %v1361
        %v1408 = vadd.f32 %v1356, %v1361
        %v1409 = vadd.f32 %v1357, %v1361
        %v1410 = vadd.f32 %v1358, %v1361
        %vm1459 = vcmask 1040384
        %v1460 = vrot.slane %v1363, 7
        %v1461 = vrot.slane %v1364, 7
        %v1462 = vsel %vm1459, %v1460, %v1461
        %v1463 = vrot.slane %v1365, 7
        %v1464 = vsel %vm1459, %v1461, %v1463
        %v1465 = vrot.slane %v1366, 7
        %v1466 = vrot.slane %v1367, 7
        %v1467 = vsel %vm1459, %v1465, %v1466
        %v1468 = vrot.slane %v1368, 7
        %v1469 = vsel %vm1459, %v1466, %v1468
        %v1470 = vrot.slane %v1369, 7
        %v1471 = vrot.slane %v1370, 7
        %v1472 = vsel %vm1459, %v1470, %v1471
        %v1473 = vrot.slane %v1371, 7
        %v1474 = vsel %vm1459, %v1471, %v1473
        %v1475 = vrot.slane %v1372, 7
        %v1476 = vrot.slane %v1373, 7
        %v1477 = vsel %vm1459, %v1475, %v1476
        %v1478 = vrot.slane %v1374, 7
        %v1479 = vsel %vm1459, %v1476, %v1478
        %v1480 = vrot.slane %v1375, 7
        %v1481 = vrot.slane %v1376, 7
        %v1482 = vsel %vm1459, %v1480, %v1481
        %v1483 = vrot.slane %v1377, 7
        %v1484 = vsel %vm1459, %v1481, %v1483
        %v1485 = vrot.slane %v1378, 7
        %v1486 = vrot.slane %v1379, 7
        %v1487 = vsel %vm1459, %v1485, %v1486
        %v1488 = vrot.slane %v1380, 7
        %v1489 = vsel %vm1459, %v1486, %v1488
        %v1490 = vrot.slane %v1381, 7
        %v1491 = vrot.slane %v1382, 7
        %v1492 = vsel %vm1459, %v1490, %v1491
        %v1493 = vrot.slane %v1383, 7
        %v1494 = vsel %vm1459, %v1491, %v1493
        %v1495 = vrot.slane %v1384, 7
        %v1496 = vrot.slane %v1385, 7
        %v1497 = vsel %vm1459, %v1495, %v1496
        %v1498 = vrot.slane %v1386, 7
        %v1499 = vsel %vm1459, %v1496, %v1498
        %v1500 = vrot.slane %v1387, 7
        %v1501 = vrot.slane %v1388, 7
        %v1502 = vsel %vm1459, %v1500, %v1501
        %v1503 = vrot.slane %v1389, 7
        %v1504 = vsel %vm1459, %v1501, %v1503
        %v1505 = vrot.slane %v1390, 7
        %v1506 = vrot.slane %v1391, 7
        %v1507 = vsel %vm1459, %v1505, %v1506
        %v1508 = vrot.slane %v1392, 7
        %v1509 = vsel %vm1459, %v1506, %v1508
        %v1510 = vrot.slane %v1393, 7
        %v1511 = vrot.slane %v1394, 7
        %v1512 = vsel %vm1459, %v1510, %v1511
        %v1513 = vrot.slane %v1395, 7
        %v1514 = vsel %vm1459, %v1511, %v1513
        %v1515 = vrot.slane %v1396, 7
        %v1516 = vrot.slane %v1397, 7
        %v1517 = vsel %vm1459, %v1515, %v1516
        %v1518 = vrot.slane %v1398, 7
        %v1519 = vsel %vm1459, %v1516, %v1518
        %v1520 = vrot.slane %v1399, 7
        %v1521 = vrot.slane %v1400, 7
        %v1522 = vsel %vm1459, %v1520, %v1521
        %v1523 = vrot.slane %v1401, 7
        %v1524 = vsel %vm1459, %v1521, %v1523
        %v1525 = vrot.slane %v1402, 7
        %v1526 = vrot.slane %v1403, 7
        %v1527 = vsel %vm1459, %v1525, %v1526
        %v1528 = vrot.slane %v1404, 7
        %v1529 = vsel %vm1459, %v1526, %v1528
        %v1530 = vrot.slane %v1405, 7
        %v1531 = vrot.slane %v1406, 7
        %v1532 = vsel %vm1459, %v1530, %v1531
        %v1533 = vrot.slane %v1407, 7
        %v1534 = vsel %vm1459, %v1531, %v1533
        %v1535 = vrot.slane %v1408, 7
        %v1536 = vrot.slane %v1409, 7
        %v1537 = vsel %vm1459, %v1535, %v1536
        %v1538 = vrot.slane %v1410, 7
        %v1539 = vsel %vm1459, %v1536, %v1538
        %s1540 = scalar_lea.vmem %s1, 128
        %v1541 = vld [vmem:[%s1540] sm:$0xff]
        %v1542 = vld [vmem:[%s1540 + $0x8] sm:$0xff]
        %v1543 = vld [vmem:[%s1540 + $0x10] sm:$0xff]
        %v1544 = vld [vmem:[%s1540 + $0x18] sm:$0xff]
        %v1545 = vld [vmem:[%s1540 + $0x20] sm:$0xff]
        %v1546 = vld [vmem:[%s1540 + $0x28] sm:$0xff]
        %v1547 = vld [vmem:[%s1540 + $0x30] sm:$0xff]
        %v1548 = vld [vmem:[%s1540 + $0x38] sm:$0xff]
        %v1549 = vld [vmem:[%s1540 + $0x40] sm:$0xff]
        %v1550 = vld [vmem:[%s1540 + $0x48] sm:$0xff]
        %v1551 = vld [vmem:[%s1540 + $0x50] sm:$0xff]
        %v1552 = vld [vmem:[%s1540 + $0x58] sm:$0xff]
        %v1553 = vld [vmem:[%s1540 + $0x60] sm:$0xff]
        %v1554 = vld [vmem:[%s1540 + $0x68] sm:$0xff]
        %v1555 = vld [vmem:[%s1540 + $0x70] sm:$0xff]
        %v1556 = vld [vmem:[%s1540 + $0x78] sm:$0xff]
        %v1557 = vsel %vm170, %v1462, 0
        %v1559 = vsel %vm170, %v1464, 0
        %v1561 = vsel %vm170, %v1467, 0
        %v1563 = vsel %vm170, %v1469, 0
        %v1565 = vsel %vm170, %v1472, 0
        %v1567 = vsel %vm170, %v1474, 0
        %v1569 = vsel %vm170, %v1477, 0
        %v1571 = vsel %vm170, %v1479, 0
        %v1573 = vsel %vm170, %v1482, 0
        %v1575 = vsel %vm170, %v1484, 0
        %v1577 = vsel %vm170, %v1487, 0
        %v1579 = vsel %vm170, %v1489, 0
        %v1581 = vsel %vm170, %v1492, 0
        %v1583 = vsel %vm170, %v1494, 0
        %v1585 = vsel %vm170, %v1497, 0
        %v1587 = vsel %vm170, %v1499, 0
        %v1589 = vsel %vm170, %v1502, 0
        %v1591 = vsel %vm170, %v1504, 0
        %v1593 = vsel %vm170, %v1507, 0
        %v1595 = vsel %vm170, %v1509, 0
        %v1597 = vsel %vm170, %v1512, 0
        %v1599 = vsel %vm170, %v1514, 0
        %v1601 = vsel %vm170, %v1517, 0
        %v1603 = vsel %vm170, %v1519, 0
        %v1605 = vsel %vm170, %v1522, 0
        %v1607 = vsel %vm170, %v1524, 0
        %v1609 = vsel %vm170, %v1527, 0
        %v1611 = vsel %vm170, %v1529, 0
        %v1613 = vsel %vm170, %v1532, 0
        %v1615 = vsel %vm170, %v1534, 0
        %v1617 = vsel %vm170, %v1537, 0
        %v1619 = vsel %vm170, %v1539, 0
        %1621 = vmatpush.msra.mxu0 0.0
        %1622 = vmatpush.msra.mxu0 0.0
        %1623 = vmatpush.msra.mxu0 0.0
        %1624 = vmatpush.msra.mxu0 0.0
        %1625 = vmatpush.msra.mxu0 0.0
        %1626 = vmatpush.msra.mxu0 0.0
        %1627 = vmatpush.msra.mxu0 0.0
        %1628 = vmatpush.msra.mxu0 0.0
        %1629 = vmatpush.msra.mxu0 %v1555
        %1630 = vmatpush.msra.mxu0 %v1553
        %1631 = vmatpush.msra.mxu0 %v1551
        %1632 = vmatpush.msra.mxu0 %v1549
        %1633 = vmatpush.msra.mxu0 %v1547
        %1634 = vmatpush.msra.mxu0 %v1545
        %1635 = vmatpush.msra.mxu0 %v1543
        %1636 = vmatpush.msra.mxu0 %v1541
        %1637 = vmatmul.f32.gmra.mxu0 %v1557
        %v1638 = vpop.f32.mrf.mxu0
        %v1639 = vadd.f32 0.0, %v1638
        %1640 = vmatmul.f32.gmra.mxu0 %v1559
        %v1641 = vpop.f32.mrf.mxu0
        %v1642 = vadd.f32 0.0, %v1641
        %1643 = vmatmul.f32.gmra.mxu0 %v1561
        %v1644 = vpop.f32.mrf.mxu0
        %v1645 = vadd.f32 0.0, %v1644
        %1646 = vmatmul.f32.gmra.mxu0 %v1563
        %v1647 = vpop.f32.mrf.mxu0
        %v1648 = vadd.f32 0.0, %v1647
        %1649 = vmatmul.f32.gmra.mxu0 %v1565
        %v1650 = vpop.f32.mrf.mxu0
        %v1651 = vadd.f32 0.0, %v1650
        %1652 = vmatmul.f32.gmra.mxu0 %v1567
        %v1653 = vpop.f32.mrf.mxu0
        %v1654 = vadd.f32 0.0, %v1653
        %1655 = vmatmul.f32.gmra.mxu0 %v1569
        %v1656 = vpop.f32.mrf.mxu0
        %v1657 = vadd.f32 0.0, %v1656
        %1658 = vmatmul.f32.gmra.mxu0 %v1571
        %v1659 = vpop.f32.mrf.mxu0
        %v1660 = vadd.f32 0.0, %v1659
        %1661 = vmatmul.f32.gmra.mxu0 %v1573
        %v1662 = vpop.f32.mrf.mxu0
        %v1663 = vadd.f32 0.0, %v1662
        %1664 = vmatmul.f32.gmra.mxu0 %v1575
        %v1665 = vpop.f32.mrf.mxu0
        %v1666 = vadd.f32 0.0, %v1665
        %1667 = vmatmul.f32.gmra.mxu0 %v1577
        %v1668 = vpop.f32.mrf.mxu0
        %v1669 = vadd.f32 0.0, %v1668
        %1670 = vmatmul.f32.gmra.mxu0 %v1579
        %v1671 = vpop.f32.mrf.mxu0
        %v1672 = vadd.f32 0.0, %v1671
        %1673 = vmatmul.f32.gmra.mxu0 %v1581
        %v1674 = vpop.f32.mrf.mxu0
        %v1675 = vadd.f32 0.0, %v1674
        %1676 = vmatmul.f32.gmra.mxu0 %v1583
        %v1677 = vpop.f32.mrf.mxu0
        %v1678 = vadd.f32 0.0, %v1677
        %1679 = vmatmul.f32.gmra.mxu0 %v1585
        %v1680 = vpop.f32.mrf.mxu0
        %v1681 = vadd.f32 0.0, %v1680
        %1682 = vmatmul.f32.gmra.mxu0 %v1587
        %v1683 = vpop.f32.mrf.mxu0
        %v1684 = vadd.f32 0.0, %v1683
        %1685 = vmatmul.f32.gmra.mxu0 %v1589
        %v1686 = vpop.f32.mrf.mxu0
        %v1687 = vadd.f32 0.0, %v1686
        %1688 = vmatmul.f32.gmra.mxu0 %v1591
        %v1689 = vpop.f32.mrf.mxu0
        %v1690 = vadd.f32 0.0, %v1689
        %1691 = vmatmul.f32.gmra.mxu0 %v1593
        %v1692 = vpop.f32.mrf.mxu0
        %v1693 = vadd.f32 0.0, %v1692
        %1694 = vmatmul.f32.gmra.mxu0 %v1595
        %v1695 = vpop.f32.mrf.mxu0
        %v1696 = vadd.f32 0.0, %v1695
        %1697 = vmatmul.f32.gmra.mxu0 %v1597
        %v1698 = vpop.f32.mrf.mxu0
        %v1699 = vadd.f32 0.0, %v1698
        %1700 = vmatmul.f32.gmra.mxu0 %v1599
        %v1701 = vpop.f32.mrf.mxu0
        %v1702 = vadd.f32 0.0, %v1701
        %1703 = vmatmul.f32.gmra.mxu0 %v1601
        %v1704 = vpop.f32.mrf.mxu0
        %v1705 = vadd.f32 0.0, %v1704
        %1706 = vmatmul.f32.gmra.mxu0 %v1603
        %v1707 = vpop.f32.mrf.mxu0
        %v1708 = vadd.f32 0.0, %v1707
        %1709 = vmatmul.f32.gmra.mxu0 %v1605
        %v1710 = vpop.f32.mrf.mxu0
        %v1711 = vadd.f32 0.0, %v1710
        %1712 = vmatmul.f32.gmra.mxu0 %v1607
        %v1713 = vpop.f32.mrf.mxu0
        %v1714 = vadd.f32 0.0, %v1713
        %1715 = vmatmul.f32.gmra.mxu0 %v1609
        %v1716 = vpop.f32.mrf.mxu0
        %v1717 = vadd.f32 0.0, %v1716
        %1718 = vmatmul.f32.gmra.mxu0 %v1611
        %v1719 = vpop.f32.mrf.mxu0
        %v1720 = vadd.f32 0.0, %v1719
        %1721 = vmatmul.f32.gmra.mxu0 %v1613
        %v1722 = vpop.f32.mrf.mxu0
        %v1723 = vadd.f32 0.0, %v1722
        %1724 = vmatmul.f32.gmra.mxu0 %v1615
        %v1725 = vpop.f32.mrf.mxu0
        %v1726 = vadd.f32 0.0, %v1725
        %1727 = vmatmul.f32.gmra.mxu0 %v1617
        %v1728 = vpop.f32.mrf.mxu0
        %v1729 = vadd.f32 0.0, %v1728
        %1730 = vmatmul.f32.gmra.mxu0 %v1619
        %v1731 = vpop.f32.mrf.mxu0
        %v1732 = vadd.f32 0.0, %v1731
        %1733 = vdwg.mxu0
        %1734 = vmatpush.msra.mxu0 0.0
        %1735 = vmatpush.msra.mxu0 0.0
        %1736 = vmatpush.msra.mxu0 0.0
        %1737 = vmatpush.msra.mxu0 0.0
        %1738 = vmatpush.msra.mxu0 0.0
        %1739 = vmatpush.msra.mxu0 0.0
        %1740 = vmatpush.msra.mxu0 0.0
        %1741 = vmatpush.msra.mxu0 0.0
        %1742 = vmatpush.msra.mxu0 %v1556
        %1743 = vmatpush.msra.mxu0 %v1554
        %1744 = vmatpush.msra.mxu0 %v1552
        %1745 = vmatpush.msra.mxu0 %v1550
        %1746 = vmatpush.msra.mxu0 %v1548
        %1747 = vmatpush.msra.mxu0 %v1546
        %1748 = vmatpush.msra.mxu0 %v1544
        %1749 = vmatpush.msra.mxu0 %v1542
        %1750 = vmatmul.f32.gmra.mxu0 %v1557
        %v1751 = vpop.f32.mrf.mxu0
        %v1752 = vadd.f32 0.0, %v1751
        %1753 = vmatmul.f32.gmra.mxu0 %v1559
        %v1754 = vpop.f32.mrf.mxu0
        %v1755 = vadd.f32 0.0, %v1754
        %1756 = vmatmul.f32.gmra.mxu0 %v1561
        %v1757 = vpop.f32.mrf.mxu0
        %v1758 = vadd.f32 0.0, %v1757
        %1759 = vmatmul.f32.gmra.mxu0 %v1563
        %v1760 = vpop.f32.mrf.mxu0
        %v1761 = vadd.f32 0.0, %v1760
        %1762 = vmatmul.f32.gmra.mxu0 %v1565
        %v1763 = vpop.f32.mrf.mxu0
        %v1764 = vadd.f32 0.0, %v1763
        %1765 = vmatmul.f32.gmra.mxu0 %v1567
        %v1766 = vpop.f32.mrf.mxu0
        %v1767 = vadd.f32 0.0, %v1766
        %1768 = vmatmul.f32.gmra.mxu0 %v1569
        %v1769 = vpop.f32.mrf.mxu0
        %v1770 = vadd.f32 0.0, %v1769
        %1771 = vmatmul.f32.gmra.mxu0 %v1571
        %v1772 = vpop.f32.mrf.mxu0
        %v1773 = vadd.f32 0.0, %v1772
        %1774 = vmatmul.f32.gmra.mxu0 %v1573
        %v1775 = vpop.f32.mrf.mxu0
        %v1776 = vadd.f32 0.0, %v1775
        %1777 = vmatmul.f32.gmra.mxu0 %v1575
        %v1778 = vpop.f32.mrf.mxu0
        %v1779 = vadd.f32 0.0, %v1778
        %1780 = vmatmul.f32.gmra.mxu0 %v1577
        %v1781 = vpop.f32.mrf.mxu0
        %v1782 = vadd.f32 0.0, %v1781
        %1783 = vmatmul.f32.gmra.mxu0 %v1579
        %v1784 = vpop.f32.mrf.mxu0
        %v1785 = vadd.f32 0.0, %v1784
        %1786 = vmatmul.f32.gmra.mxu0 %v1581
        %v1787 = vpop.f32.mrf.mxu0
        %v1788 = vadd.f32 0.0, %v1787
        %1789 = vmatmul.f32.gmra.mxu0 %v1583
        %v1790 = vpop.f32.mrf.mxu0
        %v1791 = vadd.f32 0.0, %v1790
        %1792 = vmatmul.f32.gmra.mxu0 %v1585
        %v1793 = vpop.f32.mrf.mxu0
        %v1794 = vadd.f32 0.0, %v1793
        %1795 = vmatmul.f32.gmra.mxu0 %v1587
        %v1796 = vpop.f32.mrf.mxu0
        %v1797 = vadd.f32 0.0, %v1796
        %1798 = vmatmul.f32.gmra.mxu0 %v1589
        %v1799 = vpop.f32.mrf.mxu0
        %v1800 = vadd.f32 0.0, %v1799
        %1801 = vmatmul.f32.gmra.mxu0 %v1591
        %v1802 = vpop.f32.mrf.mxu0
        %v1803 = vadd.f32 0.0, %v1802
        %1804 = vmatmul.f32.gmra.mxu0 %v1593
        %v1805 = vpop.f32.mrf.mxu0
        %v1806 = vadd.f32 0.0, %v1805
        %1807 = vmatmul.f32.gmra.mxu0 %v1595
        %v1808 = vpop.f32.mrf.mxu0
        %v1809 = vadd.f32 0.0, %v1808
        %1810 = vmatmul.f32.gmra.mxu0 %v1597
        %v1811 = vpop.f32.mrf.mxu0
        %v1812 = vadd.f32 0.0, %v1811
        %1813 = vmatmul.f32.gmra.mxu0 %v1599
        %v1814 = vpop.f32.mrf.mxu0
        %v1815 = vadd.f32 0.0, %v1814
        %1816 = vmatmul.f32.gmra.mxu0 %v1601
        %v1817 = vpop.f32.mrf.mxu0
        %v1818 = vadd.f32 0.0, %v1817
        %1819 = vmatmul.f32.gmra.mxu0 %v1603
        %v1820 = vpop.f32.mrf.mxu0
        %v1821 = vadd.f32 0.0, %v1820
        %1822 = vmatmul.f32.gmra.mxu0 %v1605
        %v1823 = vpop.f32.mrf.mxu0
        %v1824 = vadd.f32 0.0, %v1823
        %1825 = vmatmul.f32.gmra.mxu0 %v1607
        %v1826 = vpop.f32.mrf.mxu0
        %v1827 = vadd.f32 0.0, %v1826
        %1828 = vmatmul.f32.gmra.mxu0 %v1609
        %v1829 = vpop.f32.mrf.mxu0
        %v1830 = vadd.f32 0.0, %v1829
        %1831 = vmatmul.f32.gmra.mxu0 %v1611
        %v1832 = vpop.f32.mrf.mxu0
        %v1833 = vadd.f32 0.0, %v1832
        %1834 = vmatmul.f32.gmra.mxu0 %v1613
        %v1835 = vpop.f32.mrf.mxu0
        %v1836 = vadd.f32 0.0, %v1835
        %1837 = vmatmul.f32.gmra.mxu0 %v1615
        %v1838 = vpop.f32.mrf.mxu0
        %v1839 = vadd.f32 0.0, %v1838
        %1840 = vmatmul.f32.gmra.mxu0 %v1617
        %v1841 = vpop.f32.mrf.mxu0
        %v1842 = vadd.f32 0.0, %v1841
        %1843 = vmatmul.f32.gmra.mxu0 %v1619
        %v1844 = vpop.f32.mrf.mxu0
        %v1845 = vadd.f32 0.0, %v1844
        %1846 = vdwg.mxu0
        %1847 = vst [vmem:[%s684 + $0x10] sm:$0xff] %v1639
        %1848 = vst.msk [vmem:[%s684 + $0x18] sm:$0xff] %vm170, %v1752
        %1849 = vst [vmem:[%s684 + $0x20] sm:$0xff] %v1642
        %1850 = vst.msk [vmem:[%s684 + $0x28] sm:$0xff] %vm170, %v1755
        %1851 = vst [vmem:[%s684 + $0x50] sm:$0xff] %v1645
        %1852 = vst.msk [vmem:[%s684 + $0x58] sm:$0xff] %vm170, %v1758
        %1853 = vst [vmem:[%s684 + $0x60] sm:$0xff] %v1648
        %1854 = vst.msk [vmem:[%s684 + $0x68] sm:$0xff] %vm170, %v1761
        %1855 = vst [vmem:[%s684 + $0x90] sm:$0xff] %v1651
        %1856 = vst.msk [vmem:[%s684 + $0x98] sm:$0xff] %vm170, %v1764
        %1857 = vst [vmem:[%s684 + $0xa0] sm:$0xff] %v1654
        %1858 = vst.msk [vmem:[%s684 + $0xa8] sm:$0xff] %vm170, %v1767
        %1859 = vst [vmem:[%s684 + $0xd0] sm:$0xff] %v1657
        %1860 = vst.msk [vmem:[%s684 + $0xd8] sm:$0xff] %vm170, %v1770
        %1861 = vst [vmem:[%s684 + $0xe0] sm:$0xff] %v1660
        %1862 = vst.msk [vmem:[%s684 + $0xe8] sm:$0xff] %vm170, %v1773
        %1863 = vst [vmem:[%s684 + $0x110] sm:$0xff] %v1663
        %1864 = vst.msk [vmem:[%s684 + $0x118] sm:$0xff] %vm170, %v1776
        %1865 = vst [vmem:[%s684 + $0x120] sm:$0xff] %v1666
        %1866 = vst.msk [vmem:[%s684 + $0x128] sm:$0xff] %vm170, %v1779
        %1867 = vst [vmem:[%s684 + $0x150] sm:$0xff] %v1669
        %1868 = vst.msk [vmem:[%s684 + $0x158] sm:$0xff] %vm170, %v1782
        %1869 = vst [vmem:[%s684 + $0x160] sm:$0xff] %v1672
        %1870 = vst.msk [vmem:[%s684 + $0x168] sm:$0xff] %vm170, %v1785
        %1871 = vst [vmem:[%s684 + $0x190] sm:$0xff] %v1675
        %1872 = vst.msk [vmem:[%s684 + $0x198] sm:$0xff] %vm170, %v1788
        %1873 = vst [vmem:[%s684 + $0x1a0] sm:$0xff] %v1678
        %1874 = vst.msk [vmem:[%s684 + $0x1a8] sm:$0xff] %vm170, %v1791
        %1875 = vst [vmem:[%s684 + $0x1d0] sm:$0xff] %v1681
        %1876 = vst.msk [vmem:[%s684 + $0x1d8] sm:$0xff] %vm170, %v1794
        %1877 = vst [vmem:[%s684 + $0x1e0] sm:$0xff] %v1684
        %1878 = vst.msk [vmem:[%s684 + $0x1e8] sm:$0xff] %vm170, %v1797
        %1879 = vst [vmem:[%s684 + $0x210] sm:$0xff] %v1687
        %1880 = vst.msk [vmem:[%s684 + $0x218] sm:$0xff] %vm170, %v1800
        %1881 = vst [vmem:[%s684 + $0x220] sm:$0xff] %v1690
        %1882 = vst.msk [vmem:[%s684 + $0x228] sm:$0xff] %vm170, %v1803
        %1883 = vst [vmem:[%s684 + $0x250] sm:$0xff] %v1693
        %1884 = vst.msk [vmem:[%s684 + $0x258] sm:$0xff] %vm170, %v1806
        %1885 = vst [vmem:[%s684 + $0x260] sm:$0xff] %v1696
        %1886 = vst.msk [vmem:[%s684 + $0x268] sm:$0xff] %vm170, %v1809
        %1887 = vst [vmem:[%s684 + $0x290] sm:$0xff] %v1699
        %1888 = vst.msk [vmem:[%s684 + $0x298] sm:$0xff] %vm170, %v1812
        %1889 = vst [vmem:[%s684 + $0x2a0] sm:$0xff] %v1702
        %1890 = vst.msk [vmem:[%s684 + $0x2a8] sm:$0xff] %vm170, %v1815
        %1891 = vst [vmem:[%s684 + $0x2d0] sm:$0xff] %v1705
        %1892 = vst.msk [vmem:[%s684 + $0x2d8] sm:$0xff] %vm170, %v1818
        %1893 = vst [vmem:[%s684 + $0x2e0] sm:$0xff] %v1708
        %1894 = vst.msk [vmem:[%s684 + $0x2e8] sm:$0xff] %vm170, %v1821
        %1895 = vst [vmem:[%s684 + $0x310] sm:$0xff] %v1711
        %1896 = vst.msk [vmem:[%s684 + $0x318] sm:$0xff] %vm170, %v1824
        %1897 = vst [vmem:[%s684 + $0x320] sm:$0xff] %v1714
        %1898 = vst.msk [vmem:[%s684 + $0x328] sm:$0xff] %vm170, %v1827
        %1899 = vst [vmem:[%s684 + $0x350] sm:$0xff] %v1717
        %1900 = vst.msk [vmem:[%s684 + $0x358] sm:$0xff] %vm170, %v1830
        %1901 = vst [vmem:[%s684 + $0x360] sm:$0xff] %v1720
        %1902 = vst.msk [vmem:[%s684 + $0x368] sm:$0xff] %vm170, %v1833
        %1903 = vst [vmem:[%s684 + $0x390] sm:$0xff] %v1723
        %1904 = vst.msk [vmem:[%s684 + $0x398] sm:$0xff] %vm170, %v1836
        %1905 = vst [vmem:[%s684 + $0x3a0] sm:$0xff] %v1726
        %1906 = vst.msk [vmem:[%s684 + $0x3a8] sm:$0xff] %vm170, %v1839
        %1907 = vst [vmem:[%s684 + $0x3d0] sm:$0xff] %v1729
        %1908 = vst.msk [vmem:[%s684 + $0x3d8] sm:$0xff] %vm170, %v1842
        %1909 = vst [vmem:[%s684 + $0x3e0] sm:$0xff] %v1732
        %1910 = vst.msk [vmem:[%s684 + $0x3e8] sm:$0xff] %vm170, %v1845
        %v1911 = vld [vmem:[#allocation2 + $0x10] sm:$0xff]
        %v1912 = vld [vmem:[#allocation2 + $0x20] sm:$0xff]
        %v1913 = vld [vmem:[#allocation2 + $0x50] sm:$0xff]
        %v1914 = vld [vmem:[#allocation2 + $0x60] sm:$0xff]
        %v1915 = vld [vmem:[#allocation2 + $0x90] sm:$0xff]
        %v1916 = vld [vmem:[#allocation2 + $0xa0] sm:$0xff]
        %v1917 = vld [vmem:[#allocation2 + $0xd0] sm:$0xff]
        %v1918 = vld [vmem:[#allocation2 + $0xe0] sm:$0xff]
        %v1919 = vld [vmem:[#allocation2 + $0x110] sm:$0xff]
        %v1920 = vld [vmem:[#allocation2 + $0x120] sm:$0xff]
        %v1921 = vld [vmem:[#allocation2 + $0x150] sm:$0xff]
        %v1922 = vld [vmem:[#allocation2 + $0x160] sm:$0xff]
        %v1923 = vld [vmem:[#allocation2 + $0x190] sm:$0xff]
        %v1924 = vld [vmem:[#allocation2 + $0x1a0] sm:$0xff]
        %v1925 = vld [vmem:[#allocation2 + $0x1d0] sm:$0xff]
        %v1926 = vld [vmem:[#allocation2 + $0x1e0] sm:$0xff]
        %v1927 = vld [vmem:[#allocation2 + $0x210] sm:$0xff]
        %v1928 = vld [vmem:[#allocation2 + $0x220] sm:$0xff]
        %v1929 = vld [vmem:[#allocation2 + $0x250] sm:$0xff]
        %v1930 = vld [vmem:[#allocation2 + $0x260] sm:$0xff]
        %v1931 = vld [vmem:[#allocation2 + $0x290] sm:$0xff]
        %v1932 = vld [vmem:[#allocation2 + $0x2a0] sm:$0xff]
        %v1933 = vld [vmem:[#allocation2 + $0x2d0] sm:$0xff]
        %v1934 = vld [vmem:[#allocation2 + $0x2e0] sm:$0xff]
        %v1935 = vld [vmem:[#allocation2 + $0x310] sm:$0xff]
        %v1936 = vld [vmem:[#allocation2 + $0x320] sm:$0xff]
        %v1937 = vld [vmem:[#allocation2 + $0x350] sm:$0xff]
        %v1938 = vld [vmem:[#allocation2 + $0x360] sm:$0xff]
        %v1939 = vld [vmem:[#allocation2 + $0x390] sm:$0xff]
        %v1940 = vld [vmem:[#allocation2 + $0x3a0] sm:$0xff]
        %v1941 = vld [vmem:[#allocation2 + $0x3d0] sm:$0xff]
        %v1942 = vld [vmem:[#allocation2 + $0x3e0] sm:$0xff]
        %v1943 = vld [vmem:[%s684 + $0x10] sm:$0xff]
        %v1944 = vld [vmem:[%s684 + $0x20] sm:$0xff]
        %v1945 = vld [vmem:[%s684 + $0x50] sm:$0xff]
        %v1946 = vld [vmem:[%s684 + $0x60] sm:$0xff]
        %v1947 = vld [vmem:[%s684 + $0x90] sm:$0xff]
        %v1948 = vld [vmem:[%s684 + $0xa0] sm:$0xff]
        %v1949 = vld [vmem:[%s684 + $0xd0] sm:$0xff]
        %v1950 = vld [vmem:[%s684 + $0xe0] sm:$0xff]
        %v1951 = vld [vmem:[%s684 + $0x110] sm:$0xff]
        %v1952 = vld [vmem:[%s684 + $0x120] sm:$0xff]
        %v1953 = vld [vmem:[%s684 + $0x150] sm:$0xff]
        %v1954 = vld [vmem:[%s684 + $0x160] sm:$0xff]
        %v1955 = vld [vmem:[%s684 + $0x190] sm:$0xff]
        %v1956 = vld [vmem:[%s684 + $0x1a0] sm:$0xff]
        %v1957 = vld [vmem:[%s684 + $0x1d0] sm:$0xff]
        %v1958 = vld [vmem:[%s684 + $0x1e0] sm:$0xff]
        %v1959 = vld [vmem:[%s684 + $0x210] sm:$0xff]
        %v1960 = vld [vmem:[%s684 + $0x220] sm:$0xff]
        %v1961 = vld [vmem:[%s684 + $0x250] sm:$0xff]
        %v1962 = vld [vmem:[%s684 + $0x260] sm:$0xff]
        %v1963 = vld [vmem:[%s684 + $0x290] sm:$0xff]
        %v1964 = vld [vmem:[%s684 + $0x2a0] sm:$0xff]
        %v1965 = vld [vmem:[%s684 + $0x2d0] sm:$0xff]
        %v1966 = vld [vmem:[%s684 + $0x2e0] sm:$0xff]
        %v1967 = vld [vmem:[%s684 + $0x310] sm:$0xff]
        %v1968 = vld [vmem:[%s684 + $0x320] sm:$0xff]
        %v1969 = vld [vmem:[%s684 + $0x350] sm:$0xff]
        %v1970 = vld [vmem:[%s684 + $0x360] sm:$0xff]
        %v1971 = vld [vmem:[%s684 + $0x390] sm:$0xff]
        %v1972 = vld [vmem:[%s684 + $0x3a0] sm:$0xff]
        %v1973 = vld [vmem:[%s684 + $0x3d0] sm:$0xff]
        %v1974 = vld [vmem:[%s684 + $0x3e0] sm:$0xff]
        %2007 = vrot.lane.b32.xlu0 %v1943, 64
        %v2008 = vpop.permute.xlu0 %2007
        %2009 = vrot.lane.b32.xlu0 %v1944, 64
        %v2010 = vpop.permute.xlu0 %2009
        %2011 = vrot.lane.b32.xlu0 %v1945, 64
        %v2012 = vpop.permute.xlu0 %2011
        %2013 = vrot.lane.b32.xlu0 %v1946, 64
        %v2014 = vpop.permute.xlu0 %2013
        %2015 = vrot.lane.b32.xlu0 %v1947, 64
        %v2016 = vpop.permute.xlu0 %2015
        %2017 = vrot.lane.b32.xlu0 %v1948, 64
        %v2018 = vpop.permute.xlu0 %2017
        %2019 = vrot.lane.b32.xlu0 %v1949, 64
        %v2020 = vpop.permute.xlu0 %2019
        %2021 = vrot.lane.b32.xlu0 %v1950, 64
        %v2022 = vpop.permute.xlu0 %2021
        %2023 = vrot.lane.b32.xlu0 %v1951, 64
        %v2024 = vpop.permute.xlu0 %2023
        %2025 = vrot.lane.b32.xlu0 %v1952, 64
        %v2026 = vpop.permute.xlu0 %2025
        %2027 = vrot.lane.b32.xlu0 %v1953, 64
        %v2028 = vpop.permute.xlu0 %2027
        %2029 = vrot.lane.b32.xlu0 %v1954, 64
        %v2030 = vpop.permute.xlu0 %2029
        %2031 = vrot.lane.b32.xlu0 %v1955, 64
        %v2032 = vpop.permute.xlu0 %2031
        %2033 = vrot.lane.b32.xlu0 %v1956, 64
        %v2034 = vpop.permute.xlu0 %2033
        %2035 = vrot.lane.b32.xlu0 %v1957, 64
        %v2036 = vpop.permute.xlu0 %2035
        %2037 = vrot.lane.b32.xlu0 %v1958, 64
        %v2038 = vpop.permute.xlu0 %2037
        %2039 = vrot.lane.b32.xlu0 %v1959, 64
        %v2040 = vpop.permute.xlu0 %2039
        %2041 = vrot.lane.b32.xlu0 %v1960, 64
        %v2042 = vpop.permute.xlu0 %2041
        %2043 = vrot.lane.b32.xlu0 %v1961, 64
        %v2044 = vpop.permute.xlu0 %2043
        %2045 = vrot.lane.b32.xlu0 %v1962, 64
        %v2046 = vpop.permute.xlu0 %2045
        %2047 = vrot.lane.b32.xlu0 %v1963, 64
        %v2048 = vpop.permute.xlu0 %2047
        %2049 = vrot.lane.b32.xlu0 %v1964, 64
        %v2050 = vpop.permute.xlu0 %2049
        %2051 = vrot.lane.b32.xlu0 %v1965, 64
        %v2052 = vpop.permute.xlu0 %2051
        %2053 = vrot.lane.b32.xlu0 %v1966, 64
        %v2054 = vpop.permute.xlu0 %2053
        %2055 = vrot.lane.b32.xlu0 %v1967, 64
        %v2056 = vpop.permute.xlu0 %2055
        %2057 = vrot.lane.b32.xlu0 %v1968, 64
        %v2058 = vpop.permute.xlu0 %2057
        %2059 = vrot.lane.b32.xlu0 %v1969, 64
        %v2060 = vpop.permute.xlu0 %2059
        %2061 = vrot.lane.b32.xlu0 %v1970, 64
        %v2062 = vpop.permute.xlu0 %2061
        %2063 = vrot.lane.b32.xlu0 %v1971, 64
        %v2064 = vpop.permute.xlu0 %2063
        %2065 = vrot.lane.b32.xlu0 %v1972, 64
        %v2066 = vpop.permute.xlu0 %2065
        %2067 = vrot.lane.b32.xlu0 %v1973, 64
        %v2068 = vpop.permute.xlu0 %2067
        %2069 = vrot.lane.b32.xlu0 %v1974, 64
        %v2070 = vpop.permute.xlu0 %2069
        %v2103 = vadd.f32 %v1911, %v2008
        %v2104 = vadd.f32 %v1912, %v2010
        %v2105 = vadd.f32 %v1913, %v2012
        %v2106 = vadd.f32 %v1914, %v2014
        %v2107 = vadd.f32 %v1915, %v2016
        %v2108 = vadd.f32 %v1916, %v2018
        %v2109 = vadd.f32 %v1917, %v2020
        %v2110 = vadd.f32 %v1918, %v2022
        %v2111 = vadd.f32 %v1919, %v2024
        %v2112 = vadd.f32 %v1920, %v2026
        %v2113 = vadd.f32 %v1921, %v2028
        %v2114 = vadd.f32 %v1922, %v2030
        %v2115 = vadd.f32 %v1923, %v2032
        %v2116 = vadd.f32 %v1924, %v2034
        %v2117 = vadd.f32 %v1925, %v2036
        %v2118 = vadd.f32 %v1926, %v2038
        %v2119 = vadd.f32 %v1927, %v2040
        %v2120 = vadd.f32 %v1928, %v2042
        %v2121 = vadd.f32 %v1929, %v2044
        %v2122 = vadd.f32 %v1930, %v2046
        %v2123 = vadd.f32 %v1931, %v2048
        %v2124 = vadd.f32 %v1932, %v2050
        %v2125 = vadd.f32 %v1933, %v2052
        %v2126 = vadd.f32 %v1934, %v2054
        %v2127 = vadd.f32 %v1935, %v2056
        %v2128 = vadd.f32 %v1936, %v2058
        %v2129 = vadd.f32 %v1937, %v2060
        %v2130 = vadd.f32 %v1938, %v2062
        %v2131 = vadd.f32 %v1939, %v2064
        %v2132 = vadd.f32 %v1940, %v2066
        %v2133 = vadd.f32 %v1941, %v2068
        %v2134 = vadd.f32 %v1942, %v2070
        %s2135 = scalar_lea.vmem [#allocation2], 128
        %v2136 = vld [vmem:[%s2135 + $0x18] sm:$0xff]
        %v2137 = vld [vmem:[%s2135 + $0x28] sm:$0xff]
        %v2138 = vld [vmem:[%s2135 + $0x58] sm:$0xff]
        %v2139 = vld [vmem:[%s2135 + $0x68] sm:$0xff]
        %v2140 = vld [vmem:[%s2135 + $0x98] sm:$0xff]
        %v2141 = vld [vmem:[%s2135 + $0xa8] sm:$0xff]
        %v2142 = vld [vmem:[%s2135 + $0xd8] sm:$0xff]
        %v2143 = vld [vmem:[%s2135 + $0xe8] sm:$0xff]
        %v2144 = vld [vmem:[%s2135 + $0x118] sm:$0xff]
        %v2145 = vld [vmem:[%s2135 + $0x128] sm:$0xff]
        %v2146 = vld [vmem:[%s2135 + $0x158] sm:$0xff]
        %v2147 = vld [vmem:[%s2135 + $0x168] sm:$0xff]
        %v2148 = vld [vmem:[%s2135 + $0x198] sm:$0xff]
        %v2149 = vld [vmem:[%s2135 + $0x1a8] sm:$0xff]
        %v2150 = vld [vmem:[%s2135 + $0x1d8] sm:$0xff]
        %v2151 = vld [vmem:[%s2135 + $0x1e8] sm:$0xff]
        %v2152 = vld [vmem:[%s2135 + $0x218] sm:$0xff]
        %v2153 = vld [vmem:[%s2135 + $0x228] sm:$0xff]
        %v2154 = vld [vmem:[%s2135 + $0x258] sm:$0xff]
        %v2155 = vld [vmem:[%s2135 + $0x268] sm:$0xff]
        %v2156 = vld [vmem:[%s2135 + $0x298] sm:$0xff]
        %v2157 = vld [vmem:[%s2135 + $0x2a8] sm:$0xff]
        %v2158 = vld [vmem:[%s2135 + $0x2d8] sm:$0xff]
        %v2159 = vld [vmem:[%s2135 + $0x2e8] sm:$0xff]
        %v2160 = vld [vmem:[%s2135 + $0x318] sm:$0xff]
        %v2161 = vld [vmem:[%s2135 + $0x328] sm:$0xff]
        %v2162 = vld [vmem:[%s2135 + $0x358] sm:$0xff]
        %v2163 = vld [vmem:[%s2135 + $0x368] sm:$0xff]
        %v2164 = vld [vmem:[%s2135 + $0x398] sm:$0xff]
        %v2165 = vld [vmem:[%s2135 + $0x3a8] sm:$0xff]
        %v2166 = vld [vmem:[%s2135 + $0x3d8] sm:$0xff]
        %v2167 = vld [vmem:[%s2135 + $0x3e8] sm:$0xff]
        %v2168 = vadd.f32 %v2103, %v2136
        %v2169 = vadd.f32 %v2104, %v2137
        %v2170 = vadd.f32 %v2105, %v2138
        %v2171 = vadd.f32 %v2106, %v2139
        %v2172 = vadd.f32 %v2107, %v2140
        %v2173 = vadd.f32 %v2108, %v2141
        %v2174 = vadd.f32 %v2109, %v2142
        %v2175 = vadd.f32 %v2110, %v2143
        %v2176 = vadd.f32 %v2111, %v2144
        %v2177 = vadd.f32 %v2112, %v2145
        %v2178 = vadd.f32 %v2113, %v2146
        %v2179 = vadd.f32 %v2114, %v2147
        %v2180 = vadd.f32 %v2115, %v2148
        %v2181 = vadd.f32 %v2116, %v2149
        %v2182 = vadd.f32 %v2117, %v2150
        %v2183 = vadd.f32 %v2118, %v2151
        %v2184 = vadd.f32 %v2119, %v2152
        %v2185 = vadd.f32 %v2120, %v2153
        %v2186 = vadd.f32 %v2121, %v2154
        %v2187 = vadd.f32 %v2122, %v2155
        %v2188 = vadd.f32 %v2123, %v2156
        %v2189 = vadd.f32 %v2124, %v2157
        %v2190 = vadd.f32 %v2125, %v2158
        %v2191 = vadd.f32 %v2126, %v2159
        %v2192 = vadd.f32 %v2127, %v2160
        %v2193 = vadd.f32 %v2128, %v2161
        %v2194 = vadd.f32 %v2129, %v2162
        %v2195 = vadd.f32 %v2130, %v2163
        %v2196 = vadd.f32 %v2131, %v2164
        %v2197 = vadd.f32 %v2132, %v2165
        %v2198 = vadd.f32 %v2133, %v2166
        %v2199 = vadd.f32 %v2134, %v2167
        %s2200 = scalar_lea.vmem %s2, 1
        %v2201 = vld [vmem:[%s2200] sm:$0x1]
        %v2203 = vperm.slane %v2201, 0
        %v2205 = vadd.f32 %v2168, %v2203
        %v2206 = vadd.f32 %v2169, %v2203
        %v2207 = vadd.f32 %v2170, %v2203
        %v2208 = vadd.f32 %v2171, %v2203
        %v2209 = vadd.f32 %v2172, %v2203
        %v2210 = vadd.f32 %v2173, %v2203
        %v2211 = vadd.f32 %v2174, %v2203
        %v2212 = vadd.f32 %v2175, %v2203
        %v2213 = vadd.f32 %v2176, %v2203
        %v2214 = vadd.f32 %v2177, %v2203
        %v2215 = vadd.f32 %v2178, %v2203
        %v2216 = vadd.f32 %v2179, %v2203
        %v2217 = vadd.f32 %v2180, %v2203
        %v2218 = vadd.f32 %v2181, %v2203
        %v2219 = vadd.f32 %v2182, %v2203
        %v2220 = vadd.f32 %v2183, %v2203
        %v2221 = vadd.f32 %v2184, %v2203
        %v2222 = vadd.f32 %v2185, %v2203
        %v2223 = vadd.f32 %v2186, %v2203
        %v2224 = vadd.f32 %v2187, %v2203
        %v2225 = vadd.f32 %v2188, %v2203
        %v2226 = vadd.f32 %v2189, %v2203
        %v2227 = vadd.f32 %v2190, %v2203
        %v2228 = vadd.f32 %v2191, %v2203
        %v2229 = vadd.f32 %v2192, %v2203
        %v2230 = vadd.f32 %v2193, %v2203
        %v2231 = vadd.f32 %v2194, %v2203
        %v2232 = vadd.f32 %v2195, %v2203
        %v2233 = vadd.f32 %v2196, %v2203
        %v2234 = vadd.f32 %v2197, %v2203
        %v2235 = vadd.f32 %v2198, %v2203
        %v2236 = vadd.f32 %v2199, %v2203
        %v2237 = vmax.f32 %v2205, 0.0
        %v2238 = vmax.f32 %v2206, 0.0
        %v2239 = vmax.f32 %v2207, 0.0
        %v2240 = vmax.f32 %v2208, 0.0
        %v2241 = vmax.f32 %v2209, 0.0
        %v2242 = vmax.f32 %v2210, 0.0
        %v2243 = vmax.f32 %v2211, 0.0
        %v2244 = vmax.f32 %v2212, 0.0
        %v2245 = vmax.f32 %v2213, 0.0
        %v2246 = vmax.f32 %v2214, 0.0
        %v2247 = vmax.f32 %v2215, 0.0
        %v2248 = vmax.f32 %v2216, 0.0
        %v2249 = vmax.f32 %v2217, 0.0
        %v2250 = vmax.f32 %v2218, 0.0
        %v2251 = vmax.f32 %v2219, 0.0
        %v2252 = vmax.f32 %v2220, 0.0
        %v2253 = vmax.f32 %v2221, 0.0
        %v2254 = vmax.f32 %v2222, 0.0
        %v2255 = vmax.f32 %v2223, 0.0
        %v2256 = vmax.f32 %v2224, 0.0
        %v2257 = vmax.f32 %v2225, 0.0
        %v2258 = vmax.f32 %v2226, 0.0
        %v2259 = vmax.f32 %v2227, 0.0
        %v2260 = vmax.f32 %v2228, 0.0
        %v2261 = vmax.f32 %v2229, 0.0
        %v2262 = vmax.f32 %v2230, 0.0
        %v2263 = vmax.f32 %v2231, 0.0
        %v2264 = vmax.f32 %v2232, 0.0
        %v2265 = vmax.f32 %v2233, 0.0
        %v2266 = vmax.f32 %v2234, 0.0
        %v2267 = vmax.f32 %v2235, 0.0
        %v2268 = vmax.f32 %v2236, 0.0
        %s2269 = scalar_lea.vmem %s1, 256
        %v2270 = vld [vmem:[%s2269] sm:$0xff]
        %v2271 = vld [vmem:[%s2269 + $0x8] sm:$0xff]
        %v2272 = vld [vmem:[%s2269 + $0x10] sm:$0xff]
        %v2273 = vld [vmem:[%s2269 + $0x18] sm:$0xff]
        %v2274 = vld [vmem:[%s2269 + $0x20] sm:$0xff]
        %v2275 = vld [vmem:[%s2269 + $0x28] sm:$0xff]
        %v2276 = vld [vmem:[%s2269 + $0x30] sm:$0xff]
        %v2277 = vld [vmem:[%s2269 + $0x38] sm:$0xff]
        %v2278 = vld [vmem:[%s2269 + $0x40] sm:$0xff]
        %v2279 = vld [vmem:[%s2269 + $0x48] sm:$0xff]
        %v2280 = vld [vmem:[%s2269 + $0x50] sm:$0xff]
        %v2281 = vld [vmem:[%s2269 + $0x58] sm:$0xff]
        %v2282 = vld [vmem:[%s2269 + $0x60] sm:$0xff]
        %v2283 = vld [vmem:[%s2269 + $0x68] sm:$0xff]
        %v2284 = vld [vmem:[%s2269 + $0x70] sm:$0xff]
        %v2285 = vld [vmem:[%s2269 + $0x78] sm:$0xff]
        %v2287 = vsel %vm170, %v2237, 0
        %v2290 = vsel %vm170, %v2238, 0
        %v2293 = vsel %vm170, %v2239, 0
        %v2296 = vsel %vm170, %v2240, 0
        %v2299 = vsel %vm170, %v2241, 0
        %v2302 = vsel %vm170, %v2242, 0
        %v2305 = vsel %vm170, %v2243, 0
        %v2308 = vsel %vm170, %v2244, 0
        %v2311 = vsel %vm170, %v2245, 0
        %v2314 = vsel %vm170, %v2246, 0
        %v2317 = vsel %vm170, %v2247, 0
        %v2320 = vsel %vm170, %v2248, 0
        %v2323 = vsel %vm170, %v2249, 0
        %v2326 = vsel %vm170, %v2250, 0
        %v2329 = vsel %vm170, %v2251, 0
        %v2332 = vsel %vm170, %v2252, 0
        %v2335 = vsel %vm170, %v2253, 0
        %v2338 = vsel %vm170, %v2254, 0
        %v2341 = vsel %vm170, %v2255, 0
        %v2344 = vsel %vm170, %v2256, 0
        %v2347 = vsel %vm170, %v2257, 0
        %v2350 = vsel %vm170, %v2258, 0
        %v2353 = vsel %vm170, %v2259, 0
        %v2356 = vsel %vm170, %v2260, 0
        %v2359 = vsel %vm170, %v2261, 0
        %v2362 = vsel %vm170, %v2262, 0
        %v2365 = vsel %vm170, %v2263, 0
        %v2368 = vsel %vm170, %v2264, 0
        %v2371 = vsel %vm170, %v2265, 0
        %v2374 = vsel %vm170, %v2266, 0
        %v2377 = vsel %vm170, %v2267, 0
        %v2380 = vsel %vm170, %v2268, 0
        %2382 = vmatpush.msra.mxu0 0.0
        %2383 = vmatpush.msra.mxu0 0.0
        %2384 = vmatpush.msra.mxu0 0.0
        %2385 = vmatpush.msra.mxu0 0.0
        %2386 = vmatpush.msra.mxu0 0.0
        %2387 = vmatpush.msra.mxu0 0.0
        %2388 = vmatpush.msra.mxu0 0.0
        %2389 = vmatpush.msra.mxu0 0.0
        %2390 = vmatpush.msra.mxu0 %v2284
        %2391 = vmatpush.msra.mxu0 %v2282
        %2392 = vmatpush.msra.mxu0 %v2280
        %2393 = vmatpush.msra.mxu0 %v2278
        %2394 = vmatpush.msra.mxu0 %v2276
        %2395 = vmatpush.msra.mxu0 %v2274
        %2396 = vmatpush.msra.mxu0 %v2272
        %2397 = vmatpush.msra.mxu0 %v2270
        %2398 = vmatmul.f32.gmra.mxu0 %v2287
        %v2399 = vpop.f32.mrf.mxu0
        %v2400 = vadd.f32 0.0, %v2399
        %2401 = vmatmul.f32.gmra.mxu0 %v2290
        %v2402 = vpop.f32.mrf.mxu0
        %v2403 = vadd.f32 0.0, %v2402
        %2404 = vmatmul.f32.gmra.mxu0 %v2293
        %v2405 = vpop.f32.mrf.mxu0
        %v2406 = vadd.f32 0.0, %v2405
        %2407 = vmatmul.f32.gmra.mxu0 %v2296
        %v2408 = vpop.f32.mrf.mxu0
        %v2409 = vadd.f32 0.0, %v2408
        %2410 = vmatmul.f32.gmra.mxu0 %v2299
        %v2411 = vpop.f32.mrf.mxu0
        %v2412 = vadd.f32 0.0, %v2411
        %2413 = vmatmul.f32.gmra.mxu0 %v2302
        %v2414 = vpop.f32.mrf.mxu0
        %v2415 = vadd.f32 0.0, %v2414
        %2416 = vmatmul.f32.gmra.mxu0 %v2305
        %v2417 = vpop.f32.mrf.mxu0
        %v2418 = vadd.f32 0.0, %v2417
        %2419 = vmatmul.f32.gmra.mxu0 %v2308
        %v2420 = vpop.f32.mrf.mxu0
        %v2421 = vadd.f32 0.0, %v2420
        %2422 = vmatmul.f32.gmra.mxu0 %v2311
        %v2423 = vpop.f32.mrf.mxu0
        %v2424 = vadd.f32 0.0, %v2423
        %2425 = vmatmul.f32.gmra.mxu0 %v2314
        %v2426 = vpop.f32.mrf.mxu0
        %v2427 = vadd.f32 0.0, %v2426
        %2428 = vmatmul.f32.gmra.mxu0 %v2317
        %v2429 = vpop.f32.mrf.mxu0
        %v2430 = vadd.f32 0.0, %v2429
        %2431 = vmatmul.f32.gmra.mxu0 %v2320
        %v2432 = vpop.f32.mrf.mxu0
        %v2433 = vadd.f32 0.0, %v2432
        %2434 = vmatmul.f32.gmra.mxu0 %v2323
        %v2435 = vpop.f32.mrf.mxu0
        %v2436 = vadd.f32 0.0, %v2435
        %2437 = vmatmul.f32.gmra.mxu0 %v2326
        %v2438 = vpop.f32.mrf.mxu0
        %v2439 = vadd.f32 0.0, %v2438
        %2440 = vmatmul.f32.gmra.mxu0 %v2329
        %v2441 = vpop.f32.mrf.mxu0
        %v2442 = vadd.f32 0.0, %v2441
        %2443 = vmatmul.f32.gmra.mxu0 %v2332
        %v2444 = vpop.f32.mrf.mxu0
        %v2445 = vadd.f32 0.0, %v2444
        %2446 = vmatmul.f32.gmra.mxu0 %v2335
        %v2447 = vpop.f32.mrf.mxu0
        %v2448 = vadd.f32 0.0, %v2447
        %2449 = vmatmul.f32.gmra.mxu0 %v2338
        %v2450 = vpop.f32.mrf.mxu0
        %v2451 = vadd.f32 0.0, %v2450
        %2452 = vmatmul.f32.gmra.mxu0 %v2341
        %v2453 = vpop.f32.mrf.mxu0
        %v2454 = vadd.f32 0.0, %v2453
        %2455 = vmatmul.f32.gmra.mxu0 %v2344
        %v2456 = vpop.f32.mrf.mxu0
        %v2457 = vadd.f32 0.0, %v2456
        %2458 = vmatmul.f32.gmra.mxu0 %v2347
        %v2459 = vpop.f32.mrf.mxu0
        %v2460 = vadd.f32 0.0, %v2459
        %2461 = vmatmul.f32.gmra.mxu0 %v2350
        %v2462 = vpop.f32.mrf.mxu0
        %v2463 = vadd.f32 0.0, %v2462
        %2464 = vmatmul.f32.gmra.mxu0 %v2353
        %v2465 = vpop.f32.mrf.mxu0
        %v2466 = vadd.f32 0.0, %v2465
        %2467 = vmatmul.f32.gmra.mxu0 %v2356
        %v2468 = vpop.f32.mrf.mxu0
        %v2469 = vadd.f32 0.0, %v2468
        %2470 = vmatmul.f32.gmra.mxu0 %v2359
        %v2471 = vpop.f32.mrf.mxu0
        %v2472 = vadd.f32 0.0, %v2471
        %2473 = vmatmul.f32.gmra.mxu0 %v2362
        %v2474 = vpop.f32.mrf.mxu0
        %v2475 = vadd.f32 0.0, %v2474
        %2476 = vmatmul.f32.gmra.mxu0 %v2365
        %v2477 = vpop.f32.mrf.mxu0
        %v2478 = vadd.f32 0.0, %v2477
        %2479 = vmatmul.f32.gmra.mxu0 %v2368
        %v2480 = vpop.f32.mrf.mxu0
        %v2481 = vadd.f32 0.0, %v2480
        %2482 = vmatmul.f32.gmra.mxu0 %v2371
        %v2483 = vpop.f32.mrf.mxu0
        %v2484 = vadd.f32 0.0, %v2483
        %2485 = vmatmul.f32.gmra.mxu0 %v2374
        %v2486 = vpop.f32.mrf.mxu0
        %v2487 = vadd.f32 0.0, %v2486
        %2488 = vmatmul.f32.gmra.mxu0 %v2377
        %v2489 = vpop.f32.mrf.mxu0
        %v2490 = vadd.f32 0.0, %v2489
        %2491 = vmatmul.f32.gmra.mxu0 %v2380
        %v2492 = vpop.f32.mrf.mxu0
        %v2493 = vadd.f32 0.0, %v2492
        %2494 = vdwg.mxu0
        %2495 = vmatpush.msra.mxu0 0.0
        %2496 = vmatpush.msra.mxu0 0.0
        %2497 = vmatpush.msra.mxu0 0.0
        %2498 = vmatpush.msra.mxu0 0.0
        %2499 = vmatpush.msra.mxu0 0.0
        %2500 = vmatpush.msra.mxu0 0.0
        %2501 = vmatpush.msra.mxu0 0.0
        %2502 = vmatpush.msra.mxu0 0.0
        %2503 = vmatpush.msra.mxu0 %v2285
        %2504 = vmatpush.msra.mxu0 %v2283
        %2505 = vmatpush.msra.mxu0 %v2281
        %2506 = vmatpush.msra.mxu0 %v2279
        %2507 = vmatpush.msra.mxu0 %v2277
        %2508 = vmatpush.msra.mxu0 %v2275
        %2509 = vmatpush.msra.mxu0 %v2273
        %2510 = vmatpush.msra.mxu0 %v2271
        %2511 = vmatmul.f32.gmra.mxu0 %v2287
        %v2512 = vpop.f32.mrf.mxu0
        %v2513 = vadd.f32 0.0, %v2512
        %2514 = vmatmul.f32.gmra.mxu0 %v2290
        %v2515 = vpop.f32.mrf.mxu0
        %v2516 = vadd.f32 0.0, %v2515
        %2517 = vmatmul.f32.gmra.mxu0 %v2293
        %v2518 = vpop.f32.mrf.mxu0
        %v2519 = vadd.f32 0.0, %v2518
        %2520 = vmatmul.f32.gmra.mxu0 %v2296
        %v2521 = vpop.f32.mrf.mxu0
        %v2522 = vadd.f32 0.0, %v2521
        %2523 = vmatmul.f32.gmra.mxu0 %v2299
        %v2524 = vpop.f32.mrf.mxu0
        %v2525 = vadd.f32 0.0, %v2524
        %2526 = vmatmul.f32.gmra.mxu0 %v2302
        %v2527 = vpop.f32.mrf.mxu0
        %v2528 = vadd.f32 0.0, %v2527
        %2529 = vmatmul.f32.gmra.mxu0 %v2305
        %v2530 = vpop.f32.mrf.mxu0
        %v2531 = vadd.f32 0.0, %v2530
        %2532 = vmatmul.f32.gmra.mxu0 %v2308
        %v2533 = vpop.f32.mrf.mxu0
        %v2534 = vadd.f32 0.0, %v2533
        %2535 = vmatmul.f32.gmra.mxu0 %v2311
        %v2536 = vpop.f32.mrf.mxu0
        %v2537 = vadd.f32 0.0, %v2536
        %2538 = vmatmul.f32.gmra.mxu0 %v2314
        %v2539 = vpop.f32.mrf.mxu0
        %v2540 = vadd.f32 0.0, %v2539
        %2541 = vmatmul.f32.gmra.mxu0 %v2317
        %v2542 = vpop.f32.mrf.mxu0
        %v2543 = vadd.f32 0.0, %v2542
        %2544 = vmatmul.f32.gmra.mxu0 %v2320
        %v2545 = vpop.f32.mrf.mxu0
        %v2546 = vadd.f32 0.0, %v2545
        %2547 = vmatmul.f32.gmra.mxu0 %v2323
        %v2548 = vpop.f32.mrf.mxu0
        %v2549 = vadd.f32 0.0, %v2548
        %2550 = vmatmul.f32.gmra.mxu0 %v2326
        %v2551 = vpop.f32.mrf.mxu0
        %v2552 = vadd.f32 0.0, %v2551
        %2553 = vmatmul.f32.gmra.mxu0 %v2329
        %v2554 = vpop.f32.mrf.mxu0
        %v2555 = vadd.f32 0.0, %v2554
        %2556 = vmatmul.f32.gmra.mxu0 %v2332
        %v2557 = vpop.f32.mrf.mxu0
        %v2558 = vadd.f32 0.0, %v2557
        %2559 = vmatmul.f32.gmra.mxu0 %v2335
        %v2560 = vpop.f32.mrf.mxu0
        %v2561 = vadd.f32 0.0, %v2560
        %2562 = vmatmul.f32.gmra.mxu0 %v2338
        %v2563 = vpop.f32.mrf.mxu0
        %v2564 = vadd.f32 0.0, %v2563
        %2565 = vmatmul.f32.gmra.mxu0 %v2341
        %v2566 = vpop.f32.mrf.mxu0
        %v2567 = vadd.f32 0.0, %v2566
        %2568 = vmatmul.f32.gmra.mxu0 %v2344
        %v2569 = vpop.f32.mrf.mxu0
        %v2570 = vadd.f32 0.0, %v2569
        %2571 = vmatmul.f32.gmra.mxu0 %v2347
        %v2572 = vpop.f32.mrf.mxu0
        %v2573 = vadd.f32 0.0, %v2572
        %2574 = vmatmul.f32.gmra.mxu0 %v2350
        %v2575 = vpop.f32.mrf.mxu0
        %v2576 = vadd.f32 0.0, %v2575
        %2577 = vmatmul.f32.gmra.mxu0 %v2353
        %v2578 = vpop.f32.mrf.mxu0
        %v2579 = vadd.f32 0.0, %v2578
        %2580 = vmatmul.f32.gmra.mxu0 %v2356
        %v2581 = vpop.f32.mrf.mxu0
        %v2582 = vadd.f32 0.0, %v2581
        %2583 = vmatmul.f32.gmra.mxu0 %v2359
        %v2584 = vpop.f32.mrf.mxu0
        %v2585 = vadd.f32 0.0, %v2584
        %2586 = vmatmul.f32.gmra.mxu0 %v2362
        %v2587 = vpop.f32.mrf.mxu0
        %v2588 = vadd.f32 0.0, %v2587
        %2589 = vmatmul.f32.gmra.mxu0 %v2365
        %v2590 = vpop.f32.mrf.mxu0
        %v2591 = vadd.f32 0.0, %v2590
        %2592 = vmatmul.f32.gmra.mxu0 %v2368
        %v2593 = vpop.f32.mrf.mxu0
        %v2594 = vadd.f32 0.0, %v2593
        %2595 = vmatmul.f32.gmra.mxu0 %v2371
        %v2596 = vpop.f32.mrf.mxu0
        %v2597 = vadd.f32 0.0, %v2596
        %2598 = vmatmul.f32.gmra.mxu0 %v2374
        %v2599 = vpop.f32.mrf.mxu0
        %v2600 = vadd.f32 0.0, %v2599
        %2601 = vmatmul.f32.gmra.mxu0 %v2377
        %v2602 = vpop.f32.mrf.mxu0
        %v2603 = vadd.f32 0.0, %v2602
        %2604 = vmatmul.f32.gmra.mxu0 %v2380
        %v2605 = vpop.f32.mrf.mxu0
        %v2606 = vadd.f32 0.0, %v2605
        %2607 = vdwg.mxu0
        %2608 = vst [vmem:[%s684 + $0x10] sm:$0xff] %v2400
        %2609 = vst.msk [vmem:[%s684 + $0x18] sm:$0xff] %vm170, %v2513
        %2610 = vst [vmem:[%s684 + $0x20] sm:$0xff] %v2403
        %2611 = vst.msk [vmem:[%s684 + $0x28] sm:$0xff] %vm170, %v2516
        %2612 = vst [vmem:[%s684 + $0x50] sm:$0xff] %v2406
        %2613 = vst.msk [vmem:[%s684 + $0x58] sm:$0xff] %vm170, %v2519
        %2614 = vst [vmem:[%s684 + $0x60] sm:$0xff] %v2409
        %2615 = vst.msk [vmem:[%s684 + $0x68] sm:$0xff] %vm170, %v2522
        %2616 = vst [vmem:[%s684 + $0x90] sm:$0xff] %v2412
        %2617 = vst.msk [vmem:[%s684 + $0x98] sm:$0xff] %vm170, %v2525
        %2618 = vst [vmem:[%s684 + $0xa0] sm:$0xff] %v2415
        %2619 = vst.msk [vmem:[%s684 + $0xa8] sm:$0xff] %vm170, %v2528
        %2620 = vst [vmem:[%s684 + $0xd0] sm:$0xff] %v2418
        %2621 = vst.msk [vmem:[%s684 + $0xd8] sm:$0xff] %vm170, %v2531
        %2622 = vst [vmem:[%s684 + $0xe0] sm:$0xff] %v2421
        %2623 = vst.msk [vmem:[%s684 + $0xe8] sm:$0xff] %vm170, %v2534
        %2624 = vst [vmem:[%s684 + $0x110] sm:$0xff] %v2424
        %2625 = vst.msk [vmem:[%s684 + $0x118] sm:$0xff] %vm170, %v2537
        %2626 = vst [vmem:[%s684 + $0x120] sm:$0xff] %v2427
        %2627 = vst.msk [vmem:[%s684 + $0x128] sm:$0xff] %vm170, %v2540
        %2628 = vst [vmem:[%s684 + $0x150] sm:$0xff] %v2430
        %2629 = vst.msk [vmem:[%s684 + $0x158] sm:$0xff] %vm170, %v2543
        %2630 = vst [vmem:[%s684 + $0x160] sm:$0xff] %v2433
        %2631 = vst.msk [vmem:[%s684 + $0x168] sm:$0xff] %vm170, %v2546
        %2632 = vst [vmem:[%s684 + $0x190] sm:$0xff] %v2436
        %2633 = vst.msk [vmem:[%s684 + $0x198] sm:$0xff] %vm170, %v2549
        %2634 = vst [vmem:[%s684 + $0x1a0] sm:$0xff] %v2439
        %2635 = vst.msk [vmem:[%s684 + $0x1a8] sm:$0xff] %vm170, %v2552
        %2636 = vst [vmem:[%s684 + $0x1d0] sm:$0xff] %v2442
        %2637 = vst.msk [vmem:[%s684 + $0x1d8] sm:$0xff] %vm170, %v2555
        %2638 = vst [vmem:[%s684 + $0x1e0] sm:$0xff] %v2445
        %2639 = vst.msk [vmem:[%s684 + $0x1e8] sm:$0xff] %vm170, %v2558
        %2640 = vst [vmem:[%s684 + $0x210] sm:$0xff] %v2448
        %2641 = vst.msk [vmem:[%s684 + $0x218] sm:$0xff] %vm170, %v2561
        %2642 = vst [vmem:[%s684 + $0x220] sm:$0xff] %v2451
        %2643 = vst.msk [vmem:[%s684 + $0x228] sm:$0xff] %vm170, %v2564
        %2644 = vst [vmem:[%s684 + $0x250] sm:$0xff] %v2454
        %2645 = vst.msk [vmem:[%s684 + $0x258] sm:$0xff] %vm170, %v2567
        %2646 = vst [vmem:[%s684 + $0x260] sm:$0xff] %v2457
        %2647 = vst.msk [vmem:[%s684 + $0x268] sm:$0xff] %vm170, %v2570
        %2648 = vst [vmem:[%s684 + $0x290] sm:$0xff] %v2460
        %2649 = vst.msk [vmem:[%s684 + $0x298] sm:$0xff] %vm170, %v2573
        %2650 = vst [vmem:[%s684 + $0x2a0] sm:$0xff] %v2463
        %2651 = vst.msk [vmem:[%s684 + $0x2a8] sm:$0xff] %vm170, %v2576
        %2652 = vst [vmem:[%s684 + $0x2d0] sm:$0xff] %v2466
        %2653 = vst.msk [vmem:[%s684 + $0x2d8] sm:$0xff] %vm170, %v2579
        %2654 = vst [vmem:[%s684 + $0x2e0] sm:$0xff] %v2469
        %2655 = vst.msk [vmem:[%s684 + $0x2e8] sm:$0xff] %vm170, %v2582
        %2656 = vst [vmem:[%s684 + $0x310] sm:$0xff] %v2472
        %2657 = vst.msk [vmem:[%s684 + $0x318] sm:$0xff] %vm170, %v2585
        %2658 = vst [vmem:[%s684 + $0x320] sm:$0xff] %v2475
        %2659 = vst.msk [vmem:[%s684 + $0x328] sm:$0xff] %vm170, %v2588
        %2660 = vst [vmem:[%s684 + $0x350] sm:$0xff] %v2478
        %2661 = vst.msk [vmem:[%s684 + $0x358] sm:$0xff] %vm170, %v2591
        %2662 = vst [vmem:[%s684 + $0x360] sm:$0xff] %v2481
        %2663 = vst.msk [vmem:[%s684 + $0x368] sm:$0xff] %vm170, %v2594
        %2664 = vst [vmem:[%s684 + $0x390] sm:$0xff] %v2484
        %2665 = vst.msk [vmem:[%s684 + $0x398] sm:$0xff] %vm170, %v2597
        %2666 = vst [vmem:[%s684 + $0x3a0] sm:$0xff] %v2487
        %2667 = vst.msk [vmem:[%s684 + $0x3a8] sm:$0xff] %vm170, %v2600
        %2668 = vst [vmem:[%s684 + $0x3d0] sm:$0xff] %v2490
        %2669 = vst.msk [vmem:[%s684 + $0x3d8] sm:$0xff] %vm170, %v2603
        %2670 = vst [vmem:[%s684 + $0x3e0] sm:$0xff] %v2493
        %2671 = vst.msk [vmem:[%s684 + $0x3e8] sm:$0xff] %vm170, %v2606
        %v2672 = vld [vmem:[%s684] sm:$0x80]
        %v2673 = vld [vmem:[%s684 + $0x10] sm:$0xff]
        %v2674 = vld [vmem:[%s684 + $0x20] sm:$0x7f]
        %v2675 = vld [vmem:[%s684 + $0x40] sm:$0x80]
        %v2676 = vld [vmem:[%s684 + $0x50] sm:$0xff]
        %v2677 = vld [vmem:[%s684 + $0x60] sm:$0x7f]
        %v2678 = vld [vmem:[%s684 + $0x80] sm:$0x80]
        %v2679 = vld [vmem:[%s684 + $0x90] sm:$0xff]
        %v2680 = vld [vmem:[%s684 + $0xa0] sm:$0x7f]
        %v2681 = vld [vmem:[%s684 + $0xc0] sm:$0x80]
        %v2682 = vld [vmem:[%s684 + $0xd0] sm:$0xff]
        %v2683 = vld [vmem:[%s684 + $0xe0] sm:$0x7f]
        %v2684 = vld [vmem:[%s684 + $0x100] sm:$0x80]
        %v2685 = vld [vmem:[%s684 + $0x110] sm:$0xff]
        %v2686 = vld [vmem:[%s684 + $0x120] sm:$0x7f]
        %v2687 = vld [vmem:[%s684 + $0x140] sm:$0x80]
        %v2688 = vld [vmem:[%s684 + $0x150] sm:$0xff]
        %v2689 = vld [vmem:[%s684 + $0x160] sm:$0x7f]
        %v2690 = vld [vmem:[%s684 + $0x180] sm:$0x80]
        %v2691 = vld [vmem:[%s684 + $0x190] sm:$0xff]
        %v2692 = vld [vmem:[%s684 + $0x1a0] sm:$0x7f]
        %v2693 = vld [vmem:[%s684 + $0x1c0] sm:$0x80]
        %v2694 = vld [vmem:[%s684 + $0x1d0] sm:$0xff]
        %v2695 = vld [vmem:[%s684 + $0x1e0] sm:$0x7f]
        %v2696 = vld [vmem:[%s684 + $0x200] sm:$0x80]
        %v2697 = vld [vmem:[%s684 + $0x210] sm:$0xff]
        %v2698 = vld [vmem:[%s684 + $0x220] sm:$0x7f]
        %v2699 = vld [vmem:[%s684 + $0x240] sm:$0x80]
        %v2700 = vld [vmem:[%s684 + $0x250] sm:$0xff]
        %v2701 = vld [vmem:[%s684 + $0x260] sm:$0x7f]
        %v2702 = vld [vmem:[%s684 + $0x280] sm:$0x80]
        %v2703 = vld [vmem:[%s684 + $0x290] sm:$0xff]
        %v2704 = vld [vmem:[%s684 + $0x2a0] sm:$0x7f]
        %v2705 = vld [vmem:[%s684 + $0x2c0] sm:$0x80]
        %v2706 = vld [vmem:[%s684 + $0x2d0] sm:$0xff]
        %v2707 = vld [vmem:[%s684 + $0x2e0] sm:$0x7f]
        %v2708 = vld [vmem:[%s684 + $0x300] sm:$0x80]
        %v2709 = vld [vmem:[%s684 + $0x310] sm:$0xff]
        %v2710 = vld [vmem:[%s684 + $0x320] sm:$0x7f]
        %v2711 = vld [vmem:[%s684 + $0x340] sm:$0x80]
        %v2712 = vld [vmem:[%s684 + $0x350] sm:$0xff]
        %v2713 = vld [vmem:[%s684 + $0x360] sm:$0x7f]
        %v2714 = vld [vmem:[%s684 + $0x380] sm:$0x80]
        %v2715 = vld [vmem:[%s684 + $0x390] sm:$0xff]
        %v2716 = vld [vmem:[%s684 + $0x3a0] sm:$0x7f]
        %v2717 = vld [vmem:[%s684 + $0x3c0] sm:$0x80]
        %v2718 = vld [vmem:[%s684 + $0x3d0] sm:$0xff]
        %v2719 = vld [vmem:[%s684 + $0x3e0] sm:$0x7f]
        %v2720 = vld [vmem:[%s684 + $0x20] sm:$0xff]
        %v2721 = vld [vmem:[%s684 + $0x60] sm:$0xff]
        %v2722 = vld [vmem:[%s684 + $0xa0] sm:$0xff]
        %v2723 = vld [vmem:[%s684 + $0xe0] sm:$0xff]
        %v2724 = vld [vmem:[%s684 + $0x120] sm:$0xff]
        %v2725 = vld [vmem:[%s684 + $0x160] sm:$0xff]
        %v2726 = vld [vmem:[%s684 + $0x1a0] sm:$0xff]
        %v2727 = vld [vmem:[%s684 + $0x1e0] sm:$0xff]
        %v2728 = vld [vmem:[%s684 + $0x220] sm:$0xff]
        %v2729 = vld [vmem:[%s684 + $0x260] sm:$0xff]
        %v2730 = vld [vmem:[%s684 + $0x2a0] sm:$0xff]
        %v2731 = vld [vmem:[%s684 + $0x2e0] sm:$0xff]
        %v2732 = vld [vmem:[%s684 + $0x320] sm:$0xff]
        %v2733 = vld [vmem:[%s684 + $0x360] sm:$0xff]
        %v2734 = vld [vmem:[%s684 + $0x3a0] sm:$0xff]
        %v2735 = vld [vmem:[%s684 + $0x3e0] sm:$0xff]
        %v2768 = vrot.slane %v2673, 1
        %v2769 = vrot.slane %v2720, 1
        %v2770 = vsel %vm845, %v2768, %v2769
        %v2771 = vrot.slane %v2676, 1
        %v2772 = vrot.slane %v2721, 1
        %v2773 = vsel %vm845, %v2771, %v2772
        %v2774 = vrot.slane %v2679, 1
        %v2775 = vrot.slane %v2722, 1
        %v2776 = vsel %vm845, %v2774, %v2775
        %v2777 = vrot.slane %v2682, 1
        %v2778 = vrot.slane %v2723, 1
        %v2779 = vsel %vm845, %v2777, %v2778
        %v2780 = vrot.slane %v2685, 1
        %v2781 = vrot.slane %v2724, 1
        %v2782 = vsel %vm845, %v2780, %v2781
        %v2783 = vrot.slane %v2688, 1
        %v2784 = vrot.slane %v2725, 1
        %v2785 = vsel %vm845, %v2783, %v2784
        %v2786 = vrot.slane %v2691, 1
        %v2787 = vrot.slane %v2726, 1
        %v2788 = vsel %vm845, %v2786, %v2787
        %v2789 = vrot.slane %v2694, 1
        %v2790 = vrot.slane %v2727, 1
        %v2791 = vsel %vm845, %v2789, %v2790
        %v2792 = vrot.slane %v2697, 1
        %v2793 = vrot.slane %v2728, 1
        %v2794 = vsel %vm845, %v2792, %v2793
        %v2795 = vrot.slane %v2700, 1
        %v2796 = vrot.slane %v2729, 1
        %v2797 = vsel %vm845, %v2795, %v2796
        %v2798 = vrot.slane %v2703, 1
        %v2799 = vrot.slane %v2730, 1
        %v2800 = vsel %vm845, %v2798, %v2799
        %v2801 = vrot.slane %v2706, 1
        %v2802 = vrot.slane %v2731, 1
        %v2803 = vsel %vm845, %v2801, %v2802
        %v2804 = vrot.slane %v2709, 1
        %v2805 = vrot.slane %v2732, 1
        %v2806 = vsel %vm845, %v2804, %v2805
        %v2807 = vrot.slane %v2712, 1
        %v2808 = vrot.slane %v2733, 1
        %v2809 = vsel %vm845, %v2807, %v2808
        %v2810 = vrot.slane %v2715, 1
        %v2811 = vrot.slane %v2734, 1
        %v2812 = vsel %vm845, %v2810, %v2811
        %v2813 = vrot.slane %v2718, 1
        %v2814 = vrot.slane %v2735, 1
        %v2815 = vsel %vm845, %v2813, %v2814
        %2816 = vrot.lane.b32.xlu0 %v2768, 64
        %v2817 = vpop.permute.xlu0 %2816
        %2818 = vrot.lane.b32.xlu0 %v2770, 64
        %v2819 = vpop.permute.xlu0 %2818
        %2820 = vrot.lane.b32.xlu0 %v2769, 64
        %v2821 = vpop.permute.xlu0 %2820
        %2822 = vrot.lane.b32.xlu0 %v2771, 64
        %v2823 = vpop.permute.xlu0 %2822
        %2824 = vrot.lane.b32.xlu0 %v2773, 64
        %v2825 = vpop.permute.xlu0 %2824
        %2826 = vrot.lane.b32.xlu0 %v2772, 64
        %v2827 = vpop.permute.xlu0 %2826
        %2828 = vrot.lane.b32.xlu0 %v2774, 64
        %v2829 = vpop.permute.xlu0 %2828
        %2830 = vrot.lane.b32.xlu0 %v2776, 64
        %v2831 = vpop.permute.xlu0 %2830
        %2832 = vrot.lane.b32.xlu0 %v2775, 64
        %v2833 = vpop.permute.xlu0 %2832
        %2834 = vrot.lane.b32.xlu0 %v2777, 64
        %v2835 = vpop.permute.xlu0 %2834
        %2836 = vrot.lane.b32.xlu0 %v2779, 64
        %v2837 = vpop.permute.xlu0 %2836
        %2838 = vrot.lane.b32.xlu0 %v2778, 64
        %v2839 = vpop.permute.xlu0 %2838
        %2840 = vrot.lane.b32.xlu0 %v2780, 64
        %v2841 = vpop.permute.xlu0 %2840
        %2842 = vrot.lane.b32.xlu0 %v2782, 64
        %v2843 = vpop.permute.xlu0 %2842
        %2844 = vrot.lane.b32.xlu0 %v2781, 64
        %v2845 = vpop.permute.xlu0 %2844
        %2846 = vrot.lane.b32.xlu0 %v2783, 64
        %v2847 = vpop.permute.xlu0 %2846
        %2848 = vrot.lane.b32.xlu0 %v2785, 64
        %v2849 = vpop.permute.xlu0 %2848
        %2850 = vrot.lane.b32.xlu0 %v2784, 64
        %v2851 = vpop.permute.xlu0 %2850
        %2852 = vrot.lane.b32.xlu0 %v2786, 64
        %v2853 = vpop.permute.xlu0 %2852
        %2854 = vrot.lane.b32.xlu0 %v2788, 64
        %v2855 = vpop.permute.xlu0 %2854
        %2856 = vrot.lane.b32.xlu0 %v2787, 64
        %v2857 = vpop.permute.xlu0 %2856
        %2858 = vrot.lane.b32.xlu0 %v2789, 64
        %v2859 = vpop.permute.xlu0 %2858
        %2860 = vrot.lane.b32.xlu0 %v2791, 64
        %v2861 = vpop.permute.xlu0 %2860
        %2862 = vrot.lane.b32.xlu0 %v2790, 64
        %v2863 = vpop.permute.xlu0 %2862
        %2864 = vrot.lane.b32.xlu0 %v2792, 64
        %v2865 = vpop.permute.xlu0 %2864
        %2866 = vrot.lane.b32.xlu0 %v2794, 64
        %v2867 = vpop.permute.xlu0 %2866
        %2868 = vrot.lane.b32.xlu0 %v2793, 64
        %v2869 = vpop.permute.xlu0 %2868
        %2870 = vrot.lane.b32.xlu0 %v2795, 64
        %v2871 = vpop.permute.xlu0 %2870
        %2872 = vrot.lane.b32.xlu0 %v2797, 64
        %v2873 = vpop.permute.xlu0 %2872
        %2874 = vrot.lane.b32.xlu0 %v2796, 64
        %v2875 = vpop.permute.xlu0 %2874
        %2876 = vrot.lane.b32.xlu0 %v2798, 64
        %v2877 = vpop.permute.xlu0 %2876
        %2878 = vrot.lane.b32.xlu0 %v2800, 64
        %v2879 = vpop.permute.xlu0 %2878
        %2880 = vrot.lane.b32.xlu0 %v2799, 64
        %v2881 = vpop.permute.xlu0 %2880
        %2882 = vrot.lane.b32.xlu0 %v2801, 64
        %v2883 = vpop.permute.xlu0 %2882
        %2884 = vrot.lane.b32.xlu0 %v2803, 64
        %v2885 = vpop.permute.xlu0 %2884
        %2886 = vrot.lane.b32.xlu0 %v2802, 64
        %v2887 = vpop.permute.xlu0 %2886
        %2888 = vrot.lane.b32.xlu0 %v2804, 64
        %v2889 = vpop.permute.xlu0 %2888
        %2890 = vrot.lane.b32.xlu0 %v2806, 64
        %v2891 = vpop.permute.xlu0 %2890
        %2892 = vrot.lane.b32.xlu0 %v2805, 64
        %v2893 = vpop.permute.xlu0 %2892
        %2894 = vrot.lane.b32.xlu0 %v2807, 64
        %v2895 = vpop.permute.xlu0 %2894
        %2896 = vrot.lane.b32.xlu0 %v2809, 64
        %v2897 = vpop.permute.xlu0 %2896
        %2898 = vrot.lane.b32.xlu0 %v2808, 64
        %v2899 = vpop.permute.xlu0 %2898
        %2900 = vrot.lane.b32.xlu0 %v2810, 64
        %v2901 = vpop.permute.xlu0 %2900
        %2902 = vrot.lane.b32.xlu0 %v2812, 64
        %v2903 = vpop.permute.xlu0 %2902
        %2904 = vrot.lane.b32.xlu0 %v2811, 64
        %v2905 = vpop.permute.xlu0 %2904
        %2906 = vrot.lane.b32.xlu0 %v2813, 64
        %v2907 = vpop.permute.xlu0 %2906
        %2908 = vrot.lane.b32.xlu0 %v2815, 64
        %v2909 = vpop.permute.xlu0 %2908
        %2910 = vrot.lane.b32.xlu0 %v2814, 64
        %v2911 = vpop.permute.xlu0 %2910
        %v2960 = vadd.f32 %v2672, %v2817
        %v2961 = vadd.f32 %v2673, %v2819
        %v2962 = vadd.f32 %v2674, %v2821
        %v2963 = vadd.f32 %v2675, %v2823
        %v2964 = vadd.f32 %v2676, %v2825
        %v2965 = vadd.f32 %v2677, %v2827
        %v2966 = vadd.f32 %v2678, %v2829
        %v2967 = vadd.f32 %v2679, %v2831
        %v2968 = vadd.f32 %v2680, %v2833
        %v2969 = vadd.f32 %v2681, %v2835
        %v2970 = vadd.f32 %v2682, %v2837
        %v2971 = vadd.f32 %v2683, %v2839
        %v2972 = vadd.f32 %v2684, %v2841
        %v2973 = vadd.f32 %v2685, %v2843
        %v2974 = vadd.f32 %v2686, %v2845
        %v2975 = vadd.f32 %v2687, %v2847
        %v2976 = vadd.f32 %v2688, %v2849
        %v2977 = vadd.f32 %v2689, %v2851
        %v2978 = vadd.f32 %v2690, %v2853
        %v2979 = vadd.f32 %v2691, %v2855
        %v2980 = vadd.f32 %v2692, %v2857
        %v2981 = vadd.f32 %v2693, %v2859
        %v2982 = vadd.f32 %v2694, %v2861
        %v2983 = vadd.f32 %v2695, %v2863
        %v2984 = vadd.f32 %v2696, %v2865
        %v2985 = vadd.f32 %v2697, %v2867
        %v2986 = vadd.f32 %v2698, %v2869
        %v2987 = vadd.f32 %v2699, %v2871
        %v2988 = vadd.f32 %v2700, %v2873
        %v2989 = vadd.f32 %v2701, %v2875
        %v2990 = vadd.f32 %v2702, %v2877
        %v2991 = vadd.f32 %v2703, %v2879
        %v2992 = vadd.f32 %v2704, %v2881
        %v2993 = vadd.f32 %v2705, %v2883
        %v2994 = vadd.f32 %v2706, %v2885
        %v2995 = vadd.f32 %v2707, %v2887
        %v2996 = vadd.f32 %v2708, %v2889
        %v2997 = vadd.f32 %v2709, %v2891
        %v2998 = vadd.f32 %v2710, %v2893
        %v2999 = vadd.f32 %v2711, %v2895
        %v3000 = vadd.f32 %v2712, %v2897
        %v3001 = vadd.f32 %v2713, %v2899
        %v3002 = vadd.f32 %v2714, %v2901
        %v3003 = vadd.f32 %v2715, %v2903
        %v3004 = vadd.f32 %v2716, %v2905
        %v3005 = vadd.f32 %v2717, %v2907
        %v3006 = vadd.f32 %v2718, %v2909
        %v3007 = vadd.f32 %v2719, %v2911
        %v3008 = vld [vmem:[%s684 + $0x18] sm:$0xfe]
        %v3009 = vld [vmem:[%s684 + $0x28] sm:$0xff]
        %v3010 = vld [vmem:[%s684 + $0x38] sm:$0x1]
        %v3011 = vld [vmem:[%s684 + $0x58] sm:$0xfe]
        %v3012 = vld [vmem:[%s684 + $0x68] sm:$0xff]
        %v3013 = vld [vmem:[%s684 + $0x78] sm:$0x1]
        %v3014 = vld [vmem:[%s684 + $0x98] sm:$0xfe]
        %v3015 = vld [vmem:[%s684 + $0xa8] sm:$0xff]
        %v3016 = vld [vmem:[%s684 + $0xb8] sm:$0x1]
        %v3017 = vld [vmem:[%s684 + $0xd8] sm:$0xfe]
        %v3018 = vld [vmem:[%s684 + $0xe8] sm:$0xff]
        %v3019 = vld [vmem:[%s684 + $0xf8] sm:$0x1]
        %v3020 = vld [vmem:[%s684 + $0x118] sm:$0xfe]
        %v3021 = vld [vmem:[%s684 + $0x128] sm:$0xff]
        %v3022 = vld [vmem:[%s684 + $0x138] sm:$0x1]
        %v3023 = vld [vmem:[%s684 + $0x158] sm:$0xfe]
        %v3024 = vld [vmem:[%s684 + $0x168] sm:$0xff]
        %v3025 = vld [vmem:[%s684 + $0x178] sm:$0x1]
        %v3026 = vld [vmem:[%s684 + $0x198] sm:$0xfe]
        %v3027 = vld [vmem:[%s684 + $0x1a8] sm:$0xff]
        %v3028 = vld [vmem:[%s684 + $0x1b8] sm:$0x1]
        %v3029 = vld [vmem:[%s684 + $0x1d8] sm:$0xfe]
        %v3030 = vld [vmem:[%s684 + $0x1e8] sm:$0xff]
        %v3031 = vld [vmem:[%s684 + $0x1f8] sm:$0x1]
        %v3032 = vld [vmem:[%s684 + $0x218] sm:$0xfe]
        %v3033 = vld [vmem:[%s684 + $0x228] sm:$0xff]
        %v3034 = vld [vmem:[%s684 + $0x238] sm:$0x1]
        %v3035 = vld [vmem:[%s684 + $0x258] sm:$0xfe]
        %v3036 = vld [vmem:[%s684 + $0x268] sm:$0xff]
        %v3037 = vld [vmem:[%s684 + $0x278] sm:$0x1]
        %v3038 = vld [vmem:[%s684 + $0x298] sm:$0xfe]
        %v3039 = vld [vmem:[%s684 + $0x2a8] sm:$0xff]
        %v3040 = vld [vmem:[%s684 + $0x2b8] sm:$0x1]
        %v3041 = vld [vmem:[%s684 + $0x2d8] sm:$0xfe]
        %v3042 = vld [vmem:[%s684 + $0x2e8] sm:$0xff]
        %v3043 = vld [vmem:[%s684 + $0x2f8] sm:$0x1]
        %v3044 = vld [vmem:[%s684 + $0x318] sm:$0xfe]
        %v3045 = vld [vmem:[%s684 + $0x328] sm:$0xff]
        %v3046 = vld [vmem:[%s684 + $0x338] sm:$0x1]
        %v3047 = vld [vmem:[%s684 + $0x358] sm:$0xfe]
        %v3048 = vld [vmem:[%s684 + $0x368] sm:$0xff]
        %v3049 = vld [vmem:[%s684 + $0x378] sm:$0x1]
        %v3050 = vld [vmem:[%s684 + $0x398] sm:$0xfe]
        %v3051 = vld [vmem:[%s684 + $0x3a8] sm:$0xff]
        %v3052 = vld [vmem:[%s684 + $0x3b8] sm:$0x1]
        %v3053 = vld [vmem:[%s684 + $0x3d8] sm:$0xfe]
        %v3054 = vld [vmem:[%s684 + $0x3e8] sm:$0xff]
        %v3055 = vld [vmem:[%s684 + $0x3f8] sm:$0x1]
        %v3104 = vrot.slane %v3008, 2
        %v3105 = vrot.slane %v3009, 2
        %v3106 = vsel %vm1182, %v3104, %v3105
        %v3107 = vrot.slane %v3010, 2
        %v3108 = vsel %vm1182, %v3105, %v3107
        %v3109 = vrot.slane %v3011, 2
        %v3110 = vrot.slane %v3012, 2
        %v3111 = vsel %vm1182, %v3109, %v3110
        %v3112 = vrot.slane %v3013, 2
        %v3113 = vsel %vm1182, %v3110, %v3112
        %v3114 = vrot.slane %v3014, 2
        %v3115 = vrot.slane %v3015, 2
        %v3116 = vsel %vm1182, %v3114, %v3115
        %v3117 = vrot.slane %v3016, 2
        %v3118 = vsel %vm1182, %v3115, %v3117
        %v3119 = vrot.slane %v3017, 2
        %v3120 = vrot.slane %v3018, 2
        %v3121 = vsel %vm1182, %v3119, %v3120
        %v3122 = vrot.slane %v3019, 2
        %v3123 = vsel %vm1182, %v3120, %v3122
        %v3124 = vrot.slane %v3020, 2
        %v3125 = vrot.slane %v3021, 2
        %v3126 = vsel %vm1182, %v3124, %v3125
        %v3127 = vrot.slane %v3022, 2
        %v3128 = vsel %vm1182, %v3125, %v3127
        %v3129 = vrot.slane %v3023, 2
        %v3130 = vrot.slane %v3024, 2
        %v3131 = vsel %vm1182, %v3129, %v3130
        %v3132 = vrot.slane %v3025, 2
        %v3133 = vsel %vm1182, %v3130, %v3132
        %v3134 = vrot.slane %v3026, 2
        %v3135 = vrot.slane %v3027, 2
        %v3136 = vsel %vm1182, %v3134, %v3135
        %v3137 = vrot.slane %v3028, 2
        %v3138 = vsel %vm1182, %v3135, %v3137
        %v3139 = vrot.slane %v3029, 2
        %v3140 = vrot.slane %v3030, 2
        %v3141 = vsel %vm1182, %v3139, %v3140
        %v3142 = vrot.slane %v3031, 2
        %v3143 = vsel %vm1182, %v3140, %v3142
        %v3144 = vrot.slane %v3032, 2
        %v3145 = vrot.slane %v3033, 2
        %v3146 = vsel %vm1182, %v3144, %v3145
        %v3147 = vrot.slane %v3034, 2
        %v3148 = vsel %vm1182, %v3145, %v3147
        %v3149 = vrot.slane %v3035, 2
        %v3150 = vrot.slane %v3036, 2
        %v3151 = vsel %vm1182, %v3149, %v3150
        %v3152 = vrot.slane %v3037, 2
        %v3153 = vsel %vm1182, %v3150, %v3152
        %v3154 = vrot.slane %v3038, 2
        %v3155 = vrot.slane %v3039, 2
        %v3156 = vsel %vm1182, %v3154, %v3155
        %v3157 = vrot.slane %v3040, 2
        %v3158 = vsel %vm1182, %v3155, %v3157
        %v3159 = vrot.slane %v3041, 2
        %v3160 = vrot.slane %v3042, 2
        %v3161 = vsel %vm1182, %v3159, %v3160
        %v3162 = vrot.slane %v3043, 2
        %v3163 = vsel %vm1182, %v3160, %v3162
        %v3164 = vrot.slane %v3044, 2
        %v3165 = vrot.slane %v3045, 2
        %v3166 = vsel %vm1182, %v3164, %v3165
        %v3167 = vrot.slane %v3046, 2
        %v3168 = vsel %vm1182, %v3165, %v3167
        %v3169 = vrot.slane %v3047, 2
        %v3170 = vrot.slane %v3048, 2
        %v3171 = vsel %vm1182, %v3169, %v3170
        %v3172 = vrot.slane %v3049, 2
        %v3173 = vsel %vm1182, %v3170, %v3172
        %v3174 = vrot.slane %v3050, 2
        %v3175 = vrot.slane %v3051, 2
        %v3176 = vsel %vm1182, %v3174, %v3175
        %v3177 = vrot.slane %v3052, 2
        %v3178 = vsel %vm1182, %v3175, %v3177
        %v3179 = vrot.slane %v3053, 2
        %v3180 = vrot.slane %v3054, 2
        %v3181 = vsel %vm1182, %v3179, %v3180
        %v3182 = vrot.slane %v3055, 2
        %v3183 = vsel %vm1182, %v3180, %v3182
        %v3232 = vadd.f32 %v2960, %v3104
        %v3233 = vadd.f32 %v2961, %v3106
        %v3234 = vadd.f32 %v2962, %v3108
        %v3235 = vadd.f32 %v2963, %v3109
        %v3236 = vadd.f32 %v2964, %v3111
        %v3237 = vadd.f32 %v2965, %v3113
        %v3238 = vadd.f32 %v2966, %v3114
        %v3239 = vadd.f32 %v2967, %v3116
        %v3240 = vadd.f32 %v2968, %v3118
        %v3241 = vadd.f32 %v2969, %v3119
        %v3242 = vadd.f32 %v2970, %v3121
        %v3243 = vadd.f32 %v2971, %v3123
        %v3244 = vadd.f32 %v2972, %v3124
        %v3245 = vadd.f32 %v2973, %v3126
        %v3246 = vadd.f32 %v2974, %v3128
        %v3247 = vadd.f32 %v2975, %v3129
        %v3248 = vadd.f32 %v2976, %v3131
        %v3249 = vadd.f32 %v2977, %v3133
        %v3250 = vadd.f32 %v2978, %v3134
        %v3251 = vadd.f32 %v2979, %v3136
        %v3252 = vadd.f32 %v2980, %v3138
        %v3253 = vadd.f32 %v2981, %v3139
        %v3254 = vadd.f32 %v2982, %v3141
        %v3255 = vadd.f32 %v2983, %v3143
        %v3256 = vadd.f32 %v2984, %v3144
        %v3257 = vadd.f32 %v2985, %v3146
        %v3258 = vadd.f32 %v2986, %v3148
        %v3259 = vadd.f32 %v2987, %v3149
        %v3260 = vadd.f32 %v2988, %v3151
        %v3261 = vadd.f32 %v2989, %v3153
        %v3262 = vadd.f32 %v2990, %v3154
        %v3263 = vadd.f32 %v2991, %v3156
        %v3264 = vadd.f32 %v2992, %v3158
        %v3265 = vadd.f32 %v2993, %v3159
        %v3266 = vadd.f32 %v2994, %v3161
        %v3267 = vadd.f32 %v2995, %v3163
        %v3268 = vadd.f32 %v2996, %v3164
        %v3269 = vadd.f32 %v2997, %v3166
        %v3270 = vadd.f32 %v2998, %v3168
        %v3271 = vadd.f32 %v2999, %v3169
        %v3272 = vadd.f32 %v3000, %v3171
        %v3273 = vadd.f32 %v3001, %v3173
        %v3274 = vadd.f32 %v3002, %v3174
        %v3275 = vadd.f32 %v3003, %v3176
        %v3276 = vadd.f32 %v3004, %v3178
        %v3277 = vadd.f32 %v3005, %v3179
        %v3278 = vadd.f32 %v3006, %v3181
        %v3279 = vadd.f32 %v3007, %v3183
        %s3280 = scalar_lea.vmem %s2, 2
        %v3281 = vld [vmem:[%s3280] sm:$0x1]
        %v3283 = vperm.slane %v3281, 0
        %v3285 = vadd.f32 %v3232, %v3283
        %v3286 = vadd.f32 %v3233, %v3283
        %v3287 = vadd.f32 %v3234, %v3283
        %v3288 = vadd.f32 %v3235, %v3283
        %v3289 = vadd.f32 %v3236, %v3283
        %v3290 = vadd.f32 %v3237, %v3283
        %v3291 = vadd.f32 %v3238, %v3283
        %v3292 = vadd.f32 %v3239, %v3283
        %v3293 = vadd.f32 %v3240, %v3283
        %v3294 = vadd.f32 %v3241, %v3283
        %v3295 = vadd.f32 %v3242, %v3283
        %v3296 = vadd.f32 %v3243, %v3283
        %v3297 = vadd.f32 %v3244, %v3283
        %v3298 = vadd.f32 %v3245, %v3283
        %v3299 = vadd.f32 %v3246, %v3283
        %v3300 = vadd.f32 %v3247, %v3283
        %v3301 = vadd.f32 %v3248, %v3283
        %v3302 = vadd.f32 %v3249, %v3283
        %v3303 = vadd.f32 %v3250, %v3283
        %v3304 = vadd.f32 %v3251, %v3283
        %v3305 = vadd.f32 %v3252, %v3283
        %v3306 = vadd.f32 %v3253, %v3283
        %v3307 = vadd.f32 %v3254, %v3283
        %v3308 = vadd.f32 %v3255, %v3283
        %v3309 = vadd.f32 %v3256, %v3283
        %v3310 = vadd.f32 %v3257, %v3283
        %v3311 = vadd.f32 %v3258, %v3283
        %v3312 = vadd.f32 %v3259, %v3283
        %v3313 = vadd.f32 %v3260, %v3283
        %v3314 = vadd.f32 %v3261, %v3283
        %v3315 = vadd.f32 %v3262, %v3283
        %v3316 = vadd.f32 %v3263, %v3283
        %v3317 = vadd.f32 %v3264, %v3283
        %v3318 = vadd.f32 %v3265, %v3283
        %v3319 = vadd.f32 %v3266, %v3283
        %v3320 = vadd.f32 %v3267, %v3283
        %v3321 = vadd.f32 %v3268, %v3283
        %v3322 = vadd.f32 %v3269, %v3283
        %v3323 = vadd.f32 %v3270, %v3283
        %v3324 = vadd.f32 %v3271, %v3283
        %v3325 = vadd.f32 %v3272, %v3283
        %v3326 = vadd.f32 %v3273, %v3283
        %v3327 = vadd.f32 %v3274, %v3283
        %v3328 = vadd.f32 %v3275, %v3283
        %v3329 = vadd.f32 %v3276, %v3283
        %v3330 = vadd.f32 %v3277, %v3283
        %v3331 = vadd.f32 %v3278, %v3283
        %v3332 = vadd.f32 %v3279, %v3283
        %v3381 = vrot.slane %v3285, 7
        %v3382 = vrot.slane %v3286, 7
        %v3383 = vsel %vm1459, %v3381, %v3382
        %v3384 = vrot.slane %v3287, 7
        %v3385 = vsel %vm1459, %v3382, %v3384
        %v3386 = vrot.slane %v3288, 7
        %v3387 = vrot.slane %v3289, 7
        %v3388 = vsel %vm1459, %v3386, %v3387
        %v3389 = vrot.slane %v3290, 7
        %v3390 = vsel %vm1459, %v3387, %v3389
        %v3391 = vrot.slane %v3291, 7
        %v3392 = vrot.slane %v3292, 7
        %v3393 = vsel %vm1459, %v3391, %v3392
        %v3394 = vrot.slane %v3293, 7
        %v3395 = vsel %vm1459, %v3392, %v3394
        %v3396 = vrot.slane %v3294, 7
        %v3397 = vrot.slane %v3295, 7
        %v3398 = vsel %vm1459, %v3396, %v3397
        %v3399 = vrot.slane %v3296, 7
        %v3400 = vsel %vm1459, %v3397, %v3399
        %v3401 = vrot.slane %v3297, 7
        %v3402 = vrot.slane %v3298, 7
        %v3403 = vsel %vm1459, %v3401, %v3402
        %v3404 = vrot.slane %v3299, 7
        %v3405 = vsel %vm1459, %v3402, %v3404
        %v3406 = vrot.slane %v3300, 7
        %v3407 = vrot.slane %v3301, 7
        %v3408 = vsel %vm1459, %v3406, %v3407
        %v3409 = vrot.slane %v3302, 7
        %v3410 = vsel %vm1459, %v3407, %v3409
        %v3411 = vrot.slane %v3303, 7
        %v3412 = vrot.slane %v3304, 7
        %v3413 = vsel %vm1459, %v3411, %v3412
        %v3414 = vrot.slane %v3305, 7
        %v3415 = vsel %vm1459, %v3412, %v3414
        %v3416 = vrot.slane %v3306, 7
        %v3417 = vrot.slane %v3307, 7
        %v3418 = vsel %vm1459, %v3416, %v3417
        %v3419 = vrot.slane %v3308, 7
        %v3420 = vsel %vm1459, %v3417, %v3419
        %v3421 = vrot.slane %v3309, 7
        %v3422 = vrot.slane %v3310, 7
        %v3423 = vsel %vm1459, %v3421, %v3422
        %v3424 = vrot.slane %v3311, 7
        %v3425 = vsel %vm1459, %v3422, %v3424
        %v3426 = vrot.slane %v3312, 7
        %v3427 = vrot.slane %v3313, 7
        %v3428 = vsel %vm1459, %v3426, %v3427
        %v3429 = vrot.slane %v3314, 7
        %v3430 = vsel %vm1459, %v3427, %v3429
        %v3431 = vrot.slane %v3315, 7
        %v3432 = vrot.slane %v3316, 7
        %v3433 = vsel %vm1459, %v3431, %v3432
        %v3434 = vrot.slane %v3317, 7
        %v3435 = vsel %vm1459, %v3432, %v3434
        %v3436 = vrot.slane %v3318, 7
        %v3437 = vrot.slane %v3319, 7
        %v3438 = vsel %vm1459, %v3436, %v3437
        %v3439 = vrot.slane %v3320, 7
        %v3440 = vsel %vm1459, %v3437, %v3439
        %v3441 = vrot.slane %v3321, 7
        %v3442 = vrot.slane %v3322, 7
        %v3443 = vsel %vm1459, %v3441, %v3442
        %v3444 = vrot.slane %v3323, 7
        %v3445 = vsel %vm1459, %v3442, %v3444
        %v3446 = vrot.slane %v3324, 7
        %v3447 = vrot.slane %v3325, 7
        %v3448 = vsel %vm1459, %v3446, %v3447
        %v3449 = vrot.slane %v3326, 7
        %v3450 = vsel %vm1459, %v3447, %v3449
        %v3451 = vrot.slane %v3327, 7
        %v3452 = vrot.slane %v3328, 7
        %v3453 = vsel %vm1459, %v3451, %v3452
        %v3454 = vrot.slane %v3329, 7
        %v3455 = vsel %vm1459, %v3452, %v3454
        %v3456 = vrot.slane %v3330, 7
        %v3457 = vrot.slane %v3331, 7
        %v3458 = vsel %vm1459, %v3456, %v3457
        %v3459 = vrot.slane %v3332, 7
        %v3460 = vsel %vm1459, %v3457, %v3459
        %s3461 = scalar_lea.vmem %s1, 384
        %v3462 = vld [vmem:[%s3461] sm:$0xff]
        %v3463 = vld [vmem:[%s3461 + $0x8] sm:$0xff]
        %v3464 = vld [vmem:[%s3461 + $0x10] sm:$0xff]
        %v3465 = vld [vmem:[%s3461 + $0x18] sm:$0xff]
        %v3466 = vld [vmem:[%s3461 + $0x20] sm:$0xff]
        %v3467 = vld [vmem:[%s3461 + $0x28] sm:$0xff]
        %v3468 = vld [vmem:[%s3461 + $0x30] sm:$0xff]
        %v3469 = vld [vmem:[%s3461 + $0x38] sm:$0xff]
        %v3470 = vld [vmem:[%s3461 + $0x40] sm:$0xff]
        %v3471 = vld [vmem:[%s3461 + $0x48] sm:$0xff]
        %v3472 = vld [vmem:[%s3461 + $0x50] sm:$0xff]
        %v3473 = vld [vmem:[%s3461 + $0x58] sm:$0xff]
        %v3474 = vld [vmem:[%s3461 + $0x60] sm:$0xff]
        %v3475 = vld [vmem:[%s3461 + $0x68] sm:$0xff]
        %v3476 = vld [vmem:[%s3461 + $0x70] sm:$0xff]
        %v3477 = vld [vmem:[%s3461 + $0x78] sm:$0xff]
        %v3478 = vsel %vm170, %v3383, 0
        %v3480 = vsel %vm170, %v3385, 0
        %v3482 = vsel %vm170, %v3388, 0
        %v3484 = vsel %vm170, %v3390, 0
        %v3486 = vsel %vm170, %v3393, 0
        %v3488 = vsel %vm170, %v3395, 0
        %v3490 = vsel %vm170, %v3398, 0
        %v3492 = vsel %vm170, %v3400, 0
        %v3494 = vsel %vm170, %v3403, 0
        %v3496 = vsel %vm170, %v3405, 0
        %v3498 = vsel %vm170, %v3408, 0
        %v3500 = vsel %vm170, %v3410, 0
        %v3502 = vsel %vm170, %v3413, 0
        %v3504 = vsel %vm170, %v3415, 0
        %v3506 = vsel %vm170, %v3418, 0
        %v3508 = vsel %vm170, %v3420, 0
        %v3510 = vsel %vm170, %v3423, 0
        %v3512 = vsel %vm170, %v3425, 0
        %v3514 = vsel %vm170, %v3428, 0
        %v3516 = vsel %vm170, %v3430, 0
        %v3518 = vsel %vm170, %v3433, 0
        %v3520 = vsel %vm170, %v3435, 0
        %v3522 = vsel %vm170, %v3438, 0
        %v3524 = vsel %vm170, %v3440, 0
        %v3526 = vsel %vm170, %v3443, 0
        %v3528 = vsel %vm170, %v3445, 0
        %v3530 = vsel %vm170, %v3448, 0
        %v3532 = vsel %vm170, %v3450, 0
        %v3534 = vsel %vm170, %v3453, 0
        %v3536 = vsel %vm170, %v3455, 0
        %v3538 = vsel %vm170, %v3458, 0
        %v3540 = vsel %vm170, %v3460, 0
        %3542 = vmatpush.msra.mxu0 0.0
        %3543 = vmatpush.msra.mxu0 0.0
        %3544 = vmatpush.msra.mxu0 0.0
        %3545 = vmatpush.msra.mxu0 0.0
        %3546 = vmatpush.msra.mxu0 0.0
        %3547 = vmatpush.msra.mxu0 0.0
        %3548 = vmatpush.msra.mxu0 0.0
        %3549 = vmatpush.msra.mxu0 0.0
        %3550 = vmatpush.msra.mxu0 %v3476
        %3551 = vmatpush.msra.mxu0 %v3474
        %3552 = vmatpush.msra.mxu0 %v3472
        %3553 = vmatpush.msra.mxu0 %v3470
        %3554 = vmatpush.msra.mxu0 %v3468
        %3555 = vmatpush.msra.mxu0 %v3466
        %3556 = vmatpush.msra.mxu0 %v3464
        %3557 = vmatpush.msra.mxu0 %v3462
        %3558 = vmatmul.f32.gmra.mxu0 %v3478
        %v3559 = vpop.f32.mrf.mxu0
        %v3560 = vadd.f32 0.0, %v3559
        %3561 = vmatmul.f32.gmra.mxu0 %v3480
        %v3562 = vpop.f32.mrf.mxu0
        %v3563 = vadd.f32 0.0, %v3562
        %3564 = vmatmul.f32.gmra.mxu0 %v3482
        %v3565 = vpop.f32.mrf.mxu0
        %v3566 = vadd.f32 0.0, %v3565
        %3567 = vmatmul.f32.gmra.mxu0 %v3484
        %v3568 = vpop.f32.mrf.mxu0
        %v3569 = vadd.f32 0.0, %v3568
        %3570 = vmatmul.f32.gmra.mxu0 %v3486
        %v3571 = vpop.f32.mrf.mxu0
        %v3572 = vadd.f32 0.0, %v3571
        %3573 = vmatmul.f32.gmra.mxu0 %v3488
        %v3574 = vpop.f32.mrf.mxu0
        %v3575 = vadd.f32 0.0, %v3574
        %3576 = vmatmul.f32.gmra.mxu0 %v3490
        %v3577 = vpop.f32.mrf.mxu0
        %v3578 = vadd.f32 0.0, %v3577
        %3579 = vmatmul.f32.gmra.mxu0 %v3492
        %v3580 = vpop.f32.mrf.mxu0
        %v3581 = vadd.f32 0.0, %v3580
        %3582 = vmatmul.f32.gmra.mxu0 %v3494
        %v3583 = vpop.f32.mrf.mxu0
        %v3584 = vadd.f32 0.0, %v3583
        %3585 = vmatmul.f32.gmra.mxu0 %v3496
        %v3586 = vpop.f32.mrf.mxu0
        %v3587 = vadd.f32 0.0, %v3586
        %3588 = vmatmul.f32.gmra.mxu0 %v3498
        %v3589 = vpop.f32.mrf.mxu0
        %v3590 = vadd.f32 0.0, %v3589
        %3591 = vmatmul.f32.gmra.mxu0 %v3500
        %v3592 = vpop.f32.mrf.mxu0
        %v3593 = vadd.f32 0.0, %v3592
        %3594 = vmatmul.f32.gmra.mxu0 %v3502
        %v3595 = vpop.f32.mrf.mxu0
        %v3596 = vadd.f32 0.0, %v3595
        %3597 = vmatmul.f32.gmra.mxu0 %v3504
        %v3598 = vpop.f32.mrf.mxu0
        %v3599 = vadd.f32 0.0, %v3598
        %3600 = vmatmul.f32.gmra.mxu0 %v3506
        %v3601 = vpop.f32.mrf.mxu0
        %v3602 = vadd.f32 0.0, %v3601
        %3603 = vmatmul.f32.gmra.mxu0 %v3508
        %v3604 = vpop.f32.mrf.mxu0
        %v3605 = vadd.f32 0.0, %v3604
        %3606 = vmatmul.f32.gmra.mxu0 %v3510
        %v3607 = vpop.f32.mrf.mxu0
        %v3608 = vadd.f32 0.0, %v3607
        %3609 = vmatmul.f32.gmra.mxu0 %v3512
        %v3610 = vpop.f32.mrf.mxu0
        %v3611 = vadd.f32 0.0, %v3610
        %3612 = vmatmul.f32.gmra.mxu0 %v3514
        %v3613 = vpop.f32.mrf.mxu0
        %v3614 = vadd.f32 0.0, %v3613
        %3615 = vmatmul.f32.gmra.mxu0 %v3516
        %v3616 = vpop.f32.mrf.mxu0
        %v3617 = vadd.f32 0.0, %v3616
        %3618 = vmatmul.f32.gmra.mxu0 %v3518
        %v3619 = vpop.f32.mrf.mxu0
        %v3620 = vadd.f32 0.0, %v3619
        %3621 = vmatmul.f32.gmra.mxu0 %v3520
        %v3622 = vpop.f32.mrf.mxu0
        %v3623 = vadd.f32 0.0, %v3622
        %3624 = vmatmul.f32.gmra.mxu0 %v3522
        %v3625 = vpop.f32.mrf.mxu0
        %v3626 = vadd.f32 0.0, %v3625
        %3627 = vmatmul.f32.gmra.mxu0 %v3524
        %v3628 = vpop.f32.mrf.mxu0
        %v3629 = vadd.f32 0.0, %v3628
        %3630 = vmatmul.f32.gmra.mxu0 %v3526
        %v3631 = vpop.f32.mrf.mxu0
        %v3632 = vadd.f32 0.0, %v3631
        %3633 = vmatmul.f32.gmra.mxu0 %v3528
        %v3634 = vpop.f32.mrf.mxu0
        %v3635 = vadd.f32 0.0, %v3634
        %3636 = vmatmul.f32.gmra.mxu0 %v3530
        %v3637 = vpop.f32.mrf.mxu0
        %v3638 = vadd.f32 0.0, %v3637
        %3639 = vmatmul.f32.gmra.mxu0 %v3532
        %v3640 = vpop.f32.mrf.mxu0
        %v3641 = vadd.f32 0.0, %v3640
        %3642 = vmatmul.f32.gmra.mxu0 %v3534
        %v3643 = vpop.f32.mrf.mxu0
        %v3644 = vadd.f32 0.0, %v3643
        %3645 = vmatmul.f32.gmra.mxu0 %v3536
        %v3646 = vpop.f32.mrf.mxu0
        %v3647 = vadd.f32 0.0, %v3646
        %3648 = vmatmul.f32.gmra.mxu0 %v3538
        %v3649 = vpop.f32.mrf.mxu0
        %v3650 = vadd.f32 0.0, %v3649
        %3651 = vmatmul.f32.gmra.mxu0 %v3540
        %v3652 = vpop.f32.mrf.mxu0
        %v3653 = vadd.f32 0.0, %v3652
        %3654 = vdwg.mxu0
        %3655 = vmatpush.msra.mxu0 0.0
        %3656 = vmatpush.msra.mxu0 0.0
        %3657 = vmatpush.msra.mxu0 0.0
        %3658 = vmatpush.msra.mxu0 0.0
        %3659 = vmatpush.msra.mxu0 0.0
        %3660 = vmatpush.msra.mxu0 0.0
        %3661 = vmatpush.msra.mxu0 0.0
        %3662 = vmatpush.msra.mxu0 0.0
        %3663 = vmatpush.msra.mxu0 %v3477
        %3664 = vmatpush.msra.mxu0 %v3475
        %3665 = vmatpush.msra.mxu0 %v3473
        %3666 = vmatpush.msra.mxu0 %v3471
        %3667 = vmatpush.msra.mxu0 %v3469
        %3668 = vmatpush.msra.mxu0 %v3467
        %3669 = vmatpush.msra.mxu0 %v3465
        %3670 = vmatpush.msra.mxu0 %v3463
        %3671 = vmatmul.f32.gmra.mxu0 %v3478
        %v3672 = vpop.f32.mrf.mxu0
        %v3673 = vadd.f32 0.0, %v3672
        %3674 = vmatmul.f32.gmra.mxu0 %v3480
        %v3675 = vpop.f32.mrf.mxu0
        %v3676 = vadd.f32 0.0, %v3675
        %3677 = vmatmul.f32.gmra.mxu0 %v3482
        %v3678 = vpop.f32.mrf.mxu0
        %v3679 = vadd.f32 0.0, %v3678
        %3680 = vmatmul.f32.gmra.mxu0 %v3484
        %v3681 = vpop.f32.mrf.mxu0
        %v3682 = vadd.f32 0.0, %v3681
        %3683 = vmatmul.f32.gmra.mxu0 %v3486
        %v3684 = vpop.f32.mrf.mxu0
        %v3685 = vadd.f32 0.0, %v3684
        %3686 = vmatmul.f32.gmra.mxu0 %v3488
        %v3687 = vpop.f32.mrf.mxu0
        %v3688 = vadd.f32 0.0, %v3687
        %3689 = vmatmul.f32.gmra.mxu0 %v3490
        %v3690 = vpop.f32.mrf.mxu0
        %v3691 = vadd.f32 0.0, %v3690
        %3692 = vmatmul.f32.gmra.mxu0 %v3492
        %v3693 = vpop.f32.mrf.mxu0
        %v3694 = vadd.f32 0.0, %v3693
        %3695 = vmatmul.f32.gmra.mxu0 %v3494
        %v3696 = vpop.f32.mrf.mxu0
        %v3697 = vadd.f32 0.0, %v3696
        %3698 = vmatmul.f32.gmra.mxu0 %v3496
        %v3699 = vpop.f32.mrf.mxu0
        %v3700 = vadd.f32 0.0, %v3699
        %3701 = vmatmul.f32.gmra.mxu0 %v3498
        %v3702 = vpop.f32.mrf.mxu0
        %v3703 = vadd.f32 0.0, %v3702
        %3704 = vmatmul.f32.gmra.mxu0 %v3500
        %v3705 = vpop.f32.mrf.mxu0
        %v3706 = vadd.f32 0.0, %v3705
        %3707 = vmatmul.f32.gmra.mxu0 %v3502
        %v3708 = vpop.f32.mrf.mxu0
        %v3709 = vadd.f32 0.0, %v3708
        %3710 = vmatmul.f32.gmra.mxu0 %v3504
        %v3711 = vpop.f32.mrf.mxu0
        %v3712 = vadd.f32 0.0, %v3711
        %3713 = vmatmul.f32.gmra.mxu0 %v3506
        %v3714 = vpop.f32.mrf.mxu0
        %v3715 = vadd.f32 0.0, %v3714
        %3716 = vmatmul.f32.gmra.mxu0 %v3508
        %v3717 = vpop.f32.mrf.mxu0
        %v3718 = vadd.f32 0.0, %v3717
        %3719 = vmatmul.f32.gmra.mxu0 %v3510
        %v3720 = vpop.f32.mrf.mxu0
        %v3721 = vadd.f32 0.0, %v3720
        %3722 = vmatmul.f32.gmra.mxu0 %v3512
        %v3723 = vpop.f32.mrf.mxu0
        %v3724 = vadd.f32 0.0, %v3723
        %3725 = vmatmul.f32.gmra.mxu0 %v3514
        %v3726 = vpop.f32.mrf.mxu0
        %v3727 = vadd.f32 0.0, %v3726
        %3728 = vmatmul.f32.gmra.mxu0 %v3516
        %v3729 = vpop.f32.mrf.mxu0
        %v3730 = vadd.f32 0.0, %v3729
        %3731 = vmatmul.f32.gmra.mxu0 %v3518
        %v3732 = vpop.f32.mrf.mxu0
        %v3733 = vadd.f32 0.0, %v3732
        %3734 = vmatmul.f32.gmra.mxu0 %v3520
        %v3735 = vpop.f32.mrf.mxu0
        %v3736 = vadd.f32 0.0, %v3735
        %3737 = vmatmul.f32.gmra.mxu0 %v3522
        %v3738 = vpop.f32.mrf.mxu0
        %v3739 = vadd.f32 0.0, %v3738
        %3740 = vmatmul.f32.gmra.mxu0 %v3524
        %v3741 = vpop.f32.mrf.mxu0
        %v3742 = vadd.f32 0.0, %v3741
        %3743 = vmatmul.f32.gmra.mxu0 %v3526
        %v3744 = vpop.f32.mrf.mxu0
        %v3745 = vadd.f32 0.0, %v3744
        %3746 = vmatmul.f32.gmra.mxu0 %v3528
        %v3747 = vpop.f32.mrf.mxu0
        %v3748 = vadd.f32 0.0, %v3747
        %3749 = vmatmul.f32.gmra.mxu0 %v3530
        %v3750 = vpop.f32.mrf.mxu0
        %v3751 = vadd.f32 0.0, %v3750
        %3752 = vmatmul.f32.gmra.mxu0 %v3532
        %v3753 = vpop.f32.mrf.mxu0
        %v3754 = vadd.f32 0.0, %v3753
        %3755 = vmatmul.f32.gmra.mxu0 %v3534
        %v3756 = vpop.f32.mrf.mxu0
        %v3757 = vadd.f32 0.0, %v3756
        %3758 = vmatmul.f32.gmra.mxu0 %v3536
        %v3759 = vpop.f32.mrf.mxu0
        %v3760 = vadd.f32 0.0, %v3759
        %3761 = vmatmul.f32.gmra.mxu0 %v3538
        %v3762 = vpop.f32.mrf.mxu0
        %v3763 = vadd.f32 0.0, %v3762
        %3764 = vmatmul.f32.gmra.mxu0 %v3540
        %v3765 = vpop.f32.mrf.mxu0
        %v3766 = vadd.f32 0.0, %v3765
        %3767 = vdwg.mxu0
        %3768 = vst [vmem:[%s684 + $0x10] sm:$0xff] %v3560
        %3769 = vst.msk [vmem:[%s684 + $0x18] sm:$0xff] %vm170, %v3673
        %3770 = vst [vmem:[%s684 + $0x20] sm:$0xff] %v3563
        %3771 = vst.msk [vmem:[%s684 + $0x28] sm:$0xff] %vm170, %v3676
        %3772 = vst [vmem:[%s684 + $0x50] sm:$0xff] %v3566
        %3773 = vst.msk [vmem:[%s684 + $0x58] sm:$0xff] %vm170, %v3679
        %3774 = vst [vmem:[%s684 + $0x60] sm:$0xff] %v3569
        %3775 = vst.msk [vmem:[%s684 + $0x68] sm:$0xff] %vm170, %v3682
        %3776 = vst [vmem:[%s684 + $0x90] sm:$0xff] %v3572
        %3777 = vst.msk [vmem:[%s684 + $0x98] sm:$0xff] %vm170, %v3685
        %3778 = vst [vmem:[%s684 + $0xa0] sm:$0xff] %v3575
        %3779 = vst.msk [vmem:[%s684 + $0xa8] sm:$0xff] %vm170, %v3688
        %3780 = vst [vmem:[%s684 + $0xd0] sm:$0xff] %v3578
        %3781 = vst.msk [vmem:[%s684 + $0xd8] sm:$0xff] %vm170, %v3691
        %3782 = vst [vmem:[%s684 + $0xe0] sm:$0xff] %v3581
        %3783 = vst.msk [vmem:[%s684 + $0xe8] sm:$0xff] %vm170, %v3694
        %3784 = vst [vmem:[%s684 + $0x110] sm:$0xff] %v3584
        %3785 = vst.msk [vmem:[%s684 + $0x118] sm:$0xff] %vm170, %v3697
        %3786 = vst [vmem:[%s684 + $0x120] sm:$0xff] %v3587
        %3787 = vst.msk [vmem:[%s684 + $0x128] sm:$0xff] %vm170, %v3700
        %3788 = vst [vmem:[%s684 + $0x150] sm:$0xff] %v3590
        %3789 = vst.msk [vmem:[%s684 + $0x158] sm:$0xff] %vm170, %v3703
        %3790 = vst [vmem:[%s684 + $0x160] sm:$0xff] %v3593
        %3791 = vst.msk [vmem:[%s684 + $0x168] sm:$0xff] %vm170, %v3706
        %3792 = vst [vmem:[%s684 + $0x190] sm:$0xff] %v3596
        %3793 = vst.msk [vmem:[%s684 + $0x198] sm:$0xff] %vm170, %v3709
        %3794 = vst [vmem:[%s684 + $0x1a0] sm:$0xff] %v3599
        %3795 = vst.msk [vmem:[%s684 + $0x1a8] sm:$0xff] %vm170, %v3712
        %3796 = vst [vmem:[%s684 + $0x1d0] sm:$0xff] %v3602
        %3797 = vst.msk [vmem:[%s684 + $0x1d8] sm:$0xff] %vm170, %v3715
        %3798 = vst [vmem:[%s684 + $0x1e0] sm:$0xff] %v3605
        %3799 = vst.msk [vmem:[%s684 + $0x1e8] sm:$0xff] %vm170, %v3718
        %3800 = vst [vmem:[%s684 + $0x210] sm:$0xff] %v3608
        %3801 = vst.msk [vmem:[%s684 + $0x218] sm:$0xff] %vm170, %v3721
        %3802 = vst [vmem:[%s684 + $0x220] sm:$0xff] %v3611
        %3803 = vst.msk [vmem:[%s684 + $0x228] sm:$0xff] %vm170, %v3724
        %3804 = vst [vmem:[%s684 + $0x250] sm:$0xff] %v3614
        %3805 = vst.msk [vmem:[%s684 + $0x258] sm:$0xff] %vm170, %v3727
        %3806 = vst [vmem:[%s684 + $0x260] sm:$0xff] %v3617
        %3807 = vst.msk [vmem:[%s684 + $0x268] sm:$0xff] %vm170, %v3730
        %3808 = vst [vmem:[%s684 + $0x290] sm:$0xff] %v3620
        %3809 = vst.msk [vmem:[%s684 + $0x298] sm:$0xff] %vm170, %v3733
        %3810 = vst [vmem:[%s684 + $0x2a0] sm:$0xff] %v3623
        %3811 = vst.msk [vmem:[%s684 + $0x2a8] sm:$0xff] %vm170, %v3736
        %3812 = vst [vmem:[%s684 + $0x2d0] sm:$0xff] %v3626
        %3813 = vst.msk [vmem:[%s684 + $0x2d8] sm:$0xff] %vm170, %v3739
        %3814 = vst [vmem:[%s684 + $0x2e0] sm:$0xff] %v3629
        %3815 = vst.msk [vmem:[%s684 + $0x2e8] sm:$0xff] %vm170, %v3742
        %3816 = vst [vmem:[%s684 + $0x310] sm:$0xff] %v3632
        %3817 = vst.msk [vmem:[%s684 + $0x318] sm:$0xff] %vm170, %v3745
        %3818 = vst [vmem:[%s684 + $0x320] sm:$0xff] %v3635
        %3819 = vst.msk [vmem:[%s684 + $0x328] sm:$0xff] %vm170, %v3748
        %3820 = vst [vmem:[%s684 + $0x350] sm:$0xff] %v3638
        %3821 = vst.msk [vmem:[%s684 + $0x358] sm:$0xff] %vm170, %v3751
        %3822 = vst [vmem:[%s684 + $0x360] sm:$0xff] %v3641
        %3823 = vst.msk [vmem:[%s684 + $0x368] sm:$0xff] %vm170, %v3754
        %3824 = vst [vmem:[%s684 + $0x390] sm:$0xff] %v3644
        %3825 = vst.msk [vmem:[%s684 + $0x398] sm:$0xff] %vm170, %v3757
        %3826 = vst [vmem:[%s684 + $0x3a0] sm:$0xff] %v3647
        %3827 = vst.msk [vmem:[%s684 + $0x3a8] sm:$0xff] %vm170, %v3760
        %3828 = vst [vmem:[%s684 + $0x3d0] sm:$0xff] %v3650
        %3829 = vst.msk [vmem:[%s684 + $0x3d8] sm:$0xff] %vm170, %v3763
        %3830 = vst [vmem:[%s684 + $0x3e0] sm:$0xff] %v3653
        %3831 = vst.msk [vmem:[%s684 + $0x3e8] sm:$0xff] %vm170, %v3766
        %v3832 = vld [vmem:[#allocation2 + $0x10] sm:$0xff]
        %v3833 = vld [vmem:[#allocation2 + $0x20] sm:$0xff]
        %v3834 = vld [vmem:[#allocation2 + $0x50] sm:$0xff]
        %v3835 = vld [vmem:[#allocation2 + $0x60] sm:$0xff]
        %v3836 = vld [vmem:[#allocation2 + $0x90] sm:$0xff]
        %v3837 = vld [vmem:[#allocation2 + $0xa0] sm:$0xff]
        %v3838 = vld [vmem:[#allocation2 + $0xd0] sm:$0xff]
        %v3839 = vld [vmem:[#allocation2 + $0xe0] sm:$0xff]
        %v3840 = vld [vmem:[#allocation2 + $0x110] sm:$0xff]
        %v3841 = vld [vmem:[#allocation2 + $0x120] sm:$0xff]
        %v3842 = vld [vmem:[#allocation2 + $0x150] sm:$0xff]
        %v3843 = vld [vmem:[#allocation2 + $0x160] sm:$0xff]
        %v3844 = vld [vmem:[#allocation2 + $0x190] sm:$0xff]
        %v3845 = vld [vmem:[#allocation2 + $0x1a0] sm:$0xff]
        %v3846 = vld [vmem:[#allocation2 + $0x1d0] sm:$0xff]
        %v3847 = vld [vmem:[#allocation2 + $0x1e0] sm:$0xff]
        %v3848 = vld [vmem:[#allocation2 + $0x210] sm:$0xff]
        %v3849 = vld [vmem:[#allocation2 + $0x220] sm:$0xff]
        %v3850 = vld [vmem:[#allocation2 + $0x250] sm:$0xff]
        %v3851 = vld [vmem:[#allocation2 + $0x260] sm:$0xff]
        %v3852 = vld [vmem:[#allocation2 + $0x290] sm:$0xff]
        %v3853 = vld [vmem:[#allocation2 + $0x2a0] sm:$0xff]
        %v3854 = vld [vmem:[#allocation2 + $0x2d0] sm:$0xff]
        %v3855 = vld [vmem:[#allocation2 + $0x2e0] sm:$0xff]
        %v3856 = vld [vmem:[#allocation2 + $0x310] sm:$0xff]
        %v3857 = vld [vmem:[#allocation2 + $0x320] sm:$0xff]
        %v3858 = vld [vmem:[#allocation2 + $0x350] sm:$0xff]
        %v3859 = vld [vmem:[#allocation2 + $0x360] sm:$0xff]
        %v3860 = vld [vmem:[#allocation2 + $0x390] sm:$0xff]
        %v3861 = vld [vmem:[#allocation2 + $0x3a0] sm:$0xff]
        %v3862 = vld [vmem:[#allocation2 + $0x3d0] sm:$0xff]
        %v3863 = vld [vmem:[#allocation2 + $0x3e0] sm:$0xff]
        %v3864 = vld [vmem:[%s684 + $0x10] sm:$0xff]
        %v3865 = vld [vmem:[%s684 + $0x20] sm:$0xff]
        %v3866 = vld [vmem:[%s684 + $0x50] sm:$0xff]
        %v3867 = vld [vmem:[%s684 + $0x60] sm:$0xff]
        %v3868 = vld [vmem:[%s684 + $0x90] sm:$0xff]
        %v3869 = vld [vmem:[%s684 + $0xa0] sm:$0xff]
        %v3870 = vld [vmem:[%s684 + $0xd0] sm:$0xff]
        %v3871 = vld [vmem:[%s684 + $0xe0] sm:$0xff]
        %v3872 = vld [vmem:[%s684 + $0x110] sm:$0xff]
        %v3873 = vld [vmem:[%s684 + $0x120] sm:$0xff]
        %v3874 = vld [vmem:[%s684 + $0x150] sm:$0xff]
        %v3875 = vld [vmem:[%s684 + $0x160] sm:$0xff]
        %v3876 = vld [vmem:[%s684 + $0x190] sm:$0xff]
        %v3877 = vld [vmem:[%s684 + $0x1a0] sm:$0xff]
        %v3878 = vld [vmem:[%s684 + $0x1d0] sm:$0xff]
        %v3879 = vld [vmem:[%s684 + $0x1e0] sm:$0xff]
        %v3880 = vld [vmem:[%s684 + $0x210] sm:$0xff]
        %v3881 = vld [vmem:[%s684 + $0x220] sm:$0xff]
        %v3882 = vld [vmem:[%s684 + $0x250] sm:$0xff]
        %v3883 = vld [vmem:[%s684 + $0x260] sm:$0xff]
        %v3884 = vld [vmem:[%s684 + $0x290] sm:$0xff]
        %v3885 = vld [vmem:[%s684 + $0x2a0] sm:$0xff]
        %v3886 = vld [vmem:[%s684 + $0x2d0] sm:$0xff]
        %v3887 = vld [vmem:[%s684 + $0x2e0] sm:$0xff]
        %v3888 = vld [vmem:[%s684 + $0x310] sm:$0xff]
        %v3889 = vld [vmem:[%s684 + $0x320] sm:$0xff]
        %v3890 = vld [vmem:[%s684 + $0x350] sm:$0xff]
        %v3891 = vld [vmem:[%s684 + $0x360] sm:$0xff]
        %v3892 = vld [vmem:[%s684 + $0x390] sm:$0xff]
        %v3893 = vld [vmem:[%s684 + $0x3a0] sm:$0xff]
        %v3894 = vld [vmem:[%s684 + $0x3d0] sm:$0xff]
        %v3895 = vld [vmem:[%s684 + $0x3e0] sm:$0xff]
        %3928 = vrot.lane.b32.xlu0 %v3864, 64
        %v3929 = vpop.permute.xlu0 %3928
        %3930 = vrot.lane.b32.xlu0 %v3865, 64
        %v3931 = vpop.permute.xlu0 %3930
        %3932 = vrot.lane.b32.xlu0 %v3866, 64
        %v3933 = vpop.permute.xlu0 %3932
        %3934 = vrot.lane.b32.xlu0 %v3867, 64
        %v3935 = vpop.permute.xlu0 %3934
        %3936 = vrot.lane.b32.xlu0 %v3868, 64
        %v3937 = vpop.permute.xlu0 %3936
        %3938 = vrot.lane.b32.xlu0 %v3869, 64
        %v3939 = vpop.permute.xlu0 %3938
        %3940 = vrot.lane.b32.xlu0 %v3870, 64
        %v3941 = vpop.permute.xlu0 %3940
        %3942 = vrot.lane.b32.xlu0 %v3871, 64
        %v3943 = vpop.permute.xlu0 %3942
        %3944 = vrot.lane.b32.xlu0 %v3872, 64
        %v3945 = vpop.permute.xlu0 %3944
        %3946 = vrot.lane.b32.xlu0 %v3873, 64
        %v3947 = vpop.permute.xlu0 %3946
        %3948 = vrot.lane.b32.xlu0 %v3874, 64
        %v3949 = vpop.permute.xlu0 %3948
        %3950 = vrot.lane.b32.xlu0 %v3875, 64
        %v3951 = vpop.permute.xlu0 %3950
        %3952 = vrot.lane.b32.xlu0 %v3876, 64
        %v3953 = vpop.permute.xlu0 %3952
        %3954 = vrot.lane.b32.xlu0 %v3877, 64
        %v3955 = vpop.permute.xlu0 %3954
        %3956 = vrot.lane.b32.xlu0 %v3878, 64
        %v3957 = vpop.permute.xlu0 %3956
        %3958 = vrot.lane.b32.xlu0 %v3879, 64
        %v3959 = vpop.permute.xlu0 %3958
        %3960 = vrot.lane.b32.xlu0 %v3880, 64
        %v3961 = vpop.permute.xlu0 %3960
        %3962 = vrot.lane.b32.xlu0 %v3881, 64
        %v3963 = vpop.permute.xlu0 %3962
        %3964 = vrot.lane.b32.xlu0 %v3882, 64
        %v3965 = vpop.permute.xlu0 %3964
        %3966 = vrot.lane.b32.xlu0 %v3883, 64
        %v3967 = vpop.permute.xlu0 %3966
        %3968 = vrot.lane.b32.xlu0 %v3884, 64
        %v3969 = vpop.permute.xlu0 %3968
        %3970 = vrot.lane.b32.xlu0 %v3885, 64
        %v3971 = vpop.permute.xlu0 %3970
        %3972 = vrot.lane.b32.xlu0 %v3886, 64
        %v3973 = vpop.permute.xlu0 %3972
        %3974 = vrot.lane.b32.xlu0 %v3887, 64
        %v3975 = vpop.permute.xlu0 %3974
        %3976 = vrot.lane.b32.xlu0 %v3888, 64
        %v3977 = vpop.permute.xlu0 %3976
        %3978 = vrot.lane.b32.xlu0 %v3889, 64
        %v3979 = vpop.permute.xlu0 %3978
        %3980 = vrot.lane.b32.xlu0 %v3890, 64
        %v3981 = vpop.permute.xlu0 %3980
        %3982 = vrot.lane.b32.xlu0 %v3891, 64
        %v3983 = vpop.permute.xlu0 %3982
        %3984 = vrot.lane.b32.xlu0 %v3892, 64
        %v3985 = vpop.permute.xlu0 %3984
        %3986 = vrot.lane.b32.xlu0 %v3893, 64
        %v3987 = vpop.permute.xlu0 %3986
        %3988 = vrot.lane.b32.xlu0 %v3894, 64
        %v3989 = vpop.permute.xlu0 %3988
        %3990 = vrot.lane.b32.xlu0 %v3895, 64
        %v3991 = vpop.permute.xlu0 %3990
        %v4024 = vadd.f32 %v3832, %v3929
        %v4025 = vadd.f32 %v3833, %v3931
        %v4026 = vadd.f32 %v3834, %v3933
        %v4027 = vadd.f32 %v3835, %v3935
        %v4028 = vadd.f32 %v3836, %v3937
        %v4029 = vadd.f32 %v3837, %v3939
        %v4030 = vadd.f32 %v3838, %v3941
        %v4031 = vadd.f32 %v3839, %v3943
        %v4032 = vadd.f32 %v3840, %v3945
        %v4033 = vadd.f32 %v3841, %v3947
        %v4034 = vadd.f32 %v3842, %v3949
        %v4035 = vadd.f32 %v3843, %v3951
        %v4036 = vadd.f32 %v3844, %v3953
        %v4037 = vadd.f32 %v3845, %v3955
        %v4038 = vadd.f32 %v3846, %v3957
        %v4039 = vadd.f32 %v3847, %v3959
        %v4040 = vadd.f32 %v3848, %v3961
        %v4041 = vadd.f32 %v3849, %v3963
        %v4042 = vadd.f32 %v3850, %v3965
        %v4043 = vadd.f32 %v3851, %v3967
        %v4044 = vadd.f32 %v3852, %v3969
        %v4045 = vadd.f32 %v3853, %v3971
        %v4046 = vadd.f32 %v3854, %v3973
        %v4047 = vadd.f32 %v3855, %v3975
        %v4048 = vadd.f32 %v3856, %v3977
        %v4049 = vadd.f32 %v3857, %v3979
        %v4050 = vadd.f32 %v3858, %v3981
        %v4051 = vadd.f32 %v3859, %v3983
        %v4052 = vadd.f32 %v3860, %v3985
        %v4053 = vadd.f32 %v3861, %v3987
        %v4054 = vadd.f32 %v3862, %v3989
        %v4055 = vadd.f32 %v3863, %v3991
        %v4056 = vld [vmem:[%s2135 + $0x18] sm:$0xff]
        %v4057 = vld [vmem:[%s2135 + $0x28] sm:$0xff]
        %v4058 = vld [vmem:[%s2135 + $0x58] sm:$0xff]
        %v4059 = vld [vmem:[%s2135 + $0x68] sm:$0xff]
        %v4060 = vld [vmem:[%s2135 + $0x98] sm:$0xff]
        %v4061 = vld [vmem:[%s2135 + $0xa8] sm:$0xff]
        %v4062 = vld [vmem:[%s2135 + $0xd8] sm:$0xff]
        %v4063 = vld [vmem:[%s2135 + $0xe8] sm:$0xff]
        %v4064 = vld [vmem:[%s2135 + $0x118] sm:$0xff]
        %v4065 = vld [vmem:[%s2135 + $0x128] sm:$0xff]
        %v4066 = vld [vmem:[%s2135 + $0x158] sm:$0xff]
        %v4067 = vld [vmem:[%s2135 + $0x168] sm:$0xff]
        %v4068 = vld [vmem:[%s2135 + $0x198] sm:$0xff]
        %v4069 = vld [vmem:[%s2135 + $0x1a8] sm:$0xff]
        %v4070 = vld [vmem:[%s2135 + $0x1d8] sm:$0xff]
        %v4071 = vld [vmem:[%s2135 + $0x1e8] sm:$0xff]
        %v4072 = vld [vmem:[%s2135 + $0x218] sm:$0xff]
        %v4073 = vld [vmem:[%s2135 + $0x228] sm:$0xff]
        %v4074 = vld [vmem:[%s2135 + $0x258] sm:$0xff]
        %v4075 = vld [vmem:[%s2135 + $0x268] sm:$0xff]
        %v4076 = vld [vmem:[%s2135 + $0x298] sm:$0xff]
        %v4077 = vld [vmem:[%s2135 + $0x2a8] sm:$0xff]
        %v4078 = vld [vmem:[%s2135 + $0x2d8] sm:$0xff]
        %v4079 = vld [vmem:[%s2135 + $0x2e8] sm:$0xff]
        %v4080 = vld [vmem:[%s2135 + $0x318] sm:$0xff]
        %v4081 = vld [vmem:[%s2135 + $0x328] sm:$0xff]
        %v4082 = vld [vmem:[%s2135 + $0x358] sm:$0xff]
        %v4083 = vld [vmem:[%s2135 + $0x368] sm:$0xff]
        %v4084 = vld [vmem:[%s2135 + $0x398] sm:$0xff]
        %v4085 = vld [vmem:[%s2135 + $0x3a8] sm:$0xff]
        %v4086 = vld [vmem:[%s2135 + $0x3d8] sm:$0xff]
        %v4087 = vld [vmem:[%s2135 + $0x3e8] sm:$0xff]
        %v4088 = vadd.f32 %v4024, %v4056
        %v4089 = vadd.f32 %v4025, %v4057
        %v4090 = vadd.f32 %v4026, %v4058
        %v4091 = vadd.f32 %v4027, %v4059
        %v4092 = vadd.f32 %v4028, %v4060
        %v4093 = vadd.f32 %v4029, %v4061
        %v4094 = vadd.f32 %v4030, %v4062
        %v4095 = vadd.f32 %v4031, %v4063
        %v4096 = vadd.f32 %v4032, %v4064
        %v4097 = vadd.f32 %v4033, %v4065
        %v4098 = vadd.f32 %v4034, %v4066
        %v4099 = vadd.f32 %v4035, %v4067
        %v4100 = vadd.f32 %v4036, %v4068
        %v4101 = vadd.f32 %v4037, %v4069
        %v4102 = vadd.f32 %v4038, %v4070
        %v4103 = vadd.f32 %v4039, %v4071
        %v4104 = vadd.f32 %v4040, %v4072
        %v4105 = vadd.f32 %v4041, %v4073
        %v4106 = vadd.f32 %v4042, %v4074
        %v4107 = vadd.f32 %v4043, %v4075
        %v4108 = vadd.f32 %v4044, %v4076
        %v4109 = vadd.f32 %v4045, %v4077
        %v4110 = vadd.f32 %v4046, %v4078
        %v4111 = vadd.f32 %v4047, %v4079
        %v4112 = vadd.f32 %v4048, %v4080
        %v4113 = vadd.f32 %v4049, %v4081
        %v4114 = vadd.f32 %v4050, %v4082
        %v4115 = vadd.f32 %v4051, %v4083
        %v4116 = vadd.f32 %v4052, %v4084
        %v4117 = vadd.f32 %v4053, %v4085
        %v4118 = vadd.f32 %v4054, %v4086
        %v4119 = vadd.f32 %v4055, %v4087
        %s4120 = scalar_lea.vmem %s2, 3
        %v4121 = vld [vmem:[%s4120] sm:$0x1]
        %v4123 = vperm.slane %v4121, 0
        %v4125 = vadd.f32 %v4088, %v4123
        %v4126 = vadd.f32 %v4089, %v4123
        %v4127 = vadd.f32 %v4090, %v4123
        %v4128 = vadd.f32 %v4091, %v4123
        %v4129 = vadd.f32 %v4092, %v4123
        %v4130 = vadd.f32 %v4093, %v4123
        %v4131 = vadd.f32 %v4094, %v4123
        %v4132 = vadd.f32 %v4095, %v4123
        %v4133 = vadd.f32 %v4096, %v4123
        %v4134 = vadd.f32 %v4097, %v4123
        %v4135 = vadd.f32 %v4098, %v4123
        %v4136 = vadd.f32 %v4099, %v4123
        %v4137 = vadd.f32 %v4100, %v4123
        %v4138 = vadd.f32 %v4101, %v4123
        %v4139 = vadd.f32 %v4102, %v4123
        %v4140 = vadd.f32 %v4103, %v4123
        %v4141 = vadd.f32 %v4104, %v4123
        %v4142 = vadd.f32 %v4105, %v4123
        %v4143 = vadd.f32 %v4106, %v4123
        %v4144 = vadd.f32 %v4107, %v4123
        %v4145 = vadd.f32 %v4108, %v4123
        %v4146 = vadd.f32 %v4109, %v4123
        %v4147 = vadd.f32 %v4110, %v4123
        %v4148 = vadd.f32 %v4111, %v4123
        %v4149 = vadd.f32 %v4112, %v4123
        %v4150 = vadd.f32 %v4113, %v4123
        %v4151 = vadd.f32 %v4114, %v4123
        %v4152 = vadd.f32 %v4115, %v4123
        %v4153 = vadd.f32 %v4116, %v4123
        %v4154 = vadd.f32 %v4117, %v4123
        %v4155 = vadd.f32 %v4118, %v4123
        %v4156 = vadd.f32 %v4119, %v4123
        %v4157 = vmax.f32 %v4125, 0.0
        %v4158 = vmax.f32 %v4126, 0.0
        %v4159 = vmax.f32 %v4127, 0.0
        %v4160 = vmax.f32 %v4128, 0.0
        %v4161 = vmax.f32 %v4129, 0.0
        %v4162 = vmax.f32 %v4130, 0.0
        %v4163 = vmax.f32 %v4131, 0.0
        %v4164 = vmax.f32 %v4132, 0.0
        %v4165 = vmax.f32 %v4133, 0.0
        %v4166 = vmax.f32 %v4134, 0.0
        %v4167 = vmax.f32 %v4135, 0.0
        %v4168 = vmax.f32 %v4136, 0.0
        %v4169 = vmax.f32 %v4137, 0.0
        %v4170 = vmax.f32 %v4138, 0.0
        %v4171 = vmax.f32 %v4139, 0.0
        %v4172 = vmax.f32 %v4140, 0.0
        %v4173 = vmax.f32 %v4141, 0.0
        %v4174 = vmax.f32 %v4142, 0.0
        %v4175 = vmax.f32 %v4143, 0.0
        %v4176 = vmax.f32 %v4144, 0.0
        %v4177 = vmax.f32 %v4145, 0.0
        %v4178 = vmax.f32 %v4146, 0.0
        %v4179 = vmax.f32 %v4147, 0.0
        %v4180 = vmax.f32 %v4148, 0.0
        %v4181 = vmax.f32 %v4149, 0.0
        %v4182 = vmax.f32 %v4150, 0.0
        %v4183 = vmax.f32 %v4151, 0.0
        %v4184 = vmax.f32 %v4152, 0.0
        %v4185 = vmax.f32 %v4153, 0.0
        %v4186 = vmax.f32 %v4154, 0.0
        %v4187 = vmax.f32 %v4155, 0.0
        %v4188 = vmax.f32 %v4156, 0.0
        %v4189 = vld [vmem:[%s168] sm:$0xff]
        %v4190 = vld [vmem:[%s168 + $0x8] sm:$0xff]
        %v4191 = vld [vmem:[%s168 + $0x10] sm:$0xff]
        %v4192 = vld [vmem:[%s168 + $0x18] sm:$0xff]
        %v4193 = vld [vmem:[%s168 + $0x20] sm:$0xff]
        %v4194 = vld [vmem:[%s168 + $0x28] sm:$0xff]
        %v4195 = vld [vmem:[%s168 + $0x30] sm:$0xff]
        %v4196 = vld [vmem:[%s168 + $0x38] sm:$0xff]
        %v4197 = vld [vmem:[%s168 + $0x40] sm:$0xff]
        %v4198 = vld [vmem:[%s168 + $0x48] sm:$0xff]
        %v4199 = vld [vmem:[%s168 + $0x50] sm:$0xff]
        %v4200 = vld [vmem:[%s168 + $0x58] sm:$0xff]
        %v4201 = vld [vmem:[%s168 + $0x60] sm:$0xff]
        %v4202 = vld [vmem:[%s168 + $0x68] sm:$0xff]
        %v4203 = vld [vmem:[%s168 + $0x70] sm:$0xff]
        %v4204 = vld [vmem:[%s168 + $0x78] sm:$0xff]
        %v4205 = vld [vmem:[%s168 + $0x80] sm:$0xff]
        %v4206 = vld [vmem:[%s168 + $0x88] sm:$0xff]
        %v4207 = vld [vmem:[%s168 + $0x90] sm:$0xff]
        %v4208 = vld [vmem:[%s168 + $0x98] sm:$0xff]
        %v4209 = vld [vmem:[%s168 + $0xa0] sm:$0xff]
        %v4210 = vld [vmem:[%s168 + $0xa8] sm:$0xff]
        %v4211 = vld [vmem:[%s168 + $0xb0] sm:$0xff]
        %v4212 = vld [vmem:[%s168 + $0xb8] sm:$0xff]
        %v4213 = vld [vmem:[%s168 + $0xc0] sm:$0xff]
        %v4214 = vld [vmem:[%s168 + $0xc8] sm:$0xff]
        %v4215 = vld [vmem:[%s168 + $0xd0] sm:$0xff]
        %v4216 = vld [vmem:[%s168 + $0xd8] sm:$0xff]
        %v4217 = vld [vmem:[%s168 + $0xe0] sm:$0xff]
        %v4218 = vld [vmem:[%s168 + $0xe8] sm:$0xff]
        %v4219 = vld [vmem:[%s168 + $0xf0] sm:$0xff]
        %v4220 = vld [vmem:[%s168 + $0xf8] sm:$0xff]
        %v4221 = vadd.f32 %v4157, %v4189
        %v4222 = vadd.f32 %v4158, %v4190
        %v4223 = vadd.f32 %v4159, %v4191
        %v4224 = vadd.f32 %v4160, %v4192
        %v4225 = vadd.f32 %v4161, %v4193
        %v4226 = vadd.f32 %v4162, %v4194
        %v4227 = vadd.f32 %v4163, %v4195
        %v4228 = vadd.f32 %v4164, %v4196
        %v4229 = vadd.f32 %v4165, %v4197
        %v4230 = vadd.f32 %v4166, %v4198
        %v4231 = vadd.f32 %v4167, %v4199
        %v4232 = vadd.f32 %v4168, %v4200
        %v4233 = vadd.f32 %v4169, %v4201
        %v4234 = vadd.f32 %v4170, %v4202
        %v4235 = vadd.f32 %v4171, %v4203
        %v4236 = vadd.f32 %v4172, %v4204
        %v4237 = vadd.f32 %v4173, %v4205
        %v4238 = vadd.f32 %v4174, %v4206
        %v4239 = vadd.f32 %v4175, %v4207
        %v4240 = vadd.f32 %v4176, %v4208
        %v4241 = vadd.f32 %v4177, %v4209
        %v4242 = vadd.f32 %v4178, %v4210
        %v4243 = vadd.f32 %v4179, %v4211
        %v4244 = vadd.f32 %v4180, %v4212
        %v4245 = vadd.f32 %v4181, %v4213
        %v4246 = vadd.f32 %v4182, %v4214
        %v4247 = vadd.f32 %v4183, %v4215
        %v4248 = vadd.f32 %v4184, %v4216
        %v4249 = vadd.f32 %v4185, %v4217
        %v4250 = vadd.f32 %v4186, %v4218
        %v4251 = vadd.f32 %v4187, %v4219
        %v4252 = vadd.f32 %v4188, %v4220
        %4253 = vst.msk [vmem:[%s163] sm:$0xff] %vm170, %v4221
        %4254 = vst.msk [vmem:[%s163 + $0x8] sm:$0xff] %vm170, %v4222
        %4255 = vst.msk [vmem:[%s163 + $0x10] sm:$0xff] %vm170, %v4223
        %4256 = vst.msk [vmem:[%s163 + $0x18] sm:$0xff] %vm170, %v4224
        %4257 = vst.msk [vmem:[%s163 + $0x20] sm:$0xff] %vm170, %v4225
        %4258 = vst.msk [vmem:[%s163 + $0x28] sm:$0xff] %vm170, %v4226
        %4259 = vst.msk [vmem:[%s163 + $0x30] sm:$0xff] %vm170, %v4227
        %4260 = vst.msk [vmem:[%s163 + $0x38] sm:$0xff] %vm170, %v4228
        %4261 = vst.msk [vmem:[%s163 + $0x40] sm:$0xff] %vm170, %v4229
        %4262 = vst.msk [vmem:[%s163 + $0x48] sm:$0xff] %vm170, %v4230
        %4263 = vst.msk [vmem:[%s163 + $0x50] sm:$0xff] %vm170, %v4231
        %4264 = vst.msk [vmem:[%s163 + $0x58] sm:$0xff] %vm170, %v4232
        %4265 = vst.msk [vmem:[%s163 + $0x60] sm:$0xff] %vm170, %v4233
        %4266 = vst.msk [vmem:[%s163 + $0x68] sm:$0xff] %vm170, %v4234
        %4267 = vst.msk [vmem:[%s163 + $0x70] sm:$0xff] %vm170, %v4235
        %4268 = vst.msk [vmem:[%s163 + $0x78] sm:$0xff] %vm170, %v4236
        %4269 = vst.msk [vmem:[%s163 + $0x80] sm:$0xff] %vm170, %v4237
        %4270 = vst.msk [vmem:[%s163 + $0x88] sm:$0xff] %vm170, %v4238
        %4271 = vst.msk [vmem:[%s163 + $0x90] sm:$0xff] %vm170, %v4239
        %4272 = vst.msk [vmem:[%s163 + $0x98] sm:$0xff] %vm170, %v4240
        %4273 = vst.msk [vmem:[%s163 + $0xa0] sm:$0xff] %vm170, %v4241
        %4274 = vst.msk [vmem:[%s163 + $0xa8] sm:$0xff] %vm170, %v4242
        %4275 = vst.msk [vmem:[%s163 + $0xb0] sm:$0xff] %vm170, %v4243
        %4276 = vst.msk [vmem:[%s163 + $0xb8] sm:$0xff] %vm170, %v4244
        %4277 = vst.msk [vmem:[%s163 + $0xc0] sm:$0xff] %vm170, %v4245
        %4278 = vst.msk [vmem:[%s163 + $0xc8] sm:$0xff] %vm170, %v4246
        %4279 = vst.msk [vmem:[%s163 + $0xd0] sm:$0xff] %vm170, %v4247
        %4280 = vst.msk [vmem:[%s163 + $0xd8] sm:$0xff] %vm170, %v4248
        %4281 = vst.msk [vmem:[%s163 + $0xe0] sm:$0xff] %vm170, %v4249
        %4282 = vst.msk [vmem:[%s163 + $0xe8] sm:$0xff] %vm170, %v4250
        %4283 = vst.msk [vmem:[%s163 + $0xf0] sm:$0xff] %vm170, %v4251
        %4284 = vst.msk [vmem:[%s163 + $0xf8] sm:$0xff] %vm170, %v4252
        %v4285 = vld [vmem:[%s163] sm:$0xff]
        %v4286 = vld [vmem:[%s163 + $0x8] sm:$0xff]
        %v4287 = vld [vmem:[%s163 + $0x10] sm:$0xff]
        %v4288 = vld [vmem:[%s163 + $0x18] sm:$0xff]
        %v4289 = vld [vmem:[%s163 + $0x20] sm:$0xff]
        %v4290 = vld [vmem:[%s163 + $0x28] sm:$0xff]
        %v4291 = vld [vmem:[%s163 + $0x30] sm:$0xff]
        %v4292 = vld [vmem:[%s163 + $0x38] sm:$0xff]
        %v4293 = vld [vmem:[%s163 + $0x40] sm:$0xff]
        %v4294 = vld [vmem:[%s163 + $0x48] sm:$0xff]
        %v4295 = vld [vmem:[%s163 + $0x50] sm:$0xff]
        %v4296 = vld [vmem:[%s163 + $0x58] sm:$0xff]
        %v4297 = vld [vmem:[%s163 + $0x60] sm:$0xff]
        %v4298 = vld [vmem:[%s163 + $0x68] sm:$0xff]
        %v4299 = vld [vmem:[%s163 + $0x70] sm:$0xff]
        %v4300 = vld [vmem:[%s163 + $0x78] sm:$0xff]
        %v4301 = vld [vmem:[%s163 + $0x80] sm:$0xff]
        %v4302 = vld [vmem:[%s163 + $0x88] sm:$0xff]
        %v4303 = vld [vmem:[%s163 + $0x90] sm:$0xff]
        %v4304 = vld [vmem:[%s163 + $0x98] sm:$0xff]
        %v4305 = vld [vmem:[%s163 + $0xa0] sm:$0xff]
        %v4306 = vld [vmem:[%s163 + $0xa8] sm:$0xff]
        %v4307 = vld [vmem:[%s163 + $0xb0] sm:$0xff]
        %v4308 = vld [vmem:[%s163 + $0xb8] sm:$0xff]
        %v4309 = vld [vmem:[%s163 + $0xc0] sm:$0xff]
        %v4310 = vld [vmem:[%s163 + $0xc8] sm:$0xff]
        %v4311 = vld [vmem:[%s163 + $0xd0] sm:$0xff]
        %v4312 = vld [vmem:[%s163 + $0xd8] sm:$0xff]
        %v4313 = vld [vmem:[%s163 + $0xe0] sm:$0xff]
        %v4314 = vld [vmem:[%s163 + $0xe8] sm:$0xff]
        %v4315 = vld [vmem:[%s163 + $0xf0] sm:$0xff]
        %v4316 = vld [vmem:[%s163 + $0xf8] sm:$0xff]
        %s4317 = scalar_lea.vmem %s1, 512
        %v4318 = vld [vmem:[%s4317] sm:$0xff]
        %v4319 = vld [vmem:[%s4317 + $0x8] sm:$0xff]
        %v4320 = vld [vmem:[%s4317 + $0x10] sm:$0xff]
        %v4321 = vld [vmem:[%s4317 + $0x18] sm:$0xff]
        %v4322 = vld [vmem:[%s4317 + $0x20] sm:$0xff]
        %v4323 = vld [vmem:[%s4317 + $0x28] sm:$0xff]
        %v4324 = vld [vmem:[%s4317 + $0x30] sm:$0xff]
        %v4325 = vld [vmem:[%s4317 + $0x38] sm:$0xff]
        %v4326 = vld [vmem:[%s4317 + $0x40] sm:$0xff]
        %v4327 = vld [vmem:[%s4317 + $0x48] sm:$0xff]
        %v4328 = vld [vmem:[%s4317 + $0x50] sm:$0xff]
        %v4329 = vld [vmem:[%s4317 + $0x58] sm:$0xff]
        %v4330 = vld [vmem:[%s4317 + $0x60] sm:$0xff]
        %v4331 = vld [vmem:[%s4317 + $0x68] sm:$0xff]
        %v4332 = vld [vmem:[%s4317 + $0x70] sm:$0xff]
        %v4333 = vld [vmem:[%s4317 + $0x78] sm:$0xff]
        %v4335 = vsel %vm170, %v4285, 0
        %v4338 = vsel %vm170, %v4286, 0
        %v4341 = vsel %vm170, %v4287, 0
        %v4344 = vsel %vm170, %v4288, 0
        %v4347 = vsel %vm170, %v4289, 0
        %v4350 = vsel %vm170, %v4290, 0
        %v4353 = vsel %vm170, %v4291, 0
        %v4356 = vsel %vm170, %v4292, 0
        %v4359 = vsel %vm170, %v4293, 0
        %v4362 = vsel %vm170, %v4294, 0
        %v4365 = vsel %vm170, %v4295, 0
        %v4368 = vsel %vm170, %v4296, 0
        %v4371 = vsel %vm170, %v4297, 0
        %v4374 = vsel %vm170, %v4298, 0
        %v4377 = vsel %vm170, %v4299, 0
        %v4380 = vsel %vm170, %v4300, 0
        %v4383 = vsel %vm170, %v4301, 0
        %v4386 = vsel %vm170, %v4302, 0
        %v4389 = vsel %vm170, %v4303, 0
        %v4392 = vsel %vm170, %v4304, 0
        %v4395 = vsel %vm170, %v4305, 0
        %v4398 = vsel %vm170, %v4306, 0
        %v4401 = vsel %vm170, %v4307, 0
        %v4404 = vsel %vm170, %v4308, 0
        %v4407 = vsel %vm170, %v4309, 0
        %v4410 = vsel %vm170, %v4310, 0
        %v4413 = vsel %vm170, %v4311, 0
        %v4416 = vsel %vm170, %v4312, 0
        %v4419 = vsel %vm170, %v4313, 0
        %v4422 = vsel %vm170, %v4314, 0
        %v4425 = vsel %vm170, %v4315, 0
        %v4428 = vsel %vm170, %v4316, 0
        %4430 = vmatpush.msra.mxu0 0.0
        %4431 = vmatpush.msra.mxu0 0.0
        %4432 = vmatpush.msra.mxu0 0.0
        %4433 = vmatpush.msra.mxu0 0.0
        %4434 = vmatpush.msra.mxu0 0.0
        %4435 = vmatpush.msra.mxu0 0.0
        %4436 = vmatpush.msra.mxu0 0.0
        %4437 = vmatpush.msra.mxu0 0.0
        %4438 = vmatpush.msra.mxu0 %v4332
        %4439 = vmatpush.msra.mxu0 %v4330
        %4440 = vmatpush.msra.mxu0 %v4328
        %4441 = vmatpush.msra.mxu0 %v4326
        %4442 = vmatpush.msra.mxu0 %v4324
        %4443 = vmatpush.msra.mxu0 %v4322
        %4444 = vmatpush.msra.mxu0 %v4320
        %4445 = vmatpush.msra.mxu0 %v4318
        %4446 = vmatmul.f32.gmra.mxu0 %v4335
        %v4447 = vpop.f32.mrf.mxu0
        %v4448 = vadd.f32 0.0, %v4447
        %4449 = vmatmul.f32.gmra.mxu0 %v4338
        %v4450 = vpop.f32.mrf.mxu0
        %v4451 = vadd.f32 0.0, %v4450
        %4452 = vmatmul.f32.gmra.mxu0 %v4341
        %v4453 = vpop.f32.mrf.mxu0
        %v4454 = vadd.f32 0.0, %v4453
        %4455 = vmatmul.f32.gmra.mxu0 %v4344
        %v4456 = vpop.f32.mrf.mxu0
        %v4457 = vadd.f32 0.0, %v4456
        %4458 = vmatmul.f32.gmra.mxu0 %v4347
        %v4459 = vpop.f32.mrf.mxu0
        %v4460 = vadd.f32 0.0, %v4459
        %4461 = vmatmul.f32.gmra.mxu0 %v4350
        %v4462 = vpop.f32.mrf.mxu0
        %v4463 = vadd.f32 0.0, %v4462
        %4464 = vmatmul.f32.gmra.mxu0 %v4353
        %v4465 = vpop.f32.mrf.mxu0
        %v4466 = vadd.f32 0.0, %v4465
        %4467 = vmatmul.f32.gmra.mxu0 %v4356
        %v4468 = vpop.f32.mrf.mxu0
        %v4469 = vadd.f32 0.0, %v4468
        %4470 = vmatmul.f32.gmra.mxu0 %v4359
        %v4471 = vpop.f32.mrf.mxu0
        %v4472 = vadd.f32 0.0, %v4471
        %4473 = vmatmul.f32.gmra.mxu0 %v4362
        %v4474 = vpop.f32.mrf.mxu0
        %v4475 = vadd.f32 0.0, %v4474
        %4476 = vmatmul.f32.gmra.mxu0 %v4365
        %v4477 = vpop.f32.mrf.mxu0
        %v4478 = vadd.f32 0.0, %v4477
        %4479 = vmatmul.f32.gmra.mxu0 %v4368
        %v4480 = vpop.f32.mrf.mxu0
        %v4481 = vadd.f32 0.0, %v4480
        %4482 = vmatmul.f32.gmra.mxu0 %v4371
        %v4483 = vpop.f32.mrf.mxu0
        %v4484 = vadd.f32 0.0, %v4483
        %4485 = vmatmul.f32.gmra.mxu0 %v4374
        %v4486 = vpop.f32.mrf.mxu0
        %v4487 = vadd.f32 0.0, %v4486
        %4488 = vmatmul.f32.gmra.mxu0 %v4377
        %v4489 = vpop.f32.mrf.mxu0
        %v4490 = vadd.f32 0.0, %v4489
        %4491 = vmatmul.f32.gmra.mxu0 %v4380
        %v4492 = vpop.f32.mrf.mxu0
        %v4493 = vadd.f32 0.0, %v4492
        %4494 = vmatmul.f32.gmra.mxu0 %v4383
        %v4495 = vpop.f32.mrf.mxu0
        %v4496 = vadd.f32 0.0, %v4495
        %4497 = vmatmul.f32.gmra.mxu0 %v4386
        %v4498 = vpop.f32.mrf.mxu0
        %v4499 = vadd.f32 0.0, %v4498
        %4500 = vmatmul.f32.gmra.mxu0 %v4389
        %v4501 = vpop.f32.mrf.mxu0
        %v4502 = vadd.f32 0.0, %v4501
        %4503 = vmatmul.f32.gmra.mxu0 %v4392
        %v4504 = vpop.f32.mrf.mxu0
        %v4505 = vadd.f32 0.0, %v4504
        %4506 = vmatmul.f32.gmra.mxu0 %v4395
        %v4507 = vpop.f32.mrf.mxu0
        %v4508 = vadd.f32 0.0, %v4507
        %4509 = vmatmul.f32.gmra.mxu0 %v4398
        %v4510 = vpop.f32.mrf.mxu0
        %v4511 = vadd.f32 0.0, %v4510
        %4512 = vmatmul.f32.gmra.mxu0 %v4401
        %v4513 = vpop.f32.mrf.mxu0
        %v4514 = vadd.f32 0.0, %v4513
        %4515 = vmatmul.f32.gmra.mxu0 %v4404
        %v4516 = vpop.f32.mrf.mxu0
        %v4517 = vadd.f32 0.0, %v4516
        %4518 = vmatmul.f32.gmra.mxu0 %v4407
        %v4519 = vpop.f32.mrf.mxu0
        %v4520 = vadd.f32 0.0, %v4519
        %4521 = vmatmul.f32.gmra.mxu0 %v4410
        %v4522 = vpop.f32.mrf.mxu0
        %v4523 = vadd.f32 0.0, %v4522
        %4524 = vmatmul.f32.gmra.mxu0 %v4413
        %v4525 = vpop.f32.mrf.mxu0
        %v4526 = vadd.f32 0.0, %v4525
        %4527 = vmatmul.f32.gmra.mxu0 %v4416
        %v4528 = vpop.f32.mrf.mxu0
        %v4529 = vadd.f32 0.0, %v4528
        %4530 = vmatmul.f32.gmra.mxu0 %v4419
        %v4531 = vpop.f32.mrf.mxu0
        %v4532 = vadd.f32 0.0, %v4531
        %4533 = vmatmul.f32.gmra.mxu0 %v4422
        %v4534 = vpop.f32.mrf.mxu0
        %v4535 = vadd.f32 0.0, %v4534
        %4536 = vmatmul.f32.gmra.mxu0 %v4425
        %v4537 = vpop.f32.mrf.mxu0
        %v4538 = vadd.f32 0.0, %v4537
        %4539 = vmatmul.f32.gmra.mxu0 %v4428
        %v4540 = vpop.f32.mrf.mxu0
        %v4541 = vadd.f32 0.0, %v4540
        %4542 = vdwg.mxu0
        %4543 = vmatpush.msra.mxu0 0.0
        %4544 = vmatpush.msra.mxu0 0.0
        %4545 = vmatpush.msra.mxu0 0.0
        %4546 = vmatpush.msra.mxu0 0.0
        %4547 = vmatpush.msra.mxu0 0.0
        %4548 = vmatpush.msra.mxu0 0.0
        %4549 = vmatpush.msra.mxu0 0.0
        %4550 = vmatpush.msra.mxu0 0.0
        %4551 = vmatpush.msra.mxu0 %v4333
        %4552 = vmatpush.msra.mxu0 %v4331
        %4553 = vmatpush.msra.mxu0 %v4329
        %4554 = vmatpush.msra.mxu0 %v4327
        %4555 = vmatpush.msra.mxu0 %v4325
        %4556 = vmatpush.msra.mxu0 %v4323
        %4557 = vmatpush.msra.mxu0 %v4321
        %4558 = vmatpush.msra.mxu0 %v4319
        %4559 = vmatmul.f32.gmra.mxu0 %v4335
        %v4560 = vpop.f32.mrf.mxu0
        %v4561 = vadd.f32 0.0, %v4560
        %4562 = vmatmul.f32.gmra.mxu0 %v4338
        %v4563 = vpop.f32.mrf.mxu0
        %v4564 = vadd.f32 0.0, %v4563
        %4565 = vmatmul.f32.gmra.mxu0 %v4341
        %v4566 = vpop.f32.mrf.mxu0
        %v4567 = vadd.f32 0.0, %v4566
        %4568 = vmatmul.f32.gmra.mxu0 %v4344
        %v4569 = vpop.f32.mrf.mxu0
        %v4570 = vadd.f32 0.0, %v4569
        %4571 = vmatmul.f32.gmra.mxu0 %v4347
        %v4572 = vpop.f32.mrf.mxu0
        %v4573 = vadd.f32 0.0, %v4572
        %4574 = vmatmul.f32.gmra.mxu0 %v4350
        %v4575 = vpop.f32.mrf.mxu0
        %v4576 = vadd.f32 0.0, %v4575
        %4577 = vmatmul.f32.gmra.mxu0 %v4353
        %v4578 = vpop.f32.mrf.mxu0
        %v4579 = vadd.f32 0.0, %v4578
        %4580 = vmatmul.f32.gmra.mxu0 %v4356
        %v4581 = vpop.f32.mrf.mxu0
        %v4582 = vadd.f32 0.0, %v4581
        %4583 = vmatmul.f32.gmra.mxu0 %v4359
        %v4584 = vpop.f32.mrf.mxu0
        %v4585 = vadd.f32 0.0, %v4584
        %4586 = vmatmul.f32.gmra.mxu0 %v4362
        %v4587 = vpop.f32.mrf.mxu0
        %v4588 = vadd.f32 0.0, %v4587
        %4589 = vmatmul.f32.gmra.mxu0 %v4365
        %v4590 = vpop.f32.mrf.mxu0
        %v4591 = vadd.f32 0.0, %v4590
        %4592 = vmatmul.f32.gmra.mxu0 %v4368
        %v4593 = vpop.f32.mrf.mxu0
        %v4594 = vadd.f32 0.0, %v4593
        %4595 = vmatmul.f32.gmra.mxu0 %v4371
        %v4596 = vpop.f32.mrf.mxu0
        %v4597 = vadd.f32 0.0, %v4596
        %4598 = vmatmul.f32.gmra.mxu0 %v4374
        %v4599 = vpop.f32.mrf.mxu0
        %v4600 = vadd.f32 0.0, %v4599
        %4601 = vmatmul.f32.gmra.mxu0 %v4377
        %v4602 = vpop.f32.mrf.mxu0
        %v4603 = vadd.f32 0.0, %v4602
        %4604 = vmatmul.f32.gmra.mxu0 %v4380
        %v4605 = vpop.f32.mrf.mxu0
        %v4606 = vadd.f32 0.0, %v4605
        %4607 = vmatmul.f32.gmra.mxu0 %v4383
        %v4608 = vpop.f32.mrf.mxu0
        %v4609 = vadd.f32 0.0, %v4608
        %4610 = vmatmul.f32.gmra.mxu0 %v4386
        %v4611 = vpop.f32.mrf.mxu0
        %v4612 = vadd.f32 0.0, %v4611
        %4613 = vmatmul.f32.gmra.mxu0 %v4389
        %v4614 = vpop.f32.mrf.mxu0
        %v4615 = vadd.f32 0.0, %v4614
        %4616 = vmatmul.f32.gmra.mxu0 %v4392
        %v4617 = vpop.f32.mrf.mxu0
        %v4618 = vadd.f32 0.0, %v4617
        %4619 = vmatmul.f32.gmra.mxu0 %v4395
        %v4620 = vpop.f32.mrf.mxu0
        %v4621 = vadd.f32 0.0, %v4620
        %4622 = vmatmul.f32.gmra.mxu0 %v4398
        %v4623 = vpop.f32.mrf.mxu0
        %v4624 = vadd.f32 0.0, %v4623
        %4625 = vmatmul.f32.gmra.mxu0 %v4401
        %v4626 = vpop.f32.mrf.mxu0
        %v4627 = vadd.f32 0.0, %v4626
        %4628 = vmatmul.f32.gmra.mxu0 %v4404
        %v4629 = vpop.f32.mrf.mxu0
        %v4630 = vadd.f32 0.0, %v4629
        %4631 = vmatmul.f32.gmra.mxu0 %v4407
        %v4632 = vpop.f32.mrf.mxu0
        %v4633 = vadd.f32 0.0, %v4632
        %4634 = vmatmul.f32.gmra.mxu0 %v4410
        %v4635 = vpop.f32.mrf.mxu0
        %v4636 = vadd.f32 0.0, %v4635
        %4637 = vmatmul.f32.gmra.mxu0 %v4413
        %v4638 = vpop.f32.mrf.mxu0
        %v4639 = vadd.f32 0.0, %v4638
        %4640 = vmatmul.f32.gmra.mxu0 %v4416
        %v4641 = vpop.f32.mrf.mxu0
        %v4642 = vadd.f32 0.0, %v4641
        %4643 = vmatmul.f32.gmra.mxu0 %v4419
        %v4644 = vpop.f32.mrf.mxu0
        %v4645 = vadd.f32 0.0, %v4644
        %4646 = vmatmul.f32.gmra.mxu0 %v4422
        %v4647 = vpop.f32.mrf.mxu0
        %v4648 = vadd.f32 0.0, %v4647
        %4649 = vmatmul.f32.gmra.mxu0 %v4425
        %v4650 = vpop.f32.mrf.mxu0
        %v4651 = vadd.f32 0.0, %v4650
        %4652 = vmatmul.f32.gmra.mxu0 %v4428
        %v4653 = vpop.f32.mrf.mxu0
        %v4654 = vadd.f32 0.0, %v4653
        %4655 = vdwg.mxu0
        %4656 = vst [vmem:[%s684 + $0x10] sm:$0xff] %v4448
        %4657 = vst.msk [vmem:[%s684 + $0x18] sm:$0xff] %vm170, %v4561
        %4658 = vst [vmem:[%s684 + $0x20] sm:$0xff] %v4451
        %4659 = vst.msk [vmem:[%s684 + $0x28] sm:$0xff] %vm170, %v4564
        %4660 = vst [vmem:[%s684 + $0x50] sm:$0xff] %v4454
        %4661 = vst.msk [vmem:[%s684 + $0x58] sm:$0xff] %vm170, %v4567
        %4662 = vst [vmem:[%s684 + $0x60] sm:$0xff] %v4457
        %4663 = vst.msk [vmem:[%s684 + $0x68] sm:$0xff] %vm170, %v4570
        %4664 = vst [vmem:[%s684 + $0x90] sm:$0xff] %v4460
        %4665 = vst.msk [vmem:[%s684 + $0x98] sm:$0xff] %vm170, %v4573
        %4666 = vst [vmem:[%s684 + $0xa0] sm:$0xff] %v4463
        %4667 = vst.msk [vmem:[%s684 + $0xa8] sm:$0xff] %vm170, %v4576
        %4668 = vst [vmem:[%s684 + $0xd0] sm:$0xff] %v4466
        %4669 = vst.msk [vmem:[%s684 + $0xd8] sm:$0xff] %vm170, %v4579
        %4670 = vst [vmem:[%s684 + $0xe0] sm:$0xff] %v4469
        %4671 = vst.msk [vmem:[%s684 + $0xe8] sm:$0xff] %vm170, %v4582
        %4672 = vst [vmem:[%s684 + $0x110] sm:$0xff] %v4472
        %4673 = vst.msk [vmem:[%s684 + $0x118] sm:$0xff] %vm170, %v4585
        %4674 = vst [vmem:[%s684 + $0x120] sm:$0xff] %v4475
        %4675 = vst.msk [vmem:[%s684 + $0x128] sm:$0xff] %vm170, %v4588
        %4676 = vst [vmem:[%s684 + $0x150] sm:$0xff] %v4478
        %4677 = vst.msk [vmem:[%s684 + $0x158] sm:$0xff] %vm170, %v4591
        %4678 = vst [vmem:[%s684 + $0x160] sm:$0xff] %v4481
        %4679 = vst.msk [vmem:[%s684 + $0x168] sm:$0xff] %vm170, %v4594
        %4680 = vst [vmem:[%s684 + $0x190] sm:$0xff] %v4484
        %4681 = vst.msk [vmem:[%s684 + $0x198] sm:$0xff] %vm170, %v4597
        %4682 = vst [vmem:[%s684 + $0x1a0] sm:$0xff] %v4487
        %4683 = vst.msk [vmem:[%s684 + $0x1a8] sm:$0xff] %vm170, %v4600
        %4684 = vst [vmem:[%s684 + $0x1d0] sm:$0xff] %v4490
        %4685 = vst.msk [vmem:[%s684 + $0x1d8] sm:$0xff] %vm170, %v4603
        %4686 = vst [vmem:[%s684 + $0x1e0] sm:$0xff] %v4493
        %4687 = vst.msk [vmem:[%s684 + $0x1e8] sm:$0xff] %vm170, %v4606
        %4688 = vst [vmem:[%s684 + $0x210] sm:$0xff] %v4496
        %4689 = vst.msk [vmem:[%s684 + $0x218] sm:$0xff] %vm170, %v4609
        %4690 = vst [vmem:[%s684 + $0x220] sm:$0xff] %v4499
        %4691 = vst.msk [vmem:[%s684 + $0x228] sm:$0xff] %vm170, %v4612
        %4692 = vst [vmem:[%s684 + $0x250] sm:$0xff] %v4502
        %4693 = vst.msk [vmem:[%s684 + $0x258] sm:$0xff] %vm170, %v4615
        %4694 = vst [vmem:[%s684 + $0x260] sm:$0xff] %v4505
        %4695 = vst.msk [vmem:[%s684 + $0x268] sm:$0xff] %vm170, %v4618
        %4696 = vst [vmem:[%s684 + $0x290] sm:$0xff] %v4508
        %4697 = vst.msk [vmem:[%s684 + $0x298] sm:$0xff] %vm170, %v4621
        %4698 = vst [vmem:[%s684 + $0x2a0] sm:$0xff] %v4511
        %4699 = vst.msk [vmem:[%s684 + $0x2a8] sm:$0xff] %vm170, %v4624
        %4700 = vst [vmem:[%s684 + $0x2d0] sm:$0xff] %v4514
        %4701 = vst.msk [vmem:[%s684 + $0x2d8] sm:$0xff] %vm170, %v4627
        %4702 = vst [vmem:[%s684 + $0x2e0] sm:$0xff] %v4517
        %4703 = vst.msk [vmem:[%s684 + $0x2e8] sm:$0xff] %vm170, %v4630
        %4704 = vst [vmem:[%s684 + $0x310] sm:$0xff] %v4520
        %4705 = vst.msk [vmem:[%s684 + $0x318] sm:$0xff] %vm170, %v4633
        %4706 = vst [vmem:[%s684 + $0x320] sm:$0xff] %v4523
        %4707 = vst.msk [vmem:[%s684 + $0x328] sm:$0xff] %vm170, %v4636
        %4708 = vst [vmem:[%s684 + $0x350] sm:$0xff] %v4526
        %4709 = vst.msk [vmem:[%s684 + $0x358] sm:$0xff] %vm170, %v4639
        %4710 = vst [vmem:[%s684 + $0x360] sm:$0xff] %v4529
        %4711 = vst.msk [vmem:[%s684 + $0x368] sm:$0xff] %vm170, %v4642
        %4712 = vst [vmem:[%s684 + $0x390] sm:$0xff] %v4532
        %4713 = vst.msk [vmem:[%s684 + $0x398] sm:$0xff] %vm170, %v4645
        %4714 = vst [vmem:[%s684 + $0x3a0] sm:$0xff] %v4535
        %4715 = vst.msk [vmem:[%s684 + $0x3a8] sm:$0xff] %vm170, %v4648
        %4716 = vst [vmem:[%s684 + $0x3d0] sm:$0xff] %v4538
        %4717 = vst.msk [vmem:[%s684 + $0x3d8] sm:$0xff] %vm170, %v4651
        %4718 = vst [vmem:[%s684 + $0x3e0] sm:$0xff] %v4541
        %4719 = vst.msk [vmem:[%s684 + $0x3e8] sm:$0xff] %vm170, %v4654
        %v4720 = vld [vmem:[%s684] sm:$0x80]
        %v4721 = vld [vmem:[%s684 + $0x10] sm:$0xff]
        %v4722 = vld [vmem:[%s684 + $0x20] sm:$0x7f]
        %v4723 = vld [vmem:[%s684 + $0x40] sm:$0x80]
        %v4724 = vld [vmem:[%s684 + $0x50] sm:$0xff]
        %v4725 = vld [vmem:[%s684 + $0x60] sm:$0x7f]
        %v4726 = vld [vmem:[%s684 + $0x80] sm:$0x80]
        %v4727 = vld [vmem:[%s684 + $0x90] sm:$0xff]
        %v4728 = vld [vmem:[%s684 + $0xa0] sm:$0x7f]
        %v4729 = vld [vmem:[%s684 + $0xc0] sm:$0x80]
        %v4730 = vld [vmem:[%s684 + $0xd0] sm:$0xff]
        %v4731 = vld [vmem:[%s684 + $0xe0] sm:$0x7f]
        %v4732 = vld [vmem:[%s684 + $0x100] sm:$0x80]
        %v4733 = vld [vmem:[%s684 + $0x110] sm:$0xff]
        %v4734 = vld [vmem:[%s684 + $0x120] sm:$0x7f]
        %v4735 = vld [vmem:[%s684 + $0x140] sm:$0x80]
        %v4736 = vld [vmem:[%s684 + $0x150] sm:$0xff]
        %v4737 = vld [vmem:[%s684 + $0x160] sm:$0x7f]
        %v4738 = vld [vmem:[%s684 + $0x180] sm:$0x80]
        %v4739 = vld [vmem:[%s684 + $0x190] sm:$0xff]
        %v4740 = vld [vmem:[%s684 + $0x1a0] sm:$0x7f]
        %v4741 = vld [vmem:[%s684 + $0x1c0] sm:$0x80]
        %v4742 = vld [vmem:[%s684 + $0x1d0] sm:$0xff]
        %v4743 = vld [vmem:[%s684 + $0x1e0] sm:$0x7f]
        %v4744 = vld [vmem:[%s684 + $0x200] sm:$0x80]
        %v4745 = vld [vmem:[%s684 + $0x210] sm:$0xff]
        %v4746 = vld [vmem:[%s684 + $0x220] sm:$0x7f]
        %v4747 = vld [vmem:[%s684 + $0x240] sm:$0x80]
        %v4748 = vld [vmem:[%s684 + $0x250] sm:$0xff]
        %v4749 = vld [vmem:[%s684 + $0x260] sm:$0x7f]
        %v4750 = vld [vmem:[%s684 + $0x280] sm:$0x80]
        %v4751 = vld [vmem:[%s684 + $0x290] sm:$0xff]
        %v4752 = vld [vmem:[%s684 + $0x2a0] sm:$0x7f]
        %v4753 = vld [vmem:[%s684 + $0x2c0] sm:$0x80]
        %v4754 = vld [vmem:[%s684 + $0x2d0] sm:$0xff]
        %v4755 = vld [vmem:[%s684 + $0x2e0] sm:$0x7f]
        %v4756 = vld [vmem:[%s684 + $0x300] sm:$0x80]
        %v4757 = vld [vmem:[%s684 + $0x310] sm:$0xff]
        %v4758 = vld [vmem:[%s684 + $0x320] sm:$0x7f]
        %v4759 = vld [vmem:[%s684 + $0x340] sm:$0x80]
        %v4760 = vld [vmem:[%s684 + $0x350] sm:$0xff]
        %v4761 = vld [vmem:[%s684 + $0x360] sm:$0x7f]
        %v4762 = vld [vmem:[%s684 + $0x380] sm:$0x80]
        %v4763 = vld [vmem:[%s684 + $0x390] sm:$0xff]
        %v4764 = vld [vmem:[%s684 + $0x3a0] sm:$0x7f]
        %v4765 = vld [vmem:[%s684 + $0x3c0] sm:$0x80]
        %v4766 = vld [vmem:[%s684 + $0x3d0] sm:$0xff]
        %v4767 = vld [vmem:[%s684 + $0x3e0] sm:$0x7f]
        %v4768 = vld [vmem:[%s684 + $0x20] sm:$0xff]
        %v4769 = vld [vmem:[%s684 + $0x60] sm:$0xff]
        %v4770 = vld [vmem:[%s684 + $0xa0] sm:$0xff]
        %v4771 = vld [vmem:[%s684 + $0xe0] sm:$0xff]
        %v4772 = vld [vmem:[%s684 + $0x120] sm:$0xff]
        %v4773 = vld [vmem:[%s684 + $0x160] sm:$0xff]
        %v4774 = vld [vmem:[%s684 + $0x1a0] sm:$0xff]
        %v4775 = vld [vmem:[%s684 + $0x1e0] sm:$0xff]
        %v4776 = vld [vmem:[%s684 + $0x220] sm:$0xff]
        %v4777 = vld [vmem:[%s684 + $0x260] sm:$0xff]
        %v4778 = vld [vmem:[%s684 + $0x2a0] sm:$0xff]
        %v4779 = vld [vmem:[%s684 + $0x2e0] sm:$0xff]
        %v4780 = vld [vmem:[%s684 + $0x320] sm:$0xff]
        %v4781 = vld [vmem:[%s684 + $0x360] sm:$0xff]
        %v4782 = vld [vmem:[%s684 + $0x3a0] sm:$0xff]
        %v4783 = vld [vmem:[%s684 + $0x3e0] sm:$0xff]
        %v4816 = vrot.slane %v4721, 1
        %v4817 = vrot.slane %v4768, 1
        %v4818 = vsel %vm845, %v4816, %v4817
        %v4819 = vrot.slane %v4724, 1
        %v4820 = vrot.slane %v4769, 1
        %v4821 = vsel %vm845, %v4819, %v4820
        %v4822 = vrot.slane %v4727, 1
        %v4823 = vrot.slane %v4770, 1
        %v4824 = vsel %vm845, %v4822, %v4823
        %v4825 = vrot.slane %v4730, 1
        %v4826 = vrot.slane %v4771, 1
        %v4827 = vsel %vm845, %v4825, %v4826
        %v4828 = vrot.slane %v4733, 1
        %v4829 = vrot.slane %v4772, 1
        %v4830 = vsel %vm845, %v4828, %v4829
        %v4831 = vrot.slane %v4736, 1
        %v4832 = vrot.slane %v4773, 1
        %v4833 = vsel %vm845, %v4831, %v4832
        %v4834 = vrot.slane %v4739, 1
        %v4835 = vrot.slane %v4774, 1
        %v4836 = vsel %vm845, %v4834, %v4835
        %v4837 = vrot.slane %v4742, 1
        %v4838 = vrot.slane %v4775, 1
        %v4839 = vsel %vm845, %v4837, %v4838
        %v4840 = vrot.slane %v4745, 1
        %v4841 = vrot.slane %v4776, 1
        %v4842 = vsel %vm845, %v4840, %v4841
        %v4843 = vrot.slane %v4748, 1
        %v4844 = vrot.slane %v4777, 1
        %v4845 = vsel %vm845, %v4843, %v4844
        %v4846 = vrot.slane %v4751, 1
        %v4847 = vrot.slane %v4778, 1
        %v4848 = vsel %vm845, %v4846, %v4847
        %v4849 = vrot.slane %v4754, 1
        %v4850 = vrot.slane %v4779, 1
        %v4851 = vsel %vm845, %v4849, %v4850
        %v4852 = vrot.slane %v4757, 1
        %v4853 = vrot.slane %v4780, 1
        %v4854 = vsel %vm845, %v4852, %v4853
        %v4855 = vrot.slane %v4760, 1
        %v4856 = vrot.slane %v4781, 1
        %v4857 = vsel %vm845, %v4855, %v4856
        %v4858 = vrot.slane %v4763, 1
        %v4859 = vrot.slane %v4782, 1
        %v4860 = vsel %vm845, %v4858, %v4859
        %v4861 = vrot.slane %v4766, 1
        %v4862 = vrot.slane %v4783, 1
        %v4863 = vsel %vm845, %v4861, %v4862
        %4864 = vrot.lane.b32.xlu0 %v4816, 64
        %v4865 = vpop.permute.xlu0 %4864
        %4866 = vrot.lane.b32.xlu0 %v4818, 64
        %v4867 = vpop.permute.xlu0 %4866
        %4868 = vrot.lane.b32.xlu0 %v4817, 64
        %v4869 = vpop.permute.xlu0 %4868
        %4870 = vrot.lane.b32.xlu0 %v4819, 64
        %v4871 = vpop.permute.xlu0 %4870
        %4872 = vrot.lane.b32.xlu0 %v4821, 64
        %v4873 = vpop.permute.xlu0 %4872
        %4874 = vrot.lane.b32.xlu0 %v4820, 64
        %v4875 = vpop.permute.xlu0 %4874
        %4876 = vrot.lane.b32.xlu0 %v4822, 64
        %v4877 = vpop.permute.xlu0 %4876
        %4878 = vrot.lane.b32.xlu0 %v4824, 64
        %v4879 = vpop.permute.xlu0 %4878
        %4880 = vrot.lane.b32.xlu0 %v4823, 64
        %v4881 = vpop.permute.xlu0 %4880
        %4882 = vrot.lane.b32.xlu0 %v4825, 64
        %v4883 = vpop.permute.xlu0 %4882
        %4884 = vrot.lane.b32.xlu0 %v4827, 64
        %v4885 = vpop.permute.xlu0 %4884
        %4886 = vrot.lane.b32.xlu0 %v4826, 64
        %v4887 = vpop.permute.xlu0 %4886
        %4888 = vrot.lane.b32.xlu0 %v4828, 64
        %v4889 = vpop.permute.xlu0 %4888
        %4890 = vrot.lane.b32.xlu0 %v4830, 64
        %v4891 = vpop.permute.xlu0 %4890
        %4892 = vrot.lane.b32.xlu0 %v4829, 64
        %v4893 = vpop.permute.xlu0 %4892
        %4894 = vrot.lane.b32.xlu0 %v4831, 64
        %v4895 = vpop.permute.xlu0 %4894
        %4896 = vrot.lane.b32.xlu0 %v4833, 64
        %v4897 = vpop.permute.xlu0 %4896
        %4898 = vrot.lane.b32.xlu0 %v4832, 64
        %v4899 = vpop.permute.xlu0 %4898
        %4900 = vrot.lane.b32.xlu0 %v4834, 64
        %v4901 = vpop.permute.xlu0 %4900
        %4902 = vrot.lane.b32.xlu0 %v4836, 64
        %v4903 = vpop.permute.xlu0 %4902
        %4904 = vrot.lane.b32.xlu0 %v4835, 64
        %v4905 = vpop.permute.xlu0 %4904
        %4906 = vrot.lane.b32.xlu0 %v4837, 64
        %v4907 = vpop.permute.xlu0 %4906
        %4908 = vrot.lane.b32.xlu0 %v4839, 64
        %v4909 = vpop.permute.xlu0 %4908
        %4910 = vrot.lane.b32.xlu0 %v4838, 64
        %v4911 = vpop.permute.xlu0 %4910
        %4912 = vrot.lane.b32.xlu0 %v4840, 64
        %v4913 = vpop.permute.xlu0 %4912
        %4914 = vrot.lane.b32.xlu0 %v4842, 64
        %v4915 = vpop.permute.xlu0 %4914
        %4916 = vrot.lane.b32.xlu0 %v4841, 64
        %v4917 = vpop.permute.xlu0 %4916
        %4918 = vrot.lane.b32.xlu0 %v4843, 64
        %v4919 = vpop.permute.xlu0 %4918
        %4920 = vrot.lane.b32.xlu0 %v4845, 64
        %v4921 = vpop.permute.xlu0 %4920
        %4922 = vrot.lane.b32.xlu0 %v4844, 64
        %v4923 = vpop.permute.xlu0 %4922
        %4924 = vrot.lane.b32.xlu0 %v4846, 64
        %v4925 = vpop.permute.xlu0 %4924
        %4926 = vrot.lane.b32.xlu0 %v4848, 64
        %v4927 = vpop.permute.xlu0 %4926
        %4928 = vrot.lane.b32.xlu0 %v4847, 64
        %v4929 = vpop.permute.xlu0 %4928
        %4930 = vrot.lane.b32.xlu0 %v4849, 64
        %v4931 = vpop.permute.xlu0 %4930
        %4932 = vrot.lane.b32.xlu0 %v4851, 64
        %v4933 = vpop.permute.xlu0 %4932
        %4934 = vrot.lane.b32.xlu0 %v4850, 64
        %v4935 = vpop.permute.xlu0 %4934
        %4936 = vrot.lane.b32.xlu0 %v4852, 64
        %v4937 = vpop.permute.xlu0 %4936
        %4938 = vrot.lane.b32.xlu0 %v4854, 64
        %v4939 = vpop.permute.xlu0 %4938
        %4940 = vrot.lane.b32.xlu0 %v4853, 64
        %v4941 = vpop.permute.xlu0 %4940
        %4942 = vrot.lane.b32.xlu0 %v4855, 64
        %v4943 = vpop.permute.xlu0 %4942
        %4944 = vrot.lane.b32.xlu0 %v4857, 64
        %v4945 = vpop.permute.xlu0 %4944
        %4946 = vrot.lane.b32.xlu0 %v4856, 64
        %v4947 = vpop.permute.xlu0 %4946
        %4948 = vrot.lane.b32.xlu0 %v4858, 64
        %v4949 = vpop.permute.xlu0 %4948
        %4950 = vrot.lane.b32.xlu0 %v4860, 64
        %v4951 = vpop.permute.xlu0 %4950
        %4952 = vrot.lane.b32.xlu0 %v4859, 64
        %v4953 = vpop.permute.xlu0 %4952
        %4954 = vrot.lane.b32.xlu0 %v4861, 64
        %v4955 = vpop.permute.xlu0 %4954
        %4956 = vrot.lane.b32.xlu0 %v4863, 64
        %v4957 = vpop.permute.xlu0 %4956
        %4958 = vrot.lane.b32.xlu0 %v4862, 64
        %v4959 = vpop.permute.xlu0 %4958
        %v5008 = vadd.f32 %v4720, %v4865
        %v5009 = vadd.f32 %v4721, %v4867
        %v5010 = vadd.f32 %v4722, %v4869
        %v5011 = vadd.f32 %v4723, %v4871
        %v5012 = vadd.f32 %v4724, %v4873
        %v5013 = vadd.f32 %v4725, %v4875
        %v5014 = vadd.f32 %v4726, %v4877
        %v5015 = vadd.f32 %v4727, %v4879
        %v5016 = vadd.f32 %v4728, %v4881
        %v5017 = vadd.f32 %v4729, %v4883
        %v5018 = vadd.f32 %v4730, %v4885
        %v5019 = vadd.f32 %v4731, %v4887
        %v5020 = vadd.f32 %v4732, %v4889
        %v5021 = vadd.f32 %v4733, %v4891
        %v5022 = vadd.f32 %v4734, %v4893
        %v5023 = vadd.f32 %v4735, %v4895
        %v5024 = vadd.f32 %v4736, %v4897
        %v5025 = vadd.f32 %v4737, %v4899
        %v5026 = vadd.f32 %v4738, %v4901
        %v5027 = vadd.f32 %v4739, %v4903
        %v5028 = vadd.f32 %v4740, %v4905
        %v5029 = vadd.f32 %v4741, %v4907
        %v5030 = vadd.f32 %v4742, %v4909
        %v5031 = vadd.f32 %v4743, %v4911
        %v5032 = vadd.f32 %v4744, %v4913
        %v5033 = vadd.f32 %v4745, %v4915
        %v5034 = vadd.f32 %v4746, %v4917
        %v5035 = vadd.f32 %v4747, %v4919
        %v5036 = vadd.f32 %v4748, %v4921
        %v5037 = vadd.f32 %v4749, %v4923
        %v5038 = vadd.f32 %v4750, %v4925
        %v5039 = vadd.f32 %v4751, %v4927
        %v5040 = vadd.f32 %v4752, %v4929
        %v5041 = vadd.f32 %v4753, %v4931
        %v5042 = vadd.f32 %v4754, %v4933
        %v5043 = vadd.f32 %v4755, %v4935
        %v5044 = vadd.f32 %v4756, %v4937
        %v5045 = vadd.f32 %v4757, %v4939
        %v5046 = vadd.f32 %v4758, %v4941
        %v5047 = vadd.f32 %v4759, %v4943
        %v5048 = vadd.f32 %v4760, %v4945
        %v5049 = vadd.f32 %v4761, %v4947
        %v5050 = vadd.f32 %v4762, %v4949
        %v5051 = vadd.f32 %v4763, %v4951
        %v5052 = vadd.f32 %v4764, %v4953
        %v5053 = vadd.f32 %v4765, %v4955
        %v5054 = vadd.f32 %v4766, %v4957
        %v5055 = vadd.f32 %v4767, %v4959
        %v5056 = vld [vmem:[%s684 + $0x18] sm:$0xfe]
        %v5057 = vld [vmem:[%s684 + $0x28] sm:$0xff]
        %v5058 = vld [vmem:[%s684 + $0x38] sm:$0x1]
        %v5059 = vld [vmem:[%s684 + $0x58] sm:$0xfe]
        %v5060 = vld [vmem:[%s684 + $0x68] sm:$0xff]
        %v5061 = vld [vmem:[%s684 + $0x78] sm:$0x1]
        %v5062 = vld [vmem:[%s684 + $0x98] sm:$0xfe]
        %v5063 = vld [vmem:[%s684 + $0xa8] sm:$0xff]
        %v5064 = vld [vmem:[%s684 + $0xb8] sm:$0x1]
        %v5065 = vld [vmem:[%s684 + $0xd8] sm:$0xfe]
        %v5066 = vld [vmem:[%s684 + $0xe8] sm:$0xff]
        %v5067 = vld [vmem:[%s684 + $0xf8] sm:$0x1]
        %v5068 = vld [vmem:[%s684 + $0x118] sm:$0xfe]
        %v5069 = vld [vmem:[%s684 + $0x128] sm:$0xff]
        %v5070 = vld [vmem:[%s684 + $0x138] sm:$0x1]
        %v5071 = vld [vmem:[%s684 + $0x158] sm:$0xfe]
        %v5072 = vld [vmem:[%s684 + $0x168] sm:$0xff]
        %v5073 = vld [vmem:[%s684 + $0x178] sm:$0x1]
        %v5074 = vld [vmem:[%s684 + $0x198] sm:$0xfe]
        %v5075 = vld [vmem:[%s684 + $0x1a8] sm:$0xff]
        %v5076 = vld [vmem:[%s684 + $0x1b8] sm:$0x1]
        %v5077 = vld [vmem:[%s684 + $0x1d8] sm:$0xfe]
        %v5078 = vld [vmem:[%s684 + $0x1e8] sm:$0xff]
        %v5079 = vld [vmem:[%s684 + $0x1f8] sm:$0x1]
        %v5080 = vld [vmem:[%s684 + $0x218] sm:$0xfe]
        %v5081 = vld [vmem:[%s684 + $0x228] sm:$0xff]
        %v5082 = vld [vmem:[%s684 + $0x238] sm:$0x1]
        %v5083 = vld [vmem:[%s684 + $0x258] sm:$0xfe]
        %v5084 = vld [vmem:[%s684 + $0x268] sm:$0xff]
        %v5085 = vld [vmem:[%s684 + $0x278] sm:$0x1]
        %v5086 = vld [vmem:[%s684 + $0x298] sm:$0xfe]
        %v5087 = vld [vmem:[%s684 + $0x2a8] sm:$0xff]
        %v5088 = vld [vmem:[%s684 + $0x2b8] sm:$0x1]
        %v5089 = vld [vmem:[%s684 + $0x2d8] sm:$0xfe]
        %v5090 = vld [vmem:[%s684 + $0x2e8] sm:$0xff]
        %v5091 = vld [vmem:[%s684 + $0x2f8] sm:$0x1]
        %v5092 = vld [vmem:[%s684 + $0x318] sm:$0xfe]
        %v5093 = vld [vmem:[%s684 + $0x328] sm:$0xff]
        %v5094 = vld [vmem:[%s684 + $0x338] sm:$0x1]
        %v5095 = vld [vmem:[%s684 + $0x358] sm:$0xfe]
        %v5096 = vld [vmem:[%s684 + $0x368] sm:$0xff]
        %v5097 = vld [vmem:[%s684 + $0x378] sm:$0x1]
        %v5098 = vld [vmem:[%s684 + $0x398] sm:$0xfe]
        %v5099 = vld [vmem:[%s684 + $0x3a8] sm:$0xff]
        %v5100 = vld [vmem:[%s684 + $0x3b8] sm:$0x1]
        %v5101 = vld [vmem:[%s684 + $0x3d8] sm:$0xfe]
        %v5102 = vld [vmem:[%s684 + $0x3e8] sm:$0xff]
        %v5103 = vld [vmem:[%s684 + $0x3f8] sm:$0x1]
        %v5152 = vrot.slane %v5056, 2
        %v5153 = vrot.slane %v5057, 2
        %v5154 = vsel %vm1182, %v5152, %v5153
        %v5155 = vrot.slane %v5058, 2
        %v5156 = vsel %vm1182, %v5153, %v5155
        %v5157 = vrot.slane %v5059, 2
        %v5158 = vrot.slane %v5060, 2
        %v5159 = vsel %vm1182, %v5157, %v5158
        %v5160 = vrot.slane %v5061, 2
        %v5161 = vsel %vm1182, %v5158, %v5160
        %v5162 = vrot.slane %v5062, 2
        %v5163 = vrot.slane %v5063, 2
        %v5164 = vsel %vm1182, %v5162, %v5163
        %v5165 = vrot.slane %v5064, 2
        %v5166 = vsel %vm1182, %v5163, %v5165
        %v5167 = vrot.slane %v5065, 2
        %v5168 = vrot.slane %v5066, 2
        %v5169 = vsel %vm1182, %v5167, %v5168
        %v5170 = vrot.slane %v5067, 2
        %v5171 = vsel %vm1182, %v5168, %v5170
        %v5172 = vrot.slane %v5068, 2
        %v5173 = vrot.slane %v5069, 2
        %v5174 = vsel %vm1182, %v5172, %v5173
        %v5175 = vrot.slane %v5070, 2
        %v5176 = vsel %vm1182, %v5173, %v5175
        %v5177 = vrot.slane %v5071, 2
        %v5178 = vrot.slane %v5072, 2
        %v5179 = vsel %vm1182, %v5177, %v5178
        %v5180 = vrot.slane %v5073, 2
        %v5181 = vsel %vm1182, %v5178, %v5180
        %v5182 = vrot.slane %v5074, 2
        %v5183 = vrot.slane %v5075, 2
        %v5184 = vsel %vm1182, %v5182, %v5183
        %v5185 = vrot.slane %v5076, 2
        %v5186 = vsel %vm1182, %v5183, %v5185
        %v5187 = vrot.slane %v5077, 2
        %v5188 = vrot.slane %v5078, 2
        %v5189 = vsel %vm1182, %v5187, %v5188
        %v5190 = vrot.slane %v5079, 2
        %v5191 = vsel %vm1182, %v5188, %v5190
        %v5192 = vrot.slane %v5080, 2
        %v5193 = vrot.slane %v5081, 2
        %v5194 = vsel %vm1182, %v5192, %v5193
        %v5195 = vrot.slane %v5082, 2
        %v5196 = vsel %vm1182, %v5193, %v5195
        %v5197 = vrot.slane %v5083, 2
        %v5198 = vrot.slane %v5084, 2
        %v5199 = vsel %vm1182, %v5197, %v5198
        %v5200 = vrot.slane %v5085, 2
        %v5201 = vsel %vm1182, %v5198, %v5200
        %v5202 = vrot.slane %v5086, 2
        %v5203 = vrot.slane %v5087, 2
        %v5204 = vsel %vm1182, %v5202, %v5203
        %v5205 = vrot.slane %v5088, 2
        %v5206 = vsel %vm1182, %v5203, %v5205
        %v5207 = vrot.slane %v5089, 2
        %v5208 = vrot.slane %v5090, 2
        %v5209 = vsel %vm1182, %v5207, %v5208
        %v5210 = vrot.slane %v5091, 2
        %v5211 = vsel %vm1182, %v5208, %v5210
        %v5212 = vrot.slane %v5092, 2
        %v5213 = vrot.slane %v5093, 2
        %v5214 = vsel %vm1182, %v5212, %v5213
        %v5215 = vrot.slane %v5094, 2
        %v5216 = vsel %vm1182, %v5213, %v5215
        %v5217 = vrot.slane %v5095, 2
        %v5218 = vrot.slane %v5096, 2
        %v5219 = vsel %vm1182, %v5217, %v5218
        %v5220 = vrot.slane %v5097, 2
        %v5221 = vsel %vm1182, %v5218, %v5220
        %v5222 = vrot.slane %v5098, 2
        %v5223 = vrot.slane %v5099, 2
        %v5224 = vsel %vm1182, %v5222, %v5223
        %v5225 = vrot.slane %v5100, 2
        %v5226 = vsel %vm1182, %v5223, %v5225
        %v5227 = vrot.slane %v5101, 2
        %v5228 = vrot.slane %v5102, 2
        %v5229 = vsel %vm1182, %v5227, %v5228
        %v5230 = vrot.slane %v5103, 2
        %v5231 = vsel %vm1182, %v5228, %v5230
        %v5280 = vadd.f32 %v5008, %v5152
        %v5281 = vadd.f32 %v5009, %v5154
        %v5282 = vadd.f32 %v5010, %v5156
        %v5283 = vadd.f32 %v5011, %v5157
        %v5284 = vadd.f32 %v5012, %v5159
        %v5285 = vadd.f32 %v5013, %v5161
        %v5286 = vadd.f32 %v5014, %v5162
        %v5287 = vadd.f32 %v5015, %v5164
        %v5288 = vadd.f32 %v5016, %v5166
        %v5289 = vadd.f32 %v5017, %v5167
        %v5290 = vadd.f32 %v5018, %v5169
        %v5291 = vadd.f32 %v5019, %v5171
        %v5292 = vadd.f32 %v5020, %v5172
        %v5293 = vadd.f32 %v5021, %v5174
        %v5294 = vadd.f32 %v5022, %v5176
        %v5295 = vadd.f32 %v5023, %v5177
        %v5296 = vadd.f32 %v5024, %v5179
        %v5297 = vadd.f32 %v5025, %v5181
        %v5298 = vadd.f32 %v5026, %v5182
        %v5299 = vadd.f32 %v5027, %v5184
        %v5300 = vadd.f32 %v5028, %v5186
        %v5301 = vadd.f32 %v5029, %v5187
        %v5302 = vadd.f32 %v5030, %v5189
        %v5303 = vadd.f32 %v5031, %v5191
        %v5304 = vadd.f32 %v5032, %v5192
        %v5305 = vadd.f32 %v5033, %v5194
        %v5306 = vadd.f32 %v5034, %v5196
        %v5307 = vadd.f32 %v5035, %v5197
        %v5308 = vadd.f32 %v5036, %v5199
        %v5309 = vadd.f32 %v5037, %v5201
        %v5310 = vadd.f32 %v5038, %v5202
        %v5311 = vadd.f32 %v5039, %v5204
        %v5312 = vadd.f32 %v5040, %v5206
        %v5313 = vadd.f32 %v5041, %v5207
        %v5314 = vadd.f32 %v5042, %v5209
        %v5315 = vadd.f32 %v5043, %v5211
        %v5316 = vadd.f32 %v5044, %v5212
        %v5317 = vadd.f32 %v5045, %v5214
        %v5318 = vadd.f32 %v5046, %v5216
        %v5319 = vadd.f32 %v5047, %v5217
        %v5320 = vadd.f32 %v5048, %v5219
        %v5321 = vadd.f32 %v5049, %v5221
        %v5322 = vadd.f32 %v5050, %v5222
        %v5323 = vadd.f32 %v5051, %v5224
        %v5324 = vadd.f32 %v5052, %v5226
        %v5325 = vadd.f32 %v5053, %v5227
        %v5326 = vadd.f32 %v5054, %v5229
        %v5327 = vadd.f32 %v5055, %v5231
        %s5328 = scalar_lea.vmem %s2, 4
        %v5329 = vld [vmem:[%s5328] sm:$0x1]
        %v5331 = vperm.slane %v5329, 0
        %v5333 = vadd.f32 %v5280, %v5331
        %v5334 = vadd.f32 %v5281, %v5331
        %v5335 = vadd.f32 %v5282, %v5331
        %v5336 = vadd.f32 %v5283, %v5331
        %v5337 = vadd.f32 %v5284, %v5331
        %v5338 = vadd.f32 %v5285, %v5331
        %v5339 = vadd.f32 %v5286, %v5331
        %v5340 = vadd.f32 %v5287, %v5331
        %v5341 = vadd.f32 %v5288, %v5331
        %v5342 = vadd.f32 %v5289, %v5331
        %v5343 = vadd.f32 %v5290, %v5331
        %v5344 = vadd.f32 %v5291, %v5331
        %v5345 = vadd.f32 %v5292, %v5331
        %v5346 = vadd.f32 %v5293, %v5331
        %v5347 = vadd.f32 %v5294, %v5331
        %v5348 = vadd.f32 %v5295, %v5331
        %v5349 = vadd.f32 %v5296, %v5331
        %v5350 = vadd.f32 %v5297, %v5331
        %v5351 = vadd.f32 %v5298, %v5331
        %v5352 = vadd.f32 %v5299, %v5331
        %v5353 = vadd.f32 %v5300, %v5331
        %v5354 = vadd.f32 %v5301, %v5331
        %v5355 = vadd.f32 %v5302, %v5331
        %v5356 = vadd.f32 %v5303, %v5331
        %v5357 = vadd.f32 %v5304, %v5331
        %v5358 = vadd.f32 %v5305, %v5331
        %v5359 = vadd.f32 %v5306, %v5331
        %v5360 = vadd.f32 %v5307, %v5331
        %v5361 = vadd.f32 %v5308, %v5331
        %v5362 = vadd.f32 %v5309, %v5331
        %v5363 = vadd.f32 %v5310, %v5331
        %v5364 = vadd.f32 %v5311, %v5331
        %v5365 = vadd.f32 %v5312, %v5331
        %v5366 = vadd.f32 %v5313, %v5331
        %v5367 = vadd.f32 %v5314, %v5331
        %v5368 = vadd.f32 %v5315, %v5331
        %v5369 = vadd.f32 %v5316, %v5331
        %v5370 = vadd.f32 %v5317, %v5331
        %v5371 = vadd.f32 %v5318, %v5331
        %v5372 = vadd.f32 %v5319, %v5331
        %v5373 = vadd.f32 %v5320, %v5331
        %v5374 = vadd.f32 %v5321, %v5331
        %v5375 = vadd.f32 %v5322, %v5331
        %v5376 = vadd.f32 %v5323, %v5331
        %v5377 = vadd.f32 %v5324, %v5331
        %v5378 = vadd.f32 %v5325, %v5331
        %v5379 = vadd.f32 %v5326, %v5331
        %v5380 = vadd.f32 %v5327, %v5331
        %v5429 = vrot.slane %v5333, 7
        %v5430 = vrot.slane %v5334, 7
        %v5431 = vsel %vm1459, %v5429, %v5430
        %v5432 = vrot.slane %v5335, 7
        %v5433 = vsel %vm1459, %v5430, %v5432
        %v5434 = vrot.slane %v5336, 7
        %v5435 = vrot.slane %v5337, 7
        %v5436 = vsel %vm1459, %v5434, %v5435
        %v5437 = vrot.slane %v5338, 7
        %v5438 = vsel %vm1459, %v5435, %v5437
        %v5439 = vrot.slane %v5339, 7
        %v5440 = vrot.slane %v5340, 7
        %v5441 = vsel %vm1459, %v5439, %v5440
        %v5442 = vrot.slane %v5341, 7
        %v5443 = vsel %vm1459, %v5440, %v5442
        %v5444 = vrot.slane %v5342, 7
        %v5445 = vrot.slane %v5343, 7
        %v5446 = vsel %vm1459, %v5444, %v5445
        %v5447 = vrot.slane %v5344, 7
        %v5448 = vsel %vm1459, %v5445, %v5447
        %v5449 = vrot.slane %v5345, 7
        %v5450 = vrot.slane %v5346, 7
        %v5451 = vsel %vm1459, %v5449, %v5450
        %v5452 = vrot.slane %v5347, 7
        %v5453 = vsel %vm1459, %v5450, %v5452
        %v5454 = vrot.slane %v5348, 7
        %v5455 = vrot.slane %v5349, 7
        %v5456 = vsel %vm1459, %v5454, %v5455
        %v5457 = vrot.slane %v5350, 7
        %v5458 = vsel %vm1459, %v5455, %v5457
        %v5459 = vrot.slane %v5351, 7
        %v5460 = vrot.slane %v5352, 7
        %v5461 = vsel %vm1459, %v5459, %v5460
        %v5462 = vrot.slane %v5353, 7
        %v5463 = vsel %vm1459, %v5460, %v5462
        %v5464 = vrot.slane %v5354, 7
        %v5465 = vrot.slane %v5355, 7
        %v5466 = vsel %vm1459, %v5464, %v5465
        %v5467 = vrot.slane %v5356, 7
        %v5468 = vsel %vm1459, %v5465, %v5467
        %v5469 = vrot.slane %v5357, 7
        %v5470 = vrot.slane %v5358, 7
        %v5471 = vsel %vm1459, %v5469, %v5470
        %v5472 = vrot.slane %v5359, 7
        %v5473 = vsel %vm1459, %v5470, %v5472
        %v5474 = vrot.slane %v5360, 7
        %v5475 = vrot.slane %v5361, 7
        %v5476 = vsel %vm1459, %v5474, %v5475
        %v5477 = vrot.slane %v5362, 7
        %v5478 = vsel %vm1459, %v5475, %v5477
        %v5479 = vrot.slane %v5363, 7
        %v5480 = vrot.slane %v5364, 7
        %v5481 = vsel %vm1459, %v5479, %v5480
        %v5482 = vrot.slane %v5365, 7
        %v5483 = vsel %vm1459, %v5480, %v5482
        %v5484 = vrot.slane %v5366, 7
        %v5485 = vrot.slane %v5367, 7
        %v5486 = vsel %vm1459, %v5484, %v5485
        %v5487 = vrot.slane %v5368, 7
        %v5488 = vsel %vm1459, %v5485, %v5487
        %v5489 = vrot.slane %v5369, 7
        %v5490 = vrot.slane %v5370, 7
        %v5491 = vsel %vm1459, %v5489, %v5490
        %v5492 = vrot.slane %v5371, 7
        %v5493 = vsel %vm1459, %v5490, %v5492
        %v5494 = vrot.slane %v5372, 7
        %v5495 = vrot.slane %v5373, 7
        %v5496 = vsel %vm1459, %v5494, %v5495
        %v5497 = vrot.slane %v5374, 7
        %v5498 = vsel %vm1459, %v5495, %v5497
        %v5499 = vrot.slane %v5375, 7
        %v5500 = vrot.slane %v5376, 7
        %v5501 = vsel %vm1459, %v5499, %v5500
        %v5502 = vrot.slane %v5377, 7
        %v5503 = vsel %vm1459, %v5500, %v5502
        %v5504 = vrot.slane %v5378, 7
        %v5505 = vrot.slane %v5379, 7
        %v5506 = vsel %vm1459, %v5504, %v5505
        %v5507 = vrot.slane %v5380, 7
        %v5508 = vsel %vm1459, %v5505, %v5507
        %s5509 = scalar_lea.vmem %s1, 640
        %v5510 = vld [vmem:[%s5509] sm:$0xff]
        %v5511 = vld [vmem:[%s5509 + $0x8] sm:$0xff]
        %v5512 = vld [vmem:[%s5509 + $0x10] sm:$0xff]
        %v5513 = vld [vmem:[%s5509 + $0x18] sm:$0xff]
        %v5514 = vld [vmem:[%s5509 + $0x20] sm:$0xff]
        %v5515 = vld [vmem:[%s5509 + $0x28] sm:$0xff]
        %v5516 = vld [vmem:[%s5509 + $0x30] sm:$0xff]
        %v5517 = vld [vmem:[%s5509 + $0x38] sm:$0xff]
        %v5518 = vld [vmem:[%s5509 + $0x40] sm:$0xff]
        %v5519 = vld [vmem:[%s5509 + $0x48] sm:$0xff]
        %v5520 = vld [vmem:[%s5509 + $0x50] sm:$0xff]
        %v5521 = vld [vmem:[%s5509 + $0x58] sm:$0xff]
        %v5522 = vld [vmem:[%s5509 + $0x60] sm:$0xff]
        %v5523 = vld [vmem:[%s5509 + $0x68] sm:$0xff]
        %v5524 = vld [vmem:[%s5509 + $0x70] sm:$0xff]
        %v5525 = vld [vmem:[%s5509 + $0x78] sm:$0xff]
        %v5526 = vsel %vm170, %v5431, 0
        %v5528 = vsel %vm170, %v5433, 0
        %v5530 = vsel %vm170, %v5436, 0
        %v5532 = vsel %vm170, %v5438, 0
        %v5534 = vsel %vm170, %v5441, 0
        %v5536 = vsel %vm170, %v5443, 0
        %v5538 = vsel %vm170, %v5446, 0
        %v5540 = vsel %vm170, %v5448, 0
        %v5542 = vsel %vm170, %v5451, 0
        %v5544 = vsel %vm170, %v5453, 0
        %v5546 = vsel %vm170, %v5456, 0
        %v5548 = vsel %vm170, %v5458, 0
        %v5550 = vsel %vm170, %v5461, 0
        %v5552 = vsel %vm170, %v5463, 0
        %v5554 = vsel %vm170, %v5466, 0
        %v5556 = vsel %vm170, %v5468, 0
        %v5558 = vsel %vm170, %v5471, 0
        %v5560 = vsel %vm170, %v5473, 0
        %v5562 = vsel %vm170, %v5476, 0
        %v5564 = vsel %vm170, %v5478, 0
        %v5566 = vsel %vm170, %v5481, 0
        %v5568 = vsel %vm170, %v5483, 0
        %v5570 = vsel %vm170, %v5486, 0
        %v5572 = vsel %vm170, %v5488, 0
        %v5574 = vsel %vm170, %v5491, 0
        %v5576 = vsel %vm170, %v5493, 0
        %v5578 = vsel %vm170, %v5496, 0
        %v5580 = vsel %vm170, %v5498, 0
        %v5582 = vsel %vm170, %v5501, 0
        %v5584 = vsel %vm170, %v5503, 0
        %v5586 = vsel %vm170, %v5506, 0
        %v5588 = vsel %vm170, %v5508, 0
        %5590 = vmatpush.msra.mxu0 0.0
        %5591 = vmatpush.msra.mxu0 0.0
        %5592 = vmatpush.msra.mxu0 0.0
        %5593 = vmatpush.msra.mxu0 0.0
        %5594 = vmatpush.msra.mxu0 0.0
        %5595 = vmatpush.msra.mxu0 0.0
        %5596 = vmatpush.msra.mxu0 0.0
        %5597 = vmatpush.msra.mxu0 0.0
        %5598 = vmatpush.msra.mxu0 %v5524
        %5599 = vmatpush.msra.mxu0 %v5522
        %5600 = vmatpush.msra.mxu0 %v5520
        %5601 = vmatpush.msra.mxu0 %v5518
        %5602 = vmatpush.msra.mxu0 %v5516
        %5603 = vmatpush.msra.mxu0 %v5514
        %5604 = vmatpush.msra.mxu0 %v5512
        %5605 = vmatpush.msra.mxu0 %v5510
        %5606 = vmatmul.f32.gmra.mxu0 %v5526
        %v5607 = vpop.f32.mrf.mxu0
        %v5608 = vadd.f32 0.0, %v5607
        %5609 = vmatmul.f32.gmra.mxu0 %v5528
        %v5610 = vpop.f32.mrf.mxu0
        %v5611 = vadd.f32 0.0, %v5610
        %5612 = vmatmul.f32.gmra.mxu0 %v5530
        %v5613 = vpop.f32.mrf.mxu0
        %v5614 = vadd.f32 0.0, %v5613
        %5615 = vmatmul.f32.gmra.mxu0 %v5532
        %v5616 = vpop.f32.mrf.mxu0
        %v5617 = vadd.f32 0.0, %v5616
        %5618 = vmatmul.f32.gmra.mxu0 %v5534
        %v5619 = vpop.f32.mrf.mxu0
        %v5620 = vadd.f32 0.0, %v5619
        %5621 = vmatmul.f32.gmra.mxu0 %v5536
        %v5622 = vpop.f32.mrf.mxu0
        %v5623 = vadd.f32 0.0, %v5622
        %5624 = vmatmul.f32.gmra.mxu0 %v5538
        %v5625 = vpop.f32.mrf.mxu0
        %v5626 = vadd.f32 0.0, %v5625
        %5627 = vmatmul.f32.gmra.mxu0 %v5540
        %v5628 = vpop.f32.mrf.mxu0
        %v5629 = vadd.f32 0.0, %v5628
        %5630 = vmatmul.f32.gmra.mxu0 %v5542
        %v5631 = vpop.f32.mrf.mxu0
        %v5632 = vadd.f32 0.0, %v5631
        %5633 = vmatmul.f32.gmra.mxu0 %v5544
        %v5634 = vpop.f32.mrf.mxu0
        %v5635 = vadd.f32 0.0, %v5634
        %5636 = vmatmul.f32.gmra.mxu0 %v5546
        %v5637 = vpop.f32.mrf.mxu0
        %v5638 = vadd.f32 0.0, %v5637
        %5639 = vmatmul.f32.gmra.mxu0 %v5548
        %v5640 = vpop.f32.mrf.mxu0
        %v5641 = vadd.f32 0.0, %v5640
        %5642 = vmatmul.f32.gmra.mxu0 %v5550
        %v5643 = vpop.f32.mrf.mxu0
        %v5644 = vadd.f32 0.0, %v5643
        %5645 = vmatmul.f32.gmra.mxu0 %v5552
        %v5646 = vpop.f32.mrf.mxu0
        %v5647 = vadd.f32 0.0, %v5646
        %5648 = vmatmul.f32.gmra.mxu0 %v5554
        %v5649 = vpop.f32.mrf.mxu0
        %v5650 = vadd.f32 0.0, %v5649
        %5651 = vmatmul.f32.gmra.mxu0 %v5556
        %v5652 = vpop.f32.mrf.mxu0
        %v5653 = vadd.f32 0.0, %v5652
        %5654 = vmatmul.f32.gmra.mxu0 %v5558
        %v5655 = vpop.f32.mrf.mxu0
        %v5656 = vadd.f32 0.0, %v5655
        %5657 = vmatmul.f32.gmra.mxu0 %v5560
        %v5658 = vpop.f32.mrf.mxu0
        %v5659 = vadd.f32 0.0, %v5658
        %5660 = vmatmul.f32.gmra.mxu0 %v5562
        %v5661 = vpop.f32.mrf.mxu0
        %v5662 = vadd.f32 0.0, %v5661
        %5663 = vmatmul.f32.gmra.mxu0 %v5564
        %v5664 = vpop.f32.mrf.mxu0
        %v5665 = vadd.f32 0.0, %v5664
        %5666 = vmatmul.f32.gmra.mxu0 %v5566
        %v5667 = vpop.f32.mrf.mxu0
        %v5668 = vadd.f32 0.0, %v5667
        %5669 = vmatmul.f32.gmra.mxu0 %v5568
        %v5670 = vpop.f32.mrf.mxu0
        %v5671 = vadd.f32 0.0, %v5670
        %5672 = vmatmul.f32.gmra.mxu0 %v5570
        %v5673 = vpop.f32.mrf.mxu0
        %v5674 = vadd.f32 0.0, %v5673
        %5675 = vmatmul.f32.gmra.mxu0 %v5572
        %v5676 = vpop.f32.mrf.mxu0
        %v5677 = vadd.f32 0.0, %v5676
        %5678 = vmatmul.f32.gmra.mxu0 %v5574
        %v5679 = vpop.f32.mrf.mxu0
        %v5680 = vadd.f32 0.0, %v5679
        %5681 = vmatmul.f32.gmra.mxu0 %v5576
        %v5682 = vpop.f32.mrf.mxu0
        %v5683 = vadd.f32 0.0, %v5682
        %5684 = vmatmul.f32.gmra.mxu0 %v5578
        %v5685 = vpop.f32.mrf.mxu0
        %v5686 = vadd.f32 0.0, %v5685
        %5687 = vmatmul.f32.gmra.mxu0 %v5580
        %v5688 = vpop.f32.mrf.mxu0
        %v5689 = vadd.f32 0.0, %v5688
        %5690 = vmatmul.f32.gmra.mxu0 %v5582
        %v5691 = vpop.f32.mrf.mxu0
        %v5692 = vadd.f32 0.0, %v5691
        %5693 = vmatmul.f32.gmra.mxu0 %v5584
        %v5694 = vpop.f32.mrf.mxu0
        %v5695 = vadd.f32 0.0, %v5694
        %5696 = vmatmul.f32.gmra.mxu0 %v5586
        %v5697 = vpop.f32.mrf.mxu0
        %v5698 = vadd.f32 0.0, %v5697
        %5699 = vmatmul.f32.gmra.mxu0 %v5588
        %v5700 = vpop.f32.mrf.mxu0
        %v5701 = vadd.f32 0.0, %v5700
        %5702 = vdwg.mxu0
        %5703 = vmatpush.msra.mxu0 0.0
        %5704 = vmatpush.msra.mxu0 0.0
        %5705 = vmatpush.msra.mxu0 0.0
        %5706 = vmatpush.msra.mxu0 0.0
        %5707 = vmatpush.msra.mxu0 0.0
        %5708 = vmatpush.msra.mxu0 0.0
        %5709 = vmatpush.msra.mxu0 0.0
        %5710 = vmatpush.msra.mxu0 0.0
        %5711 = vmatpush.msra.mxu0 %v5525
        %5712 = vmatpush.msra.mxu0 %v5523
        %5713 = vmatpush.msra.mxu0 %v5521
        %5714 = vmatpush.msra.mxu0 %v5519
        %5715 = vmatpush.msra.mxu0 %v5517
        %5716 = vmatpush.msra.mxu0 %v5515
        %5717 = vmatpush.msra.mxu0 %v5513
        %5718 = vmatpush.msra.mxu0 %v5511
        %5719 = vmatmul.f32.gmra.mxu0 %v5526
        %v5720 = vpop.f32.mrf.mxu0
        %v5721 = vadd.f32 0.0, %v5720
        %5722 = vmatmul.f32.gmra.mxu0 %v5528
        %v5723 = vpop.f32.mrf.mxu0
        %v5724 = vadd.f32 0.0, %v5723
        %5725 = vmatmul.f32.gmra.mxu0 %v5530
        %v5726 = vpop.f32.mrf.mxu0
        %v5727 = vadd.f32 0.0, %v5726
        %5728 = vmatmul.f32.gmra.mxu0 %v5532
        %v5729 = vpop.f32.mrf.mxu0
        %v5730 = vadd.f32 0.0, %v5729
        %5731 = vmatmul.f32.gmra.mxu0 %v5534
        %v5732 = vpop.f32.mrf.mxu0
        %v5733 = vadd.f32 0.0, %v5732
        %5734 = vmatmul.f32.gmra.mxu0 %v5536
        %v5735 = vpop.f32.mrf.mxu0
        %v5736 = vadd.f32 0.0, %v5735
        %5737 = vmatmul.f32.gmra.mxu0 %v5538
        %v5738 = vpop.f32.mrf.mxu0
        %v5739 = vadd.f32 0.0, %v5738
        %5740 = vmatmul.f32.gmra.mxu0 %v5540
        %v5741 = vpop.f32.mrf.mxu0
        %v5742 = vadd.f32 0.0, %v5741
        %5743 = vmatmul.f32.gmra.mxu0 %v5542
        %v5744 = vpop.f32.mrf.mxu0
        %v5745 = vadd.f32 0.0, %v5744
        %5746 = vmatmul.f32.gmra.mxu0 %v5544
        %v5747 = vpop.f32.mrf.mxu0
        %v5748 = vadd.f32 0.0, %v5747
        %5749 = vmatmul.f32.gmra.mxu0 %v5546
        %v5750 = vpop.f32.mrf.mxu0
        %v5751 = vadd.f32 0.0, %v5750
        %5752 = vmatmul.f32.gmra.mxu0 %v5548
        %v5753 = vpop.f32.mrf.mxu0
        %v5754 = vadd.f32 0.0, %v5753
        %5755 = vmatmul.f32.gmra.mxu0 %v5550
        %v5756 = vpop.f32.mrf.mxu0
        %v5757 = vadd.f32 0.0, %v5756
        %5758 = vmatmul.f32.gmra.mxu0 %v5552
        %v5759 = vpop.f32.mrf.mxu0
        %v5760 = vadd.f32 0.0, %v5759
        %5761 = vmatmul.f32.gmra.mxu0 %v5554
        %v5762 = vpop.f32.mrf.mxu0
        %v5763 = vadd.f32 0.0, %v5762
        %5764 = vmatmul.f32.gmra.mxu0 %v5556
        %v5765 = vpop.f32.mrf.mxu0
        %v5766 = vadd.f32 0.0, %v5765
        %5767 = vmatmul.f32.gmra.mxu0 %v5558
        %v5768 = vpop.f32.mrf.mxu0
        %v5769 = vadd.f32 0.0, %v5768
        %5770 = vmatmul.f32.gmra.mxu0 %v5560
        %v5771 = vpop.f32.mrf.mxu0
        %v5772 = vadd.f32 0.0, %v5771
        %5773 = vmatmul.f32.gmra.mxu0 %v5562
        %v5774 = vpop.f32.mrf.mxu0
        %v5775 = vadd.f32 0.0, %v5774
        %5776 = vmatmul.f32.gmra.mxu0 %v5564
        %v5777 = vpop.f32.mrf.mxu0
        %v5778 = vadd.f32 0.0, %v5777
        %5779 = vmatmul.f32.gmra.mxu0 %v5566
        %v5780 = vpop.f32.mrf.mxu0
        %v5781 = vadd.f32 0.0, %v5780
        %5782 = vmatmul.f32.gmra.mxu0 %v5568
        %v5783 = vpop.f32.mrf.mxu0
        %v5784 = vadd.f32 0.0, %v5783
        %5785 = vmatmul.f32.gmra.mxu0 %v5570
        %v5786 = vpop.f32.mrf.mxu0
        %v5787 = vadd.f32 0.0, %v5786
        %5788 = vmatmul.f32.gmra.mxu0 %v5572
        %v5789 = vpop.f32.mrf.mxu0
        %v5790 = vadd.f32 0.0, %v5789
        %5791 = vmatmul.f32.gmra.mxu0 %v5574
        %v5792 = vpop.f32.mrf.mxu0
        %v5793 = vadd.f32 0.0, %v5792
        %5794 = vmatmul.f32.gmra.mxu0 %v5576
        %v5795 = vpop.f32.mrf.mxu0
        %v5796 = vadd.f32 0.0, %v5795
        %5797 = vmatmul.f32.gmra.mxu0 %v5578
        %v5798 = vpop.f32.mrf.mxu0
        %v5799 = vadd.f32 0.0, %v5798
        %5800 = vmatmul.f32.gmra.mxu0 %v5580
        %v5801 = vpop.f32.mrf.mxu0
        %v5802 = vadd.f32 0.0, %v5801
        %5803 = vmatmul.f32.gmra.mxu0 %v5582
        %v5804 = vpop.f32.mrf.mxu0
        %v5805 = vadd.f32 0.0, %v5804
        %5806 = vmatmul.f32.gmra.mxu0 %v5584
        %v5807 = vpop.f32.mrf.mxu0
        %v5808 = vadd.f32 0.0, %v5807
        %5809 = vmatmul.f32.gmra.mxu0 %v5586
        %v5810 = vpop.f32.mrf.mxu0
        %v5811 = vadd.f32 0.0, %v5810
        %5812 = vmatmul.f32.gmra.mxu0 %v5588
        %v5813 = vpop.f32.mrf.mxu0
        %v5814 = vadd.f32 0.0, %v5813
        %5815 = vdwg.mxu0
        %5816 = vst [vmem:[%s684 + $0x10] sm:$0xff] %v5608
        %5817 = vst.msk [vmem:[%s684 + $0x18] sm:$0xff] %vm170, %v5721
        %5818 = vst [vmem:[%s684 + $0x20] sm:$0xff] %v5611
        %5819 = vst.msk [vmem:[%s684 + $0x28] sm:$0xff] %vm170, %v5724
        %5820 = vst [vmem:[%s684 + $0x50] sm:$0xff] %v5614
        %5821 = vst.msk [vmem:[%s684 + $0x58] sm:$0xff] %vm170, %v5727
        %5822 = vst [vmem:[%s684 + $0x60] sm:$0xff] %v5617
        %5823 = vst.msk [vmem:[%s684 + $0x68] sm:$0xff] %vm170, %v5730
        %5824 = vst [vmem:[%s684 + $0x90] sm:$0xff] %v5620
        %5825 = vst.msk [vmem:[%s684 + $0x98] sm:$0xff] %vm170, %v5733
        %5826 = vst [vmem:[%s684 + $0xa0] sm:$0xff] %v5623
        %5827 = vst.msk [vmem:[%s684 + $0xa8] sm:$0xff] %vm170, %v5736
        %5828 = vst [vmem:[%s684 + $0xd0] sm:$0xff] %v5626
        %5829 = vst.msk [vmem:[%s684 + $0xd8] sm:$0xff] %vm170, %v5739
        %5830 = vst [vmem:[%s684 + $0xe0] sm:$0xff] %v5629
        %5831 = vst.msk [vmem:[%s684 + $0xe8] sm:$0xff] %vm170, %v5742
        %5832 = vst [vmem:[%s684 + $0x110] sm:$0xff] %v5632
        %5833 = vst.msk [vmem:[%s684 + $0x118] sm:$0xff] %vm170, %v5745
        %5834 = vst [vmem:[%s684 + $0x120] sm:$0xff] %v5635
        %5835 = vst.msk [vmem:[%s684 + $0x128] sm:$0xff] %vm170, %v5748
        %5836 = vst [vmem:[%s684 + $0x150] sm:$0xff] %v5638
        %5837 = vst.msk [vmem:[%s684 + $0x158] sm:$0xff] %vm170, %v5751
        %5838 = vst [vmem:[%s684 + $0x160] sm:$0xff] %v5641
        %5839 = vst.msk [vmem:[%s684 + $0x168] sm:$0xff] %vm170, %v5754
        %5840 = vst [vmem:[%s684 + $0x190] sm:$0xff] %v5644
        %5841 = vst.msk [vmem:[%s684 + $0x198] sm:$0xff] %vm170, %v5757
        %5842 = vst [vmem:[%s684 + $0x1a0] sm:$0xff] %v5647
        %5843 = vst.msk [vmem:[%s684 + $0x1a8] sm:$0xff] %vm170, %v5760
        %5844 = vst [vmem:[%s684 + $0x1d0] sm:$0xff] %v5650
        %5845 = vst.msk [vmem:[%s684 + $0x1d8] sm:$0xff] %vm170, %v5763
        %5846 = vst [vmem:[%s684 + $0x1e0] sm:$0xff] %v5653
        %5847 = vst.msk [vmem:[%s684 + $0x1e8] sm:$0xff] %vm170, %v5766
        %5848 = vst [vmem:[%s684 + $0x210] sm:$0xff] %v5656
        %5849 = vst.msk [vmem:[%s684 + $0x218] sm:$0xff] %vm170, %v5769
        %5850 = vst [vmem:[%s684 + $0x220] sm:$0xff] %v5659
        %5851 = vst.msk [vmem:[%s684 + $0x228] sm:$0xff] %vm170, %v5772
        %5852 = vst [vmem:[%s684 + $0x250] sm:$0xff] %v5662
        %5853 = vst.msk [vmem:[%s684 + $0x258] sm:$0xff] %vm170, %v5775
        %5854 = vst [vmem:[%s684 + $0x260] sm:$0xff] %v5665
        %5855 = vst.msk [vmem:[%s684 + $0x268] sm:$0xff] %vm170, %v5778
        %5856 = vst [vmem:[%s684 + $0x290] sm:$0xff] %v5668
        %5857 = vst.msk [vmem:[%s684 + $0x298] sm:$0xff] %vm170, %v5781
        %5858 = vst [vmem:[%s684 + $0x2a0] sm:$0xff] %v5671
        %5859 = vst.msk [vmem:[%s684 + $0x2a8] sm:$0xff] %vm170, %v5784
        %5860 = vst [vmem:[%s684 + $0x2d0] sm:$0xff] %v5674
        %5861 = vst.msk [vmem:[%s684 + $0x2d8] sm:$0xff] %vm170, %v5787
        %5862 = vst [vmem:[%s684 + $0x2e0] sm:$0xff] %v5677
        %5863 = vst.msk [vmem:[%s684 + $0x2e8] sm:$0xff] %vm170, %v5790
        %5864 = vst [vmem:[%s684 + $0x310] sm:$0xff] %v5680
        %5865 = vst.msk [vmem:[%s684 + $0x318] sm:$0xff] %vm170, %v5793
        %5866 = vst [vmem:[%s684 + $0x320] sm:$0xff] %v5683
        %5867 = vst.msk [vmem:[%s684 + $0x328] sm:$0xff] %vm170, %v5796
        %5868 = vst [vmem:[%s684 + $0x350] sm:$0xff] %v5686
        %5869 = vst.msk [vmem:[%s684 + $0x358] sm:$0xff] %vm170, %v5799
        %5870 = vst [vmem:[%s684 + $0x360] sm:$0xff] %v5689
        %5871 = vst.msk [vmem:[%s684 + $0x368] sm:$0xff] %vm170, %v5802
        %5872 = vst [vmem:[%s684 + $0x390] sm:$0xff] %v5692
        %5873 = vst.msk [vmem:[%s684 + $0x398] sm:$0xff] %vm170, %v5805
        %5874 = vst [vmem:[%s684 + $0x3a0] sm:$0xff] %v5695
        %5875 = vst.msk [vmem:[%s684 + $0x3a8] sm:$0xff] %vm170, %v5808
        %5876 = vst [vmem:[%s684 + $0x3d0] sm:$0xff] %v5698
        %5877 = vst.msk [vmem:[%s684 + $0x3d8] sm:$0xff] %vm170, %v5811
        %5878 = vst [vmem:[%s684 + $0x3e0] sm:$0xff] %v5701
        %5879 = vst.msk [vmem:[%s684 + $0x3e8] sm:$0xff] %vm170, %v5814
        %v5880 = vld [vmem:[#allocation2 + $0x10] sm:$0xff]
        %v5881 = vld [vmem:[#allocation2 + $0x20] sm:$0xff]
        %v5882 = vld [vmem:[#allocation2 + $0x50] sm:$0xff]
        %v5883 = vld [vmem:[#allocation2 + $0x60] sm:$0xff]
        %v5884 = vld [vmem:[#allocation2 + $0x90] sm:$0xff]
        %v5885 = vld [vmem:[#allocation2 + $0xa0] sm:$0xff]
        %v5886 = vld [vmem:[#allocation2 + $0xd0] sm:$0xff]
        %v5887 = vld [vmem:[#allocation2 + $0xe0] sm:$0xff]
        %v5888 = vld [vmem:[#allocation2 + $0x110] sm:$0xff]
        %v5889 = vld [vmem:[#allocation2 + $0x120] sm:$0xff]
        %v5890 = vld [vmem:[#allocation2 + $0x150] sm:$0xff]
        %v5891 = vld [vmem:[#allocation2 + $0x160] sm:$0xff]
        %v5892 = vld [vmem:[#allocation2 + $0x190] sm:$0xff]
        %v5893 = vld [vmem:[#allocation2 + $0x1a0] sm:$0xff]
        %v5894 = vld [vmem:[#allocation2 + $0x1d0] sm:$0xff]
        %v5895 = vld [vmem:[#allocation2 + $0x1e0] sm:$0xff]
        %v5896 = vld [vmem:[#allocation2 + $0x210] sm:$0xff]
        %v5897 = vld [vmem:[#allocation2 + $0x220] sm:$0xff]
        %v5898 = vld [vmem:[#allocation2 + $0x250] sm:$0xff]
        %v5899 = vld [vmem:[#allocation2 + $0x260] sm:$0xff]
        %v5900 = vld [vmem:[#allocation2 + $0x290] sm:$0xff]
        %v5901 = vld [vmem:[#allocation2 + $0x2a0] sm:$0xff]
        %v5902 = vld [vmem:[#allocation2 + $0x2d0] sm:$0xff]
        %v5903 = vld [vmem:[#allocation2 + $0x2e0] sm:$0xff]
        %v5904 = vld [vmem:[#allocation2 + $0x310] sm:$0xff]
        %v5905 = vld [vmem:[#allocation2 + $0x320] sm:$0xff]
        %v5906 = vld [vmem:[#allocation2 + $0x350] sm:$0xff]
        %v5907 = vld [vmem:[#allocation2 + $0x360] sm:$0xff]
        %v5908 = vld [vmem:[#allocation2 + $0x390] sm:$0xff]
        %v5909 = vld [vmem:[#allocation2 + $0x3a0] sm:$0xff]
        %v5910 = vld [vmem:[#allocation2 + $0x3d0] sm:$0xff]
        %v5911 = vld [vmem:[#allocation2 + $0x3e0] sm:$0xff]
        %v5912 = vld [vmem:[%s684 + $0x10] sm:$0xff]
        %v5913 = vld [vmem:[%s684 + $0x20] sm:$0xff]
        %v5914 = vld [vmem:[%s684 + $0x50] sm:$0xff]
        %v5915 = vld [vmem:[%s684 + $0x60] sm:$0xff]
        %v5916 = vld [vmem:[%s684 + $0x90] sm:$0xff]
        %v5917 = vld [vmem:[%s684 + $0xa0] sm:$0xff]
        %v5918 = vld [vmem:[%s684 + $0xd0] sm:$0xff]
        %v5919 = vld [vmem:[%s684 + $0xe0] sm:$0xff]
        %v5920 = vld [vmem:[%s684 + $0x110] sm:$0xff]
        %v5921 = vld [vmem:[%s684 + $0x120] sm:$0xff]
        %v5922 = vld [vmem:[%s684 + $0x150] sm:$0xff]
        %v5923 = vld [vmem:[%s684 + $0x160] sm:$0xff]
        %v5924 = vld [vmem:[%s684 + $0x190] sm:$0xff]
        %v5925 = vld [vmem:[%s684 + $0x1a0] sm:$0xff]
        %v5926 = vld [vmem:[%s684 + $0x1d0] sm:$0xff]
        %v5927 = vld [vmem:[%s684 + $0x1e0] sm:$0xff]
        %v5928 = vld [vmem:[%s684 + $0x210] sm:$0xff]
        %v5929 = vld [vmem:[%s684 + $0x220] sm:$0xff]
        %v5930 = vld [vmem:[%s684 + $0x250] sm:$0xff]
        %v5931 = vld [vmem:[%s684 + $0x260] sm:$0xff]
        %v5932 = vld [vmem:[%s684 + $0x290] sm:$0xff]
        %v5933 = vld [vmem:[%s684 + $0x2a0] sm:$0xff]
        %v5934 = vld [vmem:[%s684 + $0x2d0] sm:$0xff]
        %v5935 = vld [vmem:[%s684 + $0x2e0] sm:$0xff]
        %v5936 = vld [vmem:[%s684 + $0x310] sm:$0xff]
        %v5937 = vld [vmem:[%s684 + $0x320] sm:$0xff]
        %v5938 = vld [vmem:[%s684 + $0x350] sm:$0xff]
        %v5939 = vld [vmem:[%s684 + $0x360] sm:$0xff]
        %v5940 = vld [vmem:[%s684 + $0x390] sm:$0xff]
        %v5941 = vld [vmem:[%s684 + $0x3a0] sm:$0xff]
        %v5942 = vld [vmem:[%s684 + $0x3d0] sm:$0xff]
        %v5943 = vld [vmem:[%s684 + $0x3e0] sm:$0xff]
        %5976 = vrot.lane.b32.xlu0 %v5912, 64
        %v5977 = vpop.permute.xlu0 %5976
        %5978 = vrot.lane.b32.xlu0 %v5913, 64
        %v5979 = vpop.permute.xlu0 %5978
        %5980 = vrot.lane.b32.xlu0 %v5914, 64
        %v5981 = vpop.permute.xlu0 %5980
        %5982 = vrot.lane.b32.xlu0 %v5915, 64
        %v5983 = vpop.permute.xlu0 %5982
        %5984 = vrot.lane.b32.xlu0 %v5916, 64
        %v5985 = vpop.permute.xlu0 %5984
        %5986 = vrot.lane.b32.xlu0 %v5917, 64
        %v5987 = vpop.permute.xlu0 %5986
        %5988 = vrot.lane.b32.xlu0 %v5918, 64
        %v5989 = vpop.permute.xlu0 %5988
        %5990 = vrot.lane.b32.xlu0 %v5919, 64
        %v5991 = vpop.permute.xlu0 %5990
        %5992 = vrot.lane.b32.xlu0 %v5920, 64
        %v5993 = vpop.permute.xlu0 %5992
        %5994 = vrot.lane.b32.xlu0 %v5921, 64
        %v5995 = vpop.permute.xlu0 %5994
        %5996 = vrot.lane.b32.xlu0 %v5922, 64
        %v5997 = vpop.permute.xlu0 %5996
        %5998 = vrot.lane.b32.xlu0 %v5923, 64
        %v5999 = vpop.permute.xlu0 %5998
        %6000 = vrot.lane.b32.xlu0 %v5924, 64
        %v6001 = vpop.permute.xlu0 %6000
        %6002 = vrot.lane.b32.xlu0 %v5925, 64
        %v6003 = vpop.permute.xlu0 %6002
        %6004 = vrot.lane.b32.xlu0 %v5926, 64
        %v6005 = vpop.permute.xlu0 %6004
        %6006 = vrot.lane.b32.xlu0 %v5927, 64
        %v6007 = vpop.permute.xlu0 %6006
        %6008 = vrot.lane.b32.xlu0 %v5928, 64
        %v6009 = vpop.permute.xlu0 %6008
        %6010 = vrot.lane.b32.xlu0 %v5929, 64
        %v6011 = vpop.permute.xlu0 %6010
        %6012 = vrot.lane.b32.xlu0 %v5930, 64
        %v6013 = vpop.permute.xlu0 %6012
        %6014 = vrot.lane.b32.xlu0 %v5931, 64
        %v6015 = vpop.permute.xlu0 %6014
        %6016 = vrot.lane.b32.xlu0 %v5932, 64
        %v6017 = vpop.permute.xlu0 %6016
        %6018 = vrot.lane.b32.xlu0 %v5933, 64
        %v6019 = vpop.permute.xlu0 %6018
        %6020 = vrot.lane.b32.xlu0 %v5934, 64
        %v6021 = vpop.permute.xlu0 %6020
        %6022 = vrot.lane.b32.xlu0 %v5935, 64
        %v6023 = vpop.permute.xlu0 %6022
        %6024 = vrot.lane.b32.xlu0 %v5936, 64
        %v6025 = vpop.permute.xlu0 %6024
        %6026 = vrot.lane.b32.xlu0 %v5937, 64
        %v6027 = vpop.permute.xlu0 %6026
        %6028 = vrot.lane.b32.xlu0 %v5938, 64
        %v6029 = vpop.permute.xlu0 %6028
        %6030 = vrot.lane.b32.xlu0 %v5939, 64
        %v6031 = vpop.permute.xlu0 %6030
        %6032 = vrot.lane.b32.xlu0 %v5940, 64
        %v6033 = vpop.permute.xlu0 %6032
        %6034 = vrot.lane.b32.xlu0 %v5941, 64
        %v6035 = vpop.permute.xlu0 %6034
        %6036 = vrot.lane.b32.xlu0 %v5942, 64
        %v6037 = vpop.permute.xlu0 %6036
        %6038 = vrot.lane.b32.xlu0 %v5943, 64
        %v6039 = vpop.permute.xlu0 %6038
        %v6072 = vadd.f32 %v5880, %v5977
        %v6073 = vadd.f32 %v5881, %v5979
        %v6074 = vadd.f32 %v5882, %v5981
        %v6075 = vadd.f32 %v5883, %v5983
        %v6076 = vadd.f32 %v5884, %v5985
        %v6077 = vadd.f32 %v5885, %v5987
        %v6078 = vadd.f32 %v5886, %v5989
        %v6079 = vadd.f32 %v5887, %v5991
        %v6080 = vadd.f32 %v5888, %v5993
        %v6081 = vadd.f32 %v5889, %v5995
        %v6082 = vadd.f32 %v5890, %v5997
        %v6083 = vadd.f32 %v5891, %v5999
        %v6084 = vadd.f32 %v5892, %v6001
        %v6085 = vadd.f32 %v5893, %v6003
        %v6086 = vadd.f32 %v5894, %v6005
        %v6087 = vadd.f32 %v5895, %v6007
        %v6088 = vadd.f32 %v5896, %v6009
        %v6089 = vadd.f32 %v5897, %v6011
        %v6090 = vadd.f32 %v5898, %v6013
        %v6091 = vadd.f32 %v5899, %v6015
        %v6092 = vadd.f32 %v5900, %v6017
        %v6093 = vadd.f32 %v5901, %v6019
        %v6094 = vadd.f32 %v5902, %v6021
        %v6095 = vadd.f32 %v5903, %v6023
        %v6096 = vadd.f32 %v5904, %v6025
        %v6097 = vadd.f32 %v5905, %v6027
        %v6098 = vadd.f32 %v5906, %v6029
        %v6099 = vadd.f32 %v5907, %v6031
        %v6100 = vadd.f32 %v5908, %v6033
        %v6101 = vadd.f32 %v5909, %v6035
        %v6102 = vadd.f32 %v5910, %v6037
        %v6103 = vadd.f32 %v5911, %v6039
        %v6104 = vld [vmem:[%s2135 + $0x18] sm:$0xff]
        %v6105 = vld [vmem:[%s2135 + $0x28] sm:$0xff]
        %v6106 = vld [vmem:[%s2135 + $0x58] sm:$0xff]
        %v6107 = vld [vmem:[%s2135 + $0x68] sm:$0xff]
        %v6108 = vld [vmem:[%s2135 + $0x98] sm:$0xff]
        %v6109 = vld [vmem:[%s2135 + $0xa8] sm:$0xff]
        %v6110 = vld [vmem:[%s2135 + $0xd8] sm:$0xff]
        %v6111 = vld [vmem:[%s2135 + $0xe8] sm:$0xff]
        %v6112 = vld [vmem:[%s2135 + $0x118] sm:$0xff]
        %v6113 = vld [vmem:[%s2135 + $0x128] sm:$0xff]
        %v6114 = vld [vmem:[%s2135 + $0x158] sm:$0xff]
        %v6115 = vld [vmem:[%s2135 + $0x168] sm:$0xff]
        %v6116 = vld [vmem:[%s2135 + $0x198] sm:$0xff]
        %v6117 = vld [vmem:[%s2135 + $0x1a8] sm:$0xff]
        %v6118 = vld [vmem:[%s2135 + $0x1d8] sm:$0xff]
        %v6119 = vld [vmem:[%s2135 + $0x1e8] sm:$0xff]
        %v6120 = vld [vmem:[%s2135 + $0x218] sm:$0xff]
        %v6121 = vld [vmem:[%s2135 + $0x228] sm:$0xff]
        %v6122 = vld [vmem:[%s2135 + $0x258] sm:$0xff]
        %v6123 = vld [vmem:[%s2135 + $0x268] sm:$0xff]
        %v6124 = vld [vmem:[%s2135 + $0x298] sm:$0xff]
        %v6125 = vld [vmem:[%s2135 + $0x2a8] sm:$0xff]
        %v6126 = vld [vmem:[%s2135 + $0x2d8] sm:$0xff]
        %v6127 = vld [vmem:[%s2135 + $0x2e8] sm:$0xff]
        %v6128 = vld [vmem:[%s2135 + $0x318] sm:$0xff]
        %v6129 = vld [vmem:[%s2135 + $0x328] sm:$0xff]
        %v6130 = vld [vmem:[%s2135 + $0x358] sm:$0xff]
        %v6131 = vld [vmem:[%s2135 + $0x368] sm:$0xff]
        %v6132 = vld [vmem:[%s2135 + $0x398] sm:$0xff]
        %v6133 = vld [vmem:[%s2135 + $0x3a8] sm:$0xff]
        %v6134 = vld [vmem:[%s2135 + $0x3d8] sm:$0xff]
        %v6135 = vld [vmem:[%s2135 + $0x3e8] sm:$0xff]
        %v6136 = vadd.f32 %v6072, %v6104
        %v6137 = vadd.f32 %v6073, %v6105
        %v6138 = vadd.f32 %v6074, %v6106
        %v6139 = vadd.f32 %v6075, %v6107
        %v6140 = vadd.f32 %v6076, %v6108
        %v6141 = vadd.f32 %v6077, %v6109
        %v6142 = vadd.f32 %v6078, %v6110
        %v6143 = vadd.f32 %v6079, %v6111
        %v6144 = vadd.f32 %v6080, %v6112
        %v6145 = vadd.f32 %v6081, %v6113
        %v6146 = vadd.f32 %v6082, %v6114
        %v6147 = vadd.f32 %v6083, %v6115
        %v6148 = vadd.f32 %v6084, %v6116
        %v6149 = vadd.f32 %v6085, %v6117
        %v6150 = vadd.f32 %v6086, %v6118
        %v6151 = vadd.f32 %v6087, %v6119
        %v6152 = vadd.f32 %v6088, %v6120
        %v6153 = vadd.f32 %v6089, %v6121
        %v6154 = vadd.f32 %v6090, %v6122
        %v6155 = vadd.f32 %v6091, %v6123
        %v6156 = vadd.f32 %v6092, %v6124
        %v6157 = vadd.f32 %v6093, %v6125
        %v6158 = vadd.f32 %v6094, %v6126
        %v6159 = vadd.f32 %v6095, %v6127
        %v6160 = vadd.f32 %v6096, %v6128
        %v6161 = vadd.f32 %v6097, %v6129
        %v6162 = vadd.f32 %v6098, %v6130
        %v6163 = vadd.f32 %v6099, %v6131
        %v6164 = vadd.f32 %v6100, %v6132
        %v6165 = vadd.f32 %v6101, %v6133
        %v6166 = vadd.f32 %v6102, %v6134
        %v6167 = vadd.f32 %v6103, %v6135
        %s6168 = scalar_lea.vmem %s2, 5
        %v6169 = vld [vmem:[%s6168] sm:$0x1]
        %v6171 = vperm.slane %v6169, 0
        %v6173 = vadd.f32 %v6136, %v6171
        %v6174 = vadd.f32 %v6137, %v6171
        %v6175 = vadd.f32 %v6138, %v6171
        %v6176 = vadd.f32 %v6139, %v6171
        %v6177 = vadd.f32 %v6140, %v6171
        %v6178 = vadd.f32 %v6141, %v6171
        %v6179 = vadd.f32 %v6142, %v6171
        %v6180 = vadd.f32 %v6143, %v6171
        %v6181 = vadd.f32 %v6144, %v6171
        %v6182 = vadd.f32 %v6145, %v6171
        %v6183 = vadd.f32 %v6146, %v6171
        %v6184 = vadd.f32 %v6147, %v6171
        %v6185 = vadd.f32 %v6148, %v6171
        %v6186 = vadd.f32 %v6149, %v6171
        %v6187 = vadd.f32 %v6150, %v6171
        %v6188 = vadd.f32 %v6151, %v6171
        %v6189 = vadd.f32 %v6152, %v6171
        %v6190 = vadd.f32 %v6153, %v6171
        %v6191 = vadd.f32 %v6154, %v6171
        %v6192 = vadd.f32 %v6155, %v6171
        %v6193 = vadd.f32 %v6156, %v6171
        %v6194 = vadd.f32 %v6157, %v6171
        %v6195 = vadd.f32 %v6158, %v6171
        %v6196 = vadd.f32 %v6159, %v6171
        %v6197 = vadd.f32 %v6160, %v6171
        %v6198 = vadd.f32 %v6161, %v6171
        %v6199 = vadd.f32 %v6162, %v6171
        %v6200 = vadd.f32 %v6163, %v6171
        %v6201 = vadd.f32 %v6164, %v6171
        %v6202 = vadd.f32 %v6165, %v6171
        %v6203 = vadd.f32 %v6166, %v6171
        %v6204 = vadd.f32 %v6167, %v6171
        %v6205 = vmax.f32 %v6173, 0.0
        %v6206 = vmax.f32 %v6174, 0.0
        %v6207 = vmax.f32 %v6175, 0.0
        %v6208 = vmax.f32 %v6176, 0.0
        %v6209 = vmax.f32 %v6177, 0.0
        %v6210 = vmax.f32 %v6178, 0.0
        %v6211 = vmax.f32 %v6179, 0.0
        %v6212 = vmax.f32 %v6180, 0.0
        %v6213 = vmax.f32 %v6181, 0.0
        %v6214 = vmax.f32 %v6182, 0.0
        %v6215 = vmax.f32 %v6183, 0.0
        %v6216 = vmax.f32 %v6184, 0.0
        %v6217 = vmax.f32 %v6185, 0.0
        %v6218 = vmax.f32 %v6186, 0.0
        %v6219 = vmax.f32 %v6187, 0.0
        %v6220 = vmax.f32 %v6188, 0.0
        %v6221 = vmax.f32 %v6189, 0.0
        %v6222 = vmax.f32 %v6190, 0.0
        %v6223 = vmax.f32 %v6191, 0.0
        %v6224 = vmax.f32 %v6192, 0.0
        %v6225 = vmax.f32 %v6193, 0.0
        %v6226 = vmax.f32 %v6194, 0.0
        %v6227 = vmax.f32 %v6195, 0.0
        %v6228 = vmax.f32 %v6196, 0.0
        %v6229 = vmax.f32 %v6197, 0.0
        %v6230 = vmax.f32 %v6198, 0.0
        %v6231 = vmax.f32 %v6199, 0.0
        %v6232 = vmax.f32 %v6200, 0.0
        %v6233 = vmax.f32 %v6201, 0.0
        %v6234 = vmax.f32 %v6202, 0.0
        %v6235 = vmax.f32 %v6203, 0.0
        %v6236 = vmax.f32 %v6204, 0.0
        %s6237 = scalar_lea.vmem %s1, 768
        %v6238 = vld [vmem:[%s6237] sm:$0xff]
        %v6239 = vld [vmem:[%s6237 + $0x8] sm:$0xff]
        %v6240 = vld [vmem:[%s6237 + $0x10] sm:$0xff]
        %v6241 = vld [vmem:[%s6237 + $0x18] sm:$0xff]
        %v6242 = vld [vmem:[%s6237 + $0x20] sm:$0xff]
        %v6243 = vld [vmem:[%s6237 + $0x28] sm:$0xff]
        %v6244 = vld [vmem:[%s6237 + $0x30] sm:$0xff]
        %v6245 = vld [vmem:[%s6237 + $0x38] sm:$0xff]
        %v6246 = vld [vmem:[%s6237 + $0x40] sm:$0xff]
        %v6247 = vld [vmem:[%s6237 + $0x48] sm:$0xff]
        %v6248 = vld [vmem:[%s6237 + $0x50] sm:$0xff]
        %v6249 = vld [vmem:[%s6237 + $0x58] sm:$0xff]
        %v6250 = vld [vmem:[%s6237 + $0x60] sm:$0xff]
        %v6251 = vld [vmem:[%s6237 + $0x68] sm:$0xff]
        %v6252 = vld [vmem:[%s6237 + $0x70] sm:$0xff]
        %v6253 = vld [vmem:[%s6237 + $0x78] sm:$0xff]
        %v6255 = vsel %vm170, %v6205, 0
        %v6258 = vsel %vm170, %v6206, 0
        %v6261 = vsel %vm170, %v6207, 0
        %v6264 = vsel %vm170, %v6208, 0
        %v6267 = vsel %vm170, %v6209, 0
        %v6270 = vsel %vm170, %v6210, 0
        %v6273 = vsel %vm170, %v6211, 0
        %v6276 = vsel %vm170, %v6212, 0
        %v6279 = vsel %vm170, %v6213, 0
        %v6282 = vsel %vm170, %v6214, 0
        %v6285 = vsel %vm170, %v6215, 0
        %v6288 = vsel %vm170, %v6216, 0
        %v6291 = vsel %vm170, %v6217, 0
        %v6294 = vsel %vm170, %v6218, 0
        %v6297 = vsel %vm170, %v6219, 0
        %v6300 = vsel %vm170, %v6220, 0
        %v6303 = vsel %vm170, %v6221, 0
        %v6306 = vsel %vm170, %v6222, 0
        %v6309 = vsel %vm170, %v6223, 0
        %v6312 = vsel %vm170, %v6224, 0
        %v6315 = vsel %vm170, %v6225, 0
        %v6318 = vsel %vm170, %v6226, 0
        %v6321 = vsel %vm170, %v6227, 0
        %v6324 = vsel %vm170, %v6228, 0
        %v6327 = vsel %vm170, %v6229, 0
        %v6330 = vsel %vm170, %v6230, 0
        %v6333 = vsel %vm170, %v6231, 0
        %v6336 = vsel %vm170, %v6232, 0
        %v6339 = vsel %vm170, %v6233, 0
        %v6342 = vsel %vm170, %v6234, 0
        %v6345 = vsel %vm170, %v6235, 0
        %v6348 = vsel %vm170, %v6236, 0
        %6350 = vmatpush.msra.mxu0 0.0
        %6351 = vmatpush.msra.mxu0 0.0
        %6352 = vmatpush.msra.mxu0 0.0
        %6353 = vmatpush.msra.mxu0 0.0
        %6354 = vmatpush.msra.mxu0 0.0
        %6355 = vmatpush.msra.mxu0 0.0
        %6356 = vmatpush.msra.mxu0 0.0
        %6357 = vmatpush.msra.mxu0 0.0
        %6358 = vmatpush.msra.mxu0 %v6252
        %6359 = vmatpush.msra.mxu0 %v6250
        %6360 = vmatpush.msra.mxu0 %v6248
        %6361 = vmatpush.msra.mxu0 %v6246
        %6362 = vmatpush.msra.mxu0 %v6244
        %6363 = vmatpush.msra.mxu0 %v6242
        %6364 = vmatpush.msra.mxu0 %v6240
        %6365 = vmatpush.msra.mxu0 %v6238
        %6366 = vmatmul.f32.gmra.mxu0 %v6255
        %v6367 = vpop.f32.mrf.mxu0
        %v6368 = vadd.f32 0.0, %v6367
        %6369 = vmatmul.f32.gmra.mxu0 %v6258
        %v6370 = vpop.f32.mrf.mxu0
        %v6371 = vadd.f32 0.0, %v6370
        %6372 = vmatmul.f32.gmra.mxu0 %v6261
        %v6373 = vpop.f32.mrf.mxu0
        %v6374 = vadd.f32 0.0, %v6373
        %6375 = vmatmul.f32.gmra.mxu0 %v6264
        %v6376 = vpop.f32.mrf.mxu0
        %v6377 = vadd.f32 0.0, %v6376
        %6378 = vmatmul.f32.gmra.mxu0 %v6267
        %v6379 = vpop.f32.mrf.mxu0
        %v6380 = vadd.f32 0.0, %v6379
        %6381 = vmatmul.f32.gmra.mxu0 %v6270
        %v6382 = vpop.f32.mrf.mxu0
        %v6383 = vadd.f32 0.0, %v6382
        %6384 = vmatmul.f32.gmra.mxu0 %v6273
        %v6385 = vpop.f32.mrf.mxu0
        %v6386 = vadd.f32 0.0, %v6385
        %6387 = vmatmul.f32.gmra.mxu0 %v6276
        %v6388 = vpop.f32.mrf.mxu0
        %v6389 = vadd.f32 0.0, %v6388
        %6390 = vmatmul.f32.gmra.mxu0 %v6279
        %v6391 = vpop.f32.mrf.mxu0
        %v6392 = vadd.f32 0.0, %v6391
        %6393 = vmatmul.f32.gmra.mxu0 %v6282
        %v6394 = vpop.f32.mrf.mxu0
        %v6395 = vadd.f32 0.0, %v6394
        %6396 = vmatmul.f32.gmra.mxu0 %v6285
        %v6397 = vpop.f32.mrf.mxu0
        %v6398 = vadd.f32 0.0, %v6397
        %6399 = vmatmul.f32.gmra.mxu0 %v6288
        %v6400 = vpop.f32.mrf.mxu0
        %v6401 = vadd.f32 0.0, %v6400
        %6402 = vmatmul.f32.gmra.mxu0 %v6291
        %v6403 = vpop.f32.mrf.mxu0
        %v6404 = vadd.f32 0.0, %v6403
        %6405 = vmatmul.f32.gmra.mxu0 %v6294
        %v6406 = vpop.f32.mrf.mxu0
        %v6407 = vadd.f32 0.0, %v6406
        %6408 = vmatmul.f32.gmra.mxu0 %v6297
        %v6409 = vpop.f32.mrf.mxu0
        %v6410 = vadd.f32 0.0, %v6409
        %6411 = vmatmul.f32.gmra.mxu0 %v6300
        %v6412 = vpop.f32.mrf.mxu0
        %v6413 = vadd.f32 0.0, %v6412
        %6414 = vmatmul.f32.gmra.mxu0 %v6303
        %v6415 = vpop.f32.mrf.mxu0
        %v6416 = vadd.f32 0.0, %v6415
        %6417 = vmatmul.f32.gmra.mxu0 %v6306
        %v6418 = vpop.f32.mrf.mxu0
        %v6419 = vadd.f32 0.0, %v6418
        %6420 = vmatmul.f32.gmra.mxu0 %v6309
        %v6421 = vpop.f32.mrf.mxu0
        %v6422 = vadd.f32 0.0, %v6421
        %6423 = vmatmul.f32.gmra.mxu0 %v6312
        %v6424 = vpop.f32.mrf.mxu0
        %v6425 = vadd.f32 0.0, %v6424
        %6426 = vmatmul.f32.gmra.mxu0 %v6315
        %v6427 = vpop.f32.mrf.mxu0
        %v6428 = vadd.f32 0.0, %v6427
        %6429 = vmatmul.f32.gmra.mxu0 %v6318
        %v6430 = vpop.f32.mrf.mxu0
        %v6431 = vadd.f32 0.0, %v6430
        %6432 = vmatmul.f32.gmra.mxu0 %v6321
        %v6433 = vpop.f32.mrf.mxu0
        %v6434 = vadd.f32 0.0, %v6433
        %6435 = vmatmul.f32.gmra.mxu0 %v6324
        %v6436 = vpop.f32.mrf.mxu0
        %v6437 = vadd.f32 0.0, %v6436
        %6438 = vmatmul.f32.gmra.mxu0 %v6327
        %v6439 = vpop.f32.mrf.mxu0
        %v6440 = vadd.f32 0.0, %v6439
        %6441 = vmatmul.f32.gmra.mxu0 %v6330
        %v6442 = vpop.f32.mrf.mxu0
        %v6443 = vadd.f32 0.0, %v6442
        %6444 = vmatmul.f32.gmra.mxu0 %v6333
        %v6445 = vpop.f32.mrf.mxu0
        %v6446 = vadd.f32 0.0, %v6445
        %6447 = vmatmul.f32.gmra.mxu0 %v6336
        %v6448 = vpop.f32.mrf.mxu0
        %v6449 = vadd.f32 0.0, %v6448
        %6450 = vmatmul.f32.gmra.mxu0 %v6339
        %v6451 = vpop.f32.mrf.mxu0
        %v6452 = vadd.f32 0.0, %v6451
        %6453 = vmatmul.f32.gmra.mxu0 %v6342
        %v6454 = vpop.f32.mrf.mxu0
        %v6455 = vadd.f32 0.0, %v6454
        %6456 = vmatmul.f32.gmra.mxu0 %v6345
        %v6457 = vpop.f32.mrf.mxu0
        %v6458 = vadd.f32 0.0, %v6457
        %6459 = vmatmul.f32.gmra.mxu0 %v6348
        %v6460 = vpop.f32.mrf.mxu0
        %v6461 = vadd.f32 0.0, %v6460
        %6462 = vdwg.mxu0
        %6463 = vmatpush.msra.mxu0 0.0
        %6464 = vmatpush.msra.mxu0 0.0
        %6465 = vmatpush.msra.mxu0 0.0
        %6466 = vmatpush.msra.mxu0 0.0
        %6467 = vmatpush.msra.mxu0 0.0
        %6468 = vmatpush.msra.mxu0 0.0
        %6469 = vmatpush.msra.mxu0 0.0
        %6470 = vmatpush.msra.mxu0 0.0
        %6471 = vmatpush.msra.mxu0 %v6253
        %6472 = vmatpush.msra.mxu0 %v6251
        %6473 = vmatpush.msra.mxu0 %v6249
        %6474 = vmatpush.msra.mxu0 %v6247
        %6475 = vmatpush.msra.mxu0 %v6245
        %6476 = vmatpush.msra.mxu0 %v6243
        %6477 = vmatpush.msra.mxu0 %v6241
        %6478 = vmatpush.msra.mxu0 %v6239
        %6479 = vmatmul.f32.gmra.mxu0 %v6255
        %v6480 = vpop.f32.mrf.mxu0
        %v6481 = vadd.f32 0.0, %v6480
        %6482 = vmatmul.f32.gmra.mxu0 %v6258
        %v6483 = vpop.f32.mrf.mxu0
        %v6484 = vadd.f32 0.0, %v6483
        %6485 = vmatmul.f32.gmra.mxu0 %v6261
        %v6486 = vpop.f32.mrf.mxu0
        %v6487 = vadd.f32 0.0, %v6486
        %6488 = vmatmul.f32.gmra.mxu0 %v6264
        %v6489 = vpop.f32.mrf.mxu0
        %v6490 = vadd.f32 0.0, %v6489
        %6491 = vmatmul.f32.gmra.mxu0 %v6267
        %v6492 = vpop.f32.mrf.mxu0
        %v6493 = vadd.f32 0.0, %v6492
        %6494 = vmatmul.f32.gmra.mxu0 %v6270
        %v6495 = vpop.f32.mrf.mxu0
        %v6496 = vadd.f32 0.0, %v6495
        %6497 = vmatmul.f32.gmra.mxu0 %v6273
        %v6498 = vpop.f32.mrf.mxu0
        %v6499 = vadd.f32 0.0, %v6498
        %6500 = vmatmul.f32.gmra.mxu0 %v6276
        %v6501 = vpop.f32.mrf.mxu0
        %v6502 = vadd.f32 0.0, %v6501
        %6503 = vmatmul.f32.gmra.mxu0 %v6279
        %v6504 = vpop.f32.mrf.mxu0
        %v6505 = vadd.f32 0.0, %v6504
        %6506 = vmatmul.f32.gmra.mxu0 %v6282
        %v6507 = vpop.f32.mrf.mxu0
        %v6508 = vadd.f32 0.0, %v6507
        %6509 = vmatmul.f32.gmra.mxu0 %v6285
        %v6510 = vpop.f32.mrf.mxu0
        %v6511 = vadd.f32 0.0, %v6510
        %6512 = vmatmul.f32.gmra.mxu0 %v6288
        %v6513 = vpop.f32.mrf.mxu0
        %v6514 = vadd.f32 0.0, %v6513
        %6515 = vmatmul.f32.gmra.mxu0 %v6291
        %v6516 = vpop.f32.mrf.mxu0
        %v6517 = vadd.f32 0.0, %v6516
        %6518 = vmatmul.f32.gmra.mxu0 %v6294
        %v6519 = vpop.f32.mrf.mxu0
        %v6520 = vadd.f32 0.0, %v6519
        %6521 = vmatmul.f32.gmra.mxu0 %v6297
        %v6522 = vpop.f32.mrf.mxu0
        %v6523 = vadd.f32 0.0, %v6522
        %6524 = vmatmul.f32.gmra.mxu0 %v6300
        %v6525 = vpop.f32.mrf.mxu0
        %v6526 = vadd.f32 0.0, %v6525
        %6527 = vmatmul.f32.gmra.mxu0 %v6303
        %v6528 = vpop.f32.mrf.mxu0
        %v6529 = vadd.f32 0.0, %v6528
        %6530 = vmatmul.f32.gmra.mxu0 %v6306
        %v6531 = vpop.f32.mrf.mxu0
        %v6532 = vadd.f32 0.0, %v6531
        %6533 = vmatmul.f32.gmra.mxu0 %v6309
        %v6534 = vpop.f32.mrf.mxu0
        %v6535 = vadd.f32 0.0, %v6534
        %6536 = vmatmul.f32.gmra.mxu0 %v6312
        %v6537 = vpop.f32.mrf.mxu0
        %v6538 = vadd.f32 0.0, %v6537
        %6539 = vmatmul.f32.gmra.mxu0 %v6315
        %v6540 = vpop.f32.mrf.mxu0
        %v6541 = vadd.f32 0.0, %v6540
        %6542 = vmatmul.f32.gmra.mxu0 %v6318
        %v6543 = vpop.f32.mrf.mxu0
        %v6544 = vadd.f32 0.0, %v6543
        %6545 = vmatmul.f32.gmra.mxu0 %v6321
        %v6546 = vpop.f32.mrf.mxu0
        %v6547 = vadd.f32 0.0, %v6546
        %6548 = vmatmul.f32.gmra.mxu0 %v6324
        %v6549 = vpop.f32.mrf.mxu0
        %v6550 = vadd.f32 0.0, %v6549
        %6551 = vmatmul.f32.gmra.mxu0 %v6327
        %v6552 = vpop.f32.mrf.mxu0
        %v6553 = vadd.f32 0.0, %v6552
        %6554 = vmatmul.f32.gmra.mxu0 %v6330
        %v6555 = vpop.f32.mrf.mxu0
        %v6556 = vadd.f32 0.0, %v6555
        %6557 = vmatmul.f32.gmra.mxu0 %v6333
        %v6558 = vpop.f32.mrf.mxu0
        %v6559 = vadd.f32 0.0, %v6558
        %6560 = vmatmul.f32.gmra.mxu0 %v6336
        %v6561 = vpop.f32.mrf.mxu0
        %v6562 = vadd.f32 0.0, %v6561
        %6563 = vmatmul.f32.gmra.mxu0 %v6339
        %v6564 = vpop.f32.mrf.mxu0
        %v6565 = vadd.f32 0.0, %v6564
        %6566 = vmatmul.f32.gmra.mxu0 %v6342
        %v6567 = vpop.f32.mrf.mxu0
        %v6568 = vadd.f32 0.0, %v6567
        %6569 = vmatmul.f32.gmra.mxu0 %v6345
        %v6570 = vpop.f32.mrf.mxu0
        %v6571 = vadd.f32 0.0, %v6570
        %6572 = vmatmul.f32.gmra.mxu0 %v6348
        %v6573 = vpop.f32.mrf.mxu0
        %v6574 = vadd.f32 0.0, %v6573
        %6575 = vdwg.mxu0
        %6576 = vst [vmem:[%s684 + $0x10] sm:$0xff] %v6368
        %6577 = vst.msk [vmem:[%s684 + $0x18] sm:$0xff] %vm170, %v6481
        %6578 = vst [vmem:[%s684 + $0x20] sm:$0xff] %v6371
        %6579 = vst.msk [vmem:[%s684 + $0x28] sm:$0xff] %vm170, %v6484
        %6580 = vst [vmem:[%s684 + $0x50] sm:$0xff] %v6374
        %6581 = vst.msk [vmem:[%s684 + $0x58] sm:$0xff] %vm170, %v6487
        %6582 = vst [vmem:[%s684 + $0x60] sm:$0xff] %v6377
        %6583 = vst.msk [vmem:[%s684 + $0x68] sm:$0xff] %vm170, %v6490
        %6584 = vst [vmem:[%s684 + $0x90] sm:$0xff] %v6380
        %6585 = vst.msk [vmem:[%s684 + $0x98] sm:$0xff] %vm170, %v6493
        %6586 = vst [vmem:[%s684 + $0xa0] sm:$0xff] %v6383
        %6587 = vst.msk [vmem:[%s684 + $0xa8] sm:$0xff] %vm170, %v6496
        %6588 = vst [vmem:[%s684 + $0xd0] sm:$0xff] %v6386
        %6589 = vst.msk [vmem:[%s684 + $0xd8] sm:$0xff] %vm170, %v6499
        %6590 = vst [vmem:[%s684 + $0xe0] sm:$0xff] %v6389
        %6591 = vst.msk [vmem:[%s684 + $0xe8] sm:$0xff] %vm170, %v6502
        %6592 = vst [vmem:[%s684 + $0x110] sm:$0xff] %v6392
        %6593 = vst.msk [vmem:[%s684 + $0x118] sm:$0xff] %vm170, %v6505
        %6594 = vst [vmem:[%s684 + $0x120] sm:$0xff] %v6395
        %6595 = vst.msk [vmem:[%s684 + $0x128] sm:$0xff] %vm170, %v6508
        %6596 = vst [vmem:[%s684 + $0x150] sm:$0xff] %v6398
        %6597 = vst.msk [vmem:[%s684 + $0x158] sm:$0xff] %vm170, %v6511
        %6598 = vst [vmem:[%s684 + $0x160] sm:$0xff] %v6401
        %6599 = vst.msk [vmem:[%s684 + $0x168] sm:$0xff] %vm170, %v6514
        %6600 = vst [vmem:[%s684 + $0x190] sm:$0xff] %v6404
        %6601 = vst.msk [vmem:[%s684 + $0x198] sm:$0xff] %vm170, %v6517
        %6602 = vst [vmem:[%s684 + $0x1a0] sm:$0xff] %v6407
        %6603 = vst.msk [vmem:[%s684 + $0x1a8] sm:$0xff] %vm170, %v6520
        %6604 = vst [vmem:[%s684 + $0x1d0] sm:$0xff] %v6410
        %6605 = vst.msk [vmem:[%s684 + $0x1d8] sm:$0xff] %vm170, %v6523
        %6606 = vst [vmem:[%s684 + $0x1e0] sm:$0xff] %v6413
        %6607 = vst.msk [vmem:[%s684 + $0x1e8] sm:$0xff] %vm170, %v6526
        %6608 = vst [vmem:[%s684 + $0x210] sm:$0xff] %v6416
        %6609 = vst.msk [vmem:[%s684 + $0x218] sm:$0xff] %vm170, %v6529
        %6610 = vst [vmem:[%s684 + $0x220] sm:$0xff] %v6419
        %6611 = vst.msk [vmem:[%s684 + $0x228] sm:$0xff] %vm170, %v6532
        %6612 = vst [vmem:[%s684 + $0x250] sm:$0xff] %v6422
        %6613 = vst.msk [vmem:[%s684 + $0x258] sm:$0xff] %vm170, %v6535
        %6614 = vst [vmem:[%s684 + $0x260] sm:$0xff] %v6425
        %6615 = vst.msk [vmem:[%s684 + $0x268] sm:$0xff] %vm170, %v6538
        %6616 = vst [vmem:[%s684 + $0x290] sm:$0xff] %v6428
        %6617 = vst.msk [vmem:[%s684 + $0x298] sm:$0xff] %vm170, %v6541
        %6618 = vst [vmem:[%s684 + $0x2a0] sm:$0xff] %v6431
        %6619 = vst.msk [vmem:[%s684 + $0x2a8] sm:$0xff] %vm170, %v6544
        %6620 = vst [vmem:[%s684 + $0x2d0] sm:$0xff] %v6434
        %6621 = vst.msk [vmem:[%s684 + $0x2d8] sm:$0xff] %vm170, %v6547
        %6622 = vst [vmem:[%s684 + $0x2e0] sm:$0xff] %v6437
        %6623 = vst.msk [vmem:[%s684 + $0x2e8] sm:$0xff] %vm170, %v6550
        %6624 = vst [vmem:[%s684 + $0x310] sm:$0xff] %v6440
        %6625 = vst.msk [vmem:[%s684 + $0x318] sm:$0xff] %vm170, %v6553
        %6626 = vst [vmem:[%s684 + $0x320] sm:$0xff] %v6443
        %6627 = vst.msk [vmem:[%s684 + $0x328] sm:$0xff] %vm170, %v6556
        %6628 = vst [vmem:[%s684 + $0x350] sm:$0xff] %v6446
        %6629 = vst.msk [vmem:[%s684 + $0x358] sm:$0xff] %vm170, %v6559
        %6630 = vst [vmem:[%s684 + $0x360] sm:$0xff] %v6449
        %6631 = vst.msk [vmem:[%s684 + $0x368] sm:$0xff] %vm170, %v6562
        %6632 = vst [vmem:[%s684 + $0x390] sm:$0xff] %v6452
        %6633 = vst.msk [vmem:[%s684 + $0x398] sm:$0xff] %vm170, %v6565
        %6634 = vst [vmem:[%s684 + $0x3a0] sm:$0xff] %v6455
        %6635 = vst.msk [vmem:[%s684 + $0x3a8] sm:$0xff] %vm170, %v6568
        %6636 = vst [vmem:[%s684 + $0x3d0] sm:$0xff] %v6458
        %6637 = vst.msk [vmem:[%s684 + $0x3d8] sm:$0xff] %vm170, %v6571
        %6638 = vst [vmem:[%s684 + $0x3e0] sm:$0xff] %v6461
        %6639 = vst.msk [vmem:[%s684 + $0x3e8] sm:$0xff] %vm170, %v6574
        %v6640 = vld [vmem:[%s684] sm:$0x80]
        %v6641 = vld [vmem:[%s684 + $0x10] sm:$0xff]
        %v6642 = vld [vmem:[%s684 + $0x20] sm:$0x7f]
        %v6643 = vld [vmem:[%s684 + $0x40] sm:$0x80]
        %v6644 = vld [vmem:[%s684 + $0x50] sm:$0xff]
        %v6645 = vld [vmem:[%s684 + $0x60] sm:$0x7f]
        %v6646 = vld [vmem:[%s684 + $0x80] sm:$0x80]
        %v6647 = vld [vmem:[%s684 + $0x90] sm:$0xff]
        %v6648 = vld [vmem:[%s684 + $0xa0] sm:$0x7f]
        %v6649 = vld [vmem:[%s684 + $0xc0] sm:$0x80]
        %v6650 = vld [vmem:[%s684 + $0xd0] sm:$0xff]
        %v6651 = vld [vmem:[%s684 + $0xe0] sm:$0x7f]
        %v6652 = vld [vmem:[%s684 + $0x100] sm:$0x80]
        %v6653 = vld [vmem:[%s684 + $0x110] sm:$0xff]
        %v6654 = vld [vmem:[%s684 + $0x120] sm:$0x7f]
        %v6655 = vld [vmem:[%s684 + $0x140] sm:$0x80]
        %v6656 = vld [vmem:[%s684 + $0x150] sm:$0xff]
        %v6657 = vld [vmem:[%s684 + $0x160] sm:$0x7f]
        %v6658 = vld [vmem:[%s684 + $0x180] sm:$0x80]
        %v6659 = vld [vmem:[%s684 + $0x190] sm:$0xff]
        %v6660 = vld [vmem:[%s684 + $0x1a0] sm:$0x7f]
        %v6661 = vld [vmem:[%s684 + $0x1c0] sm:$0x80]
        %v6662 = vld [vmem:[%s684 + $0x1d0] sm:$0xff]
        %v6663 = vld [vmem:[%s684 + $0x1e0] sm:$0x7f]
        %v6664 = vld [vmem:[%s684 + $0x200] sm:$0x80]
        %v6665 = vld [vmem:[%s684 + $0x210] sm:$0xff]
        %v6666 = vld [vmem:[%s684 + $0x220] sm:$0x7f]
        %v6667 = vld [vmem:[%s684 + $0x240] sm:$0x80]
        %v6668 = vld [vmem:[%s684 + $0x250] sm:$0xff]
        %v6669 = vld [vmem:[%s684 + $0x260] sm:$0x7f]
        %v6670 = vld [vmem:[%s684 + $0x280] sm:$0x80]
        %v6671 = vld [vmem:[%s684 + $0x290] sm:$0xff]
        %v6672 = vld [vmem:[%s684 + $0x2a0] sm:$0x7f]
        %v6673 = vld [vmem:[%s684 + $0x2c0] sm:$0x80]
        %v6674 = vld [vmem:[%s684 + $0x2d0] sm:$0xff]
        %v6675 = vld [vmem:[%s684 + $0x2e0] sm:$0x7f]
        %v6676 = vld [vmem:[%s684 + $0x300] sm:$0x80]
        %v6677 = vld [vmem:[%s684 + $0x310] sm:$0xff]
        %v6678 = vld [vmem:[%s684 + $0x320] sm:$0x7f]
        %v6679 = vld [vmem:[%s684 + $0x340] sm:$0x80]
        %v6680 = vld [vmem:[%s684 + $0x350] sm:$0xff]
        %v6681 = vld [vmem:[%s684 + $0x360] sm:$0x7f]
        %v6682 = vld [vmem:[%s684 + $0x380] sm:$0x80]
        %v6683 = vld [vmem:[%s684 + $0x390] sm:$0xff]
        %v6684 = vld [vmem:[%s684 + $0x3a0] sm:$0x7f]
        %v6685 = vld [vmem:[%s684 + $0x3c0] sm:$0x80]
        %v6686 = vld [vmem:[%s684 + $0x3d0] sm:$0xff]
        %v6687 = vld [vmem:[%s684 + $0x3e0] sm:$0x7f]
        %v6688 = vld [vmem:[%s684 + $0x20] sm:$0xff]
        %v6689 = vld [vmem:[%s684 + $0x60] sm:$0xff]
        %v6690 = vld [vmem:[%s684 + $0xa0] sm:$0xff]
        %v6691 = vld [vmem:[%s684 + $0xe0] sm:$0xff]
        %v6692 = vld [vmem:[%s684 + $0x120] sm:$0xff]
        %v6693 = vld [vmem:[%s684 + $0x160] sm:$0xff]
        %v6694 = vld [vmem:[%s684 + $0x1a0] sm:$0xff]
        %v6695 = vld [vmem:[%s684 + $0x1e0] sm:$0xff]
        %v6696 = vld [vmem:[%s684 + $0x220] sm:$0xff]
        %v6697 = vld [vmem:[%s684 + $0x260] sm:$0xff]
        %v6698 = vld [vmem:[%s684 + $0x2a0] sm:$0xff]
        %v6699 = vld [vmem:[%s684 + $0x2e0] sm:$0xff]
        %v6700 = vld [vmem:[%s684 + $0x320] sm:$0xff]
        %v6701 = vld [vmem:[%s684 + $0x360] sm:$0xff]
        %v6702 = vld [vmem:[%s684 + $0x3a0] sm:$0xff]
        %v6703 = vld [vmem:[%s684 + $0x3e0] sm:$0xff]
        %v6736 = vrot.slane %v6641, 1
        %v6737 = vrot.slane %v6688, 1
        %v6738 = vsel %vm845, %v6736, %v6737
        %v6739 = vrot.slane %v6644, 1
        %v6740 = vrot.slane %v6689, 1
        %v6741 = vsel %vm845, %v6739, %v6740
        %v6742 = vrot.slane %v6647, 1
        %v6743 = vrot.slane %v6690, 1
        %v6744 = vsel %vm845, %v6742, %v6743
        %v6745 = vrot.slane %v6650, 1
        %v6746 = vrot.slane %v6691, 1
        %v6747 = vsel %vm845, %v6745, %v6746
        %v6748 = vrot.slane %v6653, 1
        %v6749 = vrot.slane %v6692, 1
        %v6750 = vsel %vm845, %v6748, %v6749
        %v6751 = vrot.slane %v6656, 1
        %v6752 = vrot.slane %v6693, 1
        %v6753 = vsel %vm845, %v6751, %v6752
        %v6754 = vrot.slane %v6659, 1
        %v6755 = vrot.slane %v6694, 1
        %v6756 = vsel %vm845, %v6754, %v6755
        %v6757 = vrot.slane %v6662, 1
        %v6758 = vrot.slane %v6695, 1
        %v6759 = vsel %vm845, %v6757, %v6758
        %v6760 = vrot.slane %v6665, 1
        %v6761 = vrot.slane %v6696, 1
        %v6762 = vsel %vm845, %v6760, %v6761
        %v6763 = vrot.slane %v6668, 1
        %v6764 = vrot.slane %v6697, 1
        %v6765 = vsel %vm845, %v6763, %v6764
        %v6766 = vrot.slane %v6671, 1
        %v6767 = vrot.slane %v6698, 1
        %v6768 = vsel %vm845, %v6766, %v6767
        %v6769 = vrot.slane %v6674, 1
        %v6770 = vrot.slane %v6699, 1
        %v6771 = vsel %vm845, %v6769, %v6770
        %v6772 = vrot.slane %v6677, 1
        %v6773 = vrot.slane %v6700, 1
        %v6774 = vsel %vm845, %v6772, %v6773
        %v6775 = vrot.slane %v6680, 1
        %v6776 = vrot.slane %v6701, 1
        %v6777 = vsel %vm845, %v6775, %v6776
        %v6778 = vrot.slane %v6683, 1
        %v6779 = vrot.slane %v6702, 1
        %v6780 = vsel %vm845, %v6778, %v6779
        %v6781 = vrot.slane %v6686, 1
        %v6782 = vrot.slane %v6703, 1
        %v6783 = vsel %vm845, %v6781, %v6782
        %6784 = vrot.lane.b32.xlu0 %v6736, 64
        %v6785 = vpop.permute.xlu0 %6784
        %6786 = vrot.lane.b32.xlu0 %v6738, 64
        %v6787 = vpop.permute.xlu0 %6786
        %6788 = vrot.lane.b32.xlu0 %v6737, 64
        %v6789 = vpop.permute.xlu0 %6788
        %6790 = vrot.lane.b32.xlu0 %v6739, 64
        %v6791 = vpop.permute.xlu0 %6790
        %6792 = vrot.lane.b32.xlu0 %v6741, 64
        %v6793 = vpop.permute.xlu0 %6792
        %6794 = vrot.lane.b32.xlu0 %v6740, 64
        %v6795 = vpop.permute.xlu0 %6794
        %6796 = vrot.lane.b32.xlu0 %v6742, 64
        %v6797 = vpop.permute.xlu0 %6796
        %6798 = vrot.lane.b32.xlu0 %v6744, 64
        %v6799 = vpop.permute.xlu0 %6798
        %6800 = vrot.lane.b32.xlu0 %v6743, 64
        %v6801 = vpop.permute.xlu0 %6800
        %6802 = vrot.lane.b32.xlu0 %v6745, 64
        %v6803 = vpop.permute.xlu0 %6802
        %6804 = vrot.lane.b32.xlu0 %v6747, 64
        %v6805 = vpop.permute.xlu0 %6804
        %6806 = vrot.lane.b32.xlu0 %v6746, 64
        %v6807 = vpop.permute.xlu0 %6806
        %6808 = vrot.lane.b32.xlu0 %v6748, 64
        %v6809 = vpop.permute.xlu0 %6808
        %6810 = vrot.lane.b32.xlu0 %v6750, 64
        %v6811 = vpop.permute.xlu0 %6810
        %6812 = vrot.lane.b32.xlu0 %v6749, 64
        %v6813 = vpop.permute.xlu0 %6812
        %6814 = vrot.lane.b32.xlu0 %v6751, 64
        %v6815 = vpop.permute.xlu0 %6814
        %6816 = vrot.lane.b32.xlu0 %v6753, 64
        %v6817 = vpop.permute.xlu0 %6816
        %6818 = vrot.lane.b32.xlu0 %v6752, 64
        %v6819 = vpop.permute.xlu0 %6818
        %6820 = vrot.lane.b32.xlu0 %v6754, 64
        %v6821 = vpop.permute.xlu0 %6820
        %6822 = vrot.lane.b32.xlu0 %v6756, 64
        %v6823 = vpop.permute.xlu0 %6822
        %6824 = vrot.lane.b32.xlu0 %v6755, 64
        %v6825 = vpop.permute.xlu0 %6824
        %6826 = vrot.lane.b32.xlu0 %v6757, 64
        %v6827 = vpop.permute.xlu0 %6826
        %6828 = vrot.lane.b32.xlu0 %v6759, 64
        %v6829 = vpop.permute.xlu0 %6828
        %6830 = vrot.lane.b32.xlu0 %v6758, 64
        %v6831 = vpop.permute.xlu0 %6830
        %6832 = vrot.lane.b32.xlu0 %v6760, 64
        %v6833 = vpop.permute.xlu0 %6832
        %6834 = vrot.lane.b32.xlu0 %v6762, 64
        %v6835 = vpop.permute.xlu0 %6834
        %6836 = vrot.lane.b32.xlu0 %v6761, 64
        %v6837 = vpop.permute.xlu0 %6836
        %6838 = vrot.lane.b32.xlu0 %v6763, 64
        %v6839 = vpop.permute.xlu0 %6838
        %6840 = vrot.lane.b32.xlu0 %v6765, 64
        %v6841 = vpop.permute.xlu0 %6840
        %6842 = vrot.lane.b32.xlu0 %v6764, 64
        %v6843 = vpop.permute.xlu0 %6842
        %6844 = vrot.lane.b32.xlu0 %v6766, 64
        %v6845 = vpop.permute.xlu0 %6844
        %6846 = vrot.lane.b32.xlu0 %v6768, 64
        %v6847 = vpop.permute.xlu0 %6846
        %6848 = vrot.lane.b32.xlu0 %v6767, 64
        %v6849 = vpop.permute.xlu0 %6848
        %6850 = vrot.lane.b32.xlu0 %v6769, 64
        %v6851 = vpop.permute.xlu0 %6850
        %6852 = vrot.lane.b32.xlu0 %v6771, 64
        %v6853 = vpop.permute.xlu0 %6852
        %6854 = vrot.lane.b32.xlu0 %v6770, 64
        %v6855 = vpop.permute.xlu0 %6854
        %6856 = vrot.lane.b32.xlu0 %v6772, 64
        %v6857 = vpop.permute.xlu0 %6856
        %6858 = vrot.lane.b32.xlu0 %v6774, 64
        %v6859 = vpop.permute.xlu0 %6858
        %6860 = vrot.lane.b32.xlu0 %v6773, 64
        %v6861 = vpop.permute.xlu0 %6860
        %6862 = vrot.lane.b32.xlu0 %v6775, 64
        %v6863 = vpop.permute.xlu0 %6862
        %6864 = vrot.lane.b32.xlu0 %v6777, 64
        %v6865 = vpop.permute.xlu0 %6864
        %6866 = vrot.lane.b32.xlu0 %v6776, 64
        %v6867 = vpop.permute.xlu0 %6866
        %6868 = vrot.lane.b32.xlu0 %v6778, 64
        %v6869 = vpop.permute.xlu0 %6868
        %6870 = vrot.lane.b32.xlu0 %v6780, 64
        %v6871 = vpop.permute.xlu0 %6870
        %6872 = vrot.lane.b32.xlu0 %v6779, 64
        %v6873 = vpop.permute.xlu0 %6872
        %6874 = vrot.lane.b32.xlu0 %v6781, 64
        %v6875 = vpop.permute.xlu0 %6874
        %6876 = vrot.lane.b32.xlu0 %v6783, 64
        %v6877 = vpop.permute.xlu0 %6876
        %6878 = vrot.lane.b32.xlu0 %v6782, 64
        %v6879 = vpop.permute.xlu0 %6878
        %v6928 = vadd.f32 %v6640, %v6785
        %v6929 = vadd.f32 %v6641, %v6787
        %v6930 = vadd.f32 %v6642, %v6789
        %v6931 = vadd.f32 %v6643, %v6791
        %v6932 = vadd.f32 %v6644, %v6793
        %v6933 = vadd.f32 %v6645, %v6795
        %v6934 = vadd.f32 %v6646, %v6797
        %v6935 = vadd.f32 %v6647, %v6799
        %v6936 = vadd.f32 %v6648, %v6801
        %v6937 = vadd.f32 %v6649, %v6803
        %v6938 = vadd.f32 %v6650, %v6805
        %v6939 = vadd.f32 %v6651, %v6807
        %v6940 = vadd.f32 %v6652, %v6809
        %v6941 = vadd.f32 %v6653, %v6811
        %v6942 = vadd.f32 %v6654, %v6813
        %v6943 = vadd.f32 %v6655, %v6815
        %v6944 = vadd.f32 %v6656, %v6817
        %v6945 = vadd.f32 %v6657, %v6819
        %v6946 = vadd.f32 %v6658, %v6821
        %v6947 = vadd.f32 %v6659, %v6823
        %v6948 = vadd.f32 %v6660, %v6825
        %v6949 = vadd.f32 %v6661, %v6827
        %v6950 = vadd.f32 %v6662, %v6829
        %v6951 = vadd.f32 %v6663, %v6831
        %v6952 = vadd.f32 %v6664, %v6833
        %v6953 = vadd.f32 %v6665, %v6835
        %v6954 = vadd.f32 %v6666, %v6837
        %v6955 = vadd.f32 %v6667, %v6839
        %v6956 = vadd.f32 %v6668, %v6841
        %v6957 = vadd.f32 %v6669, %v6843
        %v6958 = vadd.f32 %v6670, %v6845
        %v6959 = vadd.f32 %v6671, %v6847
        %v6960 = vadd.f32 %v6672, %v6849
        %v6961 = vadd.f32 %v6673, %v6851
        %v6962 = vadd.f32 %v6674, %v6853
        %v6963 = vadd.f32 %v6675, %v6855
        %v6964 = vadd.f32 %v6676, %v6857
        %v6965 = vadd.f32 %v6677, %v6859
        %v6966 = vadd.f32 %v6678, %v6861
        %v6967 = vadd.f32 %v6679, %v6863
        %v6968 = vadd.f32 %v6680, %v6865
        %v6969 = vadd.f32 %v6681, %v6867
        %v6970 = vadd.f32 %v6682, %v6869
        %v6971 = vadd.f32 %v6683, %v6871
        %v6972 = vadd.f32 %v6684, %v6873
        %v6973 = vadd.f32 %v6685, %v6875
        %v6974 = vadd.f32 %v6686, %v6877
        %v6975 = vadd.f32 %v6687, %v6879
        %v6976 = vld [vmem:[%s684 + $0x18] sm:$0xfe]
        %v6977 = vld [vmem:[%s684 + $0x28] sm:$0xff]
        %v6978 = vld [vmem:[%s684 + $0x38] sm:$0x1]
        %v6979 = vld [vmem:[%s684 + $0x58] sm:$0xfe]
        %v6980 = vld [vmem:[%s684 + $0x68] sm:$0xff]
        %v6981 = vld [vmem:[%s684 + $0x78] sm:$0x1]
        %v6982 = vld [vmem:[%s684 + $0x98] sm:$0xfe]
        %v6983 = vld [vmem:[%s684 + $0xa8] sm:$0xff]
        %v6984 = vld [vmem:[%s684 + $0xb8] sm:$0x1]
        %v6985 = vld [vmem:[%s684 + $0xd8] sm:$0xfe]
        %v6986 = vld [vmem:[%s684 + $0xe8] sm:$0xff]
        %v6987 = vld [vmem:[%s684 + $0xf8] sm:$0x1]
        %v6988 = vld [vmem:[%s684 + $0x118] sm:$0xfe]
        %v6989 = vld [vmem:[%s684 + $0x128] sm:$0xff]
        %v6990 = vld [vmem:[%s684 + $0x138] sm:$0x1]
        %v6991 = vld [vmem:[%s684 + $0x158] sm:$0xfe]
        %v6992 = vld [vmem:[%s684 + $0x168] sm:$0xff]
        %v6993 = vld [vmem:[%s684 + $0x178] sm:$0x1]
        %v6994 = vld [vmem:[%s684 + $0x198] sm:$0xfe]
        %v6995 = vld [vmem:[%s684 + $0x1a8] sm:$0xff]
        %v6996 = vld [vmem:[%s684 + $0x1b8] sm:$0x1]
        %v6997 = vld [vmem:[%s684 + $0x1d8] sm:$0xfe]
        %v6998 = vld [vmem:[%s684 + $0x1e8] sm:$0xff]
        %v6999 = vld [vmem:[%s684 + $0x1f8] sm:$0x1]
        %v7000 = vld [vmem:[%s684 + $0x218] sm:$0xfe]
        %v7001 = vld [vmem:[%s684 + $0x228] sm:$0xff]
        %v7002 = vld [vmem:[%s684 + $0x238] sm:$0x1]
        %v7003 = vld [vmem:[%s684 + $0x258] sm:$0xfe]
        %v7004 = vld [vmem:[%s684 + $0x268] sm:$0xff]
        %v7005 = vld [vmem:[%s684 + $0x278] sm:$0x1]
        %v7006 = vld [vmem:[%s684 + $0x298] sm:$0xfe]
        %v7007 = vld [vmem:[%s684 + $0x2a8] sm:$0xff]
        %v7008 = vld [vmem:[%s684 + $0x2b8] sm:$0x1]
        %v7009 = vld [vmem:[%s684 + $0x2d8] sm:$0xfe]
        %v7010 = vld [vmem:[%s684 + $0x2e8] sm:$0xff]
        %v7011 = vld [vmem:[%s684 + $0x2f8] sm:$0x1]
        %v7012 = vld [vmem:[%s684 + $0x318] sm:$0xfe]
        %v7013 = vld [vmem:[%s684 + $0x328] sm:$0xff]
        %v7014 = vld [vmem:[%s684 + $0x338] sm:$0x1]
        %v7015 = vld [vmem:[%s684 + $0x358] sm:$0xfe]
        %v7016 = vld [vmem:[%s684 + $0x368] sm:$0xff]
        %v7017 = vld [vmem:[%s684 + $0x378] sm:$0x1]
        %v7018 = vld [vmem:[%s684 + $0x398] sm:$0xfe]
        %v7019 = vld [vmem:[%s684 + $0x3a8] sm:$0xff]
        %v7020 = vld [vmem:[%s684 + $0x3b8] sm:$0x1]
        %v7021 = vld [vmem:[%s684 + $0x3d8] sm:$0xfe]
        %v7022 = vld [vmem:[%s684 + $0x3e8] sm:$0xff]
        %v7023 = vld [vmem:[%s684 + $0x3f8] sm:$0x1]
        %v7072 = vrot.slane %v6976, 2
        %v7073 = vrot.slane %v6977, 2
        %v7074 = vsel %vm1182, %v7072, %v7073
        %v7075 = vrot.slane %v6978, 2
        %v7076 = vsel %vm1182, %v7073, %v7075
        %v7077 = vrot.slane %v6979, 2
        %v7078 = vrot.slane %v6980, 2
        %v7079 = vsel %vm1182, %v7077, %v7078
        %v7080 = vrot.slane %v6981, 2
        %v7081 = vsel %vm1182, %v7078, %v7080
        %v7082 = vrot.slane %v6982, 2
        %v7083 = vrot.slane %v6983, 2
        %v7084 = vsel %vm1182, %v7082, %v7083
        %v7085 = vrot.slane %v6984, 2
        %v7086 = vsel %vm1182, %v7083, %v7085
        %v7087 = vrot.slane %v6985, 2
        %v7088 = vrot.slane %v6986, 2
        %v7089 = vsel %vm1182, %v7087, %v7088
        %v7090 = vrot.slane %v6987, 2
        %v7091 = vsel %vm1182, %v7088, %v7090
        %v7092 = vrot.slane %v6988, 2
        %v7093 = vrot.slane %v6989, 2
        %v7094 = vsel %vm1182, %v7092, %v7093
        %v7095 = vrot.slane %v6990, 2
        %v7096 = vsel %vm1182, %v7093, %v7095
        %v7097 = vrot.slane %v6991, 2
        %v7098 = vrot.slane %v6992, 2
        %v7099 = vsel %vm1182, %v7097, %v7098
        %v7100 = vrot.slane %v6993, 2
        %v7101 = vsel %vm1182, %v7098, %v7100
        %v7102 = vrot.slane %v6994, 2
        %v7103 = vrot.slane %v6995, 2
        %v7104 = vsel %vm1182, %v7102, %v7103
        %v7105 = vrot.slane %v6996, 2
        %v7106 = vsel %vm1182, %v7103, %v7105
        %v7107 = vrot.slane %v6997, 2
        %v7108 = vrot.slane %v6998, 2
        %v7109 = vsel %vm1182, %v7107, %v7108
        %v7110 = vrot.slane %v6999, 2
        %v7111 = vsel %vm1182, %v7108, %v7110
        %v7112 = vrot.slane %v7000, 2
        %v7113 = vrot.slane %v7001, 2
        %v7114 = vsel %vm1182, %v7112, %v7113
        %v7115 = vrot.slane %v7002, 2
        %v7116 = vsel %vm1182, %v7113, %v7115
        %v7117 = vrot.slane %v7003, 2
        %v7118 = vrot.slane %v7004, 2
        %v7119 = vsel %vm1182, %v7117, %v7118
        %v7120 = vrot.slane %v7005, 2
        %v7121 = vsel %vm1182, %v7118, %v7120
        %v7122 = vrot.slane %v7006, 2
        %v7123 = vrot.slane %v7007, 2
        %v7124 = vsel %vm1182, %v7122, %v7123
        %v7125 = vrot.slane %v7008, 2
        %v7126 = vsel %vm1182, %v7123, %v7125
        %v7127 = vrot.slane %v7009, 2
        %v7128 = vrot.slane %v7010, 2
        %v7129 = vsel %vm1182, %v7127, %v7128
        %v7130 = vrot.slane %v7011, 2
        %v7131 = vsel %vm1182, %v7128, %v7130
        %v7132 = vrot.slane %v7012, 2
        %v7133 = vrot.slane %v7013, 2
        %v7134 = vsel %vm1182, %v7132, %v7133
        %v7135 = vrot.slane %v7014, 2
        %v7136 = vsel %vm1182, %v7133, %v7135
        %v7137 = vrot.slane %v7015, 2
        %v7138 = vrot.slane %v7016, 2
        %v7139 = vsel %vm1182, %v7137, %v7138
        %v7140 = vrot.slane %v7017, 2
        %v7141 = vsel %vm1182, %v7138, %v7140
        %v7142 = vrot.slane %v7018, 2
        %v7143 = vrot.slane %v7019, 2
        %v7144 = vsel %vm1182, %v7142, %v7143
        %v7145 = vrot.slane %v7020, 2
        %v7146 = vsel %vm1182, %v7143, %v7145
        %v7147 = vrot.slane %v7021, 2
        %v7148 = vrot.slane %v7022, 2
        %v7149 = vsel %vm1182, %v7147, %v7148
        %v7150 = vrot.slane %v7023, 2
        %v7151 = vsel %vm1182, %v7148, %v7150
        %v7200 = vadd.f32 %v6928, %v7072
        %v7201 = vadd.f32 %v6929, %v7074
        %v7202 = vadd.f32 %v6930, %v7076
        %v7203 = vadd.f32 %v6931, %v7077
        %v7204 = vadd.f32 %v6932, %v7079
        %v7205 = vadd.f32 %v6933, %v7081
        %v7206 = vadd.f32 %v6934, %v7082
        %v7207 = vadd.f32 %v6935, %v7084
        %v7208 = vadd.f32 %v6936, %v7086
        %v7209 = vadd.f32 %v6937, %v7087
        %v7210 = vadd.f32 %v6938, %v7089
        %v7211 = vadd.f32 %v6939, %v7091
        %v7212 = vadd.f32 %v6940, %v7092
        %v7213 = vadd.f32 %v6941, %v7094
        %v7214 = vadd.f32 %v6942, %v7096
        %v7215 = vadd.f32 %v6943, %v7097
        %v7216 = vadd.f32 %v6944, %v7099
        %v7217 = vadd.f32 %v6945, %v7101
        %v7218 = vadd.f32 %v6946, %v7102
        %v7219 = vadd.f32 %v6947, %v7104
        %v7220 = vadd.f32 %v6948, %v7106
        %v7221 = vadd.f32 %v6949, %v7107
        %v7222 = vadd.f32 %v6950, %v7109
        %v7223 = vadd.f32 %v6951, %v7111
        %v7224 = vadd.f32 %v6952, %v7112
        %v7225 = vadd.f32 %v6953, %v7114
        %v7226 = vadd.f32 %v6954, %v7116
        %v7227 = vadd.f32 %v6955, %v7117
        %v7228 = vadd.f32 %v6956, %v7119
        %v7229 = vadd.f32 %v6957, %v7121
        %v7230 = vadd.f32 %v6958, %v7122
        %v7231 = vadd.f32 %v6959, %v7124
        %v7232 = vadd.f32 %v6960, %v7126
        %v7233 = vadd.f32 %v6961, %v7127
        %v7234 = vadd.f32 %v6962, %v7129
        %v7235 = vadd.f32 %v6963, %v7131
        %v7236 = vadd.f32 %v6964, %v7132
        %v7237 = vadd.f32 %v6965, %v7134
        %v7238 = vadd.f32 %v6966, %v7136
        %v7239 = vadd.f32 %v6967, %v7137
        %v7240 = vadd.f32 %v6968, %v7139
        %v7241 = vadd.f32 %v6969, %v7141
        %v7242 = vadd.f32 %v6970, %v7142
        %v7243 = vadd.f32 %v6971, %v7144
        %v7244 = vadd.f32 %v6972, %v7146
        %v7245 = vadd.f32 %v6973, %v7147
        %v7246 = vadd.f32 %v6974, %v7149
        %v7247 = vadd.f32 %v6975, %v7151
        %s7248 = scalar_lea.vmem %s2, 6
        %v7249 = vld [vmem:[%s7248] sm:$0x1]
        %v7251 = vperm.slane %v7249, 0
        %v7253 = vadd.f32 %v7200, %v7251
        %v7254 = vadd.f32 %v7201, %v7251
        %v7255 = vadd.f32 %v7202, %v7251
        %v7256 = vadd.f32 %v7203, %v7251
        %v7257 = vadd.f32 %v7204, %v7251
        %v7258 = vadd.f32 %v7205, %v7251
        %v7259 = vadd.f32 %v7206, %v7251
        %v7260 = vadd.f32 %v7207, %v7251
        %v7261 = vadd.f32 %v7208, %v7251
        %v7262 = vadd.f32 %v7209, %v7251
        %v7263 = vadd.f32 %v7210, %v7251
        %v7264 = vadd.f32 %v7211, %v7251
        %v7265 = vadd.f32 %v7212, %v7251
        %v7266 = vadd.f32 %v7213, %v7251
        %v7267 = vadd.f32 %v7214, %v7251
        %v7268 = vadd.f32 %v7215, %v7251
        %v7269 = vadd.f32 %v7216, %v7251
        %v7270 = vadd.f32 %v7217, %v7251
        %v7271 = vadd.f32 %v7218, %v7251
        %v7272 = vadd.f32 %v7219, %v7251
        %v7273 = vadd.f32 %v7220, %v7251
        %v7274 = vadd.f32 %v7221, %v7251
        %v7275 = vadd.f32 %v7222, %v7251
        %v7276 = vadd.f32 %v7223, %v7251
        %v7277 = vadd.f32 %v7224, %v7251
        %v7278 = vadd.f32 %v7225, %v7251
        %v7279 = vadd.f32 %v7226, %v7251
        %v7280 = vadd.f32 %v7227, %v7251
        %v7281 = vadd.f32 %v7228, %v7251
        %v7282 = vadd.f32 %v7229, %v7251
        %v7283 = vadd.f32 %v7230, %v7251
        %v7284 = vadd.f32 %v7231, %v7251
        %v7285 = vadd.f32 %v7232, %v7251
        %v7286 = vadd.f32 %v7233, %v7251
        %v7287 = vadd.f32 %v7234, %v7251
        %v7288 = vadd.f32 %v7235, %v7251
        %v7289 = vadd.f32 %v7236, %v7251
        %v7290 = vadd.f32 %v7237, %v7251
        %v7291 = vadd.f32 %v7238, %v7251
        %v7292 = vadd.f32 %v7239, %v7251
        %v7293 = vadd.f32 %v7240, %v7251
        %v7294 = vadd.f32 %v7241, %v7251
        %v7295 = vadd.f32 %v7242, %v7251
        %v7296 = vadd.f32 %v7243, %v7251
        %v7297 = vadd.f32 %v7244, %v7251
        %v7298 = vadd.f32 %v7245, %v7251
        %v7299 = vadd.f32 %v7246, %v7251
        %v7300 = vadd.f32 %v7247, %v7251
        %v7349 = vrot.slane %v7253, 7
        %v7350 = vrot.slane %v7254, 7
        %v7351 = vsel %vm1459, %v7349, %v7350
        %v7352 = vrot.slane %v7255, 7
        %v7353 = vsel %vm1459, %v7350, %v7352
        %v7354 = vrot.slane %v7256, 7
        %v7355 = vrot.slane %v7257, 7
        %v7356 = vsel %vm1459, %v7354, %v7355
        %v7357 = vrot.slane %v7258, 7
        %v7358 = vsel %vm1459, %v7355, %v7357
        %v7359 = vrot.slane %v7259, 7
        %v7360 = vrot.slane %v7260, 7
        %v7361 = vsel %vm1459, %v7359, %v7360
        %v7362 = vrot.slane %v7261, 7
        %v7363 = vsel %vm1459, %v7360, %v7362
        %v7364 = vrot.slane %v7262, 7
        %v7365 = vrot.slane %v7263, 7
        %v7366 = vsel %vm1459, %v7364, %v7365
        %v7367 = vrot.slane %v7264, 7
        %v7368 = vsel %vm1459, %v7365, %v7367
        %v7369 = vrot.slane %v7265, 7
        %v7370 = vrot.slane %v7266, 7
        %v7371 = vsel %vm1459, %v7369, %v7370
        %v7372 = vrot.slane %v7267, 7
        %v7373 = vsel %vm1459, %v7370, %v7372
        %v7374 = vrot.slane %v7268, 7
        %v7375 = vrot.slane %v7269, 7
        %v7376 = vsel %vm1459, %v7374, %v7375
        %v7377 = vrot.slane %v7270, 7
        %v7378 = vsel %vm1459, %v7375, %v7377
        %v7379 = vrot.slane %v7271, 7
        %v7380 = vrot.slane %v7272, 7
        %v7381 = vsel %vm1459, %v7379, %v7380
        %v7382 = vrot.slane %v7273, 7
        %v7383 = vsel %vm1459, %v7380, %v7382
        %v7384 = vrot.slane %v7274, 7
        %v7385 = vrot.slane %v7275, 7
        %v7386 = vsel %vm1459, %v7384, %v7385
        %v7387 = vrot.slane %v7276, 7
        %v7388 = vsel %vm1459, %v7385, %v7387
        %v7389 = vrot.slane %v7277, 7
        %v7390 = vrot.slane %v7278, 7
        %v7391 = vsel %vm1459, %v7389, %v7390
        %v7392 = vrot.slane %v7279, 7
        %v7393 = vsel %vm1459, %v7390, %v7392
        %v7394 = vrot.slane %v7280, 7
        %v7395 = vrot.slane %v7281, 7
        %v7396 = vsel %vm1459, %v7394, %v7395
        %v7397 = vrot.slane %v7282, 7
        %v7398 = vsel %vm1459, %v7395, %v7397
        %v7399 = vrot.slane %v7283, 7
        %v7400 = vrot.slane %v7284, 7
        %v7401 = vsel %vm1459, %v7399, %v7400
        %v7402 = vrot.slane %v7285, 7
        %v7403 = vsel %vm1459, %v7400, %v7402
        %v7404 = vrot.slane %v7286, 7
        %v7405 = vrot.slane %v7287, 7
        %v7406 = vsel %vm1459, %v7404, %v7405
        %v7407 = vrot.slane %v7288, 7
        %v7408 = vsel %vm1459, %v7405, %v7407
        %v7409 = vrot.slane %v7289, 7
        %v7410 = vrot.slane %v7290, 7
        %v7411 = vsel %vm1459, %v7409, %v7410
        %v7412 = vrot.slane %v7291, 7
        %v7413 = vsel %vm1459, %v7410, %v7412
        %v7414 = vrot.slane %v7292, 7
        %v7415 = vrot.slane %v7293, 7
        %v7416 = vsel %vm1459, %v7414, %v7415
        %v7417 = vrot.slane %v7294, 7
        %v7418 = vsel %vm1459, %v7415, %v7417
        %v7419 = vrot.slane %v7295, 7
        %v7420 = vrot.slane %v7296, 7
        %v7421 = vsel %vm1459, %v7419, %v7420
        %v7422 = vrot.slane %v7297, 7
        %v7423 = vsel %vm1459, %v7420, %v7422
        %v7424 = vrot.slane %v7298, 7
        %v7425 = vrot.slane %v7299, 7
        %v7426 = vsel %vm1459, %v7424, %v7425
        %v7427 = vrot.slane %v7300, 7
        %v7428 = vsel %vm1459, %v7425, %v7427
        %s7429 = scalar_lea.vmem %s1, 896
        %v7430 = vld [vmem:[%s7429] sm:$0xff]
        %v7431 = vld [vmem:[%s7429 + $0x8] sm:$0xff]
        %v7432 = vld [vmem:[%s7429 + $0x10] sm:$0xff]
        %v7433 = vld [vmem:[%s7429 + $0x18] sm:$0xff]
        %v7434 = vld [vmem:[%s7429 + $0x20] sm:$0xff]
        %v7435 = vld [vmem:[%s7429 + $0x28] sm:$0xff]
        %v7436 = vld [vmem:[%s7429 + $0x30] sm:$0xff]
        %v7437 = vld [vmem:[%s7429 + $0x38] sm:$0xff]
        %v7438 = vld [vmem:[%s7429 + $0x40] sm:$0xff]
        %v7439 = vld [vmem:[%s7429 + $0x48] sm:$0xff]
        %v7440 = vld [vmem:[%s7429 + $0x50] sm:$0xff]
        %v7441 = vld [vmem:[%s7429 + $0x58] sm:$0xff]
        %v7442 = vld [vmem:[%s7429 + $0x60] sm:$0xff]
        %v7443 = vld [vmem:[%s7429 + $0x68] sm:$0xff]
        %v7444 = vld [vmem:[%s7429 + $0x70] sm:$0xff]
        %v7445 = vld [vmem:[%s7429 + $0x78] sm:$0xff]
        %v7446 = vsel %vm170, %v7351, 0
        %v7448 = vsel %vm170, %v7353, 0
        %v7450 = vsel %vm170, %v7356, 0
        %v7452 = vsel %vm170, %v7358, 0
        %v7454 = vsel %vm170, %v7361, 0
        %v7456 = vsel %vm170, %v7363, 0
        %v7458 = vsel %vm170, %v7366, 0
        %v7460 = vsel %vm170, %v7368, 0
        %v7462 = vsel %vm170, %v7371, 0
        %v7464 = vsel %vm170, %v7373, 0
        %v7466 = vsel %vm170, %v7376, 0
        %v7468 = vsel %vm170, %v7378, 0
        %v7470 = vsel %vm170, %v7381, 0
        %v7472 = vsel %vm170, %v7383, 0
        %v7474 = vsel %vm170, %v7386, 0
        %v7476 = vsel %vm170, %v7388, 0
        %v7478 = vsel %vm170, %v7391, 0
        %v7480 = vsel %vm170, %v7393, 0
        %v7482 = vsel %vm170, %v7396, 0
        %v7484 = vsel %vm170, %v7398, 0
        %v7486 = vsel %vm170, %v7401, 0
        %v7488 = vsel %vm170, %v7403, 0
        %v7490 = vsel %vm170, %v7406, 0
        %v7492 = vsel %vm170, %v7408, 0
        %v7494 = vsel %vm170, %v7411, 0
        %v7496 = vsel %vm170, %v7413, 0
        %v7498 = vsel %vm170, %v7416, 0
        %v7500 = vsel %vm170, %v7418, 0
        %v7502 = vsel %vm170, %v7421, 0
        %v7504 = vsel %vm170, %v7423, 0
        %v7506 = vsel %vm170, %v7426, 0
        %v7508 = vsel %vm170, %v7428, 0
        %7510 = vmatpush.msra.mxu0 0.0
        %7511 = vmatpush.msra.mxu0 0.0
        %7512 = vmatpush.msra.mxu0 0.0
        %7513 = vmatpush.msra.mxu0 0.0
        %7514 = vmatpush.msra.mxu0 0.0
        %7515 = vmatpush.msra.mxu0 0.0
        %7516 = vmatpush.msra.mxu0 0.0
        %7517 = vmatpush.msra.mxu0 0.0
        %7518 = vmatpush.msra.mxu0 %v7444
        %7519 = vmatpush.msra.mxu0 %v7442
        %7520 = vmatpush.msra.mxu0 %v7440
        %7521 = vmatpush.msra.mxu0 %v7438
        %7522 = vmatpush.msra.mxu0 %v7436
        %7523 = vmatpush.msra.mxu0 %v7434
        %7524 = vmatpush.msra.mxu0 %v7432
        %7525 = vmatpush.msra.mxu0 %v7430
        %7526 = vmatmul.f32.gmra.mxu0 %v7446
        %v7527 = vpop.f32.mrf.mxu0
        %v7528 = vadd.f32 0.0, %v7527
        %7529 = vmatmul.f32.gmra.mxu0 %v7448
        %v7530 = vpop.f32.mrf.mxu0
        %v7531 = vadd.f32 0.0, %v7530
        %7532 = vmatmul.f32.gmra.mxu0 %v7450
        %v7533 = vpop.f32.mrf.mxu0
        %v7534 = vadd.f32 0.0, %v7533
        %7535 = vmatmul.f32.gmra.mxu0 %v7452
        %v7536 = vpop.f32.mrf.mxu0
        %v7537 = vadd.f32 0.0, %v7536
        %7538 = vmatmul.f32.gmra.mxu0 %v7454
        %v7539 = vpop.f32.mrf.mxu0
        %v7540 = vadd.f32 0.0, %v7539
        %7541 = vmatmul.f32.gmra.mxu0 %v7456
        %v7542 = vpop.f32.mrf.mxu0
        %v7543 = vadd.f32 0.0, %v7542
        %7544 = vmatmul.f32.gmra.mxu0 %v7458
        %v7545 = vpop.f32.mrf.mxu0
        %v7546 = vadd.f32 0.0, %v7545
        %7547 = vmatmul.f32.gmra.mxu0 %v7460
        %v7548 = vpop.f32.mrf.mxu0
        %v7549 = vadd.f32 0.0, %v7548
        %7550 = vmatmul.f32.gmra.mxu0 %v7462
        %v7551 = vpop.f32.mrf.mxu0
        %v7552 = vadd.f32 0.0, %v7551
        %7553 = vmatmul.f32.gmra.mxu0 %v7464
        %v7554 = vpop.f32.mrf.mxu0
        %v7555 = vadd.f32 0.0, %v7554
        %7556 = vmatmul.f32.gmra.mxu0 %v7466
        %v7557 = vpop.f32.mrf.mxu0
        %v7558 = vadd.f32 0.0, %v7557
        %7559 = vmatmul.f32.gmra.mxu0 %v7468
        %v7560 = vpop.f32.mrf.mxu0
        %v7561 = vadd.f32 0.0, %v7560
        %7562 = vmatmul.f32.gmra.mxu0 %v7470
        %v7563 = vpop.f32.mrf.mxu0
        %v7564 = vadd.f32 0.0, %v7563
        %7565 = vmatmul.f32.gmra.mxu0 %v7472
        %v7566 = vpop.f32.mrf.mxu0
        %v7567 = vadd.f32 0.0, %v7566
        %7568 = vmatmul.f32.gmra.mxu0 %v7474
        %v7569 = vpop.f32.mrf.mxu0
        %v7570 = vadd.f32 0.0, %v7569
        %7571 = vmatmul.f32.gmra.mxu0 %v7476
        %v7572 = vpop.f32.mrf.mxu0
        %v7573 = vadd.f32 0.0, %v7572
        %7574 = vmatmul.f32.gmra.mxu0 %v7478
        %v7575 = vpop.f32.mrf.mxu0
        %v7576 = vadd.f32 0.0, %v7575
        %7577 = vmatmul.f32.gmra.mxu0 %v7480
        %v7578 = vpop.f32.mrf.mxu0
        %v7579 = vadd.f32 0.0, %v7578
        %7580 = vmatmul.f32.gmra.mxu0 %v7482
        %v7581 = vpop.f32.mrf.mxu0
        %v7582 = vadd.f32 0.0, %v7581
        %7583 = vmatmul.f32.gmra.mxu0 %v7484
        %v7584 = vpop.f32.mrf.mxu0
        %v7585 = vadd.f32 0.0, %v7584
        %7586 = vmatmul.f32.gmra.mxu0 %v7486
        %v7587 = vpop.f32.mrf.mxu0
        %v7588 = vadd.f32 0.0, %v7587
        %7589 = vmatmul.f32.gmra.mxu0 %v7488
        %v7590 = vpop.f32.mrf.mxu0
        %v7591 = vadd.f32 0.0, %v7590
        %7592 = vmatmul.f32.gmra.mxu0 %v7490
        %v7593 = vpop.f32.mrf.mxu0
        %v7594 = vadd.f32 0.0, %v7593
        %7595 = vmatmul.f32.gmra.mxu0 %v7492
        %v7596 = vpop.f32.mrf.mxu0
        %v7597 = vadd.f32 0.0, %v7596
        %7598 = vmatmul.f32.gmra.mxu0 %v7494
        %v7599 = vpop.f32.mrf.mxu0
        %v7600 = vadd.f32 0.0, %v7599
        %7601 = vmatmul.f32.gmra.mxu0 %v7496
        %v7602 = vpop.f32.mrf.mxu0
        %v7603 = vadd.f32 0.0, %v7602
        %7604 = vmatmul.f32.gmra.mxu0 %v7498
        %v7605 = vpop.f32.mrf.mxu0
        %v7606 = vadd.f32 0.0, %v7605
        %7607 = vmatmul.f32.gmra.mxu0 %v7500
        %v7608 = vpop.f32.mrf.mxu0
        %v7609 = vadd.f32 0.0, %v7608
        %7610 = vmatmul.f32.gmra.mxu0 %v7502
        %v7611 = vpop.f32.mrf.mxu0
        %v7612 = vadd.f32 0.0, %v7611
        %7613 = vmatmul.f32.gmra.mxu0 %v7504
        %v7614 = vpop.f32.mrf.mxu0
        %v7615 = vadd.f32 0.0, %v7614
        %7616 = vmatmul.f32.gmra.mxu0 %v7506
        %v7617 = vpop.f32.mrf.mxu0
        %v7618 = vadd.f32 0.0, %v7617
        %7619 = vmatmul.f32.gmra.mxu0 %v7508
        %v7620 = vpop.f32.mrf.mxu0
        %v7621 = vadd.f32 0.0, %v7620
        %7622 = vdwg.mxu0
        %7623 = vmatpush.msra.mxu0 0.0
        %7624 = vmatpush.msra.mxu0 0.0
        %7625 = vmatpush.msra.mxu0 0.0
        %7626 = vmatpush.msra.mxu0 0.0
        %7627 = vmatpush.msra.mxu0 0.0
        %7628 = vmatpush.msra.mxu0 0.0
        %7629 = vmatpush.msra.mxu0 0.0
        %7630 = vmatpush.msra.mxu0 0.0
        %7631 = vmatpush.msra.mxu0 %v7445
        %7632 = vmatpush.msra.mxu0 %v7443
        %7633 = vmatpush.msra.mxu0 %v7441
        %7634 = vmatpush.msra.mxu0 %v7439
        %7635 = vmatpush.msra.mxu0 %v7437
        %7636 = vmatpush.msra.mxu0 %v7435
        %7637 = vmatpush.msra.mxu0 %v7433
        %7638 = vmatpush.msra.mxu0 %v7431
        %7639 = vmatmul.f32.gmra.mxu0 %v7446
        %v7640 = vpop.f32.mrf.mxu0
        %v7641 = vadd.f32 0.0, %v7640
        %7642 = vmatmul.f32.gmra.mxu0 %v7448
        %v7643 = vpop.f32.mrf.mxu0
        %v7644 = vadd.f32 0.0, %v7643
        %7645 = vmatmul.f32.gmra.mxu0 %v7450
        %v7646 = vpop.f32.mrf.mxu0
        %v7647 = vadd.f32 0.0, %v7646
        %7648 = vmatmul.f32.gmra.mxu0 %v7452
        %v7649 = vpop.f32.mrf.mxu0
        %v7650 = vadd.f32 0.0, %v7649
        %7651 = vmatmul.f32.gmra.mxu0 %v7454
        %v7652 = vpop.f32.mrf.mxu0
        %v7653 = vadd.f32 0.0, %v7652
        %7654 = vmatmul.f32.gmra.mxu0 %v7456
        %v7655 = vpop.f32.mrf.mxu0
        %v7656 = vadd.f32 0.0, %v7655
        %7657 = vmatmul.f32.gmra.mxu0 %v7458
        %v7658 = vpop.f32.mrf.mxu0
        %v7659 = vadd.f32 0.0, %v7658
        %7660 = vmatmul.f32.gmra.mxu0 %v7460
        %v7661 = vpop.f32.mrf.mxu0
        %v7662 = vadd.f32 0.0, %v7661
        %7663 = vmatmul.f32.gmra.mxu0 %v7462
        %v7664 = vpop.f32.mrf.mxu0
        %v7665 = vadd.f32 0.0, %v7664
        %7666 = vmatmul.f32.gmra.mxu0 %v7464
        %v7667 = vpop.f32.mrf.mxu0
        %v7668 = vadd.f32 0.0, %v7667
        %7669 = vmatmul.f32.gmra.mxu0 %v7466
        %v7670 = vpop.f32.mrf.mxu0
        %v7671 = vadd.f32 0.0, %v7670
        %7672 = vmatmul.f32.gmra.mxu0 %v7468
        %v7673 = vpop.f32.mrf.mxu0
        %v7674 = vadd.f32 0.0, %v7673
        %7675 = vmatmul.f32.gmra.mxu0 %v7470
        %v7676 = vpop.f32.mrf.mxu0
        %v7677 = vadd.f32 0.0, %v7676
        %7678 = vmatmul.f32.gmra.mxu0 %v7472
        %v7679 = vpop.f32.mrf.mxu0
        %v7680 = vadd.f32 0.0, %v7679
        %7681 = vmatmul.f32.gmra.mxu0 %v7474
        %v7682 = vpop.f32.mrf.mxu0
        %v7683 = vadd.f32 0.0, %v7682
        %7684 = vmatmul.f32.gmra.mxu0 %v7476
        %v7685 = vpop.f32.mrf.mxu0
        %v7686 = vadd.f32 0.0, %v7685
        %7687 = vmatmul.f32.gmra.mxu0 %v7478
        %v7688 = vpop.f32.mrf.mxu0
        %v7689 = vadd.f32 0.0, %v7688
        %7690 = vmatmul.f32.gmra.mxu0 %v7480
        %v7691 = vpop.f32.mrf.mxu0
        %v7692 = vadd.f32 0.0, %v7691
        %7693 = vmatmul.f32.gmra.mxu0 %v7482
        %v7694 = vpop.f32.mrf.mxu0
        %v7695 = vadd.f32 0.0, %v7694
        %7696 = vmatmul.f32.gmra.mxu0 %v7484
        %v7697 = vpop.f32.mrf.mxu0
        %v7698 = vadd.f32 0.0, %v7697
        %7699 = vmatmul.f32.gmra.mxu0 %v7486
        %v7700 = vpop.f32.mrf.mxu0
        %v7701 = vadd.f32 0.0, %v7700
        %7702 = vmatmul.f32.gmra.mxu0 %v7488
        %v7703 = vpop.f32.mrf.mxu0
        %v7704 = vadd.f32 0.0, %v7703
        %7705 = vmatmul.f32.gmra.mxu0 %v7490
        %v7706 = vpop.f32.mrf.mxu0
        %v7707 = vadd.f32 0.0, %v7706
        %7708 = vmatmul.f32.gmra.mxu0 %v7492
        %v7709 = vpop.f32.mrf.mxu0
        %v7710 = vadd.f32 0.0, %v7709
        %7711 = vmatmul.f32.gmra.mxu0 %v7494
        %v7712 = vpop.f32.mrf.mxu0
        %v7713 = vadd.f32 0.0, %v7712
        %7714 = vmatmul.f32.gmra.mxu0 %v7496
        %v7715 = vpop.f32.mrf.mxu0
        %v7716 = vadd.f32 0.0, %v7715
        %7717 = vmatmul.f32.gmra.mxu0 %v7498
        %v7718 = vpop.f32.mrf.mxu0
        %v7719 = vadd.f32 0.0, %v7718
        %7720 = vmatmul.f32.gmra.mxu0 %v7500
        %v7721 = vpop.f32.mrf.mxu0
        %v7722 = vadd.f32 0.0, %v7721
        %7723 = vmatmul.f32.gmra.mxu0 %v7502
        %v7724 = vpop.f32.mrf.mxu0
        %v7725 = vadd.f32 0.0, %v7724
        %7726 = vmatmul.f32.gmra.mxu0 %v7504
        %v7727 = vpop.f32.mrf.mxu0
        %v7728 = vadd.f32 0.0, %v7727
        %7729 = vmatmul.f32.gmra.mxu0 %v7506
        %v7730 = vpop.f32.mrf.mxu0
        %v7731 = vadd.f32 0.0, %v7730
        %7732 = vmatmul.f32.gmra.mxu0 %v7508
        %v7733 = vpop.f32.mrf.mxu0
        %v7734 = vadd.f32 0.0, %v7733
        %7735 = vdwg.mxu0
        %7736 = vst [vmem:[%s684 + $0x10] sm:$0xff] %v7528
        %7737 = vst.msk [vmem:[%s684 + $0x18] sm:$0xff] %vm170, %v7641
        %7738 = vst [vmem:[%s684 + $0x20] sm:$0xff] %v7531
        %7739 = vst.msk [vmem:[%s684 + $0x28] sm:$0xff] %vm170, %v7644
        %7740 = vst [vmem:[%s684 + $0x50] sm:$0xff] %v7534
        %7741 = vst.msk [vmem:[%s684 + $0x58] sm:$0xff] %vm170, %v7647
        %7742 = vst [vmem:[%s684 + $0x60] sm:$0xff] %v7537
        %7743 = vst.msk [vmem:[%s684 + $0x68] sm:$0xff] %vm170, %v7650
        %7744 = vst [vmem:[%s684 + $0x90] sm:$0xff] %v7540
        %7745 = vst.msk [vmem:[%s684 + $0x98] sm:$0xff] %vm170, %v7653
        %7746 = vst [vmem:[%s684 + $0xa0] sm:$0xff] %v7543
        %7747 = vst.msk [vmem:[%s684 + $0xa8] sm:$0xff] %vm170, %v7656
        %7748 = vst [vmem:[%s684 + $0xd0] sm:$0xff] %v7546
        %7749 = vst.msk [vmem:[%s684 + $0xd8] sm:$0xff] %vm170, %v7659
        %7750 = vst [vmem:[%s684 + $0xe0] sm:$0xff] %v7549
        %7751 = vst.msk [vmem:[%s684 + $0xe8] sm:$0xff] %vm170, %v7662
        %7752 = vst [vmem:[%s684 + $0x110] sm:$0xff] %v7552
        %7753 = vst.msk [vmem:[%s684 + $0x118] sm:$0xff] %vm170, %v7665
        %7754 = vst [vmem:[%s684 + $0x120] sm:$0xff] %v7555
        %7755 = vst.msk [vmem:[%s684 + $0x128] sm:$0xff] %vm170, %v7668
        %7756 = vst [vmem:[%s684 + $0x150] sm:$0xff] %v7558
        %7757 = vst.msk [vmem:[%s684 + $0x158] sm:$0xff] %vm170, %v7671
        %7758 = vst [vmem:[%s684 + $0x160] sm:$0xff] %v7561
        %7759 = vst.msk [vmem:[%s684 + $0x168] sm:$0xff] %vm170, %v7674
        %7760 = vst [vmem:[%s684 + $0x190] sm:$0xff] %v7564
        %7761 = vst.msk [vmem:[%s684 + $0x198] sm:$0xff] %vm170, %v7677
        %7762 = vst [vmem:[%s684 + $0x1a0] sm:$0xff] %v7567
        %7763 = vst.msk [vmem:[%s684 + $0x1a8] sm:$0xff] %vm170, %v7680
        %7764 = vst [vmem:[%s684 + $0x1d0] sm:$0xff] %v7570
        %7765 = vst.msk [vmem:[%s684 + $0x1d8] sm:$0xff] %vm170, %v7683
        %7766 = vst [vmem:[%s684 + $0x1e0] sm:$0xff] %v7573
        %7767 = vst.msk [vmem:[%s684 + $0x1e8] sm:$0xff] %vm170, %v7686
        %7768 = vst [vmem:[%s684 + $0x210] sm:$0xff] %v7576
        %7769 = vst.msk [vmem:[%s684 + $0x218] sm:$0xff] %vm170, %v7689
        %7770 = vst [vmem:[%s684 + $0x220] sm:$0xff] %v7579
        %7771 = vst.msk [vmem:[%s684 + $0x228] sm:$0xff] %vm170, %v7692
        %7772 = vst [vmem:[%s684 + $0x250] sm:$0xff] %v7582
        %7773 = vst.msk [vmem:[%s684 + $0x258] sm:$0xff] %vm170, %v7695
        %7774 = vst [vmem:[%s684 + $0x260] sm:$0xff] %v7585
        %7775 = vst.msk [vmem:[%s684 + $0x268] sm:$0xff] %vm170, %v7698
        %7776 = vst [vmem:[%s684 + $0x290] sm:$0xff] %v7588
        %7777 = vst.msk [vmem:[%s684 + $0x298] sm:$0xff] %vm170, %v7701
        %7778 = vst [vmem:[%s684 + $0x2a0] sm:$0xff] %v7591
        %7779 = vst.msk [vmem:[%s684 + $0x2a8] sm:$0xff] %vm170, %v7704
        %7780 = vst [vmem:[%s684 + $0x2d0] sm:$0xff] %v7594
        %7781 = vst.msk [vmem:[%s684 + $0x2d8] sm:$0xff] %vm170, %v7707
        %7782 = vst [vmem:[%s684 + $0x2e0] sm:$0xff] %v7597
        %7783 = vst.msk [vmem:[%s684 + $0x2e8] sm:$0xff] %vm170, %v7710
        %7784 = vst [vmem:[%s684 + $0x310] sm:$0xff] %v7600
        %7785 = vst.msk [vmem:[%s684 + $0x318] sm:$0xff] %vm170, %v7713
        %7786 = vst [vmem:[%s684 + $0x320] sm:$0xff] %v7603
        %7787 = vst.msk [vmem:[%s684 + $0x328] sm:$0xff] %vm170, %v7716
        %7788 = vst [vmem:[%s684 + $0x350] sm:$0xff] %v7606
        %7789 = vst.msk [vmem:[%s684 + $0x358] sm:$0xff] %vm170, %v7719
        %7790 = vst [vmem:[%s684 + $0x360] sm:$0xff] %v7609
        %7791 = vst.msk [vmem:[%s684 + $0x368] sm:$0xff] %vm170, %v7722
        %7792 = vst [vmem:[%s684 + $0x390] sm:$0xff] %v7612
        %7793 = vst.msk [vmem:[%s684 + $0x398] sm:$0xff] %vm170, %v7725
        %7794 = vst [vmem:[%s684 + $0x3a0] sm:$0xff] %v7615
        %7795 = vst.msk [vmem:[%s684 + $0x3a8] sm:$0xff] %vm170, %v7728
        %7796 = vst [vmem:[%s684 + $0x3d0] sm:$0xff] %v7618
        %7797 = vst.msk [vmem:[%s684 + $0x3d8] sm:$0xff] %vm170, %v7731
        %7798 = vst [vmem:[%s684 + $0x3e0] sm:$0xff] %v7621
        %7799 = vst.msk [vmem:[%s684 + $0x3e8] sm:$0xff] %vm170, %v7734
        %v7800 = vld [vmem:[#allocation2 + $0x10] sm:$0xff]
        %v7801 = vld [vmem:[#allocation2 + $0x20] sm:$0xff]
        %v7802 = vld [vmem:[#allocation2 + $0x50] sm:$0xff]
        %v7803 = vld [vmem:[#allocation2 + $0x60] sm:$0xff]
        %v7804 = vld [vmem:[#allocation2 + $0x90] sm:$0xff]
        %v7805 = vld [vmem:[#allocation2 + $0xa0] sm:$0xff]
        %v7806 = vld [vmem:[#allocation2 + $0xd0] sm:$0xff]
        %v7807 = vld [vmem:[#allocation2 + $0xe0] sm:$0xff]
        %v7808 = vld [vmem:[#allocation2 + $0x110] sm:$0xff]
        %v7809 = vld [vmem:[#allocation2 + $0x120] sm:$0xff]
        %v7810 = vld [vmem:[#allocation2 + $0x150] sm:$0xff]
        %v7811 = vld [vmem:[#allocation2 + $0x160] sm:$0xff]
        %v7812 = vld [vmem:[#allocation2 + $0x190] sm:$0xff]
        %v7813 = vld [vmem:[#allocation2 + $0x1a0] sm:$0xff]
        %v7814 = vld [vmem:[#allocation2 + $0x1d0] sm:$0xff]
        %v7815 = vld [vmem:[#allocation2 + $0x1e0] sm:$0xff]
        %v7816 = vld [vmem:[#allocation2 + $0x210] sm:$0xff]
        %v7817 = vld [vmem:[#allocation2 + $0x220] sm:$0xff]
        %v7818 = vld [vmem:[#allocation2 + $0x250] sm:$0xff]
        %v7819 = vld [vmem:[#allocation2 + $0x260] sm:$0xff]
        %v7820 = vld [vmem:[#allocation2 + $0x290] sm:$0xff]
        %v7821 = vld [vmem:[#allocation2 + $0x2a0] sm:$0xff]
        %v7822 = vld [vmem:[#allocation2 + $0x2d0] sm:$0xff]
        %v7823 = vld [vmem:[#allocation2 + $0x2e0] sm:$0xff]
        %v7824 = vld [vmem:[#allocation2 + $0x310] sm:$0xff]
        %v7825 = vld [vmem:[#allocation2 + $0x320] sm:$0xff]
        %v7826 = vld [vmem:[#allocation2 + $0x350] sm:$0xff]
        %v7827 = vld [vmem:[#allocation2 + $0x360] sm:$0xff]
        %v7828 = vld [vmem:[#allocation2 + $0x390] sm:$0xff]
        %v7829 = vld [vmem:[#allocation2 + $0x3a0] sm:$0xff]
        %v7830 = vld [vmem:[#allocation2 + $0x3d0] sm:$0xff]
        %v7831 = vld [vmem:[#allocation2 + $0x3e0] sm:$0xff]
        %v7832 = vld [vmem:[%s684 + $0x10] sm:$0xff]
        %v7833 = vld [vmem:[%s684 + $0x20] sm:$0xff]
        %v7834 = vld [vmem:[%s684 + $0x50] sm:$0xff]
        %v7835 = vld [vmem:[%s684 + $0x60] sm:$0xff]
        %v7836 = vld [vmem:[%s684 + $0x90] sm:$0xff]
        %v7837 = vld [vmem:[%s684 + $0xa0] sm:$0xff]
        %v7838 = vld [vmem:[%s684 + $0xd0] sm:$0xff]
        %v7839 = vld [vmem:[%s684 + $0xe0] sm:$0xff]
        %v7840 = vld [vmem:[%s684 + $0x110] sm:$0xff]
        %v7841 = vld [vmem:[%s684 + $0x120] sm:$0xff]
        %v7842 = vld [vmem:[%s684 + $0x150] sm:$0xff]
        %v7843 = vld [vmem:[%s684 + $0x160] sm:$0xff]
        %v7844 = vld [vmem:[%s684 + $0x190] sm:$0xff]
        %v7845 = vld [vmem:[%s684 + $0x1a0] sm:$0xff]
        %v7846 = vld [vmem:[%s684 + $0x1d0] sm:$0xff]
        %v7847 = vld [vmem:[%s684 + $0x1e0] sm:$0xff]
        %v7848 = vld [vmem:[%s684 + $0x210] sm:$0xff]
        %v7849 = vld [vmem:[%s684 + $0x220] sm:$0xff]
        %v7850 = vld [vmem:[%s684 + $0x250] sm:$0xff]
        %v7851 = vld [vmem:[%s684 + $0x260] sm:$0xff]
        %v7852 = vld [vmem:[%s684 + $0x290] sm:$0xff]
        %v7853 = vld [vmem:[%s684 + $0x2a0] sm:$0xff]
        %v7854 = vld [vmem:[%s684 + $0x2d0] sm:$0xff]
        %v7855 = vld [vmem:[%s684 + $0x2e0] sm:$0xff]
        %v7856 = vld [vmem:[%s684 + $0x310] sm:$0xff]
        %v7857 = vld [vmem:[%s684 + $0x320] sm:$0xff]
        %v7858 = vld [vmem:[%s684 + $0x350] sm:$0xff]
        %v7859 = vld [vmem:[%s684 + $0x360] sm:$0xff]
        %v7860 = vld [vmem:[%s684 + $0x390] sm:$0xff]
        %v7861 = vld [vmem:[%s684 + $0x3a0] sm:$0xff]
        %v7862 = vld [vmem:[%s684 + $0x3d0] sm:$0xff]
        %v7863 = vld [vmem:[%s684 + $0x3e0] sm:$0xff]
        %7896 = vrot.lane.b32.xlu0 %v7832, 64
        %v7897 = vpop.permute.xlu0 %7896
        %7898 = vrot.lane.b32.xlu0 %v7833, 64
        %v7899 = vpop.permute.xlu0 %7898
        %7900 = vrot.lane.b32.xlu0 %v7834, 64
        %v7901 = vpop.permute.xlu0 %7900
        %7902 = vrot.lane.b32.xlu0 %v7835, 64
        %v7903 = vpop.permute.xlu0 %7902
        %7904 = vrot.lane.b32.xlu0 %v7836, 64
        %v7905 = vpop.permute.xlu0 %7904
        %7906 = vrot.lane.b32.xlu0 %v7837, 64
        %v7907 = vpop.permute.xlu0 %7906
        %7908 = vrot.lane.b32.xlu0 %v7838, 64
        %v7909 = vpop.permute.xlu0 %7908
        %7910 = vrot.lane.b32.xlu0 %v7839, 64
        %v7911 = vpop.permute.xlu0 %7910
        %7912 = vrot.lane.b32.xlu0 %v7840, 64
        %v7913 = vpop.permute.xlu0 %7912
        %7914 = vrot.lane.b32.xlu0 %v7841, 64
        %v7915 = vpop.permute.xlu0 %7914
        %7916 = vrot.lane.b32.xlu0 %v7842, 64
        %v7917 = vpop.permute.xlu0 %7916
        %7918 = vrot.lane.b32.xlu0 %v7843, 64
        %v7919 = vpop.permute.xlu0 %7918
        %7920 = vrot.lane.b32.xlu0 %v7844, 64
        %v7921 = vpop.permute.xlu0 %7920
        %7922 = vrot.lane.b32.xlu0 %v7845, 64
        %v7923 = vpop.permute.xlu0 %7922
        %7924 = vrot.lane.b32.xlu0 %v7846, 64
        %v7925 = vpop.permute.xlu0 %7924
        %7926 = vrot.lane.b32.xlu0 %v7847, 64
        %v7927 = vpop.permute.xlu0 %7926
        %7928 = vrot.lane.b32.xlu0 %v7848, 64
        %v7929 = vpop.permute.xlu0 %7928
        %7930 = vrot.lane.b32.xlu0 %v7849, 64
        %v7931 = vpop.permute.xlu0 %7930
        %7932 = vrot.lane.b32.xlu0 %v7850, 64
        %v7933 = vpop.permute.xlu0 %7932
        %7934 = vrot.lane.b32.xlu0 %v7851, 64
        %v7935 = vpop.permute.xlu0 %7934
        %7936 = vrot.lane.b32.xlu0 %v7852, 64
        %v7937 = vpop.permute.xlu0 %7936
        %7938 = vrot.lane.b32.xlu0 %v7853, 64
        %v7939 = vpop.permute.xlu0 %7938
        %7940 = vrot.lane.b32.xlu0 %v7854, 64
        %v7941 = vpop.permute.xlu0 %7940
        %7942 = vrot.lane.b32.xlu0 %v7855, 64
        %v7943 = vpop.permute.xlu0 %7942
        %7944 = vrot.lane.b32.xlu0 %v7856, 64
        %v7945 = vpop.permute.xlu0 %7944
        %7946 = vrot.lane.b32.xlu0 %v7857, 64
        %v7947 = vpop.permute.xlu0 %7946
        %7948 = vrot.lane.b32.xlu0 %v7858, 64
        %v7949 = vpop.permute.xlu0 %7948
        %7950 = vrot.lane.b32.xlu0 %v7859, 64
        %v7951 = vpop.permute.xlu0 %7950
        %7952 = vrot.lane.b32.xlu0 %v7860, 64
        %v7953 = vpop.permute.xlu0 %7952
        %7954 = vrot.lane.b32.xlu0 %v7861, 64
        %v7955 = vpop.permute.xlu0 %7954
        %7956 = vrot.lane.b32.xlu0 %v7862, 64
        %v7957 = vpop.permute.xlu0 %7956
        %7958 = vrot.lane.b32.xlu0 %v7863, 64
        %v7959 = vpop.permute.xlu0 %7958
        %v7992 = vadd.f32 %v7800, %v7897
        %v7993 = vadd.f32 %v7801, %v7899
        %v7994 = vadd.f32 %v7802, %v7901
        %v7995 = vadd.f32 %v7803, %v7903
        %v7996 = vadd.f32 %v7804, %v7905
        %v7997 = vadd.f32 %v7805, %v7907
        %v7998 = vadd.f32 %v7806, %v7909
        %v7999 = vadd.f32 %v7807, %v7911
        %v8000 = vadd.f32 %v7808, %v7913
        %v8001 = vadd.f32 %v7809, %v7915
        %v8002 = vadd.f32 %v7810, %v7917
        %v8003 = vadd.f32 %v7811, %v7919
        %v8004 = vadd.f32 %v7812, %v7921
        %v8005 = vadd.f32 %v7813, %v7923
        %v8006 = vadd.f32 %v7814, %v7925
        %v8007 = vadd.f32 %v7815, %v7927
        %v8008 = vadd.f32 %v7816, %v7929
        %v8009 = vadd.f32 %v7817, %v7931
        %v8010 = vadd.f32 %v7818, %v7933
        %v8011 = vadd.f32 %v7819, %v7935
        %v8012 = vadd.f32 %v7820, %v7937
        %v8013 = vadd.f32 %v7821, %v7939
        %v8014 = vadd.f32 %v7822, %v7941
        %v8015 = vadd.f32 %v7823, %v7943
        %v8016 = vadd.f32 %v7824, %v7945
        %v8017 = vadd.f32 %v7825, %v7947
        %v8018 = vadd.f32 %v7826, %v7949
        %v8019 = vadd.f32 %v7827, %v7951
        %v8020 = vadd.f32 %v7828, %v7953
        %v8021 = vadd.f32 %v7829, %v7955
        %v8022 = vadd.f32 %v7830, %v7957
        %v8023 = vadd.f32 %v7831, %v7959
        %v8024 = vld [vmem:[%s2135 + $0x18] sm:$0xff]
        %v8025 = vld [vmem:[%s2135 + $0x28] sm:$0xff]
        %v8026 = vld [vmem:[%s2135 + $0x58] sm:$0xff]
        %v8027 = vld [vmem:[%s2135 + $0x68] sm:$0xff]
        %v8028 = vld [vmem:[%s2135 + $0x98] sm:$0xff]
        %v8029 = vld [vmem:[%s2135 + $0xa8] sm:$0xff]
        %v8030 = vld [vmem:[%s2135 + $0xd8] sm:$0xff]
        %v8031 = vld [vmem:[%s2135 + $0xe8] sm:$0xff]
        %v8032 = vld [vmem:[%s2135 + $0x118] sm:$0xff]
        %v8033 = vld [vmem:[%s2135 + $0x128] sm:$0xff]
        %v8034 = vld [vmem:[%s2135 + $0x158] sm:$0xff]
        %v8035 = vld [vmem:[%s2135 + $0x168] sm:$0xff]
        %v8036 = vld [vmem:[%s2135 + $0x198] sm:$0xff]
        %v8037 = vld [vmem:[%s2135 + $0x1a8] sm:$0xff]
        %v8038 = vld [vmem:[%s2135 + $0x1d8] sm:$0xff]
        %v8039 = vld [vmem:[%s2135 + $0x1e8] sm:$0xff]
        %v8040 = vld [vmem:[%s2135 + $0x218] sm:$0xff]
        %v8041 = vld [vmem:[%s2135 + $0x228] sm:$0xff]
        %v8042 = vld [vmem:[%s2135 + $0x258] sm:$0xff]
        %v8043 = vld [vmem:[%s2135 + $0x268] sm:$0xff]
        %v8044 = vld [vmem:[%s2135 + $0x298] sm:$0xff]
        %v8045 = vld [vmem:[%s2135 + $0x2a8] sm:$0xff]
        %v8046 = vld [vmem:[%s2135 + $0x2d8] sm:$0xff]
        %v8047 = vld [vmem:[%s2135 + $0x2e8] sm:$0xff]
        %v8048 = vld [vmem:[%s2135 + $0x318] sm:$0xff]
        %v8049 = vld [vmem:[%s2135 + $0x328] sm:$0xff]
        %v8050 = vld [vmem:[%s2135 + $0x358] sm:$0xff]
        %v8051 = vld [vmem:[%s2135 + $0x368] sm:$0xff]
        %v8052 = vld [vmem:[%s2135 + $0x398] sm:$0xff]
        %v8053 = vld [vmem:[%s2135 + $0x3a8] sm:$0xff]
        %v8054 = vld [vmem:[%s2135 + $0x3d8] sm:$0xff]
        %v8055 = vld [vmem:[%s2135 + $0x3e8] sm:$0xff]
        %v8056 = vadd.f32 %v7992, %v8024
        %v8057 = vadd.f32 %v7993, %v8025
        %v8058 = vadd.f32 %v7994, %v8026
        %v8059 = vadd.f32 %v7995, %v8027
        %v8060 = vadd.f32 %v7996, %v8028
        %v8061 = vadd.f32 %v7997, %v8029
        %v8062 = vadd.f32 %v7998, %v8030
        %v8063 = vadd.f32 %v7999, %v8031
        %v8064 = vadd.f32 %v8000, %v8032
        %v8065 = vadd.f32 %v8001, %v8033
        %v8066 = vadd.f32 %v8002, %v8034
        %v8067 = vadd.f32 %v8003, %v8035
        %v8068 = vadd.f32 %v8004, %v8036
        %v8069 = vadd.f32 %v8005, %v8037
        %v8070 = vadd.f32 %v8006, %v8038
        %v8071 = vadd.f32 %v8007, %v8039
        %v8072 = vadd.f32 %v8008, %v8040
        %v8073 = vadd.f32 %v8009, %v8041
        %v8074 = vadd.f32 %v8010, %v8042
        %v8075 = vadd.f32 %v8011, %v8043
        %v8076 = vadd.f32 %v8012, %v8044
        %v8077 = vadd.f32 %v8013, %v8045
        %v8078 = vadd.f32 %v8014, %v8046
        %v8079 = vadd.f32 %v8015, %v8047
        %v8080 = vadd.f32 %v8016, %v8048
        %v8081 = vadd.f32 %v8017, %v8049
        %v8082 = vadd.f32 %v8018, %v8050
        %v8083 = vadd.f32 %v8019, %v8051
        %v8084 = vadd.f32 %v8020, %v8052
        %v8085 = vadd.f32 %v8021, %v8053
        %v8086 = vadd.f32 %v8022, %v8054
        %v8087 = vadd.f32 %v8023, %v8055
        %s8088 = scalar_lea.vmem %s2, 7
        %v8089 = vld [vmem:[%s8088] sm:$0x1]
        %v8091 = vperm.slane %v8089, 0
        %v8093 = vadd.f32 %v8056, %v8091
        %v8094 = vadd.f32 %v8057, %v8091
        %v8095 = vadd.f32 %v8058, %v8091
        %v8096 = vadd.f32 %v8059, %v8091
        %v8097 = vadd.f32 %v8060, %v8091
        %v8098 = vadd.f32 %v8061, %v8091
        %v8099 = vadd.f32 %v8062, %v8091
        %v8100 = vadd.f32 %v8063, %v8091
        %v8101 = vadd.f32 %v8064, %v8091
        %v8102 = vadd.f32 %v8065, %v8091
        %v8103 = vadd.f32 %v8066, %v8091
        %v8104 = vadd.f32 %v8067, %v8091
        %v8105 = vadd.f32 %v8068, %v8091
        %v8106 = vadd.f32 %v8069, %v8091
        %v8107 = vadd.f32 %v8070, %v8091
        %v8108 = vadd.f32 %v8071, %v8091
        %v8109 = vadd.f32 %v8072, %v8091
        %v8110 = vadd.f32 %v8073, %v8091
        %v8111 = vadd.f32 %v8074, %v8091
        %v8112 = vadd.f32 %v8075, %v8091
        %v8113 = vadd.f32 %v8076, %v8091
        %v8114 = vadd.f32 %v8077, %v8091
        %v8115 = vadd.f32 %v8078, %v8091
        %v8116 = vadd.f32 %v8079, %v8091
        %v8117 = vadd.f32 %v8080, %v8091
        %v8118 = vadd.f32 %v8081, %v8091
        %v8119 = vadd.f32 %v8082, %v8091
        %v8120 = vadd.f32 %v8083, %v8091
        %v8121 = vadd.f32 %v8084, %v8091
        %v8122 = vadd.f32 %v8085, %v8091
        %v8123 = vadd.f32 %v8086, %v8091
        %v8124 = vadd.f32 %v8087, %v8091
        %v8125 = vmax.f32 %v8093, 0.0
        %v8126 = vmax.f32 %v8094, 0.0
        %v8127 = vmax.f32 %v8095, 0.0
        %v8128 = vmax.f32 %v8096, 0.0
        %v8129 = vmax.f32 %v8097, 0.0
        %v8130 = vmax.f32 %v8098, 0.0
        %v8131 = vmax.f32 %v8099, 0.0
        %v8132 = vmax.f32 %v8100, 0.0
        %v8133 = vmax.f32 %v8101, 0.0
        %v8134 = vmax.f32 %v8102, 0.0
        %v8135 = vmax.f32 %v8103, 0.0
        %v8136 = vmax.f32 %v8104, 0.0
        %v8137 = vmax.f32 %v8105, 0.0
        %v8138 = vmax.f32 %v8106, 0.0
        %v8139 = vmax.f32 %v8107, 0.0
        %v8140 = vmax.f32 %v8108, 0.0
        %v8141 = vmax.f32 %v8109, 0.0
        %v8142 = vmax.f32 %v8110, 0.0
        %v8143 = vmax.f32 %v8111, 0.0
        %v8144 = vmax.f32 %v8112, 0.0
        %v8145 = vmax.f32 %v8113, 0.0
        %v8146 = vmax.f32 %v8114, 0.0
        %v8147 = vmax.f32 %v8115, 0.0
        %v8148 = vmax.f32 %v8116, 0.0
        %v8149 = vmax.f32 %v8117, 0.0
        %v8150 = vmax.f32 %v8118, 0.0
        %v8151 = vmax.f32 %v8119, 0.0
        %v8152 = vmax.f32 %v8120, 0.0
        %v8153 = vmax.f32 %v8121, 0.0
        %v8154 = vmax.f32 %v8122, 0.0
        %v8155 = vmax.f32 %v8123, 0.0
        %v8156 = vmax.f32 %v8124, 0.0
        %v8157 = vld [vmem:[%s163] sm:$0xff]
        %v8158 = vld [vmem:[%s163 + $0x8] sm:$0xff]
        %v8159 = vld [vmem:[%s163 + $0x10] sm:$0xff]
        %v8160 = vld [vmem:[%s163 + $0x18] sm:$0xff]
        %v8161 = vld [vmem:[%s163 + $0x20] sm:$0xff]
        %v8162 = vld [vmem:[%s163 + $0x28] sm:$0xff]
        %v8163 = vld [vmem:[%s163 + $0x30] sm:$0xff]
        %v8164 = vld [vmem:[%s163 + $0x38] sm:$0xff]
        %v8165 = vld [vmem:[%s163 + $0x40] sm:$0xff]
        %v8166 = vld [vmem:[%s163 + $0x48] sm:$0xff]
        %v8167 = vld [vmem:[%s163 + $0x50] sm:$0xff]
        %v8168 = vld [vmem:[%s163 + $0x58] sm:$0xff]
        %v8169 = vld [vmem:[%s163 + $0x60] sm:$0xff]
        %v8170 = vld [vmem:[%s163 + $0x68] sm:$0xff]
        %v8171 = vld [vmem:[%s163 + $0x70] sm:$0xff]
        %v8172 = vld [vmem:[%s163 + $0x78] sm:$0xff]
        %v8173 = vld [vmem:[%s163 + $0x80] sm:$0xff]
        %v8174 = vld [vmem:[%s163 + $0x88] sm:$0xff]
        %v8175 = vld [vmem:[%s163 + $0x90] sm:$0xff]
        %v8176 = vld [vmem:[%s163 + $0x98] sm:$0xff]
        %v8177 = vld [vmem:[%s163 + $0xa0] sm:$0xff]
        %v8178 = vld [vmem:[%s163 + $0xa8] sm:$0xff]
        %v8179 = vld [vmem:[%s163 + $0xb0] sm:$0xff]
        %v8180 = vld [vmem:[%s163 + $0xb8] sm:$0xff]
        %v8181 = vld [vmem:[%s163 + $0xc0] sm:$0xff]
        %v8182 = vld [vmem:[%s163 + $0xc8] sm:$0xff]
        %v8183 = vld [vmem:[%s163 + $0xd0] sm:$0xff]
        %v8184 = vld [vmem:[%s163 + $0xd8] sm:$0xff]
        %v8185 = vld [vmem:[%s163 + $0xe0] sm:$0xff]
        %v8186 = vld [vmem:[%s163 + $0xe8] sm:$0xff]
        %v8187 = vld [vmem:[%s163 + $0xf0] sm:$0xff]
        %v8188 = vld [vmem:[%s163 + $0xf8] sm:$0xff]
        %v8189 = vadd.f32 %v8125, %v8157
        %v8190 = vadd.f32 %v8126, %v8158
        %v8191 = vadd.f32 %v8127, %v8159
        %v8192 = vadd.f32 %v8128, %v8160
        %v8193 = vadd.f32 %v8129, %v8161
        %v8194 = vadd.f32 %v8130, %v8162
        %v8195 = vadd.f32 %v8131, %v8163
        %v8196 = vadd.f32 %v8132, %v8164
        %v8197 = vadd.f32 %v8133, %v8165
        %v8198 = vadd.f32 %v8134, %v8166
        %v8199 = vadd.f32 %v8135, %v8167
        %v8200 = vadd.f32 %v8136, %v8168
        %v8201 = vadd.f32 %v8137, %v8169
        %v8202 = vadd.f32 %v8138, %v8170
        %v8203 = vadd.f32 %v8139, %v8171
        %v8204 = vadd.f32 %v8140, %v8172
        %v8205 = vadd.f32 %v8141, %v8173
        %v8206 = vadd.f32 %v8142, %v8174
        %v8207 = vadd.f32 %v8143, %v8175
        %v8208 = vadd.f32 %v8144, %v8176
        %v8209 = vadd.f32 %v8145, %v8177
        %v8210 = vadd.f32 %v8146, %v8178
        %v8211 = vadd.f32 %v8147, %v8179
        %v8212 = vadd.f32 %v8148, %v8180
        %v8213 = vadd.f32 %v8149, %v8181
        %v8214 = vadd.f32 %v8150, %v8182
        %v8215 = vadd.f32 %v8151, %v8183
        %v8216 = vadd.f32 %v8152, %v8184
        %v8217 = vadd.f32 %v8153, %v8185
        %v8218 = vadd.f32 %v8154, %v8186
        %v8219 = vadd.f32 %v8155, %v8187
        %v8220 = vadd.f32 %v8156, %v8188
        %v8221 = vld [vmem:[%s168] sm:$0xff]
        %v8222 = vld [vmem:[%s168 + $0x8] sm:$0xff]
        %v8223 = vld [vmem:[%s168 + $0x10] sm:$0xff]
        %v8224 = vld [vmem:[%s168 + $0x18] sm:$0xff]
        %v8225 = vld [vmem:[%s168 + $0x20] sm:$0xff]
        %v8226 = vld [vmem:[%s168 + $0x28] sm:$0xff]
        %v8227 = vld [vmem:[%s168 + $0x30] sm:$0xff]
        %v8228 = vld [vmem:[%s168 + $0x38] sm:$0xff]
        %v8229 = vld [vmem:[%s168 + $0x40] sm:$0xff]
        %v8230 = vld [vmem:[%s168 + $0x48] sm:$0xff]
        %v8231 = vld [vmem:[%s168 + $0x50] sm:$0xff]
        %v8232 = vld [vmem:[%s168 + $0x58] sm:$0xff]
        %v8233 = vld [vmem:[%s168 + $0x60] sm:$0xff]
        %v8234 = vld [vmem:[%s168 + $0x68] sm:$0xff]
        %v8235 = vld [vmem:[%s168 + $0x70] sm:$0xff]
        %v8236 = vld [vmem:[%s168 + $0x78] sm:$0xff]
        %v8237 = vld [vmem:[%s168 + $0x80] sm:$0xff]
        %v8238 = vld [vmem:[%s168 + $0x88] sm:$0xff]
        %v8239 = vld [vmem:[%s168 + $0x90] sm:$0xff]
        %v8240 = vld [vmem:[%s168 + $0x98] sm:$0xff]
        %v8241 = vld [vmem:[%s168 + $0xa0] sm:$0xff]
        %v8242 = vld [vmem:[%s168 + $0xa8] sm:$0xff]
        %v8243 = vld [vmem:[%s168 + $0xb0] sm:$0xff]
        %v8244 = vld [vmem:[%s168 + $0xb8] sm:$0xff]
        %v8245 = vld [vmem:[%s168 + $0xc0] sm:$0xff]
        %v8246 = vld [vmem:[%s168 + $0xc8] sm:$0xff]
        %v8247 = vld [vmem:[%s168 + $0xd0] sm:$0xff]
        %v8248 = vld [vmem:[%s168 + $0xd8] sm:$0xff]
        %v8249 = vld [vmem:[%s168 + $0xe0] sm:$0xff]
        %v8250 = vld [vmem:[%s168 + $0xe8] sm:$0xff]
        %v8251 = vld [vmem:[%s168 + $0xf0] sm:$0xff]
        %v8252 = vld [vmem:[%s168 + $0xf8] sm:$0xff]
        %v8253 = vadd.f32 %v8189, %v8221
        %v8254 = vadd.f32 %v8190, %v8222
        %v8255 = vadd.f32 %v8191, %v8223
        %v8256 = vadd.f32 %v8192, %v8224
        %v8257 = vadd.f32 %v8193, %v8225
        %v8258 = vadd.f32 %v8194, %v8226
        %v8259 = vadd.f32 %v8195, %v8227
        %v8260 = vadd.f32 %v8196, %v8228
        %v8261 = vadd.f32 %v8197, %v8229
        %v8262 = vadd.f32 %v8198, %v8230
        %v8263 = vadd.f32 %v8199, %v8231
        %v8264 = vadd.f32 %v8200, %v8232
        %v8265 = vadd.f32 %v8201, %v8233
        %v8266 = vadd.f32 %v8202, %v8234
        %v8267 = vadd.f32 %v8203, %v8235
        %v8268 = vadd.f32 %v8204, %v8236
        %v8269 = vadd.f32 %v8205, %v8237
        %v8270 = vadd.f32 %v8206, %v8238
        %v8271 = vadd.f32 %v8207, %v8239
        %v8272 = vadd.f32 %v8208, %v8240
        %v8273 = vadd.f32 %v8209, %v8241
        %v8274 = vadd.f32 %v8210, %v8242
        %v8275 = vadd.f32 %v8211, %v8243
        %v8276 = vadd.f32 %v8212, %v8244
        %v8277 = vadd.f32 %v8213, %v8245
        %v8278 = vadd.f32 %v8214, %v8246
        %v8279 = vadd.f32 %v8215, %v8247
        %v8280 = vadd.f32 %v8216, %v8248
        %v8281 = vadd.f32 %v8217, %v8249
        %v8282 = vadd.f32 %v8218, %v8250
        %v8283 = vadd.f32 %v8219, %v8251
        %v8284 = vadd.f32 %v8220, %v8252
        %8285 = vst.msk [vmem:[%s163] sm:$0xff] %vm170, %v8253
        %8286 = vst.msk [vmem:[%s163 + $0x8] sm:$0xff] %vm170, %v8254
        %8287 = vst.msk [vmem:[%s163 + $0x10] sm:$0xff] %vm170, %v8255
        %8288 = vst.msk [vmem:[%s163 + $0x18] sm:$0xff] %vm170, %v8256
        %8289 = vst.msk [vmem:[%s163 + $0x20] sm:$0xff] %vm170, %v8257
        %8290 = vst.msk [vmem:[%s163 + $0x28] sm:$0xff] %vm170, %v8258
        %8291 = vst.msk [vmem:[%s163 + $0x30] sm:$0xff] %vm170, %v8259
        %8292 = vst.msk [vmem:[%s163 + $0x38] sm:$0xff] %vm170, %v8260
        %8293 = vst.msk [vmem:[%s163 + $0x40] sm:$0xff] %vm170, %v8261
        %8294 = vst.msk [vmem:[%s163 + $0x48] sm:$0xff] %vm170, %v8262
        %8295 = vst.msk [vmem:[%s163 + $0x50] sm:$0xff] %vm170, %v8263
        %8296 = vst.msk [vmem:[%s163 + $0x58] sm:$0xff] %vm170, %v8264
        %8297 = vst.msk [vmem:[%s163 + $0x60] sm:$0xff] %vm170, %v8265
        %8298 = vst.msk [vmem:[%s163 + $0x68] sm:$0xff] %vm170, %v8266
        %8299 = vst.msk [vmem:[%s163 + $0x70] sm:$0xff] %vm170, %v8267
        %8300 = vst.msk [vmem:[%s163 + $0x78] sm:$0xff] %vm170, %v8268
        %8301 = vst.msk [vmem:[%s163 + $0x80] sm:$0xff] %vm170, %v8269
        %8302 = vst.msk [vmem:[%s163 + $0x88] sm:$0xff] %vm170, %v8270
        %8303 = vst.msk [vmem:[%s163 + $0x90] sm:$0xff] %vm170, %v8271
        %8304 = vst.msk [vmem:[%s163 + $0x98] sm:$0xff] %vm170, %v8272
        %8305 = vst.msk [vmem:[%s163 + $0xa0] sm:$0xff] %vm170, %v8273
        %8306 = vst.msk [vmem:[%s163 + $0xa8] sm:$0xff] %vm170, %v8274
        %8307 = vst.msk [vmem:[%s163 + $0xb0] sm:$0xff] %vm170, %v8275
        %8308 = vst.msk [vmem:[%s163 + $0xb8] sm:$0xff] %vm170, %v8276
        %8309 = vst.msk [vmem:[%s163 + $0xc0] sm:$0xff] %vm170, %v8277
        %8310 = vst.msk [vmem:[%s163 + $0xc8] sm:$0xff] %vm170, %v8278
        %8311 = vst.msk [vmem:[%s163 + $0xd0] sm:$0xff] %vm170, %v8279
        %8312 = vst.msk [vmem:[%s163 + $0xd8] sm:$0xff] %vm170, %v8280
        %8313 = vst.msk [vmem:[%s163 + $0xe0] sm:$0xff] %vm170, %v8281
        %8314 = vst.msk [vmem:[%s163 + $0xe8] sm:$0xff] %vm170, %v8282
        %8315 = vst.msk [vmem:[%s163 + $0xf0] sm:$0xff] %vm170, %v8283
        %8316 = vst.msk [vmem:[%s163 + $0xf8] sm:$0xff] %vm170, %v8284
        %s8317 = sand.u32 %s93, 1
        %s8318 = scalar_lea.sflag [#allocation4], %s8317
        %s8319 = sand.u32 %s93, 1
        %s8320 = smul.addr %s8319, 256
        %s8321 = scalar_lea.vmem [#allocation3], %s8320
        // Predicated region
        $region33: #{ferb_forward.1} parent=31 // pred_check
          %p8322 = pneg %p103
        $region34: #{ferb_forward.1} parent=31 // pred_check_branch
          %8324 = sbr.rel (%p8322) target = $region36
        $region35: #{ferb_forward.1} parent=31 // pred_region
          %8326 = vsyncadd %s8318, 0
          %s8327 = smul.addr %s17, 32
          %s8328 = smul.addr %s8327, 8
          %s8329 = scalar_lea.hbm %s3, %s8328
          %s8330 = sshll.u32 %s8321, 4
          %s8331 = int_to_ptr.vmem [resolvable:$true] %s8330
          %s8332 = sshll.u32 %s8329, 4
          %s8333 = int_to_ptr.hbm [resolvable:$true] %s8332
          %8338 = dma.vmem_to_hbm [thread:$0]  %s8331, 4096, %s8333, %s8318, 128, 128, 8
        $region36: #{ferb_forward.1} parent=31 // pred_fallthru
          _
      $region32: #{ferb_forward.1} parent=5 // pred_fallthru
        _
      %p8339 = scmp.le.s32.totalorder 2, %s12
      // Predicated region
      $region37: #{ferb_forward.1} parent=5 // pred_check
        %p8340 = pneg %p8339
      $region38: #{ferb_forward.1} parent=5 // pred_check_branch
        %8342 = sbr.rel (%p8340) target = $region40
      $region39: #{ferb_forward.1} parent=5 // pred_region
        %s8343 = ssub.s32 %s12, 2
        // Predicated region
        $region41: #{ferb_forward.1} parent=39 // pred_check
          %p8344 = pneg %p109
        $region42: #{ferb_forward.1} parent=39 // pred_check_branch
          %8346 = sbr.rel (%p8344) target = $region44
        $region43: #{ferb_forward.1} parent=39 // pred_region
          %s8347 = sand.u32 %s94, 1
          %s8348 = scalar_lea.sflag [#allocation4], %s8347
          %s8349 = sand.u32 %s94, 1
          %s8350 = smul.addr %s8349, 256
          %s8351 = scalar_lea.vmem [#allocation3], %s8350
          %8353 = dma.done %s8348, 4096
        $region44: #{ferb_forward.1} parent=39 // pred_fallthru
          _
      $region40: #{ferb_forward.1} parent=5 // pred_fallthru
        _
    $region6: #{ferb_forward.1} parent=1 // loop_footer
      %s16 = sadd.s32 1, %s12
    $region7: #{ferb_forward.1} parent=1 // loop_footer_branch
      %11 = sbr.rel target = $region3
    $region8: #{ferb_forward.1} parent=1 // loop_exit
      _
    %8354 = vsyncpa [#allocation4], 1
    %s8355 = scalar_lea.sflag [#allocation4], 1
    %8356 = vsyncpa %s8355, 1

</llo_original>
